<compile_context>
chip_gen: v7x
topology: tpu7x:2x2x1
jax: 0.10.0
libtpu: 0.0.40
codegen_flags: <defaults>
</compile_context>

<pallas_src>
import functools

import jax
import jax.numpy as jnp
from jax import lax
from jax.experimental import pallas as pl
from jax.experimental.pallas import tpu as pltpu

C_IN = 3            # DIPModel input channels
C_MID = 64          # hidden channels
C_OUT = 3           # output channels
C_OUT_PAD = 8       # conv2 accumulator rows (C_OUT padded to a sublane multiple)
K1 = 9 * C_IN       # 27: conv1 im2col contraction size (row index = tap*3 + channel)

_PRECISION = jax.lax.Precision.HIGHEST   # f32 MXU path; see header comment.


def _dip_fused_kernel(x_ref, w1_ref, b1_ref, w2_ref, b2_ref, o_ref,
                      p1_ref, h_ref, *, TH, W, R):
    """One (batch, row-block) tile per grid step.

    x_ref : (1, 1, 3, (TH+4)*Wp + 2)  input slab: TH output rows + 2 halo rows each
                                      side, width padded to Wp=W+2, +1 zero element at
                                      both flat ends so every tap is a static slice.
    w1_ref: (64, 27)                  conv1 weights, K = tap*3 + channel
    b1_ref: (64, 1)
    w2_ref: (9, 8, 64)                conv2 weights per tap, C_OUT padded 3->8
    b2_ref: (3, 1)
    o_ref : (1, 1, 3, TH*Wp)          output rows of this tile (padded width)
    p1_ref: (27, (TH+2)*Wp)     f32   VMEM scratch: conv1 im2col patches
    h_ref : (64, (TH+2)*Wp + 2) f32   VMEM scratch: ReLU hidden (+1 halo row each side;
                                      never round-trips to HBM)
    """
    Wp = W + 2
    L2 = (TH + 2) * Wp          # hidden extent: TH rows + 1 halo row each side
    Lo = TH * Wp                # output extent
    r = pl.program_id(1)

    # ---- conv1: K=27 im2col (pure static slices of the slab) + one MXU matmul ----
    for t in range(9):
        dy, dx = t // 3 - 1, t % 3 - 1
        off = (1 + dy) * Wp + dx + 1          # +1 for the slab's leading zero element
        p1_ref[3 * t:3 * t + 3, :] = x_ref[0, 0, :, off:off + L2]

    # Single column mask, computed once per step at (1, L2).  It zeroes the two padded
    # columns of every hidden row, which is exactly conv2's zero column padding.
    col = lax.broadcasted_iota(jnp.int32, (1, L2), 1) % Wp
    col_mask = ((col != 0) & (col != Wp - 1)).astype(jnp.float32)

    h = jnp.dot(w1_ref[...], p1_ref[...],
                preferred_element_type=jnp.float32, precision=_PRECISION)
    h_ref[:, 1:1 + L2] = jnp.maximum(h + b1_ref[...], 0.0) * col_mask
    zcol = jnp.zeros((C_MID, 1), jnp.float32)
    h_ref[:, 0:1] = zcol                      # corner elements only ever feed padded
    h_ref[:, 1 + L2:2 + L2] = zcol            # output columns; keep them 0 (no NaN)

    # Hidden halo rows that fall outside the image are conv2's zero row padding.
    @pl.when(r == 0)
    def _():
        h_ref[:, 1:1 + Wp] = jnp.zeros((C_MID, Wp), jnp.float32)

    @pl.when(r == R - 1)
    def _():
        h_ref[:, 1 + (TH + 1) * Wp:1 + L2] = jnp.zeros((C_MID, Wp), jnp.float32)

    # ---- conv2: 9 tap-wise accumulated matmuls reading h_ref slices directly ------
    acc = None
    for t in range(9):
        dy, dx = t // 3 - 1, t % 3 - 1
        s = (1 + dy) * Wp + dx + 1
        prod = jnp.dot(w2_ref[t], h_ref[:, s:s + Lo],
                       preferred_element_type=jnp.float32, precision=_PRECISION)
        acc = prod if acc is None else acc + prod

    o_ref[0, 0] = jax.nn.sigmoid(acc[0:C_OUT, :] + b2_ref[...]).astype(o_ref.dtype)


def _pack_weights(params):
    """PyTorch OIHW conv params -> the layouts the kernel expects (done in-jit)."""
    # conv1: K index = (ky*3 + kx)*3 + c  (tap-major, channel-minor)
    w1 = jnp.transpose(params["w1"], (0, 2, 3, 1)).reshape(C_MID, K1)      # (64, 27)
    b1 = params["b1"].reshape(C_MID, 1)
    # conv2: per-tap (C_OUT_PAD, C_MID) blocks, output channels padded 3 -> 8
    w2 = jnp.transpose(params["w2"], (2, 3, 0, 1)).reshape(9, C_OUT, C_MID)
    w2 = jnp.pad(w2, ((0, 0), (0, C_OUT_PAD - C_OUT), (0, 0)))             # (9, 8, 64)
    b2 = params["b2"].reshape(C_OUT, 1)
    return w1, b1, w2, b2


def _choose_tile_rows(H, W):
    """Largest row-tile (divisor of H) that keeps per-step VMEM around a few MiB."""
    Wp = W + 2
    bytes_per_row = (32 + 2 * C_MID + 16) * Wp * 4       # p1 + hidden + temps per row
    budget = 12 * 1024 * 1024
    max_rows = max(1, budget // bytes_per_row)
    if H >= 16:
        max_rows = min(max_rows, H // 2)   # >=2 row tiles: feeds both v7x TCs at N=1
    th = 1
    for d in range(1, H + 1):
        if H % d == 0 and d <= max_rows:
            th = d
    return th


@jax.jit
def dip_model_forward(x_nchw, params):
    """Matches DIPModel.forward: NCHW in, NCHW out. Single fused Pallas call."""
    N, C, H, W = x_nchw.shape
    assert C == C_IN, x_nchw.shape
    TH = _choose_tile_rows(H, W)
    R = H // TH
    Wp = W + 2
    L4 = (TH + 4) * Wp
    L2 = (TH + 2) * Wp
    Lo = TH * Wp

    # Zero-pad: 2 rows top/bottom (boundary tiles read true zeros, interior tiles read
    # their real neighbours) and 1 column left/right (conv column padding).
    xp = jnp.pad(x_nchw, ((0, 0), (0, 0), (2, 2), (1, 1)))                 # (N,3,H+4,Wp)
    # Overlapping (TH+4)-row slabs per tile, flattened, +1 zero element at both ends so
    # every 3x3 tap inside the kernel is a plain static slice (no roll, no mask).
    rows = jnp.arange(R)[:, None] * TH + jnp.arange(TH + 4)[None, :]       # (R, TH+4)
    slabs = xp[:, :, rows, :].transpose(0, 2, 1, 3, 4).reshape(N, R, C_IN, L4)
    slabs = jnp.pad(slabs, ((0, 0), (0, 0), (0, 0), (1, 1)))               # (N,R,3,L4+2)

    w1, b1, w2, b2 = _pack_weights(params)

    # Explicit VMEM budget: scratch + double-buffered in/out blocks + matmul temps.
    est = 4 * (2 * C_IN * (L4 + 2) + 2 * C_OUT * Lo
               + 32 * L2 + C_MID * (L2 + 2)
               + C_MID * L2 + 3 * C_OUT_PAD * Lo
               + 2 * (C_MID * K1 + C_MID + 9 * C_OUT_PAD * C_MID + C_OUT))
    vmem_limit = int(min(64 << 20, max(32 << 20, 2 * est)))   # stay v7x-safe (64 MiB)

    kernel = functools.partial(_dip_fused_kernel, TH=TH, W=W, R=R)
    out = pl.pallas_call(
        kernel,
        out_shape=jax.ShapeDtypeStruct((N, R, C_OUT, Lo), x_nchw.dtype),
        grid=(N, R),
        in_specs=[
            pl.BlockSpec((1, 1, C_IN, L4 + 2), lambda n, r: (n, r, 0, 0)),
            pl.BlockSpec((C_MID, K1), lambda n, r: (0, 0)),          # weights resident
            pl.BlockSpec((C_MID, 1), lambda n, r: (0, 0)),
            pl.BlockSpec((9, C_OUT_PAD, C_MID), lambda n, r: (0, 0, 0)),
            pl.BlockSpec((C_OUT, 1), lambda n, r: (0, 0)),
        ],
        out_specs=pl.BlockSpec((1, 1, C_OUT, Lo), lambda n, r: (n, r, 0, 0)),
        scratch_shapes=[
            pltpu.VMEM((K1, L2), jnp.float32),            # conv1 im2col patches
            pltpu.VMEM((C_MID, L2 + 2), jnp.float32),     # ReLU hidden (+halo), VMEM-only
        ],
        compiler_params=pltpu.CompilerParams(
            dimension_semantics=("parallel", "parallel"),  # batch x row-blocks on 2 TCs
            vmem_limit_bytes=vmem_limit,
        ),
    )(slabs, w1, b1, w2, b2)

    out = out.reshape(N, R, C_OUT, TH, Wp).transpose(0, 2, 1, 3, 4)
    return out.reshape(N, C_OUT, H, Wp)[:, :, :, 1:1 + W]


def init_dip_params(key, dtype=jnp.float32):
    """PyTorch Conv2d default init (uniform +-1/sqrt(fan_in)), stored in OIHW layout."""
    k1, k2, k3, k4 = jax.random.split(key, 4)
    bound1 = 1.0 / (C_IN * 9) ** 0.5
    bound2 = 1.0 / (C_MID * 9) ** 0.5
    return {
        "w1": jax.random.uniform(k1, (C_MID, C_IN, 3, 3), dtype, -bound1, bound1),
        "b1": jax.random.uniform(k2, (C_MID,), dtype, -bound1, bound1),
        "w2": jax.random.uniform(k3, (C_OUT, C_MID, 3, 3), dtype, -bound2, bound2),
        "b2": jax.random.uniform(k4, (C_OUT,), dtype, -bound2, bound2),
    }


def _reference_forward(x_nchw, params):
    """Pure-JAX reference (XLA convs in NCHW/OIHW) for correctness checking."""
    def conv(x, w, b):
        y = lax.conv_general_dilated(
            x, w, window_strides=(1, 1), padding=((1, 1), (1, 1)),
            dimension_numbers=("NCHW", "OIHW", "NCHW"),
            precision=jax.lax.Precision.HIGHEST)
        return y + b[None, :, None, None]

    h = jnp.maximum(conv(x_nchw, params["w1"], params["b1"]), 0.0)
    return jax.nn.sigmoid(conv(h, params["w2"], params["b2"]))


if __name__ == "__main__":
    key = jax.random.PRNGKey(0)
    k_params, k_x = jax.random.split(key)
    params = init_dip_params(k_params)
    x = jax.random.normal(k_x, (2, 3, 16, 16), dtype=jnp.float32)   # NCHW like PyTorch

    out = jax.block_until_ready(dip_model_forward(x, params))
    assert out.shape == (2, 3, 16, 16), out.shape

    ref = jax.block_until_ready(_reference_forward(x, params))
    max_err = float(jnp.max(jnp.abs(out - ref)))
    assert jnp.allclose(out, ref, rtol=1e-4, atol=1e-4), max_err

    print("KERNEL_OK")
</pallas_src>

<mosaic_0001>
module attributes {stable_mosaic.version = 11 : i64} {
  func.func @_dip_fused_kernel(%arg0: i32, %arg1: i32, %arg2: memref<1x1x3x218xf32, #tpu.memory_space<vmem>>, %arg3: memref<64x27xf32, #tpu.memory_space<vmem>>, %arg4: memref<64x1xf32, #tpu.memory_space<vmem>>, %arg5: memref<9x8x64xf32, #tpu.memory_space<vmem>>, %arg6: memref<3x1xf32, #tpu.memory_space<vmem>>, %arg7: memref<1x1x3x144xf32, #tpu.memory_space<vmem>>, %arg8: memref<27x180xf32, #tpu.memory_space<vmem>>, %arg9: memref<64x182xf32, #tpu.memory_space<vmem>>) attributes {dimension_semantics = [#tpu.dimension_semantics<parallel>, #tpu.dimension_semantics<parallel>], iteration_bounds = array<i64: 2, 2>, scalar_prefetch = 0 : i64, scratch_operands = 2 : i64, tpu.core_type = #tpu.core_type<tc>, window_params = [{transform_indices = @transform_0, window_bounds = array<i64: 1, 1, 3, 218>}, {pipeline_mode = #tpu.pipeline_mode<synchronous>, transform_indices = @transform_1, window_bounds = array<i64: 64, 27>}, {pipeline_mode = #tpu.pipeline_mode<synchronous>, transform_indices = @transform_2, window_bounds = array<i64: 64, 1>}, {pipeline_mode = #tpu.pipeline_mode<synchronous>, transform_indices = @transform_3, window_bounds = array<i64: 9, 8, 64>}, {pipeline_mode = #tpu.pipeline_mode<synchronous>, transform_indices = @transform_4, window_bounds = array<i64: 3, 1>}, {transform_indices = @transform_5, window_bounds = array<i64: 1, 1, 3, 144>}]} {
    %c0 = arith.constant 0 : index
    %c0_0 = arith.constant 0 : index
    %c0_1 = arith.constant 0 : index
    %c0_2 = arith.constant 0 : index
    %0 = vector.load %arg2[%c0, %c0_0, %c0_1, %c0_2] : memref<1x1x3x218xf32, #tpu.memory_space<vmem>>, vector<1x1x3x180xf32>
    %1 = vector.shape_cast %0 : vector<1x1x3x180xf32> to vector<3x180xf32>
    %c0_3 = arith.constant 0 : index
    %c0_4 = arith.constant 0 : index
    %2 = vector.load %arg8[%c0_3, %c0_4] : memref<27x180xf32, #tpu.memory_space<vmem>>, vector<3x180xf32>
    tpu.vector_store %arg8[%c0_3, %c0_4], %1 {strides = array<i32>} : memref<27x180xf32, #tpu.memory_space<vmem>>, vector<3x180xf32>,
    %c0_5 = arith.constant 0 : index
    %c0_6 = arith.constant 0 : index
    %c0_7 = arith.constant 0 : index
    %c1 = arith.constant 1 : index
    %3 = vector.load %arg2[%c0_5, %c0_6, %c0_7, %c1] : memref<1x1x3x218xf32, #tpu.memory_space<vmem>>, vector<1x1x3x180xf32>
    %4 = vector.shape_cast %3 : vector<1x1x3x180xf32> to vector<3x180xf32>
    %c3 = arith.constant 3 : index
    %c0_8 = arith.constant 0 : index
    %5 = vector.load %arg8[%c3, %c0_8] : memref<27x180xf32, #tpu.memory_space<vmem>>, vector<3x180xf32>
    tpu.vector_store %arg8[%c3, %c0_8], %4 {strides = array<i32>} : memref<27x180xf32, #tpu.memory_space<vmem>>, vector<3x180xf32>,
    %c0_9 = arith.constant 0 : index
    %c0_10 = arith.constant 0 : index
    %c0_11 = arith.constant 0 : index
    %c2 = arith.constant 2 : index
    %6 = vector.load %arg2[%c0_9, %c0_10, %c0_11, %c2] : memref<1x1x3x218xf32, #tpu.memory_space<vmem>>, vector<1x1x3x180xf32>
    %7 = vector.shape_cast %6 : vector<1x1x3x180xf32> to vector<3x180xf32>
    %c6 = arith.constant 6 : index
    %c0_12 = arith.constant 0 : index
    %8 = vector.load %arg8[%c6, %c0_12] : memref<27x180xf32, #tpu.memory_space<vmem>>, vector<3x180xf32>
    tpu.vector_store %arg8[%c6, %c0_12], %7 {strides = array<i32>} : memref<27x180xf32, #tpu.memory_space<vmem>>, vector<3x180xf32>,
    %c0_13 = arith.constant 0 : index
    %c0_14 = arith.constant 0 : index
    %c0_15 = arith.constant 0 : index
    %c18 = arith.constant 18 : index
    %9 = vector.load %arg2[%c0_13, %c0_14, %c0_15, %c18] : memref<1x1x3x218xf32, #tpu.memory_space<vmem>>, vector<1x1x3x180xf32>
    %10 = vector.shape_cast %9 : vector<1x1x3x180xf32> to vector<3x180xf32>
    %c9 = arith.constant 9 : index
    %c0_16 = arith.constant 0 : index
    %11 = vector.load %arg8[%c9, %c0_16] : memref<27x180xf32, #tpu.memory_space<vmem>>, vector<3x180xf32>
    tpu.vector_store %arg8[%c9, %c0_16], %10 {strides = array<i32>} : memref<27x180xf32, #tpu.memory_space<vmem>>, vector<3x180xf32>,
    %c0_17 = arith.constant 0 : index
    %c0_18 = arith.constant 0 : index
    %c0_19 = arith.constant 0 : index
    %c19 = arith.constant 19 : index
    %12 = vector.load %arg2[%c0_17, %c0_18, %c0_19, %c19] : memref<1x1x3x218xf32, #tpu.memory_space<vmem>>, vector<1x1x3x180xf32>
    %13 = vector.shape_cast %12 : vector<1x1x3x180xf32> to vector<3x180xf32>
    %c12 = arith.constant 12 : index
    %c0_20 = arith.constant 0 : index
    %14 = vector.load %arg8[%c12, %c0_20] : memref<27x180xf32, #tpu.memory_space<vmem>>, vector<3x180xf32>
    tpu.vector_store %arg8[%c12, %c0_20], %13 {strides = array<i32>} : memref<27x180xf32, #tpu.memory_space<vmem>>, vector<3x180xf32>,
    %c0_21 = arith.constant 0 : index
    %c0_22 = arith.constant 0 : index
    %c0_23 = arith.constant 0 : index
    %c20 = arith.constant 20 : index
    %15 = vector.load %arg2[%c0_21, %c0_22, %c0_23, %c20] : memref<1x1x3x218xf32, #tpu.memory_space<vmem>>, vector<1x1x3x180xf32>
    %16 = vector.shape_cast %15 : vector<1x1x3x180xf32> to vector<3x180xf32>
    %c15 = arith.constant 15 : index
    %c0_24 = arith.constant 0 : index
    %17 = vector.load %arg8[%c15, %c0_24] : memref<27x180xf32, #tpu.memory_space<vmem>>, vector<3x180xf32>
    tpu.vector_store %arg8[%c15, %c0_24], %16 {strides = array<i32>} : memref<27x180xf32, #tpu.memory_space<vmem>>, vector<3x180xf32>,
    %c0_25 = arith.constant 0 : index
    %c0_26 = arith.constant 0 : index
    %c0_27 = arith.constant 0 : index
    %c36 = arith.constant 36 : index
    %18 = vector.load %arg2[%c0_25, %c0_26, %c0_27, %c36] : memref<1x1x3x218xf32, #tpu.memory_space<vmem>>, vector<1x1x3x180xf32>
    %19 = vector.shape_cast %18 : vector<1x1x3x180xf32> to vector<3x180xf32>
    %c18_28 = arith.constant 18 : index
    %c0_29 = arith.constant 0 : index
    %20 = vector.load %arg8[%c18_28, %c0_29] : memref<27x180xf32, #tpu.memory_space<vmem>>, vector<3x180xf32>
    tpu.vector_store %arg8[%c18_28, %c0_29], %19 {strides = array<i32>} : memref<27x180xf32, #tpu.memory_space<vmem>>, vector<3x180xf32>,
    %c0_30 = arith.constant 0 : index
    %c0_31 = arith.constant 0 : index
    %c0_32 = arith.constant 0 : index
    %c37 = arith.constant 37 : index
    %21 = vector.load %arg2[%c0_30, %c0_31, %c0_32, %c37] : memref<1x1x3x218xf32, #tpu.memory_space<vmem>>, vector<1x1x3x180xf32>
    %22 = vector.shape_cast %21 : vector<1x1x3x180xf32> to vector<3x180xf32>
    %c21 = arith.constant 21 : index
    %c0_33 = arith.constant 0 : index
    %23 = vector.load %arg8[%c21, %c0_33] : memref<27x180xf32, #tpu.memory_space<vmem>>, vector<3x180xf32>
    tpu.vector_store %arg8[%c21, %c0_33], %22 {strides = array<i32>} : memref<27x180xf32, #tpu.memory_space<vmem>>, vector<3x180xf32>,
    %c0_34 = arith.constant 0 : index
    %c0_35 = arith.constant 0 : index
    %c0_36 = arith.constant 0 : index
    %c38 = arith.constant 38 : index
    %24 = vector.load %arg2[%c0_34, %c0_35, %c0_36, %c38] : memref<1x1x3x218xf32, #tpu.memory_space<vmem>>, vector<1x1x3x180xf32>
    %25 = vector.shape_cast %24 : vector<1x1x3x180xf32> to vector<3x180xf32>
    %c24 = arith.constant 24 : index
    %c0_37 = arith.constant 0 : index
    %26 = vector.load %arg8[%c24, %c0_37] : memref<27x180xf32, #tpu.memory_space<vmem>>, vector<3x180xf32>
    tpu.vector_store %arg8[%c24, %c0_37], %25 {strides = array<i32>} : memref<27x180xf32, #tpu.memory_space<vmem>>, vector<3x180xf32>,
    %27 = tpu.iota {dimensions = array<i32: 1>} : vector<1x180xi32>
    %c18_i32 = arith.constant 18 : i32
    %c0_i32 = arith.constant 0 : i32
    %28 = arith.cmpi eq, %c18_i32, %c0_i32 : i32
    %c1_i32 = arith.constant 1 : i32
    %29 = arith.select %28, %c1_i32, %c18_i32 : i32
    %30 = vector.broadcast %29 : i32 to vector<1x180xi32>
    %31 = arith.remsi %27, %30 : vector<1x180xi32>
    %c0_i32_38 = arith.constant 0 : i32
    %32 = vector.broadcast %c0_i32_38 : i32 to vector<1x180xi32>
    %33 = arith.cmpi ne, %31, %32 : vector<1x180xi32>
    %c0_i32_39 = arith.constant 0 : i32
    %34 = vector.broadcast %c0_i32_39 : i32 to vector<1x180xi32>
    %35 = arith.cmpi slt, %31, %34 : vector<1x180xi32>
    %c0_i32_40 = arith.constant 0 : i32
    %36 = arith.cmpi slt, %29, %c0_i32_40 : i32
    %37 = vector.broadcast %36 : i1 to vector<1x180xi1>
    %38 = vector.broadcast %37 : vector<1x180xi1> to vector<1x180xi1>
    %39 = arith.xori %35, %38 : vector<1x180xi1>
    %40 = arith.andi %39, %33 : vector<1x180xi1>
    %41 = vector.broadcast %29 : i32 to vector<1x180xi32>
    %42 = arith.addi %31, %41 : vector<1x180xi32>
    %43 = arith.select %40, %42, %31 : vector<1x180xi1>, vector<1x180xi32>
    %c0_i32_41 = arith.constant 0 : i32
    %44 = vector.broadcast %c0_i32_41 : i32 to vector<1x180xi32>
    %45 = arith.cmpi ne, %43, %44 : vector<1x180xi32>
    %c17_i32 = arith.constant 17 : i32
    %46 = vector.broadcast %c17_i32 : i32 to vector<1x180xi32>
    %47 = arith.cmpi ne, %43, %46 : vector<1x180xi32>
    %48 = arith.andi %45, %47 : vector<1x180xi1>
    %49 = arith.extui %48 : vector<1x180xi1> to vector<1x180xi32>
    %50 = arith.sitofp %49 : vector<1x180xi32> to vector<1x180xf32>
    %c0_42 = arith.constant 0 : index
    %c0_43 = arith.constant 0 : index
    %51 = vector.load %arg3[%c0_42, %c0_43] : memref<64x27xf32, #tpu.memory_space<vmem>>, vector<64x27xf32>
    %c0_44 = arith.constant 0 : index
    %c0_45 = arith.constant 0 : index
    %52 = vector.load %arg8[%c0_44, %c0_45] : memref<27x180xf32, #tpu.memory_space<vmem>>, vector<27x180xf32>
    %cst = arith.constant dense<0.000000e+00> : vector<64x180xf32>
    %53 = tpu.matmul %51, %52, %cst {dimension_numbers = #tpu.dot_dimension_numbers<[1], [0], [0], [1], [0, 0, 1, 1], [], []>, precision = #tpu.contract_precision<fp32>} : vector<64x27xf32>, vector<27x180xf32>, vector<64x180xf32> -> vector<64x180xf32>
    %c0_46 = arith.constant 0 : index
    %c0_47 = arith.constant 0 : index
    %54 = vector.load %arg4[%c0_46, %c0_47] : memref<64x1xf32, #tpu.memory_space<vmem>>, vector<64x1xf32>
    %55 = vector.broadcast %54 : vector<64x1xf32> to vector<64x180xf32>
    %56 = arith.addf %53, %55 : vector<64x180xf32>
    %cst_48 = arith.constant 0.000000e+00 : f32
    %57 = vector.broadcast %cst_48 : f32 to vector<64x180xf32>
    %58 = arith.maximumf %56, %57 : vector<64x180xf32>
    %59 = vector.broadcast %50 : vector<1x180xf32> to vector<64x180xf32>
    %60 = arith.mulf %58, %59 : vector<64x180xf32>
    %c0_49 = arith.constant 0 : index
    %c1_50 = arith.constant 1 : index
    %61 = vector.load %arg9[%c0_49, %c1_50] : memref<64x182xf32, #tpu.memory_space<vmem>>, vector<64x180xf32>
    tpu.vector_store %arg9[%c0_49, %c1_50], %60 {strides = array<i32>} : memref<64x182xf32, #tpu.memory_space<vmem>>, vector<64x180xf32>,
    %cst_51 = arith.constant 0.000000e+00 : f32
    %62 = vector.broadcast %cst_51 : f32 to vector<64x1xf32>
    %c0_52 = arith.constant 0 : index
    %c0_53 = arith.constant 0 : index
    %63 = vector.load %arg9[%c0_52, %c0_53] : memref<64x182xf32, #tpu.memory_space<vmem>>, vector<64x1xf32>
    tpu.vector_store %arg9[%c0_52, %c0_53], %62 {strides = array<i32>} : memref<64x182xf32, #tpu.memory_space<vmem>>, vector<64x1xf32>,
    %c0_54 = arith.constant 0 : index
    %c181 = arith.constant 181 : index
    %64 = vector.load %arg9[%c0_54, %c181] : memref<64x182xf32, #tpu.memory_space<vmem>>, vector<64x1xf32>
    tpu.vector_store %arg9[%c0_54, %c181], %62 {strides = array<i32>} : memref<64x182xf32, #tpu.memory_space<vmem>>, vector<64x1xf32>,
    %c0_i32_55 = arith.constant 0 : i32
    %65 = arith.cmpi eq, %arg1, %c0_i32_55 : i32
    %66 = arith.extui %65 : i1 to i32
    %c0_i32_56 = arith.constant 0 : i32
    %67 = arith.cmpi ne, %66, %c0_i32_56 : i32
    scf.if %67 {
      %cst_116 = arith.constant 0.000000e+00 : f32
      %127 = vector.broadcast %cst_116 : f32 to vector<64x18xf32>
      %c0_117 = arith.constant 0 : index
      %c1_118 = arith.constant 1 : index
      %128 = vector.load %arg9[%c0_117, %c1_118] : memref<64x182xf32, #tpu.memory_space<vmem>>, vector<64x18xf32>
      tpu.vector_store %arg9[%c0_117, %c1_118], %127 {strides = array<i32>} : memref<64x182xf32, #tpu.memory_space<vmem>>, vector<64x18xf32>,
    } else {
    }
    %c1_i32_57 = arith.constant 1 : i32
    %68 = arith.cmpi eq, %arg1, %c1_i32_57 : i32
    %69 = arith.extui %68 : i1 to i32
    %c0_i32_58 = arith.constant 0 : i32
    %70 = arith.cmpi ne, %69, %c0_i32_58 : i32
    scf.if %70 {
      %cst_116 = arith.constant 0.000000e+00 : f32
      %127 = vector.broadcast %cst_116 : f32 to vector<64x18xf32>
      %c0_117 = arith.constant 0 : index
      %c163 = arith.constant 163 : index
      %128 = vector.load %arg9[%c0_117, %c163] : memref<64x182xf32, #tpu.memory_space<vmem>>, vector<64x18xf32>
      tpu.vector_store %arg9[%c0_117, %c163], %127 {strides = array<i32>} : memref<64x182xf32, #tpu.memory_space<vmem>>, vector<64x18xf32>,
    } else {
    }
    %c0_59 = arith.constant 0 : index
    %c0_60 = arith.constant 0 : index
    %c0_61 = arith.constant 0 : index
    %71 = vector.load %arg5[%c0_59, %c0_60, %c0_61] : memref<9x8x64xf32, #tpu.memory_space<vmem>>, vector<1x8x64xf32>
    %72 = vector.shape_cast %71 : vector<1x8x64xf32> to vector<8x64xf32>
    %c0_62 = arith.constant 0 : index
    %c0_63 = arith.constant 0 : index
    %73 = vector.load %arg9[%c0_62, %c0_63] : memref<64x182xf32, #tpu.memory_space<vmem>>, vector<64x144xf32>
    %cst_64 = arith.constant dense<0.000000e+00> : vector<8x144xf32>
    %74 = tpu.matmul %72, %73, %cst_64 {dimension_numbers = #tpu.dot_dimension_numbers<[1], [0], [0], [1], [0, 0, 1, 1], [], []>, precision = #tpu.contract_precision<fp32>} : vector<8x64xf32>, vector<64x144xf32>, vector<8x144xf32> -> vector<8x144xf32>
    %c1_65 = arith.constant 1 : index
    %c0_66 = arith.constant 0 : index
    %c0_67 = arith.constant 0 : index
    %75 = vector.load %arg5[%c1_65, %c0_66, %c0_67] : memref<9x8x64xf32, #tpu.memory_space<vmem>>, vector<1x8x64xf32>
    %76 = vector.shape_cast %75 : vector<1x8x64xf32> to vector<8x64xf32>
    %c0_68 = arith.constant 0 : index
    %c1_69 = arith.constant 1 : index
    %77 = vector.load %arg9[%c0_68, %c1_69] : memref<64x182xf32, #tpu.memory_space<vmem>>, vector<64x144xf32>
    %cst_70 = arith.constant dense<0.000000e+00> : vector<8x144xf32>
    %78 = tpu.matmul %76, %77, %cst_70 {dimension_numbers = #tpu.dot_dimension_numbers<[1], [0], [0], [1], [0, 0, 1, 1], [], []>, precision = #tpu.contract_precision<fp32>} : vector<8x64xf32>, vector<64x144xf32>, vector<8x144xf32> -> vector<8x144xf32>
    %79 = arith.addf %74, %78 : vector<8x144xf32>
    %c2_71 = arith.constant 2 : index
    %c0_72 = arith.constant 0 : index
    %c0_73 = arith.constant 0 : index
    %80 = vector.load %arg5[%c2_71, %c0_72, %c0_73] : memref<9x8x64xf32, #tpu.memory_space<vmem>>, vector<1x8x64xf32>
    %81 = vector.shape_cast %80 : vector<1x8x64xf32> to vector<8x64xf32>
    %c0_74 = arith.constant 0 : index
    %c2_75 = arith.constant 2 : index
    %82 = vector.load %arg9[%c0_74, %c2_75] : memref<64x182xf32, #tpu.memory_space<vmem>>, vector<64x144xf32>
    %cst_76 = arith.constant dense<0.000000e+00> : vector<8x144xf32>
    %83 = tpu.matmul %81, %82, %cst_76 {dimension_numbers = #tpu.dot_dimension_numbers<[1], [0], [0], [1], [0, 0, 1, 1], [], []>, precision = #tpu.contract_precision<fp32>} : vector<8x64xf32>, vector<64x144xf32>, vector<8x144xf32> -> vector<8x144xf32>
    %84 = arith.addf %79, %83 : vector<8x144xf32>
    %c3_77 = arith.constant 3 : index
    %c0_78 = arith.constant 0 : index
    %c0_79 = arith.constant 0 : index
    %85 = vector.load %arg5[%c3_77, %c0_78, %c0_79] : memref<9x8x64xf32, #tpu.memory_space<vmem>>, vector<1x8x64xf32>
    %86 = vector.shape_cast %85 : vector<1x8x64xf32> to vector<8x64xf32>
    %c0_80 = arith.constant 0 : index
    %c18_81 = arith.constant 18 : index
    %87 = vector.load %arg9[%c0_80, %c18_81] : memref<64x182xf32, #tpu.memory_space<vmem>>, vector<64x144xf32>
    %cst_82 = arith.constant dense<0.000000e+00> : vector<8x144xf32>
    %88 = tpu.matmul %86, %87, %cst_82 {dimension_numbers = #tpu.dot_dimension_numbers<[1], [0], [0], [1], [0, 0, 1, 1], [], []>, precision = #tpu.contract_precision<fp32>} : vector<8x64xf32>, vector<64x144xf32>, vector<8x144xf32> -> vector<8x144xf32>
    %89 = arith.addf %84, %88 : vector<8x144xf32>
    %c4 = arith.constant 4 : index
    %c0_83 = arith.constant 0 : index
    %c0_84 = arith.constant 0 : index
    %90 = vector.load %arg5[%c4, %c0_83, %c0_84] : memref<9x8x64xf32, #tpu.memory_space<vmem>>, vector<1x8x64xf32>
    %91 = vector.shape_cast %90 : vector<1x8x64xf32> to vector<8x64xf32>
    %c0_85 = arith.constant 0 : index
    %c19_86 = arith.constant 19 : index
    %92 = vector.load %arg9[%c0_85, %c19_86] : memref<64x182xf32, #tpu.memory_space<vmem>>, vector<64x144xf32>
    %cst_87 = arith.constant dense<0.000000e+00> : vector<8x144xf32>
    %93 = tpu.matmul %91, %92, %cst_87 {dimension_numbers = #tpu.dot_dimension_numbers<[1], [0], [0], [1], [0, 0, 1, 1], [], []>, precision = #tpu.contract_precision<fp32>} : vector<8x64xf32>, vector<64x144xf32>, vector<8x144xf32> -> vector<8x144xf32>
    %94 = arith.addf %89, %93 : vector<8x144xf32>
    %c5 = arith.constant 5 : index
    %c0_88 = arith.constant 0 : index
    %c0_89 = arith.constant 0 : index
    %95 = vector.load %arg5[%c5, %c0_88, %c0_89] : memref<9x8x64xf32, #tpu.memory_space<vmem>>, vector<1x8x64xf32>
    %96 = vector.shape_cast %95 : vector<1x8x64xf32> to vector<8x64xf32>
    %c0_90 = arith.constant 0 : index
    %c20_91 = arith.constant 20 : index
    %97 = vector.load %arg9[%c0_90, %c20_91] : memref<64x182xf32, #tpu.memory_space<vmem>>, vector<64x144xf32>
    %cst_92 = arith.constant dense<0.000000e+00> : vector<8x144xf32>
    %98 = tpu.matmul %96, %97, %cst_92 {dimension_numbers = #tpu.dot_dimension_numbers<[1], [0], [0], [1], [0, 0, 1, 1], [], []>, precision = #tpu.contract_precision<fp32>} : vector<8x64xf32>, vector<64x144xf32>, vector<8x144xf32> -> vector<8x144xf32>
    %99 = arith.addf %94, %98 : vector<8x144xf32>
    %c6_93 = arith.constant 6 : index
    %c0_94 = arith.constant 0 : index
    %c0_95 = arith.constant 0 : index
    %100 = vector.load %arg5[%c6_93, %c0_94, %c0_95] : memref<9x8x64xf32, #tpu.memory_space<vmem>>, vector<1x8x64xf32>
    %101 = vector.shape_cast %100 : vector<1x8x64xf32> to vector<8x64xf32>
    %c0_96 = arith.constant 0 : index
    %c36_97 = arith.constant 36 : index
    %102 = vector.load %arg9[%c0_96, %c36_97] : memref<64x182xf32, #tpu.memory_space<vmem>>, vector<64x144xf32>
    %cst_98 = arith.constant dense<0.000000e+00> : vector<8x144xf32>
    %103 = tpu.matmul %101, %102, %cst_98 {dimension_numbers = #tpu.dot_dimension_numbers<[1], [0], [0], [1], [0, 0, 1, 1], [], []>, precision = #tpu.contract_precision<fp32>} : vector<8x64xf32>, vector<64x144xf32>, vector<8x144xf32> -> vector<8x144xf32>
    %104 = arith.addf %99, %103 : vector<8x144xf32>
    %c7 = arith.constant 7 : index
    %c0_99 = arith.constant 0 : index
    %c0_100 = arith.constant 0 : index
    %105 = vector.load %arg5[%c7, %c0_99, %c0_100] : memref<9x8x64xf32, #tpu.memory_space<vmem>>, vector<1x8x64xf32>
    %106 = vector.shape_cast %105 : vector<1x8x64xf32> to vector<8x64xf32>
    %c0_101 = arith.constant 0 : index
    %c37_102 = arith.constant 37 : index
    %107 = vector.load %arg9[%c0_101, %c37_102] : memref<64x182xf32, #tpu.memory_space<vmem>>, vector<64x144xf32>
    %cst_103 = arith.constant dense<0.000000e+00> : vector<8x144xf32>
    %108 = tpu.matmul %106, %107, %cst_103 {dimension_numbers = #tpu.dot_dimension_numbers<[1], [0], [0], [1], [0, 0, 1, 1], [], []>, precision = #tpu.contract_precision<fp32>} : vector<8x64xf32>, vector<64x144xf32>, vector<8x144xf32> -> vector<8x144xf32>
    %109 = arith.addf %104, %108 : vector<8x144xf32>
    %c8 = arith.constant 8 : index
    %c0_104 = arith.constant 0 : index
    %c0_105 = arith.constant 0 : index
    %110 = vector.load %arg5[%c8, %c0_104, %c0_105] : memref<9x8x64xf32, #tpu.memory_space<vmem>>, vector<1x8x64xf32>
    %111 = vector.shape_cast %110 : vector<1x8x64xf32> to vector<8x64xf32>
    %c0_106 = arith.constant 0 : index
    %c38_107 = arith.constant 38 : index
    %112 = vector.load %arg9[%c0_106, %c38_107] : memref<64x182xf32, #tpu.memory_space<vmem>>, vector<64x144xf32>
    %cst_108 = arith.constant dense<0.000000e+00> : vector<8x144xf32>
    %113 = tpu.matmul %111, %112, %cst_108 {dimension_numbers = #tpu.dot_dimension_numbers<[1], [0], [0], [1], [0, 0, 1, 1], [], []>, precision = #tpu.contract_precision<fp32>} : vector<8x64xf32>, vector<64x144xf32>, vector<8x144xf32> -> vector<8x144xf32>
    %114 = arith.addf %109, %113 : vector<8x144xf32>
    %115 = vector.extract_strided_slice %114 {offsets = [0, 0], sizes = [3, 144], strides = [1, 1]} : vector<8x144xf32> to vector<3x144xf32>
    %c0_109 = arith.constant 0 : index
    %c0_110 = arith.constant 0 : index
    %116 = vector.load %arg6[%c0_109, %c0_110] : memref<3x1xf32, #tpu.memory_space<vmem>>, vector<3x1xf32>
    %117 = vector.broadcast %116 : vector<3x1xf32> to vector<3x144xf32>
    %118 = arith.addf %115, %117 : vector<3x144xf32>
    %119 = arith.negf %118 : vector<3x144xf32>
    %120 = math.exp %119 : vector<3x144xf32>
    %cst_111 = arith.constant 1.000000e+00 : f32
    %121 = vector.broadcast %cst_111 : f32 to vector<3x144xf32>
    %122 = arith.addf %121, %120 : vector<3x144xf32>
    %123 = arith.divf %121, %122 : vector<3x144xf32>
    %c0_112 = arith.constant 0 : index
    %c0_113 = arith.constant 0 : index
    %c0_114 = arith.constant 0 : index
    %c0_115 = arith.constant 0 : index
    %124 = vector.load %arg7[%c0_112, %c0_113, %c0_114, %c0_115] : memref<1x1x3x144xf32, #tpu.memory_space<vmem>>, vector<1x1x3x144xf32>
    %125 = vector.shape_cast %124 : vector<1x1x3x144xf32> to vector<3x144xf32>
    %126 = vector.shape_cast %123 : vector<3x144xf32> to vector<1x1x3x144xf32>
    tpu.vector_store %arg7[%c0_112, %c0_113, %c0_114, %c0_115], %126 {strides = array<i32>} : memref<1x1x3x144xf32, #tpu.memory_space<vmem>>, vector<1x1x3x144xf32>,
    return
  }
  func.func @transform_0(%arg0: i32, %arg1: i32) -> (i32, i32, i32, i32) {
    %c0_i32 = arith.constant 0 : i32
    %c0_i32_0 = arith.constant 0 : i32
    %c0_i32_1 = arith.constant 0 : i32
    return %arg0, %arg1, %c0_i32, %c0_i32_0 : i32, i32, i32, i32
  }
  func.func @transform_1(%arg0: i32, %arg1: i32) -> (i32, i32) {
    %c0_i32 = arith.constant 0 : i32
    %c0_i32_0 = arith.constant 0 : i32
    %c0_i32_1 = arith.constant 0 : i32
    return %c0_i32, %c0_i32_0 : i32, i32
  }
  func.func @transform_2(%arg0: i32, %arg1: i32) -> (i32, i32) {
    %c0_i32 = arith.constant 0 : i32
    %c0_i32_0 = arith.constant 0 : i32
    %c0_i32_1 = arith.constant 0 : i32
    return %c0_i32, %c0_i32_0 : i32, i32
  }
  func.func @transform_3(%arg0: i32, %arg1: i32) -> (i32, i32, i32) {
    %c0_i32 = arith.constant 0 : i32
    %c0_i32_0 = arith.constant 0 : i32
    %c0_i32_1 = arith.constant 0 : i32
    %c0_i32_2 = arith.constant 0 : i32
    return %c0_i32, %c0_i32_0, %c0_i32_1 : i32, i32, i32
  }
  func.func @transform_4(%arg0: i32, %arg1: i32) -> (i32, i32) {
    %c0_i32 = arith.constant 0 : i32
    %c0_i32_0 = arith.constant 0 : i32
    %c0_i32_1 = arith.constant 0 : i32
    return %c0_i32, %c0_i32_0 : i32, i32
  }
  func.func @transform_5(%arg0: i32, %arg1: i32) -> (i32, i32, i32, i32) {
    %c0_i32 = arith.constant 0 : i32
    %c0_i32_0 = arith.constant 0 : i32
    %c0_i32_1 = arith.constant 0 : i32
    return %arg0, %arg1, %c0_i32, %c0_i32_0 : i32, i32, i32, i32
  }
}

</mosaic_0001>

<llo_original>
// kernel: dip_model_forward.1
$region0: #{dip_model_forward.1}
  #allocation0 [shape = 'u32[]', space=smem, size = 0x4, offset = 0x4, fixed_abs, tag = 'smem constant byte address 0x4 - core index']
  #allocation1 [shape = 'u32[144,128]{1,0:T(1,128)}', space=vmem, size = 0x12000, scoped, tag = 'internal scratch']
  #allocation2 [shape = 'f32[27,180]{1,0:T(8,128)}', space=vmem, size = 0x8000, scoped, tag = 'scratch operand']
  #allocation3 [shape = 'f32[64,182]{1,0:T(8,128)}', space=vmem, size = 0x10000, scoped, tag = 'scratch operand']
  %s0 = inlined_call_operand.vmem [shape: f32[2,2,3,218], index: 0, kind: input, shape index: {}]
  %s1 = inlined_call_operand.vmem [shape: f32[64,27], index: 1, kind: input, shape index: {}]
  %s2 = inlined_call_operand.vmem [shape: f32[64,1], index: 2, kind: input, shape index: {}]
  %s3 = inlined_call_operand.vmem [shape: f32[9,8,64], index: 3, kind: input, shape index: {}]
  %s4 = inlined_call_operand.vmem [shape: f32[3,1], index: 4, kind: input, shape index: {}]
  %s5 = inlined_call_operand.vmem [shape: f32[2,2,3,144], index: 5, kind: output, shape index: {}]
  %s6 = sld [smem:[#allocation0]]
  $region61: #{dip_model_forward.1} parent=0
    _
  %s8 = ssub.s32 1, %s6
  %s9 = scalar_select 0, %s8, %s6
  loop: start=0, step=1, limit=6
  $region2: #{dip_model_forward.1} parent=0 // loop_pre_header
    _
  $region3: #{dip_model_forward.1} parent=0 // loop_header
    %s11 = sphi 0, %s15
    %p12 = scmp.ge.s32.totalorder %s11, 6
    %s18 = sphi 0, %s30
    %s19 = sphi 0, %s26
    %s20 = sphi 0, %s18
    %s21 = sphi 0, %s19
    %s22 = sphi 0, %s20
    %s23 = sphi 0, %s21
    %s35 = sphi 0, %s37
    %s38 = sphi 0, %s35
    %s39 = sphi 0, %s38
    %s55 = sphi 0, %s39
    %s59 = sphi 0, %s59
    %s61 = sphi 0, %s59
    %s62 = sphi 0, %s61
    %s76 = sphi 0, %s62
    %s80 = sphi 0, %s80
    %s82 = sphi 0, %s80
    %s83 = sphi 0, %s82
    %s97 = sphi 0, %s83
    %s101 = sphi 0, %s101
    %s103 = sphi 0, %s101
    %s104 = sphi 0, %s103
    %s118 = sphi 0, %s104
    %s122 = sphi 0, %s122
    %s124 = sphi 0, %s122
    %s125 = sphi 0, %s124
    %s139 = sphi 0, %s125
    %s147 = sphi 0, %s149
    %s150 = sphi 0, %s147
    %s151 = sphi 0, %s150
    %s167 = sphi 0, %s151
  $region4: #{dip_model_forward.1} parent=0 // loop_header_branch
    %14 = sbr.rel (%p12) target = $region8
  $region5: #{dip_model_forward.1} parent=0 // loop_body
    %s16 = ssub.s32 %s11, 1
    %s17 = ssub.s32 %s11, 2
    %s24 = sadd.s32 1, %s19
    %p25 = scmp.ge.s32.totalorder %s24, 2
    %s26 = scalar_select %p25, 0, %s24
    %s27 = sadd.s32 1, %s18
    %s28 = scalar_select %p25, %s27, %s18
    %p29 = scmp.ge.s32.totalorder %s28, 2
    %s30 = scalar_select %p29, 0, %s28
    %s31 = ssub.s32 %s18, %s30
    %s32 = ssub.s32 %s19, %s26
    %s33 = sor.u32 %s31, %s32
    %p34 = scmp.eq.s32.totalorder %s33, 0
    %s36 = sadd.s32 %s35, 1
    %s37 = scalar_select %p34, %s35, %s36
    %p40 = pneg %p34
    %p41 = scmp.eq.s32.totalorder %s11, 3
    %p42 = por %p40, %p41
    %p43 = scmp.ne.s32.totalorder %s35, %s38
    %p44 = scmp.eq.s32.totalorder %s11, 0
    %p45 = por %p43, %p44
    %p46 = scmp.ne.s32.totalorder %s35, %s38
    %p47 = scmp.eq.s32.totalorder %s16, 3
    %p48 = por %p46, %p47
    %p49 = scmp.ne.s32.totalorder %s38, %s39
    %p50 = scmp.eq.s32.totalorder %s16, 0
    %p51 = por %p49, %p50
    %p52 = scmp.ne.s32.totalorder %s38, %s39
    %p53 = scmp.eq.s32.totalorder %s17, 3
    %p54 = por %p52, %p53
    %p56 = scmp.ne.s32.totalorder %s39, %s55
    %p57 = scmp.eq.s32.totalorder %s17, 0
    %p58 = por %p56, %p57
    %s60 = sadd.s32 %s59, 1
    %p63 = scmp.eq.s32.totalorder %s11, 3
    %p64 = scmp.ne.s32.totalorder %s59, %s61
    %p65 = scmp.eq.s32.totalorder %s11, 0
    %p66 = por %p64, %p65
    %p67 = scmp.ne.s32.totalorder %s59, %s61
    %p68 = scmp.eq.s32.totalorder %s16, 3
    %p69 = por %p67, %p68
    %p70 = scmp.ne.s32.totalorder %s61, %s62
    %p71 = scmp.eq.s32.totalorder %s16, 0
    %p72 = por %p70, %p71
    %p73 = scmp.ne.s32.totalorder %s61, %s62
    %p74 = scmp.eq.s32.totalorder %s17, 3
    %p75 = por %p73, %p74
    %p77 = scmp.ne.s32.totalorder %s62, %s76
    %p78 = scmp.eq.s32.totalorder %s17, 0
    %p79 = por %p77, %p78
    %s81 = sadd.s32 %s80, 1
    %p84 = scmp.eq.s32.totalorder %s11, 3
    %p85 = scmp.ne.s32.totalorder %s80, %s82
    %p86 = scmp.eq.s32.totalorder %s11, 0
    %p87 = por %p85, %p86
    %p88 = scmp.ne.s32.totalorder %s80, %s82
    %p89 = scmp.eq.s32.totalorder %s16, 3
    %p90 = por %p88, %p89
    %p91 = scmp.ne.s32.totalorder %s82, %s83
    %p92 = scmp.eq.s32.totalorder %s16, 0
    %p93 = por %p91, %p92
    %p94 = scmp.ne.s32.totalorder %s82, %s83
    %p95 = scmp.eq.s32.totalorder %s17, 3
    %p96 = por %p94, %p95
    %p98 = scmp.ne.s32.totalorder %s83, %s97
    %p99 = scmp.eq.s32.totalorder %s17, 0
    %p100 = por %p98, %p99
    %s102 = sadd.s32 %s101, 1
    %p105 = scmp.eq.s32.totalorder %s11, 3
    %p106 = scmp.ne.s32.totalorder %s101, %s103
    %p107 = scmp.eq.s32.totalorder %s11, 0
    %p108 = por %p106, %p107
    %p109 = scmp.ne.s32.totalorder %s101, %s103
    %p110 = scmp.eq.s32.totalorder %s16, 3
    %p111 = por %p109, %p110
    %p112 = scmp.ne.s32.totalorder %s103, %s104
    %p113 = scmp.eq.s32.totalorder %s16, 0
    %p114 = por %p112, %p113
    %p115 = scmp.ne.s32.totalorder %s103, %s104
    %p116 = scmp.eq.s32.totalorder %s17, 3
    %p117 = por %p115, %p116
    %p119 = scmp.ne.s32.totalorder %s104, %s118
    %p120 = scmp.eq.s32.totalorder %s17, 0
    %p121 = por %p119, %p120
    %s123 = sadd.s32 %s122, 1
    %p126 = scmp.eq.s32.totalorder %s11, 3
    %p127 = scmp.ne.s32.totalorder %s122, %s124
    %p128 = scmp.eq.s32.totalorder %s11, 0
    %p129 = por %p127, %p128
    %p130 = scmp.ne.s32.totalorder %s122, %s124
    %p131 = scmp.eq.s32.totalorder %s16, 3
    %p132 = por %p130, %p131
    %p133 = scmp.ne.s32.totalorder %s124, %s125
    %p134 = scmp.eq.s32.totalorder %s16, 0
    %p135 = por %p133, %p134
    %p136 = scmp.ne.s32.totalorder %s124, %s125
    %p137 = scmp.eq.s32.totalorder %s17, 3
    %p138 = por %p136, %p137
    %p140 = scmp.ne.s32.totalorder %s125, %s139
    %p141 = scmp.eq.s32.totalorder %s17, 0
    %p142 = por %p140, %p141
    %s143 = ssub.s32 %s18, %s30
    %s144 = ssub.s32 %s19, %s26
    %s145 = sor.u32 %s143, %s144
    %p146 = scmp.eq.s32.totalorder %s145, 0
    %s148 = sadd.s32 %s147, 1
    %s149 = scalar_select %p146, %s147, %s148
    %p152 = pneg %p146
    %p153 = scmp.eq.s32.totalorder %s11, 3
    %p154 = por %p152, %p153
    %p155 = scmp.ne.s32.totalorder %s147, %s150
    %p156 = scmp.eq.s32.totalorder %s11, 0
    %p157 = por %p155, %p156
    %p158 = scmp.ne.s32.totalorder %s147, %s150
    %p159 = scmp.eq.s32.totalorder %s16, 3
    %p160 = por %p158, %p159
    %p161 = scmp.ne.s32.totalorder %s150, %s151
    %p162 = scmp.eq.s32.totalorder %s16, 0
    %p163 = por %p161, %p162
    %p164 = scmp.ne.s32.totalorder %s150, %s151
    %p165 = scmp.eq.s32.totalorder %s17, 3
    %p166 = por %p164, %p165
    %p168 = scmp.ne.s32.totalorder %s151, %s167
    %p169 = scmp.eq.s32.totalorder %s17, 0
    %p170 = por %p168, %p169
    %p171 = scmp.le.s32.totalorder 1, %s11
    %p172 = scmp.lt.s32.totalorder %s11, 5
    %p173 = pnand %p171, %p172
    %p174 = pneg %p173
    // Predicated region
    $region9: #{dip_model_forward.1} parent=5 // pred_check
      _
    $region10: #{dip_model_forward.1} parent=5 // pred_check_branch
      %176 = sbr.rel (%p173) target = $region12
    $region11: #{dip_model_forward.1} parent=5 // pred_region
      %s177 = ssub.s32 %s11, 1
      // Predicated region
      $region13: #{dip_model_forward.1} parent=11 // pred_check
        %p178 = pneg %p72
      $region14: #{dip_model_forward.1} parent=11 // pred_check_branch
        %180 = sbr.rel (%p178) target = $region16
      $region15: #{dip_model_forward.1} parent=11 // pred_region
        _
      $region16: #{dip_model_forward.1} parent=11 // pred_fallthru
        _
      // Predicated region
      $region17: #{dip_model_forward.1} parent=11 // pred_check
        %p181 = pneg %p93
      $region18: #{dip_model_forward.1} parent=11 // pred_check_branch
        %183 = sbr.rel (%p181) target = $region20
      $region19: #{dip_model_forward.1} parent=11 // pred_region
        _
      $region20: #{dip_model_forward.1} parent=11 // pred_fallthru
        _
      // Predicated region
      $region21: #{dip_model_forward.1} parent=11 // pred_check
        %p184 = pneg %p114
      $region22: #{dip_model_forward.1} parent=11 // pred_check_branch
        %186 = sbr.rel (%p184) target = $region24
      $region23: #{dip_model_forward.1} parent=11 // pred_region
        _
      $region24: #{dip_model_forward.1} parent=11 // pred_fallthru
        _
      // Predicated region
      $region25: #{dip_model_forward.1} parent=11 // pred_check
        %p187 = pneg %p135
      $region26: #{dip_model_forward.1} parent=11 // pred_check_branch
        %189 = sbr.rel (%p187) target = $region28
      $region27: #{dip_model_forward.1} parent=11 // pred_region
        _
      $region28: #{dip_model_forward.1} parent=11 // pred_fallthru
        _
    $region12: #{dip_model_forward.1} parent=5 // pred_fallthru
      _
    %p190 = scmp.lt.s32.totalorder %s11, 4
    // Predicated region
    $region29: #{dip_model_forward.1} parent=5 // pred_check
      %p191 = pneg %p190
    $region30: #{dip_model_forward.1} parent=5 // pred_check_branch
      %193 = sbr.rel (%p191) target = $region32
    $region31: #{dip_model_forward.1} parent=5 // pred_region
      // Predicated region
      $region33: #{dip_model_forward.1} parent=31 // pred_check
        %p194 = pneg %p45
      $region34: #{dip_model_forward.1} parent=31 // pred_check_branch
        %196 = sbr.rel (%p194) target = $region36
      $region35: #{dip_model_forward.1} parent=31 // pred_region
        %p197 = scmp.lt.s32.totalorder %s18, 1
        %s198 = scalar_select %p197, %s18, 1
        %p199 = scmp.lt.s32.totalorder %s19, 1
        %s200 = scalar_select %p199, %s19, 1
        %s201 = smul.addr %s200, 2
        %s202 = smul.addr %s198, 4
        %s203 = sadd.s32 %s201, %s202
        %s204 = smul.addr %s203, 4
        %s205 = scalar_lea.vmem %s0, %s204
      $region36: #{dip_model_forward.1} parent=31 // pred_fallthru
        _
    $region32: #{dip_model_forward.1} parent=5 // pred_fallthru
      _
    %p206 = scmp.le.s32.totalorder 1, %s11
    %p207 = scmp.lt.s32.totalorder %s11, 5
    %p208 = pnand %p206, %p207
    %p209 = pneg %p208
    // Predicated region
    $region37: #{dip_model_forward.1} parent=5 // pred_check
      _
    $region38: #{dip_model_forward.1} parent=5 // pred_check_branch
      %211 = sbr.rel (%p208) target = $region40
    $region39: #{dip_model_forward.1} parent=5 // pred_region
      %s212 = ssub.s32 %s11, 1
      %p213 = scmp.lt.s32.totalorder %s20, 1
      %s214 = scalar_select %p213, %s20, 1
      %p215 = scmp.lt.s32.totalorder %s21, 1
      %s216 = scalar_select %p215, %s21, 1
      %s217 = smul.addr %s216, 2
      %s218 = smul.addr %s214, 4
      %s219 = sadd.s32 %s217, %s218
      %s220 = smul.addr %s219, 4
      %s221 = scalar_lea.vmem %s0, %s220
      %p222 = pneg %p51
      %p223 = pneg %p48
      %p224 = pneg %p72
      %p225 = pneg %p69
      %p226 = pneg %p93
      %p227 = pneg %p90
      %p228 = pneg %p114
      %p229 = pneg %p111
      %p230 = pneg %p135
      %p231 = pneg %p132
      %p232 = pneg %p163
      %p233 = pneg %p160
      %p234 = scmp.lt.s32.totalorder %s20, 1
      %s235 = scalar_select %p234, %s20, 1
      %p236 = scmp.lt.s32.totalorder %s21, 1
      %s237 = scalar_select %p236, %s21, 1
      %s238 = smul.addr %s237, 2
      %s239 = smul.addr %s235, 4
      %s240 = sadd.s32 %s238, %s239
      %s241 = smul.addr %s240, 4
      %s242 = scalar_lea.vmem %s5, %s241
      %p243 = scmp.lt.s32.totalorder %s20, 1
      %s244 = scalar_select %p243, %s20, 1
      %p245 = scmp.lt.s32.totalorder %s21, 1
      %s246 = scalar_select %p245, %s21, 1
      %s247 = smul.addr %s246, 2
      %s248 = smul.addr %s244, 4
      %s249 = sadd.s32 %s247, %s248
      %s250 = smul.addr %s249, 4
      %s251 = scalar_lea.vmem %s0, %s250
      %p252 = scmp.lt.s32.totalorder %s20, 1
      %s253 = scalar_select %p252, %s20, 1
      %p254 = scmp.lt.s32.totalorder %s21, 1
      %s255 = scalar_select %p254, %s21, 1
      %s256 = smul.addr %s255, 2
      %s257 = smul.addr %s253, 4
      %s258 = sadd.s32 %s256, %s257
      %s259 = smul.addr %s258, 4
      %s260 = scalar_lea.vmem %s5, %s259
      %v261 = vld [vmem:[%s251] sm:$0x77]
      %v263 = vcombine.high %v261, %v261
      %265 = vst [vmem:[#allocation2] sm:$0x7] %v261
      %vm266 = vcmask 419840
      %267 = vst.msk [vmem:[#allocation2 + $0x8] sm:$0x7] %vm266, %v263
      %v268 = vld [vmem:[%s251] sm:$0x77]
      %v270 = vcombine.high %v268, %v268
      %v271 = vrot.slane %v268, 5
      %v272 = vrot.slane %v270, 5
      %273 = vrot.lane.b32.xlu0 %v271, 127
      %v274 = vpop.permute.xlu0 %273
      %275 = vrot.lane.b32.xlu0 %v272, 127
      %v276 = vpop.permute.xlu0 %275
      %vm277 = vcmask 1039360
      %v278 = vsel %vm277, %v274, %v276
      %281 = vst [vmem:[#allocation2] sm:$0x38] %v278
      %vm282 = vcmask 422915
      %283 = vst.msk [vmem:[#allocation2 + $0x8] sm:$0x38] %vm282, %v276
      %v284 = vld [vmem:[%s251] sm:$0x77]
      %v286 = vcombine.high %v284, %v284
      %v287 = vrot.slane %v284, 2
      %v288 = vrot.slane %v286, 2
      %289 = vrot.lane.b32.xlu0 %v287, 126
      %v290 = vpop.permute.xlu0 %289
      %291 = vrot.lane.b32.xlu0 %v288, 126
      %v292 = vpop.permute.xlu0 %291
      %vm293 = vcmask 1031168
      %v294 = vsel %vm293, %v290, %v292
      %297 = vst [vmem:[#allocation2] sm:$0xc0] %v294
      %vm298 = vcmask 424966
      %299 = vst.msk [vmem:[#allocation2 + $0x8] sm:$0xc0] %vm298, %v292
      %300 = vst [vmem:[#allocation2 + $0x10] sm:$0x1] %v294
      %vm301 = vcmask 417792
      %302 = vst.msk [vmem:[#allocation2 + $0x18] sm:$0x1] %vm301, %v292
      %v303 = vld [vmem:[%s251] sm:$0x77]
      %v305 = vcombine.high %v303, %v303
      %v306 = vrot.slane %v303, 7
      %v307 = vrot.slane %v305, 7
      %308 = vrot.lane.b32.xlu0 %v306, 110
      %v309 = vpop.permute.xlu0 %308
      %310 = vrot.lane.b32.xlu0 %v307, 110
      %v311 = vpop.permute.xlu0 %310
      %vm312 = vcmask 900096
      %v313 = vsel %vm312, %v309, %v311
      %316 = vst [vmem:[#allocation2 + $0x10] sm:$0xe] %v313
      %vm317 = vcmask 420865
      %318 = vst.msk [vmem:[#allocation2 + $0x18] sm:$0xe] %vm317, %v311
      %v319 = vld [vmem:[%s251] sm:$0x77]
      %v321 = vcombine.low %v319, %v319
      %322 = vrot.lane.b32.xlu0 %v321, 109
      %v323 = vpop.permute.xlu0 %322
      %324 = vrot.lane.b32.xlu0 %v319, 109
      %v325 = vpop.permute.xlu0 %324
      %vm326 = vcmask 891904
      %v327 = vsel %vm326, %v323, %v325
      %330 = vst [vmem:[#allocation2 + $0x10] sm:$0x70] %v327
      %vm331 = vcmask 423940
      %332 = vst.msk [vmem:[#allocation2 + $0x18] sm:$0x70] %vm331, %v325
      %v333 = vld [vmem:[%s251] sm:$0x77]
      %v335 = vcombine.high %v333, %v333
      %v336 = vrot.slane %v333, 1
      %v337 = vrot.slane %v335, 1
      %338 = vrot.lane.b32.xlu0 %v336, 108
      %v339 = vpop.permute.xlu0 %338
      %340 = vrot.lane.b32.xlu0 %v337, 108
      %v341 = vpop.permute.xlu0 %340
      %vm342 = vcmask 883712
      %v343 = vsel %vm342, %v339, %v341
      %346 = vst [vmem:[#allocation2 + $0x10] sm:$0x80] %v343
      %vm347 = vcmask 424967
      %348 = vst.msk [vmem:[#allocation2 + $0x18] sm:$0x80] %vm347, %v341
      %349 = vst [vmem:[#allocation2 + $0x20] sm:$0x3] %v343
      %vm350 = vcmask 418816
      %351 = vst.msk [vmem:[#allocation2 + $0x28] sm:$0x3] %vm350, %v341
      %v352 = vld [vmem:[%s251] sm:$0x77]
      %v354 = vcombine.high %v352, %v352
      %v355 = vrot.slane %v352, 6
      %v356 = vrot.slane %v354, 6
      %357 = vrot.lane.b32.xlu0 %v355, 92
      %v358 = vpop.permute.xlu0 %357
      %359 = vrot.lane.b32.xlu0 %v356, 92
      %v360 = vpop.permute.xlu0 %359
      %vm361 = vcmask 752640
      %v362 = vsel %vm361, %v358, %v360
      %365 = vst [vmem:[#allocation2 + $0x20] sm:$0x1c] %v362
      %vm366 = vcmask 421890
      %367 = vst.msk [vmem:[#allocation2 + $0x28] sm:$0x1c] %vm366, %v360
      %v368 = vld [vmem:[%s251] sm:$0x77]
      %v370 = vcombine.high %v368, %v368
      %v371 = vrot.slane %v368, 3
      %v372 = vrot.slane %v370, 3
      %373 = vrot.lane.b32.xlu0 %v371, 91
      %v374 = vpop.permute.xlu0 %373
      %375 = vrot.lane.b32.xlu0 %v372, 91
      %v376 = vpop.permute.xlu0 %375
      %vm377 = vcmask 744448
      %v378 = vsel %vm377, %v374, %v376
      %381 = vst [vmem:[#allocation2 + $0x20] sm:$0xe0] %v378
      %vm382 = vcmask 424965
      %383 = vst.msk [vmem:[#allocation2 + $0x28] sm:$0xe0] %vm382, %v376
      %v384 = vld [vmem:[%s251] sm:$0x77]
      %v386 = vcombine.high %v384, %v384
      %387 = vrot.lane.b32.xlu0 %v384, 90
      %v388 = vpop.permute.xlu0 %387
      %389 = vrot.lane.b32.xlu0 %v386, 90
      %v390 = vpop.permute.xlu0 %389
      %vm391 = vcmask 736256
      %v392 = vsel %vm391, %v388, %v390
      %395 = vst [vmem:[#allocation2 + $0x30] sm:$0x7] %v392
      %396 = vst.msk [vmem:[#allocation2 + $0x38] sm:$0x7] %vm266, %v390
      %v397 = vlaneseq
      %v398 = vand.u32 %v397, 127
      %v399 = vadd.s32 %v398, 128
      %vm400 = vcmp.lt.s32.totalorder %v398, 0
      %v401 = vsub.s32 0, %v398
      %v402 = vsel %vm400, %v401, %v398
      %v403 = vmul.u32.u64.compose %v402, 3817748708
      %v404 = vextract.low.u32 %v403
      %v405 = vextract.high.u32 %v403
      %v406 = vshrl.u32 %v405, 4
      %v407 = vmul.u32 %v406, 18
      %v408 = vsub.s32 %v402, %v407
      %v409 = vsub.s32 0, %v408
      %v410 = vsel %vm400, %v409, %v408
      %vm411 = vcmp.lt.s32.totalorder %v399, 0
      %v412 = vsub.s32 0, %v399
      %v413 = vsel %vm411, %v412, %v399
      %v414 = vmul.u32.u64.compose %v413, 3817748708
      %v415 = vextract.low.u32 %v414
      %v416 = vextract.high.u32 %v414
      %v417 = vshrl.u32 %v416, 4
      %v418 = vmul.u32 %v417, 18
      %v419 = vsub.s32 %v413, %v418
      %v420 = vsub.s32 0, %v419
      %v421 = vsel %vm411, %v420, %v419
      %vm422 = vcmp.ne.s32.totalorder %v410, 0
      %vm423 = vcmp.ne.s32.totalorder %v421, 0
      %vm424 = vcmp.lt.s32.totalorder %v410, 0
      %vm425 = vcmp.lt.s32.totalorder %v421, 0
      %vm426 = vmand %vm424, %vm422
      %vm427 = vmand %vm425, %vm423
      %v428 = vadd.s32 %v410, 18
      %v429 = vadd.s32 %v421, 18
      %v430 = vsel %vm426, %v428, %v410
      %v431 = vsel %vm427, %v429, %v421
      %vm432 = vcmp.ne.s32.totalorder %v430, 0
      %vm433 = vcmp.ne.s32.totalorder %v431, 0
      %vm434 = vcmp.ne.s32.totalorder %v430, 17
      %vm435 = vcmp.ne.s32.totalorder %v431, 17
      %vm436 = vmand %vm432, %vm434
      %vm437 = vmand %vm433, %vm435
      %v438 = vsel %vm436, 1, 0
      %v439 = vsel %vm437, 1, 0
      %v440 = vcvt.s32.f32 %v438
      %v441 = vcvt.s32.f32 %v439
      %v442 = vld [vmem:[%s1] sm:$0xff]
      %v443 = vld [vmem:[%s1 + $0x8] sm:$0xff]
      %v444 = vld [vmem:[%s1 + $0x10] sm:$0xff]
      %v445 = vld [vmem:[%s1 + $0x18] sm:$0xff]
      %v446 = vld [vmem:[%s1 + $0x20] sm:$0xff]
      %v447 = vld [vmem:[%s1 + $0x28] sm:$0xff]
      %v448 = vld [vmem:[%s1 + $0x30] sm:$0xff]
      %v449 = vld [vmem:[%s1 + $0x38] sm:$0xff]
      %v450 = vld [vmem:[#allocation2] sm:$0xff]
      %v451 = vld [vmem:[#allocation2 + $0x8] sm:$0xff]
      %v452 = vld [vmem:[#allocation2 + $0x10] sm:$0xff]
      %v453 = vld [vmem:[#allocation2 + $0x18] sm:$0xff]
      %v454 = vld [vmem:[#allocation2 + $0x20] sm:$0xff]
      %v455 = vld [vmem:[#allocation2 + $0x28] sm:$0xff]
      %v456 = vld [vmem:[#allocation2 + $0x30] sm:$0x7]
      %v457 = vld [vmem:[#allocation2 + $0x38] sm:$0x7]
      %v458 = vld [vmem:[%s2] sm:$0xff]
      %v459 = vld [vmem:[%s2 + $0x8] sm:$0xff]
      %v460 = vld [vmem:[%s2 + $0x10] sm:$0xff]
      %v461 = vld [vmem:[%s2 + $0x18] sm:$0xff]
      %v462 = vld [vmem:[%s2 + $0x20] sm:$0xff]
      %v463 = vld [vmem:[%s2 + $0x28] sm:$0xff]
      %v464 = vld [vmem:[%s2 + $0x30] sm:$0xff]
      %v465 = vld [vmem:[%s2 + $0x38] sm:$0xff]
      %467 = vset.pattern.permute.xlu0 0
      %468 = vperm.xlu0 %467, %v458
      %v469 = vpop.permute.xlu0 %468
      %472 = vset.pattern.permute.xlu0 0
      %473 = vperm.xlu0 %472, %v459
      %v474 = vpop.permute.xlu0 %473
      %477 = vset.pattern.permute.xlu0 0
      %478 = vperm.xlu0 %477, %v460
      %v479 = vpop.permute.xlu0 %478
      %482 = vset.pattern.permute.xlu0 0
      %483 = vperm.xlu0 %482, %v461
      %v484 = vpop.permute.xlu0 %483
      %487 = vset.pattern.permute.xlu0 0
      %488 = vperm.xlu0 %487, %v462
      %v489 = vpop.permute.xlu0 %488
      %492 = vset.pattern.permute.xlu0 0
      %493 = vperm.xlu0 %492, %v463
      %v494 = vpop.permute.xlu0 %493
      %497 = vset.pattern.permute.xlu0 0
      %498 = vperm.xlu0 %497, %v464
      %v499 = vpop.permute.xlu0 %498
      %502 = vset.pattern.permute.xlu0 0
      %503 = vperm.xlu0 %502, %v465
      %v504 = vpop.permute.xlu0 %503
      %vm506 = vcmask 220160
      %v508 = vsel %vm506, %v442, 0
      %v511 = vsel %vm506, %v443, 0
      %v514 = vsel %vm506, %v444, 0
      %v517 = vsel %vm506, %v445, 0
      %v520 = vsel %vm506, %v446, 0
      %v523 = vsel %vm506, %v447, 0
      %v526 = vsel %vm506, %v448, 0
      %v529 = vsel %vm506, %v449, 0
      %vm531 = vcmask 1042432
      %v533 = vsel %vm531, %v456, 0
      %v536 = vsel %vm531, %v457, 0
      %v538 = vand.u32 %v451, 4294901760
      %539 = vmatprep.subr.mxu0 %v538
      %v540 = vand.u32 %v450, 4294901760
      %541 = vmatpush1.msra.mxu0 %v540
      %v542 = vand.u32 %v453, 4294901760
      %543 = vmatprep.subr.mxu0 %v542
      %v544 = vand.u32 %v452, 4294901760
      %545 = vmatpush1.msra.mxu0 %v544
      %v546 = vand.u32 %v455, 4294901760
      %547 = vmatprep.subr.mxu0 %v546
      %v548 = vand.u32 %v454, 4294901760
      %549 = vmatpush1.msra.mxu0 %v548
      %v550 = vand.u32 %v536, 4294901760
      %551 = vmatprep.subr.mxu0 %v550
      %v552 = vand.u32 %v533, 4294901760
      %553 = vmatpush1.msra.mxu0 %v552
      %554 = vmatprep.subr.mxu0 0.0
      %555 = vmatpush1.msra.mxu0 0.0
      %556 = vmatprep.subr.mxu0 0.0
      %557 = vmatpush1.msra.mxu0 0.0
      %558 = vmatprep.subr.mxu0 0.0
      %559 = vmatpush1.msra.mxu0 0.0
      %560 = vmatprep.subr.mxu0 0.0
      %561 = vmatpush1.msra.mxu0 0.0
      %562 = vmatprep.subr.mxu0 0.0
      %563 = vmatpush1.msra.mxu0 0.0
      %564 = vmatprep.subr.mxu0 0.0
      %565 = vmatpush1.msra.mxu0 0.0
      %566 = vmatprep.subr.mxu0 0.0
      %567 = vmatpush1.msra.mxu0 0.0
      %568 = vmatprep.subr.mxu0 0.0
      %569 = vmatpush1.msra.mxu0 0.0
      %570 = vmatprep.subr.mxu0 0.0
      %571 = vmatpush1.msra.mxu0 0.0
      %572 = vmatprep.subr.mxu0 0.0
      %573 = vmatpush1.msra.mxu0 0.0
      %574 = vmatprep.subr.mxu0 0.0
      %575 = vmatpush1.msra.mxu0 0.0
      %576 = vmatprep.subr.mxu0 0.0
      %577 = vmatpush1.msra.mxu0 0.0
      %578 = vmatprep.subr.mxu0 0.0
      %579 = vmatpush1.msra.mxu0 0.0
      %580 = vmatprep.subr.mxu0 0.0
      %581 = vmatpush1.msra.mxu0 0.0
      %582 = vmatprep.subr.mxu0 0.0
      %583 = vmatpush1.msra.mxu0 0.0
      %584 = vmatprep.subr.mxu0 0.0
      %585 = vmatpush1.msra.mxu0 0.0
      %586 = vmatprep.subr.mxu0 0.0
      %587 = vmatpush1.msra.mxu0 0.0
      %588 = vmatprep.subr.mxu0 0.0
      %589 = vmatpush1.msra.mxu0 0.0
      %590 = vmatprep.subr.mxu0 0.0
      %591 = vmatpush1.msra.mxu0 0.0
      %592 = vmatprep.subr.mxu0 0.0
      %593 = vmatpush1.msra.mxu0 0.0
      %594 = vmatprep.subr.mxu0 0.0
      %595 = vmatpush1.msra.mxu0 0.0
      %596 = vmatprep.subr.mxu0 0.0
      %597 = vmatpush1.msra.mxu0 0.0
      %598 = vmatprep.subr.mxu0 0.0
      %599 = vmatpush1.msra.mxu0 0.0
      %600 = vmatprep.subr.mxu0 0.0
      %601 = vmatpush1.msra.mxu0 0.0
      %602 = vmatprep.subr.mxu0 0.0
      %603 = vmatpush1.msra.mxu0 0.0
      %604 = vmatprep.subr.mxu0 0.0
      %605 = vmatpush1.msra.mxu0 0.0
      %606 = vmatprep.subr.mxu0 0.0
      %607 = vmatpush1.msra.mxu0 0.0
      %608 = vmatprep.subr.mxu0 0.0
      %609 = vmatpush1.msra.mxu0 0.0
      %610 = vmatprep.mubr.f32.mxu0 0.0
      %v611 = vand.u32 %v508, 4294901760
      %v612 = vsub.f32 %v508, %v611
      %v613 = vand.u32 %v612, 4294901760
      %v614 = vsub.f32 %v612, %v613
      %v615 = vand.u32 %v614, 4294901760
      %616 = vmatmul.mubr.f32.gmra.mrb[0].mxu0 %v615
      %v617 = vpop.f32.mrb[0].mxu0
      %v618 = vadd.f32 %v469, %v617
      %v619 = vpop.f32.mrb[0].mxu0
      %v620 = vadd.f32 %v469, %v619
      %621 = vmatprep.mubr.f32.mxu0 0.0
      %v622 = vand.u32 %v511, 4294901760
      %v623 = vsub.f32 %v511, %v622
      %v624 = vand.u32 %v623, 4294901760
      %v625 = vsub.f32 %v623, %v624
      %v626 = vand.u32 %v625, 4294901760
      %627 = vmatmul.mubr.f32.gmra.mrb[0].mxu0 %v626
      %v628 = vpop.f32.mrb[0].mxu0
      %v629 = vadd.f32 %v474, %v628
      %v630 = vpop.f32.mrb[0].mxu0
      %v631 = vadd.f32 %v474, %v630
      %632 = vmatprep.mubr.f32.mxu0 0.0
      %v633 = vand.u32 %v514, 4294901760
      %v634 = vsub.f32 %v514, %v633
      %v635 = vand.u32 %v634, 4294901760
      %v636 = vsub.f32 %v634, %v635
      %v637 = vand.u32 %v636, 4294901760
      %638 = vmatmul.mubr.f32.gmra.mrb[0].mxu0 %v637
      %v639 = vpop.f32.mrb[0].mxu0
      %v640 = vadd.f32 %v479, %v639
      %v641 = vpop.f32.mrb[0].mxu0
      %v642 = vadd.f32 %v479, %v641
      %643 = vmatprep.mubr.f32.mxu0 0.0
      %v644 = vand.u32 %v517, 4294901760
      %v645 = vsub.f32 %v517, %v644
      %v646 = vand.u32 %v645, 4294901760
      %v647 = vsub.f32 %v645, %v646
      %v648 = vand.u32 %v647, 4294901760
      %649 = vmatmul.mubr.f32.gmra.mrb[0].mxu0 %v648
      %v650 = vpop.f32.mrb[0].mxu0
      %v651 = vadd.f32 %v484, %v650
      %v652 = vpop.f32.mrb[0].mxu0
      %v653 = vadd.f32 %v484, %v652
      %654 = vmatprep.mubr.f32.mxu0 0.0
      %v655 = vand.u32 %v520, 4294901760
      %v656 = vsub.f32 %v520, %v655
      %v657 = vand.u32 %v656, 4294901760
      %v658 = vsub.f32 %v656, %v657
      %v659 = vand.u32 %v658, 4294901760
      %660 = vmatmul.mubr.f32.gmra.mrb[0].mxu0 %v659
      %v661 = vpop.f32.mrb[0].mxu0
      %v662 = vadd.f32 %v489, %v661
      %v663 = vpop.f32.mrb[0].mxu0
      %v664 = vadd.f32 %v489, %v663
      %665 = vmatprep.mubr.f32.mxu0 0.0
      %v666 = vand.u32 %v523, 4294901760
      %v667 = vsub.f32 %v523, %v666
      %v668 = vand.u32 %v667, 4294901760
      %v669 = vsub.f32 %v667, %v668
      %v670 = vand.u32 %v669, 4294901760
      %671 = vmatmul.mubr.f32.gmra.mrb[0].mxu0 %v670
      %v672 = vpop.f32.mrb[0].mxu0
      %v673 = vadd.f32 %v494, %v672
      %v674 = vpop.f32.mrb[0].mxu0
      %v675 = vadd.f32 %v494, %v674
      %676 = vmatprep.mubr.f32.mxu0 0.0
      %v677 = vand.u32 %v526, 4294901760
      %v678 = vsub.f32 %v526, %v677
      %v679 = vand.u32 %v678, 4294901760
      %v680 = vsub.f32 %v678, %v679
      %v681 = vand.u32 %v680, 4294901760
      %682 = vmatmul.mubr.f32.gmra.mrb[0].mxu0 %v681
      %v683 = vpop.f32.mrb[0].mxu0
      %v684 = vadd.f32 %v499, %v683
      %v685 = vpop.f32.mrb[0].mxu0
      %v686 = vadd.f32 %v499, %v685
      %687 = vmatprep.mubr.f32.mxu0 0.0
      %v688 = vand.u32 %v529, 4294901760
      %v689 = vsub.f32 %v529, %v688
      %v690 = vand.u32 %v689, 4294901760
      %v691 = vsub.f32 %v689, %v690
      %v692 = vand.u32 %v691, 4294901760
      %693 = vmatmul.mubr.f32.gmra.mrb[0].mxu0 %v692
      %v694 = vpop.f32.mrb[0].mxu0
      %v695 = vadd.f32 %v504, %v694
      %v696 = vpop.f32.mrb[0].mxu0
      %v697 = vadd.f32 %v504, %v696
      %698 = vdwg.mxu0
      %v699 = vand.u32 %v451, 4294901760
      %v700 = vsub.f32 %v451, %v699
      %v701 = vand.u32 %v700, 4294901760
      %v702 = vsub.f32 %v700, %v701
      %v703 = vand.u32 %v702, 4294901760
      %704 = vmatprep.subr.mxu0 %v703
      %v705 = vand.u32 %v450, 4294901760
      %v706 = vsub.f32 %v450, %v705
      %v707 = vand.u32 %v706, 4294901760
      %v708 = vsub.f32 %v706, %v707
      %v709 = vand.u32 %v708, 4294901760
      %710 = vmatpush1.msra.mxu0 %v709
      %v711 = vand.u32 %v453, 4294901760
      %v712 = vsub.f32 %v453, %v711
      %v713 = vand.u32 %v712, 4294901760
      %v714 = vsub.f32 %v712, %v713
      %v715 = vand.u32 %v714, 4294901760
      %716 = vmatprep.subr.mxu0 %v715
      %v717 = vand.u32 %v452, 4294901760
      %v718 = vsub.f32 %v452, %v717
      %v719 = vand.u32 %v718, 4294901760
      %v720 = vsub.f32 %v718, %v719
      %v721 = vand.u32 %v720, 4294901760
      %722 = vmatpush1.msra.mxu0 %v721
      %v723 = vand.u32 %v455, 4294901760
      %v724 = vsub.f32 %v455, %v723
      %v725 = vand.u32 %v724, 4294901760
      %v726 = vsub.f32 %v724, %v725
      %v727 = vand.u32 %v726, 4294901760
      %728 = vmatprep.subr.mxu0 %v727
      %v729 = vand.u32 %v454, 4294901760
      %v730 = vsub.f32 %v454, %v729
      %v731 = vand.u32 %v730, 4294901760
      %v732 = vsub.f32 %v730, %v731
      %v733 = vand.u32 %v732, 4294901760
      %734 = vmatpush1.msra.mxu0 %v733
      %v735 = vand.u32 %v536, 4294901760
      %v736 = vsub.f32 %v536, %v735
      %v737 = vand.u32 %v736, 4294901760
      %v738 = vsub.f32 %v736, %v737
      %v739 = vand.u32 %v738, 4294901760
      %740 = vmatprep.subr.mxu0 %v739
      %v741 = vand.u32 %v533, 4294901760
      %v742 = vsub.f32 %v533, %v741
      %v743 = vand.u32 %v742, 4294901760
      %v744 = vsub.f32 %v742, %v743
      %v745 = vand.u32 %v744, 4294901760
      %746 = vmatpush1.msra.mxu0 %v745
      %747 = vmatprep.subr.mxu0 0.0
      %748 = vmatpush1.msra.mxu0 0.0
      %749 = vmatprep.subr.mxu0 0.0
      %750 = vmatpush1.msra.mxu0 0.0
      %751 = vmatprep.subr.mxu0 0.0
      %752 = vmatpush1.msra.mxu0 0.0
      %753 = vmatprep.subr.mxu0 0.0
      %754 = vmatpush1.msra.mxu0 0.0
      %755 = vmatprep.subr.mxu0 0.0
      %756 = vmatpush1.msra.mxu0 0.0
      %757 = vmatprep.subr.mxu0 0.0
      %758 = vmatpush1.msra.mxu0 0.0
      %759 = vmatprep.subr.mxu0 0.0
      %760 = vmatpush1.msra.mxu0 0.0
      %761 = vmatprep.subr.mxu0 0.0
      %762 = vmatpush1.msra.mxu0 0.0
      %763 = vmatprep.subr.mxu0 0.0
      %764 = vmatpush1.msra.mxu0 0.0
      %765 = vmatprep.subr.mxu0 0.0
      %766 = vmatpush1.msra.mxu0 0.0
      %767 = vmatprep.subr.mxu0 0.0
      %768 = vmatpush1.msra.mxu0 0.0
      %769 = vmatprep.subr.mxu0 0.0
      %770 = vmatpush1.msra.mxu0 0.0
      %771 = vmatprep.subr.mxu0 0.0
      %772 = vmatpush1.msra.mxu0 0.0
      %773 = vmatprep.subr.mxu0 0.0
      %774 = vmatpush1.msra.mxu0 0.0
      %775 = vmatprep.subr.mxu0 0.0
      %776 = vmatpush1.msra.mxu0 0.0
      %777 = vmatprep.subr.mxu0 0.0
      %778 = vmatpush1.msra.mxu0 0.0
      %779 = vmatprep.subr.mxu0 0.0
      %780 = vmatpush1.msra.mxu0 0.0
      %781 = vmatprep.subr.mxu0 0.0
      %782 = vmatpush1.msra.mxu0 0.0
      %783 = vmatprep.subr.mxu0 0.0
      %784 = vmatpush1.msra.mxu0 0.0
      %785 = vmatprep.subr.mxu0 0.0
      %786 = vmatpush1.msra.mxu0 0.0
      %787 = vmatprep.subr.mxu0 0.0
      %788 = vmatpush1.msra.mxu0 0.0
      %789 = vmatprep.subr.mxu0 0.0
      %790 = vmatpush1.msra.mxu0 0.0
      %791 = vmatprep.subr.mxu0 0.0
      %792 = vmatpush1.msra.mxu0 0.0
      %793 = vmatprep.subr.mxu0 0.0
      %794 = vmatpush1.msra.mxu0 0.0
      %795 = vmatprep.subr.mxu0 0.0
      %796 = vmatpush1.msra.mxu0 0.0
      %797 = vmatprep.subr.mxu0 0.0
      %798 = vmatpush1.msra.mxu0 0.0
      %799 = vmatprep.subr.mxu0 0.0
      %800 = vmatpush1.msra.mxu0 0.0
      %801 = vmatprep.subr.mxu0 0.0
      %802 = vmatpush1.msra.mxu0 0.0
      %803 = vmatprep.mubr.f32.mxu0 0.0
      %v804 = vand.u32 %v508, 4294901760
      %805 = vmatmul.mubr.f32.gmra.mrb[0].mxu0 %v804
      %v806 = vpop.f32.mrb[0].mxu0
      %v807 = vadd.f32 %v618, %v806
      %v808 = vpop.f32.mrb[0].mxu0
      %v809 = vadd.f32 %v620, %v808
      %810 = vmatprep.mubr.f32.mxu0 0.0
      %v811 = vand.u32 %v511, 4294901760
      %812 = vmatmul.mubr.f32.gmra.mrb[0].mxu0 %v811
      %v813 = vpop.f32.mrb[0].mxu0
      %v814 = vadd.f32 %v629, %v813
      %v815 = vpop.f32.mrb[0].mxu0
      %v816 = vadd.f32 %v631, %v815
      %817 = vmatprep.mubr.f32.mxu0 0.0
      %v818 = vand.u32 %v514, 4294901760
      %819 = vmatmul.mubr.f32.gmra.mrb[0].mxu0 %v818
      %v820 = vpop.f32.mrb[0].mxu0
      %v821 = vadd.f32 %v640, %v820
      %v822 = vpop.f32.mrb[0].mxu0
      %v823 = vadd.f32 %v642, %v822
      %824 = vmatprep.mubr.f32.mxu0 0.0
      %v825 = vand.u32 %v517, 4294901760
      %826 = vmatmul.mubr.f32.gmra.mrb[0].mxu0 %v825
      %v827 = vpop.f32.mrb[0].mxu0
      %v828 = vadd.f32 %v651, %v827
      %v829 = vpop.f32.mrb[0].mxu0
      %v830 = vadd.f32 %v653, %v829
      %831 = vmatprep.mubr.f32.mxu0 0.0
      %v832 = vand.u32 %v520, 4294901760
      %833 = vmatmul.mubr.f32.gmra.mrb[0].mxu0 %v832
      %v834 = vpop.f32.mrb[0].mxu0
      %v835 = vadd.f32 %v662, %v834
      %v836 = vpop.f32.mrb[0].mxu0
      %v837 = vadd.f32 %v664, %v836
      %838 = vmatprep.mubr.f32.mxu0 0.0
      %v839 = vand.u32 %v523, 4294901760
      %840 = vmatmul.mubr.f32.gmra.mrb[0].mxu0 %v839
      %v841 = vpop.f32.mrb[0].mxu0
      %v842 = vadd.f32 %v673, %v841
      %v843 = vpop.f32.mrb[0].mxu0
      %v844 = vadd.f32 %v675, %v843
      %845 = vmatprep.mubr.f32.mxu0 0.0
      %v846 = vand.u32 %v526, 4294901760
      %847 = vmatmul.mubr.f32.gmra.mrb[0].mxu0 %v846
      %v848 = vpop.f32.mrb[0].mxu0
      %v849 = vadd.f32 %v684, %v848
      %v850 = vpop.f32.mrb[0].mxu0
      %v851 = vadd.f32 %v686, %v850
      %852 = vmatprep.mubr.f32.mxu0 0.0
      %v853 = vand.u32 %v529, 4294901760
      %854 = vmatmul.mubr.f32.gmra.mrb[0].mxu0 %v853
      %v855 = vpop.f32.mrb[0].mxu0
      %v856 = vadd.f32 %v695, %v855
      %v857 = vpop.f32.mrb[0].mxu0
      %v858 = vadd.f32 %v697, %v857
      %859 = vdwg.mxu0
      %v860 = vand.u32 %v451, 4294901760
      %v861 = vsub.f32 %v451, %v860
      %862 = vmatprep.subr.mxu0 %v861
      %v863 = vand.u32 %v450, 4294901760
      %v864 = vsub.f32 %v450, %v863
      %865 = vmatpush1.msra.mxu0 %v864
      %v866 = vand.u32 %v453, 4294901760
      %v867 = vsub.f32 %v453, %v866
      %868 = vmatprep.subr.mxu0 %v867
      %v869 = vand.u32 %v452, 4294901760
      %v870 = vsub.f32 %v452, %v869
      %871 = vmatpush1.msra.mxu0 %v870
      %v872 = vand.u32 %v455, 4294901760
      %v873 = vsub.f32 %v455, %v872
      %874 = vmatprep.subr.mxu0 %v873
      %v875 = vand.u32 %v454, 4294901760
      %v876 = vsub.f32 %v454, %v875
      %877 = vmatpush1.msra.mxu0 %v876
      %v878 = vand.u32 %v536, 4294901760
      %v879 = vsub.f32 %v536, %v878
      %880 = vmatprep.subr.mxu0 %v879
      %v881 = vand.u32 %v533, 4294901760
      %v882 = vsub.f32 %v533, %v881
      %883 = vmatpush1.msra.mxu0 %v882
      %884 = vmatprep.subr.mxu0 0.0
      %885 = vmatpush1.msra.mxu0 0.0
      %886 = vmatprep.subr.mxu0 0.0
      %887 = vmatpush1.msra.mxu0 0.0
      %888 = vmatprep.subr.mxu0 0.0
      %889 = vmatpush1.msra.mxu0 0.0
      %890 = vmatprep.subr.mxu0 0.0
      %891 = vmatpush1.msra.mxu0 0.0
      %892 = vmatprep.subr.mxu0 0.0
      %893 = vmatpush1.msra.mxu0 0.0
      %894 = vmatprep.subr.mxu0 0.0
      %895 = vmatpush1.msra.mxu0 0.0
      %896 = vmatprep.subr.mxu0 0.0
      %897 = vmatpush1.msra.mxu0 0.0
      %898 = vmatprep.subr.mxu0 0.0
      %899 = vmatpush1.msra.mxu0 0.0
      %900 = vmatprep.subr.mxu0 0.0
      %901 = vmatpush1.msra.mxu0 0.0
      %902 = vmatprep.subr.mxu0 0.0
      %903 = vmatpush1.msra.mxu0 0.0
      %904 = vmatprep.subr.mxu0 0.0
      %905 = vmatpush1.msra.mxu0 0.0
      %906 = vmatprep.subr.mxu0 0.0
      %907 = vmatpush1.msra.mxu0 0.0
      %908 = vmatprep.subr.mxu0 0.0
      %909 = vmatpush1.msra.mxu0 0.0
      %910 = vmatprep.subr.mxu0 0.0
      %911 = vmatpush1.msra.mxu0 0.0
      %912 = vmatprep.subr.mxu0 0.0
      %913 = vmatpush1.msra.mxu0 0.0
      %914 = vmatprep.subr.mxu0 0.0
      %915 = vmatpush1.msra.mxu0 0.0
      %916 = vmatprep.subr.mxu0 0.0
      %917 = vmatpush1.msra.mxu0 0.0
      %918 = vmatprep.subr.mxu0 0.0
      %919 = vmatpush1.msra.mxu0 0.0
      %920 = vmatprep.subr.mxu0 0.0
      %921 = vmatpush1.msra.mxu0 0.0
      %922 = vmatprep.subr.mxu0 0.0
      %923 = vmatpush1.msra.mxu0 0.0
      %924 = vmatprep.subr.mxu0 0.0
      %925 = vmatpush1.msra.mxu0 0.0
      %926 = vmatprep.subr.mxu0 0.0
      %927 = vmatpush1.msra.mxu0 0.0
      %928 = vmatprep.subr.mxu0 0.0
      %929 = vmatpush1.msra.mxu0 0.0
      %930 = vmatprep.subr.mxu0 0.0
      %931 = vmatpush1.msra.mxu0 0.0
      %932 = vmatprep.subr.mxu0 0.0
      %933 = vmatpush1.msra.mxu0 0.0
      %934 = vmatprep.subr.mxu0 0.0
      %935 = vmatpush1.msra.mxu0 0.0
      %936 = vmatprep.subr.mxu0 0.0
      %937 = vmatpush1.msra.mxu0 0.0
      %938 = vmatprep.subr.mxu0 0.0
      %939 = vmatpush1.msra.mxu0 0.0
      %940 = vmatprep.mubr.f32.mxu0 0.0
      %v941 = vand.u32 %v508, 4294901760
      %v942 = vsub.f32 %v508, %v941
      %943 = vmatmul.mubr.f32.gmra.mrb[0].mxu0 %v942
      %v944 = vpop.f32.mrb[0].mxu0
      %v945 = vadd.f32 %v807, %v944
      %v946 = vpop.f32.mrb[0].mxu0
      %v947 = vadd.f32 %v809, %v946
      %948 = vmatprep.mubr.f32.mxu0 0.0
      %v949 = vand.u32 %v511, 4294901760
      %v950 = vsub.f32 %v511, %v949
      %951 = vmatmul.mubr.f32.gmra.mrb[0].mxu0 %v950
      %v952 = vpop.f32.mrb[0].mxu0
      %v953 = vadd.f32 %v814, %v952
      %v954 = vpop.f32.mrb[0].mxu0
      %v955 = vadd.f32 %v816, %v954
      %956 = vmatprep.mubr.f32.mxu0 0.0
      %v957 = vand.u32 %v514, 4294901760
      %v958 = vsub.f32 %v514, %v957
      %959 = vmatmul.mubr.f32.gmra.mrb[0].mxu0 %v958
      %v960 = vpop.f32.mrb[0].mxu0
      %v961 = vadd.f32 %v821, %v960
      %v962 = vpop.f32.mrb[0].mxu0
      %v963 = vadd.f32 %v823, %v962
      %964 = vmatprep.mubr.f32.mxu0 0.0
      %v965 = vand.u32 %v517, 4294901760
      %v966 = vsub.f32 %v517, %v965
      %967 = vmatmul.mubr.f32.gmra.mrb[0].mxu0 %v966
      %v968 = vpop.f32.mrb[0].mxu0
      %v969 = vadd.f32 %v828, %v968
      %v970 = vpop.f32.mrb[0].mxu0
      %v971 = vadd.f32 %v830, %v970
      %972 = vmatprep.mubr.f32.mxu0 0.0
      %v973 = vand.u32 %v520, 4294901760
      %v974 = vsub.f32 %v520, %v973
      %975 = vmatmul.mubr.f32.gmra.mrb[0].mxu0 %v974
      %v976 = vpop.f32.mrb[0].mxu0
      %v977 = vadd.f32 %v835, %v976
      %v978 = vpop.f32.mrb[0].mxu0
      %v979 = vadd.f32 %v837, %v978
      %980 = vmatprep.mubr.f32.mxu0 0.0
      %v981 = vand.u32 %v523, 4294901760
      %v982 = vsub.f32 %v523, %v981
      %983 = vmatmul.mubr.f32.gmra.mrb[0].mxu0 %v982
      %v984 = vpop.f32.mrb[0].mxu0
      %v985 = vadd.f32 %v842, %v984
      %v986 = vpop.f32.mrb[0].mxu0
      %v987 = vadd.f32 %v844, %v986
      %988 = vmatprep.mubr.f32.mxu0 0.0
      %v989 = vand.u32 %v526, 4294901760
      %v990 = vsub.f32 %v526, %v989
      %991 = vmatmul.mubr.f32.gmra.mrb[0].mxu0 %v990
      %v992 = vpop.f32.mrb[0].mxu0
      %v993 = vadd.f32 %v849, %v992
      %v994 = vpop.f32.mrb[0].mxu0
      %v995 = vadd.f32 %v851, %v994
      %996 = vmatprep.mubr.f32.mxu0 0.0
      %v997 = vand.u32 %v529, 4294901760
      %v998 = vsub.f32 %v529, %v997
      %999 = vmatmul.mubr.f32.gmra.mrb[0].mxu0 %v998
      %v1000 = vpop.f32.mrb[0].mxu0
      %v1001 = vadd.f32 %v856, %v1000
      %v1002 = vpop.f32.mrb[0].mxu0
      %v1003 = vadd.f32 %v858, %v1002
      %1004 = vdwg.mxu0
      %v1005 = vand.u32 %v451, 4294901760
      %1006 = vmatprep.subr.mxu0 %v1005
      %v1007 = vand.u32 %v450, 4294901760
      %1008 = vmatpush1.msra.mxu0 %v1007
      %v1009 = vand.u32 %v453, 4294901760
      %1010 = vmatprep.subr.mxu0 %v1009
      %v1011 = vand.u32 %v452, 4294901760
      %1012 = vmatpush1.msra.mxu0 %v1011
      %v1013 = vand.u32 %v455, 4294901760
      %1014 = vmatprep.subr.mxu0 %v1013
      %v1015 = vand.u32 %v454, 4294901760
      %1016 = vmatpush1.msra.mxu0 %v1015
      %v1017 = vand.u32 %v536, 4294901760
      %1018 = vmatprep.subr.mxu0 %v1017
      %v1019 = vand.u32 %v533, 4294901760
      %1020 = vmatpush1.msra.mxu0 %v1019
      %1021 = vmatprep.subr.mxu0 0.0
      %1022 = vmatpush1.msra.mxu0 0.0
      %1023 = vmatprep.subr.mxu0 0.0
      %1024 = vmatpush1.msra.mxu0 0.0
      %1025 = vmatprep.subr.mxu0 0.0
      %1026 = vmatpush1.msra.mxu0 0.0
      %1027 = vmatprep.subr.mxu0 0.0
      %1028 = vmatpush1.msra.mxu0 0.0
      %1029 = vmatprep.subr.mxu0 0.0
      %1030 = vmatpush1.msra.mxu0 0.0
      %1031 = vmatprep.subr.mxu0 0.0
      %1032 = vmatpush1.msra.mxu0 0.0
      %1033 = vmatprep.subr.mxu0 0.0
      %1034 = vmatpush1.msra.mxu0 0.0
      %1035 = vmatprep.subr.mxu0 0.0
      %1036 = vmatpush1.msra.mxu0 0.0
      %1037 = vmatprep.subr.mxu0 0.0
      %1038 = vmatpush1.msra.mxu0 0.0
      %1039 = vmatprep.subr.mxu0 0.0
      %1040 = vmatpush1.msra.mxu0 0.0
      %1041 = vmatprep.subr.mxu0 0.0
      %1042 = vmatpush1.msra.mxu0 0.0
      %1043 = vmatprep.subr.mxu0 0.0
      %1044 = vmatpush1.msra.mxu0 0.0
      %1045 = vmatprep.subr.mxu0 0.0
      %1046 = vmatpush1.msra.mxu0 0.0
      %1047 = vmatprep.subr.mxu0 0.0
      %1048 = vmatpush1.msra.mxu0 0.0
      %1049 = vmatprep.subr.mxu0 0.0
      %1050 = vmatpush1.msra.mxu0 0.0
      %1051 = vmatprep.subr.mxu0 0.0
      %1052 = vmatpush1.msra.mxu0 0.0
      %1053 = vmatprep.subr.mxu0 0.0
      %1054 = vmatpush1.msra.mxu0 0.0
      %1055 = vmatprep.subr.mxu0 0.0
      %1056 = vmatpush1.msra.mxu0 0.0
      %1057 = vmatprep.subr.mxu0 0.0
      %1058 = vmatpush1.msra.mxu0 0.0
      %1059 = vmatprep.subr.mxu0 0.0
      %1060 = vmatpush1.msra.mxu0 0.0
      %1061 = vmatprep.subr.mxu0 0.0
      %1062 = vmatpush1.msra.mxu0 0.0
      %1063 = vmatprep.subr.mxu0 0.0
      %1064 = vmatpush1.msra.mxu0 0.0
      %1065 = vmatprep.subr.mxu0 0.0
      %1066 = vmatpush1.msra.mxu0 0.0
      %1067 = vmatprep.subr.mxu0 0.0
      %1068 = vmatpush1.msra.mxu0 0.0
      %1069 = vmatprep.subr.mxu0 0.0
      %1070 = vmatpush1.msra.mxu0 0.0
      %1071 = vmatprep.subr.mxu0 0.0
      %1072 = vmatpush1.msra.mxu0 0.0
      %1073 = vmatprep.subr.mxu0 0.0
      %1074 = vmatpush1.msra.mxu0 0.0
      %1075 = vmatprep.subr.mxu0 0.0
      %1076 = vmatpush1.msra.mxu0 0.0
      %1077 = vmatprep.mubr.f32.mxu0 0.0
      %v1078 = vand.u32 %v508, 4294901760
      %v1079 = vsub.f32 %v508, %v1078
      %v1080 = vand.u32 %v1079, 4294901760
      %1081 = vmatmul.mubr.f32.gmra.mrb[0].mxu0 %v1080
      %v1082 = vpop.f32.mrb[0].mxu0
      %v1083 = vadd.f32 %v945, %v1082
      %v1084 = vpop.f32.mrb[0].mxu0
      %v1085 = vadd.f32 %v947, %v1084
      %1086 = vmatprep.mubr.f32.mxu0 0.0
      %v1087 = vand.u32 %v511, 4294901760
      %v1088 = vsub.f32 %v511, %v1087
      %v1089 = vand.u32 %v1088, 4294901760
      %1090 = vmatmul.mubr.f32.gmra.mrb[0].mxu0 %v1089
      %v1091 = vpop.f32.mrb[0].mxu0
      %v1092 = vadd.f32 %v953, %v1091
      %v1093 = vpop.f32.mrb[0].mxu0
      %v1094 = vadd.f32 %v955, %v1093
      %1095 = vmatprep.mubr.f32.mxu0 0.0
      %v1096 = vand.u32 %v514, 4294901760
      %v1097 = vsub.f32 %v514, %v1096
      %v1098 = vand.u32 %v1097, 4294901760
      %1099 = vmatmul.mubr.f32.gmra.mrb[0].mxu0 %v1098
      %v1100 = vpop.f32.mrb[0].mxu0
      %v1101 = vadd.f32 %v961, %v1100
      %v1102 = vpop.f32.mrb[0].mxu0
      %v1103 = vadd.f32 %v963, %v1102
      %1104 = vmatprep.mubr.f32.mxu0 0.0
      %v1105 = vand.u32 %v517, 4294901760
      %v1106 = vsub.f32 %v517, %v1105
      %v1107 = vand.u32 %v1106, 4294901760
      %1108 = vmatmul.mubr.f32.gmra.mrb[0].mxu0 %v1107
      %v1109 = vpop.f32.mrb[0].mxu0
      %v1110 = vadd.f32 %v969, %v1109
      %v1111 = vpop.f32.mrb[0].mxu0
      %v1112 = vadd.f32 %v971, %v1111
      %1113 = vmatprep.mubr.f32.mxu0 0.0
      %v1114 = vand.u32 %v520, 4294901760
      %v1115 = vsub.f32 %v520, %v1114
      %v1116 = vand.u32 %v1115, 4294901760
      %1117 = vmatmul.mubr.f32.gmra.mrb[0].mxu0 %v1116
      %v1118 = vpop.f32.mrb[0].mxu0
      %v1119 = vadd.f32 %v977, %v1118
      %v1120 = vpop.f32.mrb[0].mxu0
      %v1121 = vadd.f32 %v979, %v1120
      %1122 = vmatprep.mubr.f32.mxu0 0.0
      %v1123 = vand.u32 %v523, 4294901760
      %v1124 = vsub.f32 %v523, %v1123
      %v1125 = vand.u32 %v1124, 4294901760
      %1126 = vmatmul.mubr.f32.gmra.mrb[0].mxu0 %v1125
      %v1127 = vpop.f32.mrb[0].mxu0
      %v1128 = vadd.f32 %v985, %v1127
      %v1129 = vpop.f32.mrb[0].mxu0
      %v1130 = vadd.f32 %v987, %v1129
      %1131 = vmatprep.mubr.f32.mxu0 0.0
      %v1132 = vand.u32 %v526, 4294901760
      %v1133 = vsub.f32 %v526, %v1132
      %v1134 = vand.u32 %v1133, 4294901760
      %1135 = vmatmul.mubr.f32.gmra.mrb[0].mxu0 %v1134
      %v1136 = vpop.f32.mrb[0].mxu0
      %v1137 = vadd.f32 %v993, %v1136
      %v1138 = vpop.f32.mrb[0].mxu0
      %v1139 = vadd.f32 %v995, %v1138
      %1140 = vmatprep.mubr.f32.mxu0 0.0
      %v1141 = vand.u32 %v529, 4294901760
      %v1142 = vsub.f32 %v529, %v1141
      %v1143 = vand.u32 %v1142, 4294901760
      %1144 = vmatmul.mubr.f32.gmra.mrb[0].mxu0 %v1143
      %v1145 = vpop.f32.mrb[0].mxu0
      %v1146 = vadd.f32 %v1001, %v1145
      %v1147 = vpop.f32.mrb[0].mxu0
      %v1148 = vadd.f32 %v1003, %v1147
      %1149 = vdwg.mxu0
      %v1150 = vand.u32 %v451, 4294901760
      %v1151 = vsub.f32 %v451, %v1150
      %v1152 = vand.u32 %v1151, 4294901760
      %1153 = vmatprep.subr.mxu0 %v1152
      %v1154 = vand.u32 %v450, 4294901760
      %v1155 = vsub.f32 %v450, %v1154
      %v1156 = vand.u32 %v1155, 4294901760
      %1157 = vmatpush1.msra.mxu0 %v1156
      %v1158 = vand.u32 %v453, 4294901760
      %v1159 = vsub.f32 %v453, %v1158
      %v1160 = vand.u32 %v1159, 4294901760
      %1161 = vmatprep.subr.mxu0 %v1160
      %v1162 = vand.u32 %v452, 4294901760
      %v1163 = vsub.f32 %v452, %v1162
      %v1164 = vand.u32 %v1163, 4294901760
      %1165 = vmatpush1.msra.mxu0 %v1164
      %v1166 = vand.u32 %v455, 4294901760
      %v1167 = vsub.f32 %v455, %v1166
      %v1168 = vand.u32 %v1167, 4294901760
      %1169 = vmatprep.subr.mxu0 %v1168
      %v1170 = vand.u32 %v454, 4294901760
      %v1171 = vsub.f32 %v454, %v1170
      %v1172 = vand.u32 %v1171, 4294901760
      %1173 = vmatpush1.msra.mxu0 %v1172
      %v1174 = vand.u32 %v536, 4294901760
      %v1175 = vsub.f32 %v536, %v1174
      %v1176 = vand.u32 %v1175, 4294901760
      %1177 = vmatprep.subr.mxu0 %v1176
      %v1178 = vand.u32 %v533, 4294901760
      %v1179 = vsub.f32 %v533, %v1178
      %v1180 = vand.u32 %v1179, 4294901760
      %1181 = vmatpush1.msra.mxu0 %v1180
      %1182 = vmatprep.subr.mxu0 0.0
      %1183 = vmatpush1.msra.mxu0 0.0
      %1184 = vmatprep.subr.mxu0 0.0
      %1185 = vmatpush1.msra.mxu0 0.0
      %1186 = vmatprep.subr.mxu0 0.0
      %1187 = vmatpush1.msra.mxu0 0.0
      %1188 = vmatprep.subr.mxu0 0.0
      %1189 = vmatpush1.msra.mxu0 0.0
      %1190 = vmatprep.subr.mxu0 0.0
      %1191 = vmatpush1.msra.mxu0 0.0
      %1192 = vmatprep.subr.mxu0 0.0
      %1193 = vmatpush1.msra.mxu0 0.0
      %1194 = vmatprep.subr.mxu0 0.0
      %1195 = vmatpush1.msra.mxu0 0.0
      %1196 = vmatprep.subr.mxu0 0.0
      %1197 = vmatpush1.msra.mxu0 0.0
      %1198 = vmatprep.subr.mxu0 0.0
      %1199 = vmatpush1.msra.mxu0 0.0
      %1200 = vmatprep.subr.mxu0 0.0
      %1201 = vmatpush1.msra.mxu0 0.0
      %1202 = vmatprep.subr.mxu0 0.0
      %1203 = vmatpush1.msra.mxu0 0.0
      %1204 = vmatprep.subr.mxu0 0.0
      %1205 = vmatpush1.msra.mxu0 0.0
      %1206 = vmatprep.subr.mxu0 0.0
      %1207 = vmatpush1.msra.mxu0 0.0
      %1208 = vmatprep.subr.mxu0 0.0
      %1209 = vmatpush1.msra.mxu0 0.0
      %1210 = vmatprep.subr.mxu0 0.0
      %1211 = vmatpush1.msra.mxu0 0.0
      %1212 = vmatprep.subr.mxu0 0.0
      %1213 = vmatpush1.msra.mxu0 0.0
      %1214 = vmatprep.subr.mxu0 0.0
      %1215 = vmatpush1.msra.mxu0 0.0
      %1216 = vmatprep.subr.mxu0 0.0
      %1217 = vmatpush1.msra.mxu0 0.0
      %1218 = vmatprep.subr.mxu0 0.0
      %1219 = vmatpush1.msra.mxu0 0.0
      %1220 = vmatprep.subr.mxu0 0.0
      %1221 = vmatpush1.msra.mxu0 0.0
      %1222 = vmatprep.subr.mxu0 0.0
      %1223 = vmatpush1.msra.mxu0 0.0
      %1224 = vmatprep.subr.mxu0 0.0
      %1225 = vmatpush1.msra.mxu0 0.0
      %1226 = vmatprep.subr.mxu0 0.0
      %1227 = vmatpush1.msra.mxu0 0.0
      %1228 = vmatprep.subr.mxu0 0.0
      %1229 = vmatpush1.msra.mxu0 0.0
      %1230 = vmatprep.subr.mxu0 0.0
      %1231 = vmatpush1.msra.mxu0 0.0
      %1232 = vmatprep.subr.mxu0 0.0
      %1233 = vmatpush1.msra.mxu0 0.0
      %1234 = vmatprep.subr.mxu0 0.0
      %1235 = vmatpush1.msra.mxu0 0.0
      %1236 = vmatprep.subr.mxu0 0.0
      %1237 = vmatpush1.msra.mxu0 0.0
      %1238 = vmatprep.mubr.f32.mxu0 0.0
      %v1239 = vand.u32 %v508, 4294901760
      %1240 = vmatmul.mubr.f32.gmra.mrb[0].mxu0 %v1239
      %v1241 = vpop.f32.mrb[0].mxu0
      %v1242 = vadd.f32 %v1083, %v1241
      %v1243 = vpop.f32.mrb[0].mxu0
      %v1244 = vadd.f32 %v1085, %v1243
      %1245 = vmatprep.mubr.f32.mxu0 0.0
      %v1246 = vand.u32 %v511, 4294901760
      %1247 = vmatmul.mubr.f32.gmra.mrb[0].mxu0 %v1246
      %v1248 = vpop.f32.mrb[0].mxu0
      %v1249 = vadd.f32 %v1092, %v1248
      %v1250 = vpop.f32.mrb[0].mxu0
      %v1251 = vadd.f32 %v1094, %v1250
      %1252 = vmatprep.mubr.f32.mxu0 0.0
      %v1253 = vand.u32 %v514, 4294901760
      %1254 = vmatmul.mubr.f32.gmra.mrb[0].mxu0 %v1253
      %v1255 = vpop.f32.mrb[0].mxu0
      %v1256 = vadd.f32 %v1101, %v1255
      %v1257 = vpop.f32.mrb[0].mxu0
      %v1258 = vadd.f32 %v1103, %v1257
      %1259 = vmatprep.mubr.f32.mxu0 0.0
      %v1260 = vand.u32 %v517, 4294901760
      %1261 = vmatmul.mubr.f32.gmra.mrb[0].mxu0 %v1260
      %v1262 = vpop.f32.mrb[0].mxu0
      %v1263 = vadd.f32 %v1110, %v1262
      %v1264 = vpop.f32.mrb[0].mxu0
      %v1265 = vadd.f32 %v1112, %v1264
      %1266 = vmatprep.mubr.f32.mxu0 0.0
      %v1267 = vand.u32 %v520, 4294901760
      %1268 = vmatmul.mubr.f32.gmra.mrb[0].mxu0 %v1267
      %v1269 = vpop.f32.mrb[0].mxu0
      %v1270 = vadd.f32 %v1119, %v1269
      %v1271 = vpop.f32.mrb[0].mxu0
      %v1272 = vadd.f32 %v1121, %v1271
      %1273 = vmatprep.mubr.f32.mxu0 0.0
      %v1274 = vand.u32 %v523, 4294901760
      %1275 = vmatmul.mubr.f32.gmra.mrb[0].mxu0 %v1274
      %v1276 = vpop.f32.mrb[0].mxu0
      %v1277 = vadd.f32 %v1128, %v1276
      %v1278 = vpop.f32.mrb[0].mxu0
      %v1279 = vadd.f32 %v1130, %v1278
      %1280 = vmatprep.mubr.f32.mxu0 0.0
      %v1281 = vand.u32 %v526, 4294901760
      %1282 = vmatmul.mubr.f32.gmra.mrb[0].mxu0 %v1281
      %v1283 = vpop.f32.mrb[0].mxu0
      %v1284 = vadd.f32 %v1137, %v1283
      %v1285 = vpop.f32.mrb[0].mxu0
      %v1286 = vadd.f32 %v1139, %v1285
      %1287 = vmatprep.mubr.f32.mxu0 0.0
      %v1288 = vand.u32 %v529, 4294901760
      %1289 = vmatmul.mubr.f32.gmra.mrb[0].mxu0 %v1288
      %v1290 = vpop.f32.mrb[0].mxu0
      %v1291 = vadd.f32 %v1146, %v1290
      %v1292 = vpop.f32.mrb[0].mxu0
      %v1293 = vadd.f32 %v1148, %v1292
      %1294 = vdwg.mxu0
      %v1295 = vand.u32 %v451, 4294901760
      %1296 = vmatprep.subr.mxu0 %v1295
      %v1297 = vand.u32 %v450, 4294901760
      %1298 = vmatpush1.msra.mxu0 %v1297
      %v1299 = vand.u32 %v453, 4294901760
      %1300 = vmatprep.subr.mxu0 %v1299
      %v1301 = vand.u32 %v452, 4294901760
      %1302 = vmatpush1.msra.mxu0 %v1301
      %v1303 = vand.u32 %v455, 4294901760
      %1304 = vmatprep.subr.mxu0 %v1303
      %v1305 = vand.u32 %v454, 4294901760
      %1306 = vmatpush1.msra.mxu0 %v1305
      %v1307 = vand.u32 %v536, 4294901760
      %1308 = vmatprep.subr.mxu0 %v1307
      %v1309 = vand.u32 %v533, 4294901760
      %1310 = vmatpush1.msra.mxu0 %v1309
      %1311 = vmatprep.subr.mxu0 0.0
      %1312 = vmatpush1.msra.mxu0 0.0
      %1313 = vmatprep.subr.mxu0 0.0
      %1314 = vmatpush1.msra.mxu0 0.0
      %1315 = vmatprep.subr.mxu0 0.0
      %1316 = vmatpush1.msra.mxu0 0.0
      %1317 = vmatprep.subr.mxu0 0.0
      %1318 = vmatpush1.msra.mxu0 0.0
      %1319 = vmatprep.subr.mxu0 0.0
      %1320 = vmatpush1.msra.mxu0 0.0
      %1321 = vmatprep.subr.mxu0 0.0
      %1322 = vmatpush1.msra.mxu0 0.0
      %1323 = vmatprep.subr.mxu0 0.0
      %1324 = vmatpush1.msra.mxu0 0.0
      %1325 = vmatprep.subr.mxu0 0.0
      %1326 = vmatpush1.msra.mxu0 0.0
      %1327 = vmatprep.subr.mxu0 0.0
      %1328 = vmatpush1.msra.mxu0 0.0
      %1329 = vmatprep.subr.mxu0 0.0
      %1330 = vmatpush1.msra.mxu0 0.0
      %1331 = vmatprep.subr.mxu0 0.0
      %1332 = vmatpush1.msra.mxu0 0.0
      %1333 = vmatprep.subr.mxu0 0.0
      %1334 = vmatpush1.msra.mxu0 0.0
      %1335 = vmatprep.subr.mxu0 0.0
      %1336 = vmatpush1.msra.mxu0 0.0
      %1337 = vmatprep.subr.mxu0 0.0
      %1338 = vmatpush1.msra.mxu0 0.0
      %1339 = vmatprep.subr.mxu0 0.0
      %1340 = vmatpush1.msra.mxu0 0.0
      %1341 = vmatprep.subr.mxu0 0.0
      %1342 = vmatpush1.msra.mxu0 0.0
      %1343 = vmatprep.subr.mxu0 0.0
      %1344 = vmatpush1.msra.mxu0 0.0
      %1345 = vmatprep.subr.mxu0 0.0
      %1346 = vmatpush1.msra.mxu0 0.0
      %1347 = vmatprep.subr.mxu0 0.0
      %1348 = vmatpush1.msra.mxu0 0.0
      %1349 = vmatprep.subr.mxu0 0.0
      %1350 = vmatpush1.msra.mxu0 0.0
      %1351 = vmatprep.subr.mxu0 0.0
      %1352 = vmatpush1.msra.mxu0 0.0
      %1353 = vmatprep.subr.mxu0 0.0
      %1354 = vmatpush1.msra.mxu0 0.0
      %1355 = vmatprep.subr.mxu0 0.0
      %1356 = vmatpush1.msra.mxu0 0.0
      %1357 = vmatprep.subr.mxu0 0.0
      %1358 = vmatpush1.msra.mxu0 0.0
      %1359 = vmatprep.subr.mxu0 0.0
      %1360 = vmatpush1.msra.mxu0 0.0
      %1361 = vmatprep.subr.mxu0 0.0
      %1362 = vmatpush1.msra.mxu0 0.0
      %1363 = vmatprep.subr.mxu0 0.0
      %1364 = vmatpush1.msra.mxu0 0.0
      %1365 = vmatprep.subr.mxu0 0.0
      %1366 = vmatpush1.msra.mxu0 0.0
      %1367 = vmatprep.mubr.f32.mxu0 0.0
      %v1368 = vand.u32 %v508, 4294901760
      %1369 = vmatmul.mubr.f32.gmra.mrb[0].mxu0 %v1368
      %v1370 = vpop.f32.mrb[0].mxu0
      %v1371 = vadd.f32 %v1242, %v1370
      %v1372 = vpop.f32.mrb[0].mxu0
      %v1373 = vadd.f32 %v1244, %v1372
      %1374 = vmatprep.mubr.f32.mxu0 0.0
      %v1375 = vand.u32 %v511, 4294901760
      %1376 = vmatmul.mubr.f32.gmra.mrb[0].mxu0 %v1375
      %v1377 = vpop.f32.mrb[0].mxu0
      %v1378 = vadd.f32 %v1249, %v1377
      %v1379 = vpop.f32.mrb[0].mxu0
      %v1380 = vadd.f32 %v1251, %v1379
      %1381 = vmatprep.mubr.f32.mxu0 0.0
      %v1382 = vand.u32 %v514, 4294901760
      %1383 = vmatmul.mubr.f32.gmra.mrb[0].mxu0 %v1382
      %v1384 = vpop.f32.mrb[0].mxu0
      %v1385 = vadd.f32 %v1256, %v1384
      %v1386 = vpop.f32.mrb[0].mxu0
      %v1387 = vadd.f32 %v1258, %v1386
      %1388 = vmatprep.mubr.f32.mxu0 0.0
      %v1389 = vand.u32 %v517, 4294901760
      %1390 = vmatmul.mubr.f32.gmra.mrb[0].mxu0 %v1389
      %v1391 = vpop.f32.mrb[0].mxu0
      %v1392 = vadd.f32 %v1263, %v1391
      %v1393 = vpop.f32.mrb[0].mxu0
      %v1394 = vadd.f32 %v1265, %v1393
      %1395 = vmatprep.mubr.f32.mxu0 0.0
      %v1396 = vand.u32 %v520, 4294901760
      %1397 = vmatmul.mubr.f32.gmra.mrb[0].mxu0 %v1396
      %v1398 = vpop.f32.mrb[0].mxu0
      %v1399 = vadd.f32 %v1270, %v1398
      %v1400 = vpop.f32.mrb[0].mxu0
      %v1401 = vadd.f32 %v1272, %v1400
      %1402 = vmatprep.mubr.f32.mxu0 0.0
      %v1403 = vand.u32 %v523, 4294901760
      %1404 = vmatmul.mubr.f32.gmra.mrb[0].mxu0 %v1403
      %v1405 = vpop.f32.mrb[0].mxu0
      %v1406 = vadd.f32 %v1277, %v1405
      %v1407 = vpop.f32.mrb[0].mxu0
      %v1408 = vadd.f32 %v1279, %v1407
      %1409 = vmatprep.mubr.f32.mxu0 0.0
      %v1410 = vand.u32 %v526, 4294901760
      %1411 = vmatmul.mubr.f32.gmra.mrb[0].mxu0 %v1410
      %v1412 = vpop.f32.mrb[0].mxu0
      %v1413 = vadd.f32 %v1284, %v1412
      %v1414 = vpop.f32.mrb[0].mxu0
      %v1415 = vadd.f32 %v1286, %v1414
      %1416 = vmatprep.mubr.f32.mxu0 0.0
      %v1417 = vand.u32 %v529, 4294901760
      %1418 = vmatmul.mubr.f32.gmra.mrb[0].mxu0 %v1417
      %v1419 = vpop.f32.mrb[0].mxu0
      %v1420 = vadd.f32 %v1291, %v1419
      %v1421 = vpop.f32.mrb[0].mxu0
      %v1422 = vadd.f32 %v1293, %v1421
      %1423 = vdwg.mxu0
      %v1424 = vmax.f32 %v1371, 0.0
      %v1425 = vmax.f32 %v1373, 0.0
      %v1426 = vmax.f32 %v1378, 0.0
      %v1427 = vmax.f32 %v1380, 0.0
      %v1428 = vmax.f32 %v1385, 0.0
      %v1429 = vmax.f32 %v1387, 0.0
      %v1430 = vmax.f32 %v1392, 0.0
      %v1431 = vmax.f32 %v1394, 0.0
      %v1432 = vmax.f32 %v1399, 0.0
      %v1433 = vmax.f32 %v1401, 0.0
      %v1434 = vmax.f32 %v1406, 0.0
      %v1435 = vmax.f32 %v1408, 0.0
      %v1436 = vmax.f32 %v1413, 0.0
      %v1437 = vmax.f32 %v1415, 0.0
      %v1438 = vmax.f32 %v1420, 0.0
      %v1439 = vmax.f32 %v1422, 0.0
      %v1440 = vmul.f32 %v1424, %v440
      %v1441 = vmul.f32 %v1425, %v441
      %v1442 = vmul.f32 %v1426, %v440
      %v1443 = vmul.f32 %v1427, %v441
      %v1444 = vmul.f32 %v1428, %v440
      %v1445 = vmul.f32 %v1429, %v441
      %v1446 = vmul.f32 %v1430, %v440
      %v1447 = vmul.f32 %v1431, %v441
      %v1448 = vmul.f32 %v1432, %v440
      %v1449 = vmul.f32 %v1433, %v441
      %v1450 = vmul.f32 %v1434, %v440
      %v1451 = vmul.f32 %v1435, %v441
      %v1452 = vmul.f32 %v1436, %v440
      %v1453 = vmul.f32 %v1437, %v441
      %v1454 = vmul.f32 %v1438, %v440
      %v1455 = vmul.f32 %v1439, %v441
      %1472 = vrot.lane.b32.xlu0 %v1440, 1
      %v1473 = vpop.permute.xlu0 %1472
      %1474 = vrot.lane.b32.xlu0 %v1441, 1
      %v1475 = vpop.permute.xlu0 %1474
      %1476 = vrot.lane.b32.xlu0 %v1442, 1
      %v1477 = vpop.permute.xlu0 %1476
      %1478 = vrot.lane.b32.xlu0 %v1443, 1
      %v1479 = vpop.permute.xlu0 %1478
      %1480 = vrot.lane.b32.xlu0 %v1444, 1
      %v1481 = vpop.permute.xlu0 %1480
      %1482 = vrot.lane.b32.xlu0 %v1445, 1
      %v1483 = vpop.permute.xlu0 %1482
      %1484 = vrot.lane.b32.xlu0 %v1446, 1
      %v1485 = vpop.permute.xlu0 %1484
      %1486 = vrot.lane.b32.xlu0 %v1447, 1
      %v1487 = vpop.permute.xlu0 %1486
      %1488 = vrot.lane.b32.xlu0 %v1448, 1
      %v1489 = vpop.permute.xlu0 %1488
      %1490 = vrot.lane.b32.xlu0 %v1449, 1
      %v1491 = vpop.permute.xlu0 %1490
      %1492 = vrot.lane.b32.xlu0 %v1450, 1
      %v1493 = vpop.permute.xlu0 %1492
      %1494 = vrot.lane.b32.xlu0 %v1451, 1
      %v1495 = vpop.permute.xlu0 %1494
      %1496 = vrot.lane.b32.xlu0 %v1452, 1
      %v1497 = vpop.permute.xlu0 %1496
      %1498 = vrot.lane.b32.xlu0 %v1453, 1
      %v1499 = vpop.permute.xlu0 %1498
      %1500 = vrot.lane.b32.xlu0 %v1454, 1
      %v1501 = vpop.permute.xlu0 %1500
      %1502 = vrot.lane.b32.xlu0 %v1455, 1
      %v1503 = vpop.permute.xlu0 %1502
      %vm1504 = vcmask 7168
      %v1505 = vsel %vm1504, %v1473, %v1475
      %v1506 = vsel %vm1504, %v1477, %v1479
      %v1507 = vsel %vm1504, %v1481, %v1483
      %v1508 = vsel %vm1504, %v1485, %v1487
      %v1509 = vsel %vm1504, %v1489, %v1491
      %v1510 = vsel %vm1504, %v1493, %v1495
      %v1511 = vsel %vm1504, %v1497, %v1499
      %v1512 = vsel %vm1504, %v1501, %v1503
      %vm1529 = vcmask 1047560
      %1530 = vst.msk [vmem:[#allocation3] sm:$0xff] %vm1529, %v1473
      %vm1531 = vcmask 433152
      %1532 = vst.msk [vmem:[#allocation3 + $0x8] sm:$0xff] %vm1531, %v1505
      %1533 = vst.msk [vmem:[#allocation3 + $0x10] sm:$0xff] %vm1529, %v1477
      %1534 = vst.msk [vmem:[#allocation3 + $0x18] sm:$0xff] %vm1531, %v1506
      %1535 = vst.msk [vmem:[#allocation3 + $0x20] sm:$0xff] %vm1529, %v1481
      %1536 = vst.msk [vmem:[#allocation3 + $0x28] sm:$0xff] %vm1531, %v1507
      %1537 = vst.msk [vmem:[#allocation3 + $0x30] sm:$0xff] %vm1529, %v1485
      %1538 = vst.msk [vmem:[#allocation3 + $0x38] sm:$0xff] %vm1531, %v1508
      %1539 = vst.msk [vmem:[#allocation3 + $0x40] sm:$0xff] %vm1529, %v1489
      %1540 = vst.msk [vmem:[#allocation3 + $0x48] sm:$0xff] %vm1531, %v1509
      %1541 = vst.msk [vmem:[#allocation3 + $0x50] sm:$0xff] %vm1529, %v1493
      %1542 = vst.msk [vmem:[#allocation3 + $0x58] sm:$0xff] %vm1531, %v1510
      %1543 = vst.msk [vmem:[#allocation3 + $0x60] sm:$0xff] %vm1529, %v1497
      %1544 = vst.msk [vmem:[#allocation3 + $0x68] sm:$0xff] %vm1531, %v1511
      %1545 = vst.msk [vmem:[#allocation3 + $0x70] sm:$0xff] %vm1529, %v1501
      %1546 = vst.msk [vmem:[#allocation3 + $0x78] sm:$0xff] %vm1531, %v1512
      %1547 = vst.msk [vmem:[#allocation3] sm:$0xff] %vm1504, 0.0
      %1548 = vst.msk [vmem:[#allocation3 + $0x10] sm:$0xff] %vm1504, 0.0
      %1549 = vst.msk [vmem:[#allocation3 + $0x20] sm:$0xff] %vm1504, 0.0
      %1550 = vst.msk [vmem:[#allocation3 + $0x30] sm:$0xff] %vm1504, 0.0
      %1551 = vst.msk [vmem:[#allocation3 + $0x40] sm:$0xff] %vm1504, 0.0
      %1552 = vst.msk [vmem:[#allocation3 + $0x50] sm:$0xff] %vm1504, 0.0
      %1553 = vst.msk [vmem:[#allocation3 + $0x60] sm:$0xff] %vm1504, 0.0
      %1554 = vst.msk [vmem:[#allocation3 + $0x70] sm:$0xff] %vm1504, 0.0
      %vm1555 = vcmask 441768
      %1556 = vst.msk [vmem:[#allocation3 + $0x8] sm:$0xff] %vm1555, 0.0
      %1557 = vst.msk [vmem:[#allocation3 + $0x18] sm:$0xff] %vm1555, 0.0
      %1558 = vst.msk [vmem:[#allocation3 + $0x28] sm:$0xff] %vm1555, 0.0
      %1559 = vst.msk [vmem:[#allocation3 + $0x38] sm:$0xff] %vm1555, 0.0
      %1560 = vst.msk [vmem:[#allocation3 + $0x48] sm:$0xff] %vm1555, 0.0
      %1561 = vst.msk [vmem:[#allocation3 + $0x58] sm:$0xff] %vm1555, 0.0
      %1562 = vst.msk [vmem:[#allocation3 + $0x68] sm:$0xff] %vm1555, 0.0
      %1563 = vst.msk [vmem:[#allocation3 + $0x78] sm:$0xff] %vm1555, 0.0
      %p1564 = scmp.eq.s32.totalorder %s21, 0
      // Predicated region
      $region41: #{dip_model_forward.1} parent=39 // pred_check
        %p1565 = pneg %p1564
      $region42: #{dip_model_forward.1} parent=39 // pred_check_branch
        %1567 = sbr.rel (%p1565) target = $region44
      $region43: #{dip_model_forward.1} parent=39 // pred_region
        %vm1568 = vcmask 154632
        %1569 = vst.msk [vmem:[#allocation3] sm:$0xff] %vm1568, 0.0
        %1570 = vst.msk [vmem:[#allocation3 + $0x10] sm:$0xff] %vm1568, 0.0
        %1571 = vst.msk [vmem:[#allocation3 + $0x20] sm:$0xff] %vm1568, 0.0
        %1572 = vst.msk [vmem:[#allocation3 + $0x30] sm:$0xff] %vm1568, 0.0
        %1573 = vst.msk [vmem:[#allocation3 + $0x40] sm:$0xff] %vm1568, 0.0
        %1574 = vst.msk [vmem:[#allocation3 + $0x50] sm:$0xff] %vm1568, 0.0
        %1575 = vst.msk [vmem:[#allocation3 + $0x60] sm:$0xff] %vm1568, 0.0
        %1576 = vst.msk [vmem:[#allocation3 + $0x70] sm:$0xff] %vm1568, 0.0
      $region44: #{dip_model_forward.1} parent=39 // pred_fallthru
        _
      %p1577 = scmp.eq.s32.totalorder %s21, 1
      // Predicated region
      $region45: #{dip_model_forward.1} parent=39 // pred_check
        %p1578 = pneg %p1577
      $region46: #{dip_model_forward.1} parent=39 // pred_check_branch
        %1580 = sbr.rel (%p1578) target = $region48
      $region47: #{dip_model_forward.1} parent=39 // pred_region
        %vm1581 = vcmask 433432
        %1582 = vst.msk [vmem:[#allocation3 + $0x8] sm:$0xff] %vm1581, 0.0
        %1583 = vst.msk [vmem:[#allocation3 + $0x18] sm:$0xff] %vm1581, 0.0
        %1584 = vst.msk [vmem:[#allocation3 + $0x28] sm:$0xff] %vm1581, 0.0
        %1585 = vst.msk [vmem:[#allocation3 + $0x38] sm:$0xff] %vm1581, 0.0
        %1586 = vst.msk [vmem:[#allocation3 + $0x48] sm:$0xff] %vm1581, 0.0
        %1587 = vst.msk [vmem:[#allocation3 + $0x58] sm:$0xff] %vm1581, 0.0
        %1588 = vst.msk [vmem:[#allocation3 + $0x68] sm:$0xff] %vm1581, 0.0
        %1589 = vst.msk [vmem:[#allocation3 + $0x78] sm:$0xff] %vm1581, 0.0
      $region48: #{dip_model_forward.1} parent=39 // pred_fallthru
        _
      %v1590 = vld [vmem:[%s3] sm:$0xff]
      %v1591 = vld [vmem:[#allocation3] sm:$0xff]
      %v1592 = vld [vmem:[#allocation3 + $0x8] sm:$0xff]
      %v1593 = vld [vmem:[#allocation3 + $0x10] sm:$0xff]
      %v1594 = vld [vmem:[#allocation3 + $0x18] sm:$0xff]
      %v1595 = vld [vmem:[#allocation3 + $0x20] sm:$0xff]
      %v1596 = vld [vmem:[#allocation3 + $0x28] sm:$0xff]
      %v1597 = vld [vmem:[#allocation3 + $0x30] sm:$0xff]
      %v1598 = vld [vmem:[#allocation3 + $0x38] sm:$0xff]
      %v1599 = vld [vmem:[#allocation3 + $0x40] sm:$0xff]
      %v1600 = vld [vmem:[#allocation3 + $0x48] sm:$0xff]
      %v1601 = vld [vmem:[#allocation3 + $0x50] sm:$0xff]
      %v1602 = vld [vmem:[#allocation3 + $0x58] sm:$0xff]
      %v1603 = vld [vmem:[#allocation3 + $0x60] sm:$0xff]
      %v1604 = vld [vmem:[#allocation3 + $0x68] sm:$0xff]
      %v1605 = vld [vmem:[#allocation3 + $0x70] sm:$0xff]
      %v1606 = vld [vmem:[#allocation3 + $0x78] sm:$0xff]
      %s1607 = scalar_lea.vmem %s3, 8
      %v1608 = vld [vmem:[%s1607] sm:$0xff]
      %1625 = vrot.lane.b32.xlu0 %v1591, 127
      %v1626 = vpop.permute.xlu0 %1625
      %1627 = vrot.lane.b32.xlu0 %v1592, 127
      %v1628 = vpop.permute.xlu0 %1627
      %1629 = vrot.lane.b32.xlu0 %v1593, 127
      %v1630 = vpop.permute.xlu0 %1629
      %1631 = vrot.lane.b32.xlu0 %v1594, 127
      %v1632 = vpop.permute.xlu0 %1631
      %1633 = vrot.lane.b32.xlu0 %v1595, 127
      %v1634 = vpop.permute.xlu0 %1633
      %1635 = vrot.lane.b32.xlu0 %v1596, 127
      %v1636 = vpop.permute.xlu0 %1635
      %1637 = vrot.lane.b32.xlu0 %v1597, 127
      %v1638 = vpop.permute.xlu0 %1637
      %1639 = vrot.lane.b32.xlu0 %v1598, 127
      %v1640 = vpop.permute.xlu0 %1639
      %1641 = vrot.lane.b32.xlu0 %v1599, 127
      %v1642 = vpop.permute.xlu0 %1641
      %1643 = vrot.lane.b32.xlu0 %v1600, 127
      %v1644 = vpop.permute.xlu0 %1643
      %1645 = vrot.lane.b32.xlu0 %v1601, 127
      %v1646 = vpop.permute.xlu0 %1645
      %1647 = vrot.lane.b32.xlu0 %v1602, 127
      %v1648 = vpop.permute.xlu0 %1647
      %1649 = vrot.lane.b32.xlu0 %v1603, 127
      %v1650 = vpop.permute.xlu0 %1649
      %1651 = vrot.lane.b32.xlu0 %v1604, 127
      %v1652 = vpop.permute.xlu0 %1651
      %1653 = vrot.lane.b32.xlu0 %v1605, 127
      %v1654 = vpop.permute.xlu0 %1653
      %1655 = vrot.lane.b32.xlu0 %v1606, 127
      %v1656 = vpop.permute.xlu0 %1655
      %v1657 = vsel %vm277, %v1626, %v1628
      %v1658 = vsel %vm277, %v1630, %v1632
      %v1659 = vsel %vm277, %v1634, %v1636
      %v1660 = vsel %vm277, %v1638, %v1640
      %v1661 = vsel %vm277, %v1642, %v1644
      %v1662 = vsel %vm277, %v1646, %v1648
      %v1663 = vsel %vm277, %v1650, %v1652
      %v1664 = vsel %vm277, %v1654, %v1656
      %vm1681 = vcmask 523264
      %v1683 = vsel %vm1681, %v1608, 0
      %v1685 = vand.u32 %v1628, 4294901760
      %1686 = vmatprep.subr.mxu0 %v1685
      %v1687 = vand.u32 %v1657, 4294901760
      %1688 = vmatpush1.msra.mxu0 %v1687
      %v1689 = vand.u32 %v1632, 4294901760
      %1690 = vmatprep.subr.mxu0 %v1689
      %v1691 = vand.u32 %v1658, 4294901760
      %1692 = vmatpush1.msra.mxu0 %v1691
      %v1693 = vand.u32 %v1636, 4294901760
      %1694 = vmatprep.subr.mxu0 %v1693
      %v1695 = vand.u32 %v1659, 4294901760
      %1696 = vmatpush1.msra.mxu0 %v1695
      %v1697 = vand.u32 %v1640, 4294901760
      %1698 = vmatprep.subr.mxu0 %v1697
      %v1699 = vand.u32 %v1660, 4294901760
      %1700 = vmatpush1.msra.mxu0 %v1699
      %v1701 = vand.u32 %v1644, 4294901760
      %1702 = vmatprep.subr.mxu0 %v1701
      %v1703 = vand.u32 %v1661, 4294901760
      %1704 = vmatpush1.msra.mxu0 %v1703
      %v1705 = vand.u32 %v1648, 4294901760
      %1706 = vmatprep.subr.mxu0 %v1705
      %v1707 = vand.u32 %v1662, 4294901760
      %1708 = vmatpush1.msra.mxu0 %v1707
      %v1709 = vand.u32 %v1652, 4294901760
      %1710 = vmatprep.subr.mxu0 %v1709
      %v1711 = vand.u32 %v1663, 4294901760
      %1712 = vmatpush1.msra.mxu0 %v1711
      %v1713 = vand.u32 %v1656, 4294901760
      %1714 = vmatprep.subr.mxu0 %v1713
      %v1715 = vand.u32 %v1664, 4294901760
      %1716 = vmatpush1.msra.mxu0 %v1715
      %1717 = vmatprep.subr.mxu0 0.0
      %1718 = vmatpush1.msra.mxu0 0.0
      %1719 = vmatprep.subr.mxu0 0.0
      %1720 = vmatpush1.msra.mxu0 0.0
      %1721 = vmatprep.subr.mxu0 0.0
      %1722 = vmatpush1.msra.mxu0 0.0
      %1723 = vmatprep.subr.mxu0 0.0
      %1724 = vmatpush1.msra.mxu0 0.0
      %1725 = vmatprep.subr.mxu0 0.0
      %1726 = vmatpush1.msra.mxu0 0.0
      %1727 = vmatprep.subr.mxu0 0.0
      %1728 = vmatpush1.msra.mxu0 0.0
      %1729 = vmatprep.subr.mxu0 0.0
      %1730 = vmatpush1.msra.mxu0 0.0
      %1731 = vmatprep.subr.mxu0 0.0
      %1732 = vmatpush1.msra.mxu0 0.0
      %1733 = vmatprep.subr.mxu0 0.0
      %1734 = vmatpush1.msra.mxu0 0.0
      %1735 = vmatprep.subr.mxu0 0.0
      %1736 = vmatpush1.msra.mxu0 0.0
      %1737 = vmatprep.subr.mxu0 0.0
      %1738 = vmatpush1.msra.mxu0 0.0
      %1739 = vmatprep.subr.mxu0 0.0
      %1740 = vmatpush1.msra.mxu0 0.0
      %1741 = vmatprep.subr.mxu0 0.0
      %1742 = vmatpush1.msra.mxu0 0.0
      %1743 = vmatprep.subr.mxu0 0.0
      %1744 = vmatpush1.msra.mxu0 0.0
      %1745 = vmatprep.subr.mxu0 0.0
      %1746 = vmatpush1.msra.mxu0 0.0
      %1747 = vmatprep.subr.mxu0 0.0
      %1748 = vmatpush1.msra.mxu0 0.0
      %1749 = vmatprep.subr.mxu0 0.0
      %1750 = vmatpush1.msra.mxu0 0.0
      %1751 = vmatprep.subr.mxu0 0.0
      %1752 = vmatpush1.msra.mxu0 0.0
      %1753 = vmatprep.subr.mxu0 0.0
      %1754 = vmatpush1.msra.mxu0 0.0
      %1755 = vmatprep.subr.mxu0 0.0
      %1756 = vmatpush1.msra.mxu0 0.0
      %1757 = vmatprep.subr.mxu0 0.0
      %1758 = vmatpush1.msra.mxu0 0.0
      %1759 = vmatprep.subr.mxu0 0.0
      %1760 = vmatpush1.msra.mxu0 0.0
      %1761 = vmatprep.subr.mxu0 0.0
      %1762 = vmatpush1.msra.mxu0 0.0
      %1763 = vmatprep.subr.mxu0 0.0
      %1764 = vmatpush1.msra.mxu0 0.0
      %1765 = vmatprep.mubr.f32.mxu0 0.0
      %v1766 = vand.u32 %v1683, 4294901760
      %v1767 = vsub.f32 %v1683, %v1766
      %v1768 = vand.u32 %v1767, 4294901760
      %v1769 = vsub.f32 %v1767, %v1768
      %v1770 = vand.u32 %v1769, 4294901760
      %1771 = vmatmul.mubr.f32.gmra.mrb[0].mxu0 %v1770
      %v1772 = vpop.f32.mrb[0].mxu0
      %v1773 = vadd.f32 0.0, %v1772
      %v1774 = vpop.f32.mrb[0].mxu0
      %v1775 = vadd.f32 0.0, %v1774
      %1776 = vdwg.mxu0
      %v1777 = vand.u32 %v1628, 4294901760
      %v1778 = vsub.f32 %v1628, %v1777
      %v1779 = vand.u32 %v1778, 4294901760
      %v1780 = vsub.f32 %v1778, %v1779
      %v1781 = vand.u32 %v1780, 4294901760
      %1782 = vmatprep.subr.mxu0 %v1781
      %v1783 = vand.u32 %v1657, 4294901760
      %v1784 = vsub.f32 %v1657, %v1783
      %v1785 = vand.u32 %v1784, 4294901760
      %v1786 = vsub.f32 %v1784, %v1785
      %v1787 = vand.u32 %v1786, 4294901760
      %1788 = vmatpush1.msra.mxu0 %v1787
      %v1789 = vand.u32 %v1632, 4294901760
      %v1790 = vsub.f32 %v1632, %v1789
      %v1791 = vand.u32 %v1790, 4294901760
      %v1792 = vsub.f32 %v1790, %v1791
      %v1793 = vand.u32 %v1792, 4294901760
      %1794 = vmatprep.subr.mxu0 %v1793
      %v1795 = vand.u32 %v1658, 4294901760
      %v1796 = vsub.f32 %v1658, %v1795
      %v1797 = vand.u32 %v1796, 4294901760
      %v1798 = vsub.f32 %v1796, %v1797
      %v1799 = vand.u32 %v1798, 4294901760
      %1800 = vmatpush1.msra.mxu0 %v1799
      %v1801 = vand.u32 %v1636, 4294901760
      %v1802 = vsub.f32 %v1636, %v1801
      %v1803 = vand.u32 %v1802, 4294901760
      %v1804 = vsub.f32 %v1802, %v1803
      %v1805 = vand.u32 %v1804, 4294901760
      %1806 = vmatprep.subr.mxu0 %v1805
      %v1807 = vand.u32 %v1659, 4294901760
      %v1808 = vsub.f32 %v1659, %v1807
      %v1809 = vand.u32 %v1808, 4294901760
      %v1810 = vsub.f32 %v1808, %v1809
      %v1811 = vand.u32 %v1810, 4294901760
      %1812 = vmatpush1.msra.mxu0 %v1811
      %v1813 = vand.u32 %v1640, 4294901760
      %v1814 = vsub.f32 %v1640, %v1813
      %v1815 = vand.u32 %v1814, 4294901760
      %v1816 = vsub.f32 %v1814, %v1815
      %v1817 = vand.u32 %v1816, 4294901760
      %1818 = vmatprep.subr.mxu0 %v1817
      %v1819 = vand.u32 %v1660, 4294901760
      %v1820 = vsub.f32 %v1660, %v1819
      %v1821 = vand.u32 %v1820, 4294901760
      %v1822 = vsub.f32 %v1820, %v1821
      %v1823 = vand.u32 %v1822, 4294901760
      %1824 = vmatpush1.msra.mxu0 %v1823
      %v1825 = vand.u32 %v1644, 4294901760
      %v1826 = vsub.f32 %v1644, %v1825
      %v1827 = vand.u32 %v1826, 4294901760
      %v1828 = vsub.f32 %v1826, %v1827
      %v1829 = vand.u32 %v1828, 4294901760
      %1830 = vmatprep.subr.mxu0 %v1829
      %v1831 = vand.u32 %v1661, 4294901760
      %v1832 = vsub.f32 %v1661, %v1831
      %v1833 = vand.u32 %v1832, 4294901760
      %v1834 = vsub.f32 %v1832, %v1833
      %v1835 = vand.u32 %v1834, 4294901760
      %1836 = vmatpush1.msra.mxu0 %v1835
      %v1837 = vand.u32 %v1648, 4294901760
      %v1838 = vsub.f32 %v1648, %v1837
      %v1839 = vand.u32 %v1838, 4294901760
      %v1840 = vsub.f32 %v1838, %v1839
      %v1841 = vand.u32 %v1840, 4294901760
      %1842 = vmatprep.subr.mxu0 %v1841
      %v1843 = vand.u32 %v1662, 4294901760
      %v1844 = vsub.f32 %v1662, %v1843
      %v1845 = vand.u32 %v1844, 4294901760
      %v1846 = vsub.f32 %v1844, %v1845
      %v1847 = vand.u32 %v1846, 4294901760
      %1848 = vmatpush1.msra.mxu0 %v1847
      %v1849 = vand.u32 %v1652, 4294901760
      %v1850 = vsub.f32 %v1652, %v1849
      %v1851 = vand.u32 %v1850, 4294901760
      %v1852 = vsub.f32 %v1850, %v1851
      %v1853 = vand.u32 %v1852, 4294901760
      %1854 = vmatprep.subr.mxu0 %v1853
      %v1855 = vand.u32 %v1663, 4294901760
      %v1856 = vsub.f32 %v1663, %v1855
      %v1857 = vand.u32 %v1856, 4294901760
      %v1858 = vsub.f32 %v1856, %v1857
      %v1859 = vand.u32 %v1858, 4294901760
      %1860 = vmatpush1.msra.mxu0 %v1859
      %v1861 = vand.u32 %v1656, 4294901760
      %v1862 = vsub.f32 %v1656, %v1861
      %v1863 = vand.u32 %v1862, 4294901760
      %v1864 = vsub.f32 %v1862, %v1863
      %v1865 = vand.u32 %v1864, 4294901760
      %1866 = vmatprep.subr.mxu0 %v1865
      %v1867 = vand.u32 %v1664, 4294901760
      %v1868 = vsub.f32 %v1664, %v1867
      %v1869 = vand.u32 %v1868, 4294901760
      %v1870 = vsub.f32 %v1868, %v1869
      %v1871 = vand.u32 %v1870, 4294901760
      %1872 = vmatpush1.msra.mxu0 %v1871
      %1873 = vmatprep.subr.mxu0 0.0
      %1874 = vmatpush1.msra.mxu0 0.0
      %1875 = vmatprep.subr.mxu0 0.0
      %1876 = vmatpush1.msra.mxu0 0.0
      %1877 = vmatprep.subr.mxu0 0.0
      %1878 = vmatpush1.msra.mxu0 0.0
      %1879 = vmatprep.subr.mxu0 0.0
      %1880 = vmatpush1.msra.mxu0 0.0
      %1881 = vmatprep.subr.mxu0 0.0
      %1882 = vmatpush1.msra.mxu0 0.0
      %1883 = vmatprep.subr.mxu0 0.0
      %1884 = vmatpush1.msra.mxu0 0.0
      %1885 = vmatprep.subr.mxu0 0.0
      %1886 = vmatpush1.msra.mxu0 0.0
      %1887 = vmatprep.subr.mxu0 0.0
      %1888 = vmatpush1.msra.mxu0 0.0
      %1889 = vmatprep.subr.mxu0 0.0
      %1890 = vmatpush1.msra.mxu0 0.0
      %1891 = vmatprep.subr.mxu0 0.0
      %1892 = vmatpush1.msra.mxu0 0.0
      %1893 = vmatprep.subr.mxu0 0.0
      %1894 = vmatpush1.msra.mxu0 0.0
      %1895 = vmatprep.subr.mxu0 0.0
      %1896 = vmatpush1.msra.mxu0 0.0
      %1897 = vmatprep.subr.mxu0 0.0
      %1898 = vmatpush1.msra.mxu0 0.0
      %1899 = vmatprep.subr.mxu0 0.0
      %1900 = vmatpush1.msra.mxu0 0.0
      %1901 = vmatprep.subr.mxu0 0.0
      %1902 = vmatpush1.msra.mxu0 0.0
      %1903 = vmatprep.subr.mxu0 0.0
      %1904 = vmatpush1.msra.mxu0 0.0
      %1905 = vmatprep.subr.mxu0 0.0
      %1906 = vmatpush1.msra.mxu0 0.0
      %1907 = vmatprep.subr.mxu0 0.0
      %1908 = vmatpush1.msra.mxu0 0.0
      %1909 = vmatprep.subr.mxu0 0.0
      %1910 = vmatpush1.msra.mxu0 0.0
      %1911 = vmatprep.subr.mxu0 0.0
      %1912 = vmatpush1.msra.mxu0 0.0
      %1913 = vmatprep.subr.mxu0 0.0
      %1914 = vmatpush1.msra.mxu0 0.0
      %1915 = vmatprep.subr.mxu0 0.0
      %1916 = vmatpush1.msra.mxu0 0.0
      %1917 = vmatprep.subr.mxu0 0.0
      %1918 = vmatpush1.msra.mxu0 0.0
      %1919 = vmatprep.subr.mxu0 0.0
      %1920 = vmatpush1.msra.mxu0 0.0
      %1921 = vmatprep.mubr.f32.mxu0 0.0
      %v1922 = vand.u32 %v1683, 4294901760
      %1923 = vmatmul.mubr.f32.gmra.mrb[0].mxu0 %v1922
      %v1924 = vpop.f32.mrb[0].mxu0
      %v1925 = vadd.f32 %v1773, %v1924
      %v1926 = vpop.f32.mrb[0].mxu0
      %v1927 = vadd.f32 %v1775, %v1926
      %1928 = vdwg.mxu0
      %v1929 = vand.u32 %v1628, 4294901760
      %v1930 = vsub.f32 %v1628, %v1929
      %1931 = vmatprep.subr.mxu0 %v1930
      %v1932 = vand.u32 %v1657, 4294901760
      %v1933 = vsub.f32 %v1657, %v1932
      %1934 = vmatpush1.msra.mxu0 %v1933
      %v1935 = vand.u32 %v1632, 4294901760
      %v1936 = vsub.f32 %v1632, %v1935
      %1937 = vmatprep.subr.mxu0 %v1936
      %v1938 = vand.u32 %v1658, 4294901760
      %v1939 = vsub.f32 %v1658, %v1938
      %1940 = vmatpush1.msra.mxu0 %v1939
      %v1941 = vand.u32 %v1636, 4294901760
      %v1942 = vsub.f32 %v1636, %v1941
      %1943 = vmatprep.subr.mxu0 %v1942
      %v1944 = vand.u32 %v1659, 4294901760
      %v1945 = vsub.f32 %v1659, %v1944
      %1946 = vmatpush1.msra.mxu0 %v1945
      %v1947 = vand.u32 %v1640, 4294901760
      %v1948 = vsub.f32 %v1640, %v1947
      %1949 = vmatprep.subr.mxu0 %v1948
      %v1950 = vand.u32 %v1660, 4294901760
      %v1951 = vsub.f32 %v1660, %v1950
      %1952 = vmatpush1.msra.mxu0 %v1951
      %v1953 = vand.u32 %v1644, 4294901760
      %v1954 = vsub.f32 %v1644, %v1953
      %1955 = vmatprep.subr.mxu0 %v1954
      %v1956 = vand.u32 %v1661, 4294901760
      %v1957 = vsub.f32 %v1661, %v1956
      %1958 = vmatpush1.msra.mxu0 %v1957
      %v1959 = vand.u32 %v1648, 4294901760
      %v1960 = vsub.f32 %v1648, %v1959
      %1961 = vmatprep.subr.mxu0 %v1960
      %v1962 = vand.u32 %v1662, 4294901760
      %v1963 = vsub.f32 %v1662, %v1962
      %1964 = vmatpush1.msra.mxu0 %v1963
      %v1965 = vand.u32 %v1652, 4294901760
      %v1966 = vsub.f32 %v1652, %v1965
      %1967 = vmatprep.subr.mxu0 %v1966
      %v1968 = vand.u32 %v1663, 4294901760
      %v1969 = vsub.f32 %v1663, %v1968
      %1970 = vmatpush1.msra.mxu0 %v1969
      %v1971 = vand.u32 %v1656, 4294901760
      %v1972 = vsub.f32 %v1656, %v1971
      %1973 = vmatprep.subr.mxu0 %v1972
      %v1974 = vand.u32 %v1664, 4294901760
      %v1975 = vsub.f32 %v1664, %v1974
      %1976 = vmatpush1.msra.mxu0 %v1975
      %1977 = vmatprep.subr.mxu0 0.0
      %1978 = vmatpush1.msra.mxu0 0.0
      %1979 = vmatprep.subr.mxu0 0.0
      %1980 = vmatpush1.msra.mxu0 0.0
      %1981 = vmatprep.subr.mxu0 0.0
      %1982 = vmatpush1.msra.mxu0 0.0
      %1983 = vmatprep.subr.mxu0 0.0
      %1984 = vmatpush1.msra.mxu0 0.0
      %1985 = vmatprep.subr.mxu0 0.0
      %1986 = vmatpush1.msra.mxu0 0.0
      %1987 = vmatprep.subr.mxu0 0.0
      %1988 = vmatpush1.msra.mxu0 0.0
      %1989 = vmatprep.subr.mxu0 0.0
      %1990 = vmatpush1.msra.mxu0 0.0
      %1991 = vmatprep.subr.mxu0 0.0
      %1992 = vmatpush1.msra.mxu0 0.0
      %1993 = vmatprep.subr.mxu0 0.0
      %1994 = vmatpush1.msra.mxu0 0.0
      %1995 = vmatprep.subr.mxu0 0.0
      %1996 = vmatpush1.msra.mxu0 0.0
      %1997 = vmatprep.subr.mxu0 0.0
      %1998 = vmatpush1.msra.mxu0 0.0
      %1999 = vmatprep.subr.mxu0 0.0
      %2000 = vmatpush1.msra.mxu0 0.0
      %2001 = vmatprep.subr.mxu0 0.0
      %2002 = vmatpush1.msra.mxu0 0.0
      %2003 = vmatprep.subr.mxu0 0.0
      %2004 = vmatpush1.msra.mxu0 0.0
      %2005 = vmatprep.subr.mxu0 0.0
      %2006 = vmatpush1.msra.mxu0 0.0
      %2007 = vmatprep.subr.mxu0 0.0
      %2008 = vmatpush1.msra.mxu0 0.0
      %2009 = vmatprep.subr.mxu0 0.0
      %2010 = vmatpush1.msra.mxu0 0.0
      %2011 = vmatprep.subr.mxu0 0.0
      %2012 = vmatpush1.msra.mxu0 0.0
      %2013 = vmatprep.subr.mxu0 0.0
      %2014 = vmatpush1.msra.mxu0 0.0
      %2015 = vmatprep.subr.mxu0 0.0
      %2016 = vmatpush1.msra.mxu0 0.0
      %2017 = vmatprep.subr.mxu0 0.0
      %2018 = vmatpush1.msra.mxu0 0.0
      %2019 = vmatprep.subr.mxu0 0.0
      %2020 = vmatpush1.msra.mxu0 0.0
      %2021 = vmatprep.subr.mxu0 0.0
      %2022 = vmatpush1.msra.mxu0 0.0
      %2023 = vmatprep.subr.mxu0 0.0
      %2024 = vmatpush1.msra.mxu0 0.0
      %2025 = vmatprep.mubr.f32.mxu0 0.0
      %v2026 = vand.u32 %v1683, 4294901760
      %v2027 = vsub.f32 %v1683, %v2026
      %2028 = vmatmul.mubr.f32.gmra.mrb[0].mxu0 %v2027
      %v2029 = vpop.f32.mrb[0].mxu0
      %v2030 = vadd.f32 %v1925, %v2029
      %v2031 = vpop.f32.mrb[0].mxu0
      %v2032 = vadd.f32 %v1927, %v2031
      %2033 = vdwg.mxu0
      %v2034 = vand.u32 %v1628, 4294901760
      %2035 = vmatprep.subr.mxu0 %v2034
      %v2036 = vand.u32 %v1657, 4294901760
      %2037 = vmatpush1.msra.mxu0 %v2036
      %v2038 = vand.u32 %v1632, 4294901760
      %2039 = vmatprep.subr.mxu0 %v2038
      %v2040 = vand.u32 %v1658, 4294901760
      %2041 = vmatpush1.msra.mxu0 %v2040
      %v2042 = vand.u32 %v1636, 4294901760
      %2043 = vmatprep.subr.mxu0 %v2042
      %v2044 = vand.u32 %v1659, 4294901760
      %2045 = vmatpush1.msra.mxu0 %v2044
      %v2046 = vand.u32 %v1640, 4294901760
      %2047 = vmatprep.subr.mxu0 %v2046
      %v2048 = vand.u32 %v1660, 4294901760
      %2049 = vmatpush1.msra.mxu0 %v2048
      %v2050 = vand.u32 %v1644, 4294901760
      %2051 = vmatprep.subr.mxu0 %v2050
      %v2052 = vand.u32 %v1661, 4294901760
      %2053 = vmatpush1.msra.mxu0 %v2052
      %v2054 = vand.u32 %v1648, 4294901760
      %2055 = vmatprep.subr.mxu0 %v2054
      %v2056 = vand.u32 %v1662, 4294901760
      %2057 = vmatpush1.msra.mxu0 %v2056
      %v2058 = vand.u32 %v1652, 4294901760
      %2059 = vmatprep.subr.mxu0 %v2058
      %v2060 = vand.u32 %v1663, 4294901760
      %2061 = vmatpush1.msra.mxu0 %v2060
      %v2062 = vand.u32 %v1656, 4294901760
      %2063 = vmatprep.subr.mxu0 %v2062
      %v2064 = vand.u32 %v1664, 4294901760
      %2065 = vmatpush1.msra.mxu0 %v2064
      %2066 = vmatprep.subr.mxu0 0.0
      %2067 = vmatpush1.msra.mxu0 0.0
      %2068 = vmatprep.subr.mxu0 0.0
      %2069 = vmatpush1.msra.mxu0 0.0
      %2070 = vmatprep.subr.mxu0 0.0
      %2071 = vmatpush1.msra.mxu0 0.0
      %2072 = vmatprep.subr.mxu0 0.0
      %2073 = vmatpush1.msra.mxu0 0.0
      %2074 = vmatprep.subr.mxu0 0.0
      %2075 = vmatpush1.msra.mxu0 0.0
      %2076 = vmatprep.subr.mxu0 0.0
      %2077 = vmatpush1.msra.mxu0 0.0
      %2078 = vmatprep.subr.mxu0 0.0
      %2079 = vmatpush1.msra.mxu0 0.0
      %2080 = vmatprep.subr.mxu0 0.0
      %2081 = vmatpush1.msra.mxu0 0.0
      %2082 = vmatprep.subr.mxu0 0.0
      %2083 = vmatpush1.msra.mxu0 0.0
      %2084 = vmatprep.subr.mxu0 0.0
      %2085 = vmatpush1.msra.mxu0 0.0
      %2086 = vmatprep.subr.mxu0 0.0
      %2087 = vmatpush1.msra.mxu0 0.0
      %2088 = vmatprep.subr.mxu0 0.0
      %2089 = vmatpush1.msra.mxu0 0.0
      %2090 = vmatprep.subr.mxu0 0.0
      %2091 = vmatpush1.msra.mxu0 0.0
      %2092 = vmatprep.subr.mxu0 0.0
      %2093 = vmatpush1.msra.mxu0 0.0
      %2094 = vmatprep.subr.mxu0 0.0
      %2095 = vmatpush1.msra.mxu0 0.0
      %2096 = vmatprep.subr.mxu0 0.0
      %2097 = vmatpush1.msra.mxu0 0.0
      %2098 = vmatprep.subr.mxu0 0.0
      %2099 = vmatpush1.msra.mxu0 0.0
      %2100 = vmatprep.subr.mxu0 0.0
      %2101 = vmatpush1.msra.mxu0 0.0
      %2102 = vmatprep.subr.mxu0 0.0
      %2103 = vmatpush1.msra.mxu0 0.0
      %2104 = vmatprep.subr.mxu0 0.0
      %2105 = vmatpush1.msra.mxu0 0.0
      %2106 = vmatprep.subr.mxu0 0.0
      %2107 = vmatpush1.msra.mxu0 0.0
      %2108 = vmatprep.subr.mxu0 0.0
      %2109 = vmatpush1.msra.mxu0 0.0
      %2110 = vmatprep.subr.mxu0 0.0
      %2111 = vmatpush1.msra.mxu0 0.0
      %2112 = vmatprep.subr.mxu0 0.0
      %2113 = vmatpush1.msra.mxu0 0.0
      %2114 = vmatprep.mubr.f32.mxu0 0.0
      %v2115 = vand.u32 %v1683, 4294901760
      %v2116 = vsub.f32 %v1683, %v2115
      %v2117 = vand.u32 %v2116, 4294901760
      %2118 = vmatmul.mubr.f32.gmra.mrb[0].mxu0 %v2117
      %v2119 = vpop.f32.mrb[0].mxu0
      %v2120 = vadd.f32 %v2030, %v2119
      %v2121 = vpop.f32.mrb[0].mxu0
      %v2122 = vadd.f32 %v2032, %v2121
      %2123 = vdwg.mxu0
      %v2124 = vand.u32 %v1628, 4294901760
      %v2125 = vsub.f32 %v1628, %v2124
      %v2126 = vand.u32 %v2125, 4294901760
      %2127 = vmatprep.subr.mxu0 %v2126
      %v2128 = vand.u32 %v1657, 4294901760
      %v2129 = vsub.f32 %v1657, %v2128
      %v2130 = vand.u32 %v2129, 4294901760
      %2131 = vmatpush1.msra.mxu0 %v2130
      %v2132 = vand.u32 %v1632, 4294901760
      %v2133 = vsub.f32 %v1632, %v2132
      %v2134 = vand.u32 %v2133, 4294901760
      %2135 = vmatprep.subr.mxu0 %v2134
      %v2136 = vand.u32 %v1658, 4294901760
      %v2137 = vsub.f32 %v1658, %v2136
      %v2138 = vand.u32 %v2137, 4294901760
      %2139 = vmatpush1.msra.mxu0 %v2138
      %v2140 = vand.u32 %v1636, 4294901760
      %v2141 = vsub.f32 %v1636, %v2140
      %v2142 = vand.u32 %v2141, 4294901760
      %2143 = vmatprep.subr.mxu0 %v2142
      %v2144 = vand.u32 %v1659, 4294901760
      %v2145 = vsub.f32 %v1659, %v2144
      %v2146 = vand.u32 %v2145, 4294901760
      %2147 = vmatpush1.msra.mxu0 %v2146
      %v2148 = vand.u32 %v1640, 4294901760
      %v2149 = vsub.f32 %v1640, %v2148
      %v2150 = vand.u32 %v2149, 4294901760
      %2151 = vmatprep.subr.mxu0 %v2150
      %v2152 = vand.u32 %v1660, 4294901760
      %v2153 = vsub.f32 %v1660, %v2152
      %v2154 = vand.u32 %v2153, 4294901760
      %2155 = vmatpush1.msra.mxu0 %v2154
      %v2156 = vand.u32 %v1644, 4294901760
      %v2157 = vsub.f32 %v1644, %v2156
      %v2158 = vand.u32 %v2157, 4294901760
      %2159 = vmatprep.subr.mxu0 %v2158
      %v2160 = vand.u32 %v1661, 4294901760
      %v2161 = vsub.f32 %v1661, %v2160
      %v2162 = vand.u32 %v2161, 4294901760
      %2163 = vmatpush1.msra.mxu0 %v2162
      %v2164 = vand.u32 %v1648, 4294901760
      %v2165 = vsub.f32 %v1648, %v2164
      %v2166 = vand.u32 %v2165, 4294901760
      %2167 = vmatprep.subr.mxu0 %v2166
      %v2168 = vand.u32 %v1662, 4294901760
      %v2169 = vsub.f32 %v1662, %v2168
      %v2170 = vand.u32 %v2169, 4294901760
      %2171 = vmatpush1.msra.mxu0 %v2170
      %v2172 = vand.u32 %v1652, 4294901760
      %v2173 = vsub.f32 %v1652, %v2172
      %v2174 = vand.u32 %v2173, 4294901760
      %2175 = vmatprep.subr.mxu0 %v2174
      %v2176 = vand.u32 %v1663, 4294901760
      %v2177 = vsub.f32 %v1663, %v2176
      %v2178 = vand.u32 %v2177, 4294901760
      %2179 = vmatpush1.msra.mxu0 %v2178
      %v2180 = vand.u32 %v1656, 4294901760
      %v2181 = vsub.f32 %v1656, %v2180
      %v2182 = vand.u32 %v2181, 4294901760
      %2183 = vmatprep.subr.mxu0 %v2182
      %v2184 = vand.u32 %v1664, 4294901760
      %v2185 = vsub.f32 %v1664, %v2184
      %v2186 = vand.u32 %v2185, 4294901760
      %2187 = vmatpush1.msra.mxu0 %v2186
      %2188 = vmatprep.subr.mxu0 0.0
      %2189 = vmatpush1.msra.mxu0 0.0
      %2190 = vmatprep.subr.mxu0 0.0
      %2191 = vmatpush1.msra.mxu0 0.0
      %2192 = vmatprep.subr.mxu0 0.0
      %2193 = vmatpush1.msra.mxu0 0.0
      %2194 = vmatprep.subr.mxu0 0.0
      %2195 = vmatpush1.msra.mxu0 0.0
      %2196 = vmatprep.subr.mxu0 0.0
      %2197 = vmatpush1.msra.mxu0 0.0
      %2198 = vmatprep.subr.mxu0 0.0
      %2199 = vmatpush1.msra.mxu0 0.0
      %2200 = vmatprep.subr.mxu0 0.0
      %2201 = vmatpush1.msra.mxu0 0.0
      %2202 = vmatprep.subr.mxu0 0.0
      %2203 = vmatpush1.msra.mxu0 0.0
      %2204 = vmatprep.subr.mxu0 0.0
      %2205 = vmatpush1.msra.mxu0 0.0
      %2206 = vmatprep.subr.mxu0 0.0
      %2207 = vmatpush1.msra.mxu0 0.0
      %2208 = vmatprep.subr.mxu0 0.0
      %2209 = vmatpush1.msra.mxu0 0.0
      %2210 = vmatprep.subr.mxu0 0.0
      %2211 = vmatpush1.msra.mxu0 0.0
      %2212 = vmatprep.subr.mxu0 0.0
      %2213 = vmatpush1.msra.mxu0 0.0
      %2214 = vmatprep.subr.mxu0 0.0
      %2215 = vmatpush1.msra.mxu0 0.0
      %2216 = vmatprep.subr.mxu0 0.0
      %2217 = vmatpush1.msra.mxu0 0.0
      %2218 = vmatprep.subr.mxu0 0.0
      %2219 = vmatpush1.msra.mxu0 0.0
      %2220 = vmatprep.subr.mxu0 0.0
      %2221 = vmatpush1.msra.mxu0 0.0
      %2222 = vmatprep.subr.mxu0 0.0
      %2223 = vmatpush1.msra.mxu0 0.0
      %2224 = vmatprep.subr.mxu0 0.0
      %2225 = vmatpush1.msra.mxu0 0.0
      %2226 = vmatprep.subr.mxu0 0.0
      %2227 = vmatpush1.msra.mxu0 0.0
      %2228 = vmatprep.subr.mxu0 0.0
      %2229 = vmatpush1.msra.mxu0 0.0
      %2230 = vmatprep.subr.mxu0 0.0
      %2231 = vmatpush1.msra.mxu0 0.0
      %2232 = vmatprep.subr.mxu0 0.0
      %2233 = vmatpush1.msra.mxu0 0.0
      %2234 = vmatprep.subr.mxu0 0.0
      %2235 = vmatpush1.msra.mxu0 0.0
      %2236 = vmatprep.mubr.f32.mxu0 0.0
      %v2237 = vand.u32 %v1683, 4294901760
      %2238 = vmatmul.mubr.f32.gmra.mrb[0].mxu0 %v2237
      %v2239 = vpop.f32.mrb[0].mxu0
      %v2240 = vadd.f32 %v2120, %v2239
      %v2241 = vpop.f32.mrb[0].mxu0
      %v2242 = vadd.f32 %v2122, %v2241
      %2243 = vdwg.mxu0
      %v2244 = vand.u32 %v1628, 4294901760
      %2245 = vmatprep.subr.mxu0 %v2244
      %v2246 = vand.u32 %v1657, 4294901760
      %2247 = vmatpush1.msra.mxu0 %v2246
      %v2248 = vand.u32 %v1632, 4294901760
      %2249 = vmatprep.subr.mxu0 %v2248
      %v2250 = vand.u32 %v1658, 4294901760
      %2251 = vmatpush1.msra.mxu0 %v2250
      %v2252 = vand.u32 %v1636, 4294901760
      %2253 = vmatprep.subr.mxu0 %v2252
      %v2254 = vand.u32 %v1659, 4294901760
      %2255 = vmatpush1.msra.mxu0 %v2254
      %v2256 = vand.u32 %v1640, 4294901760
      %2257 = vmatprep.subr.mxu0 %v2256
      %v2258 = vand.u32 %v1660, 4294901760
      %2259 = vmatpush1.msra.mxu0 %v2258
      %v2260 = vand.u32 %v1644, 4294901760
      %2261 = vmatprep.subr.mxu0 %v2260
      %v2262 = vand.u32 %v1661, 4294901760
      %2263 = vmatpush1.msra.mxu0 %v2262
      %v2264 = vand.u32 %v1648, 4294901760
      %2265 = vmatprep.subr.mxu0 %v2264
      %v2266 = vand.u32 %v1662, 4294901760
      %2267 = vmatpush1.msra.mxu0 %v2266
      %v2268 = vand.u32 %v1652, 4294901760
      %2269 = vmatprep.subr.mxu0 %v2268
      %v2270 = vand.u32 %v1663, 4294901760
      %2271 = vmatpush1.msra.mxu0 %v2270
      %v2272 = vand.u32 %v1656, 4294901760
      %2273 = vmatprep.subr.mxu0 %v2272
      %v2274 = vand.u32 %v1664, 4294901760
      %2275 = vmatpush1.msra.mxu0 %v2274
      %2276 = vmatprep.subr.mxu0 0.0
      %2277 = vmatpush1.msra.mxu0 0.0
      %2278 = vmatprep.subr.mxu0 0.0
      %2279 = vmatpush1.msra.mxu0 0.0
      %2280 = vmatprep.subr.mxu0 0.0
      %2281 = vmatpush1.msra.mxu0 0.0
      %2282 = vmatprep.subr.mxu0 0.0
      %2283 = vmatpush1.msra.mxu0 0.0
      %2284 = vmatprep.subr.mxu0 0.0
      %2285 = vmatpush1.msra.mxu0 0.0
      %2286 = vmatprep.subr.mxu0 0.0
      %2287 = vmatpush1.msra.mxu0 0.0
      %2288 = vmatprep.subr.mxu0 0.0
      %2289 = vmatpush1.msra.mxu0 0.0
      %2290 = vmatprep.subr.mxu0 0.0
      %2291 = vmatpush1.msra.mxu0 0.0
      %2292 = vmatprep.subr.mxu0 0.0
      %2293 = vmatpush1.msra.mxu0 0.0
      %2294 = vmatprep.subr.mxu0 0.0
      %2295 = vmatpush1.msra.mxu0 0.0
      %2296 = vmatprep.subr.mxu0 0.0
      %2297 = vmatpush1.msra.mxu0 0.0
      %2298 = vmatprep.subr.mxu0 0.0
      %2299 = vmatpush1.msra.mxu0 0.0
      %2300 = vmatprep.subr.mxu0 0.0
      %2301 = vmatpush1.msra.mxu0 0.0
      %2302 = vmatprep.subr.mxu0 0.0
      %2303 = vmatpush1.msra.mxu0 0.0
      %2304 = vmatprep.subr.mxu0 0.0
      %2305 = vmatpush1.msra.mxu0 0.0
      %2306 = vmatprep.subr.mxu0 0.0
      %2307 = vmatpush1.msra.mxu0 0.0
      %2308 = vmatprep.subr.mxu0 0.0
      %2309 = vmatpush1.msra.mxu0 0.0
      %2310 = vmatprep.subr.mxu0 0.0
      %2311 = vmatpush1.msra.mxu0 0.0
      %2312 = vmatprep.subr.mxu0 0.0
      %2313 = vmatpush1.msra.mxu0 0.0
      %2314 = vmatprep.subr.mxu0 0.0
      %2315 = vmatpush1.msra.mxu0 0.0
      %2316 = vmatprep.subr.mxu0 0.0
      %2317 = vmatpush1.msra.mxu0 0.0
      %2318 = vmatprep.subr.mxu0 0.0
      %2319 = vmatpush1.msra.mxu0 0.0
      %2320 = vmatprep.subr.mxu0 0.0
      %2321 = vmatpush1.msra.mxu0 0.0
      %2322 = vmatprep.subr.mxu0 0.0
      %2323 = vmatpush1.msra.mxu0 0.0
      %2324 = vmatprep.mubr.f32.mxu0 0.0
      %v2325 = vand.u32 %v1683, 4294901760
      %2326 = vmatmul.mubr.f32.gmra.mrb[0].mxu0 %v2325
      %v2327 = vpop.f32.mrb[0].mxu0
      %v2328 = vadd.f32 %v2240, %v2327
      %v2329 = vpop.f32.mrb[0].mxu0
      %v2330 = vadd.f32 %v2242, %v2329
      %2331 = vdwg.mxu0
      %v2333 = vsel %vm1681, %v1590, 0
      %v2335 = vand.u32 %v1592, 4294901760
      %2336 = vmatprep.subr.mxu0 %v2335
      %v2337 = vand.u32 %v1591, 4294901760
      %2338 = vmatpush1.msra.mxu0 %v2337
      %v2339 = vand.u32 %v1594, 4294901760
      %2340 = vmatprep.subr.mxu0 %v2339
      %v2341 = vand.u32 %v1593, 4294901760
      %2342 = vmatpush1.msra.mxu0 %v2341
      %v2343 = vand.u32 %v1596, 4294901760
      %2344 = vmatprep.subr.mxu0 %v2343
      %v2345 = vand.u32 %v1595, 4294901760
      %2346 = vmatpush1.msra.mxu0 %v2345
      %v2347 = vand.u32 %v1598, 4294901760
      %2348 = vmatprep.subr.mxu0 %v2347
      %v2349 = vand.u32 %v1597, 4294901760
      %2350 = vmatpush1.msra.mxu0 %v2349
      %v2351 = vand.u32 %v1600, 4294901760
      %2352 = vmatprep.subr.mxu0 %v2351
      %v2353 = vand.u32 %v1599, 4294901760
      %2354 = vmatpush1.msra.mxu0 %v2353
      %v2355 = vand.u32 %v1602, 4294901760
      %2356 = vmatprep.subr.mxu0 %v2355
      %v2357 = vand.u32 %v1601, 4294901760
      %2358 = vmatpush1.msra.mxu0 %v2357
      %v2359 = vand.u32 %v1604, 4294901760
      %2360 = vmatprep.subr.mxu0 %v2359
      %v2361 = vand.u32 %v1603, 4294901760
      %2362 = vmatpush1.msra.mxu0 %v2361
      %v2363 = vand.u32 %v1606, 4294901760
      %2364 = vmatprep.subr.mxu0 %v2363
      %v2365 = vand.u32 %v1605, 4294901760
      %2366 = vmatpush1.msra.mxu0 %v2365
      %2367 = vmatprep.subr.mxu0 0.0
      %2368 = vmatpush1.msra.mxu0 0.0
      %2369 = vmatprep.subr.mxu0 0.0
      %2370 = vmatpush1.msra.mxu0 0.0
      %2371 = vmatprep.subr.mxu0 0.0
      %2372 = vmatpush1.msra.mxu0 0.0
      %2373 = vmatprep.subr.mxu0 0.0
      %2374 = vmatpush1.msra.mxu0 0.0
      %2375 = vmatprep.subr.mxu0 0.0
      %2376 = vmatpush1.msra.mxu0 0.0
      %2377 = vmatprep.subr.mxu0 0.0
      %2378 = vmatpush1.msra.mxu0 0.0
      %2379 = vmatprep.subr.mxu0 0.0
      %2380 = vmatpush1.msra.mxu0 0.0
      %2381 = vmatprep.subr.mxu0 0.0
      %2382 = vmatpush1.msra.mxu0 0.0
      %2383 = vmatprep.subr.mxu0 0.0
      %2384 = vmatpush1.msra.mxu0 0.0
      %2385 = vmatprep.subr.mxu0 0.0
      %2386 = vmatpush1.msra.mxu0 0.0
      %2387 = vmatprep.subr.mxu0 0.0
      %2388 = vmatpush1.msra.mxu0 0.0
      %2389 = vmatprep.subr.mxu0 0.0
      %2390 = vmatpush1.msra.mxu0 0.0
      %2391 = vmatprep.subr.mxu0 0.0
      %2392 = vmatpush1.msra.mxu0 0.0
      %2393 = vmatprep.subr.mxu0 0.0
      %2394 = vmatpush1.msra.mxu0 0.0
      %2395 = vmatprep.subr.mxu0 0.0
      %2396 = vmatpush1.msra.mxu0 0.0
      %2397 = vmatprep.subr.mxu0 0.0
      %2398 = vmatpush1.msra.mxu0 0.0
      %2399 = vmatprep.subr.mxu0 0.0
      %2400 = vmatpush1.msra.mxu0 0.0
      %2401 = vmatprep.subr.mxu0 0.0
      %2402 = vmatpush1.msra.mxu0 0.0
      %2403 = vmatprep.subr.mxu0 0.0
      %2404 = vmatpush1.msra.mxu0 0.0
      %2405 = vmatprep.subr.mxu0 0.0
      %2406 = vmatpush1.msra.mxu0 0.0
      %2407 = vmatprep.subr.mxu0 0.0
      %2408 = vmatpush1.msra.mxu0 0.0
      %2409 = vmatprep.subr.mxu0 0.0
      %2410 = vmatpush1.msra.mxu0 0.0
      %2411 = vmatprep.subr.mxu0 0.0
      %2412 = vmatpush1.msra.mxu0 0.0
      %2413 = vmatprep.subr.mxu0 0.0
      %2414 = vmatpush1.msra.mxu0 0.0
      %2415 = vmatprep.mubr.f32.mxu0 0.0
      %v2416 = vand.u32 %v2333, 4294901760
      %v2417 = vsub.f32 %v2333, %v2416
      %v2418 = vand.u32 %v2417, 4294901760
      %v2419 = vsub.f32 %v2417, %v2418
      %v2420 = vand.u32 %v2419, 4294901760
      %2421 = vmatmul.mubr.f32.gmra.mrb[0].mxu0 %v2420
      %v2422 = vpop.f32.mrb[0].mxu0
      %v2423 = vadd.f32 %v2328, %v2422
      %v2424 = vpop.f32.mrb[0].mxu0
      %v2425 = vadd.f32 %v2330, %v2424
      %2426 = vdwg.mxu0
      %v2427 = vand.u32 %v1592, 4294901760
      %v2428 = vsub.f32 %v1592, %v2427
      %v2429 = vand.u32 %v2428, 4294901760
      %v2430 = vsub.f32 %v2428, %v2429
      %v2431 = vand.u32 %v2430, 4294901760
      %2432 = vmatprep.subr.mxu0 %v2431
      %v2433 = vand.u32 %v1591, 4294901760
      %v2434 = vsub.f32 %v1591, %v2433
      %v2435 = vand.u32 %v2434, 4294901760
      %v2436 = vsub.f32 %v2434, %v2435
      %v2437 = vand.u32 %v2436, 4294901760
      %2438 = vmatpush1.msra.mxu0 %v2437
      %v2439 = vand.u32 %v1594, 4294901760
      %v2440 = vsub.f32 %v1594, %v2439
      %v2441 = vand.u32 %v2440, 4294901760
      %v2442 = vsub.f32 %v2440, %v2441
      %v2443 = vand.u32 %v2442, 4294901760
      %2444 = vmatprep.subr.mxu0 %v2443
      %v2445 = vand.u32 %v1593, 4294901760
      %v2446 = vsub.f32 %v1593, %v2445
      %v2447 = vand.u32 %v2446, 4294901760
      %v2448 = vsub.f32 %v2446, %v2447
      %v2449 = vand.u32 %v2448, 4294901760
      %2450 = vmatpush1.msra.mxu0 %v2449
      %v2451 = vand.u32 %v1596, 4294901760
      %v2452 = vsub.f32 %v1596, %v2451
      %v2453 = vand.u32 %v2452, 4294901760
      %v2454 = vsub.f32 %v2452, %v2453
      %v2455 = vand.u32 %v2454, 4294901760
      %2456 = vmatprep.subr.mxu0 %v2455
      %v2457 = vand.u32 %v1595, 4294901760
      %v2458 = vsub.f32 %v1595, %v2457
      %v2459 = vand.u32 %v2458, 4294901760
      %v2460 = vsub.f32 %v2458, %v2459
      %v2461 = vand.u32 %v2460, 4294901760
      %2462 = vmatpush1.msra.mxu0 %v2461
      %v2463 = vand.u32 %v1598, 4294901760
      %v2464 = vsub.f32 %v1598, %v2463
      %v2465 = vand.u32 %v2464, 4294901760
      %v2466 = vsub.f32 %v2464, %v2465
      %v2467 = vand.u32 %v2466, 4294901760
      %2468 = vmatprep.subr.mxu0 %v2467
      %v2469 = vand.u32 %v1597, 4294901760
      %v2470 = vsub.f32 %v1597, %v2469
      %v2471 = vand.u32 %v2470, 4294901760
      %v2472 = vsub.f32 %v2470, %v2471
      %v2473 = vand.u32 %v2472, 4294901760
      %2474 = vmatpush1.msra.mxu0 %v2473
      %v2475 = vand.u32 %v1600, 4294901760
      %v2476 = vsub.f32 %v1600, %v2475
      %v2477 = vand.u32 %v2476, 4294901760
      %v2478 = vsub.f32 %v2476, %v2477
      %v2479 = vand.u32 %v2478, 4294901760
      %2480 = vmatprep.subr.mxu0 %v2479
      %v2481 = vand.u32 %v1599, 4294901760
      %v2482 = vsub.f32 %v1599, %v2481
      %v2483 = vand.u32 %v2482, 4294901760
      %v2484 = vsub.f32 %v2482, %v2483
      %v2485 = vand.u32 %v2484, 4294901760
      %2486 = vmatpush1.msra.mxu0 %v2485
      %v2487 = vand.u32 %v1602, 4294901760
      %v2488 = vsub.f32 %v1602, %v2487
      %v2489 = vand.u32 %v2488, 4294901760
      %v2490 = vsub.f32 %v2488, %v2489
      %v2491 = vand.u32 %v2490, 4294901760
      %2492 = vmatprep.subr.mxu0 %v2491
      %v2493 = vand.u32 %v1601, 4294901760
      %v2494 = vsub.f32 %v1601, %v2493
      %v2495 = vand.u32 %v2494, 4294901760
      %v2496 = vsub.f32 %v2494, %v2495
      %v2497 = vand.u32 %v2496, 4294901760
      %2498 = vmatpush1.msra.mxu0 %v2497
      %v2499 = vand.u32 %v1604, 4294901760
      %v2500 = vsub.f32 %v1604, %v2499
      %v2501 = vand.u32 %v2500, 4294901760
      %v2502 = vsub.f32 %v2500, %v2501
      %v2503 = vand.u32 %v2502, 4294901760
      %2504 = vmatprep.subr.mxu0 %v2503
      %v2505 = vand.u32 %v1603, 4294901760
      %v2506 = vsub.f32 %v1603, %v2505
      %v2507 = vand.u32 %v2506, 4294901760
      %v2508 = vsub.f32 %v2506, %v2507
      %v2509 = vand.u32 %v2508, 4294901760
      %2510 = vmatpush1.msra.mxu0 %v2509
      %v2511 = vand.u32 %v1606, 4294901760
      %v2512 = vsub.f32 %v1606, %v2511
      %v2513 = vand.u32 %v2512, 4294901760
      %v2514 = vsub.f32 %v2512, %v2513
      %v2515 = vand.u32 %v2514, 4294901760
      %2516 = vmatprep.subr.mxu0 %v2515
      %v2517 = vand.u32 %v1605, 4294901760
      %v2518 = vsub.f32 %v1605, %v2517
      %v2519 = vand.u32 %v2518, 4294901760
      %v2520 = vsub.f32 %v2518, %v2519
      %v2521 = vand.u32 %v2520, 4294901760
      %2522 = vmatpush1.msra.mxu0 %v2521
      %2523 = vmatprep.subr.mxu0 0.0
      %2524 = vmatpush1.msra.mxu0 0.0
      %2525 = vmatprep.subr.mxu0 0.0
      %2526 = vmatpush1.msra.mxu0 0.0
      %2527 = vmatprep.subr.mxu0 0.0
      %2528 = vmatpush1.msra.mxu0 0.0
      %2529 = vmatprep.subr.mxu0 0.0
      %2530 = vmatpush1.msra.mxu0 0.0
      %2531 = vmatprep.subr.mxu0 0.0
      %2532 = vmatpush1.msra.mxu0 0.0
      %2533 = vmatprep.subr.mxu0 0.0
      %2534 = vmatpush1.msra.mxu0 0.0
      %2535 = vmatprep.subr.mxu0 0.0
      %2536 = vmatpush1.msra.mxu0 0.0
      %2537 = vmatprep.subr.mxu0 0.0
      %2538 = vmatpush1.msra.mxu0 0.0
      %2539 = vmatprep.subr.mxu0 0.0
      %2540 = vmatpush1.msra.mxu0 0.0
      %2541 = vmatprep.subr.mxu0 0.0
      %2542 = vmatpush1.msra.mxu0 0.0
      %2543 = vmatprep.subr.mxu0 0.0
      %2544 = vmatpush1.msra.mxu0 0.0
      %2545 = vmatprep.subr.mxu0 0.0
      %2546 = vmatpush1.msra.mxu0 0.0
      %2547 = vmatprep.subr.mxu0 0.0
      %2548 = vmatpush1.msra.mxu0 0.0
      %2549 = vmatprep.subr.mxu0 0.0
      %2550 = vmatpush1.msra.mxu0 0.0
      %2551 = vmatprep.subr.mxu0 0.0
      %2552 = vmatpush1.msra.mxu0 0.0
      %2553 = vmatprep.subr.mxu0 0.0
      %2554 = vmatpush1.msra.mxu0 0.0
      %2555 = vmatprep.subr.mxu0 0.0
      %2556 = vmatpush1.msra.mxu0 0.0
      %2557 = vmatprep.subr.mxu0 0.0
      %2558 = vmatpush1.msra.mxu0 0.0
      %2559 = vmatprep.subr.mxu0 0.0
      %2560 = vmatpush1.msra.mxu0 0.0
      %2561 = vmatprep.subr.mxu0 0.0
      %2562 = vmatpush1.msra.mxu0 0.0
      %2563 = vmatprep.subr.mxu0 0.0
      %2564 = vmatpush1.msra.mxu0 0.0
      %2565 = vmatprep.subr.mxu0 0.0
      %2566 = vmatpush1.msra.mxu0 0.0
      %2567 = vmatprep.subr.mxu0 0.0
      %2568 = vmatpush1.msra.mxu0 0.0
      %2569 = vmatprep.subr.mxu0 0.0
      %2570 = vmatpush1.msra.mxu0 0.0
      %2571 = vmatprep.mubr.f32.mxu0 0.0
      %v2572 = vand.u32 %v2333, 4294901760
      %2573 = vmatmul.mubr.f32.gmra.mrb[0].mxu0 %v2572
      %v2574 = vpop.f32.mrb[0].mxu0
      %v2575 = vadd.f32 %v2423, %v2574
      %v2576 = vpop.f32.mrb[0].mxu0
      %v2577 = vadd.f32 %v2425, %v2576
      %2578 = vdwg.mxu0
      %v2579 = vand.u32 %v1592, 4294901760
      %v2580 = vsub.f32 %v1592, %v2579
      %2581 = vmatprep.subr.mxu0 %v2580
      %v2582 = vand.u32 %v1591, 4294901760
      %v2583 = vsub.f32 %v1591, %v2582
      %2584 = vmatpush1.msra.mxu0 %v2583
      %v2585 = vand.u32 %v1594, 4294901760
      %v2586 = vsub.f32 %v1594, %v2585
      %2587 = vmatprep.subr.mxu0 %v2586
      %v2588 = vand.u32 %v1593, 4294901760
      %v2589 = vsub.f32 %v1593, %v2588
      %2590 = vmatpush1.msra.mxu0 %v2589
      %v2591 = vand.u32 %v1596, 4294901760
      %v2592 = vsub.f32 %v1596, %v2591
      %2593 = vmatprep.subr.mxu0 %v2592
      %v2594 = vand.u32 %v1595, 4294901760
      %v2595 = vsub.f32 %v1595, %v2594
      %2596 = vmatpush1.msra.mxu0 %v2595
      %v2597 = vand.u32 %v1598, 4294901760
      %v2598 = vsub.f32 %v1598, %v2597
      %2599 = vmatprep.subr.mxu0 %v2598
      %v2600 = vand.u32 %v1597, 4294901760
      %v2601 = vsub.f32 %v1597, %v2600
      %2602 = vmatpush1.msra.mxu0 %v2601
      %v2603 = vand.u32 %v1600, 4294901760
      %v2604 = vsub.f32 %v1600, %v2603
      %2605 = vmatprep.subr.mxu0 %v2604
      %v2606 = vand.u32 %v1599, 4294901760
      %v2607 = vsub.f32 %v1599, %v2606
      %2608 = vmatpush1.msra.mxu0 %v2607
      %v2609 = vand.u32 %v1602, 4294901760
      %v2610 = vsub.f32 %v1602, %v2609
      %2611 = vmatprep.subr.mxu0 %v2610
      %v2612 = vand.u32 %v1601, 4294901760
      %v2613 = vsub.f32 %v1601, %v2612
      %2614 = vmatpush1.msra.mxu0 %v2613
      %v2615 = vand.u32 %v1604, 4294901760
      %v2616 = vsub.f32 %v1604, %v2615
      %2617 = vmatprep.subr.mxu0 %v2616
      %v2618 = vand.u32 %v1603, 4294901760
      %v2619 = vsub.f32 %v1603, %v2618
      %2620 = vmatpush1.msra.mxu0 %v2619
      %v2621 = vand.u32 %v1606, 4294901760
      %v2622 = vsub.f32 %v1606, %v2621
      %2623 = vmatprep.subr.mxu0 %v2622
      %v2624 = vand.u32 %v1605, 4294901760
      %v2625 = vsub.f32 %v1605, %v2624
      %2626 = vmatpush1.msra.mxu0 %v2625
      %2627 = vmatprep.subr.mxu0 0.0
      %2628 = vmatpush1.msra.mxu0 0.0
      %2629 = vmatprep.subr.mxu0 0.0
      %2630 = vmatpush1.msra.mxu0 0.0
      %2631 = vmatprep.subr.mxu0 0.0
      %2632 = vmatpush1.msra.mxu0 0.0
      %2633 = vmatprep.subr.mxu0 0.0
      %2634 = vmatpush1.msra.mxu0 0.0
      %2635 = vmatprep.subr.mxu0 0.0
      %2636 = vmatpush1.msra.mxu0 0.0
      %2637 = vmatprep.subr.mxu0 0.0
      %2638 = vmatpush1.msra.mxu0 0.0
      %2639 = vmatprep.subr.mxu0 0.0
      %2640 = vmatpush1.msra.mxu0 0.0
      %2641 = vmatprep.subr.mxu0 0.0
      %2642 = vmatpush1.msra.mxu0 0.0
      %2643 = vmatprep.subr.mxu0 0.0
      %2644 = vmatpush1.msra.mxu0 0.0
      %2645 = vmatprep.subr.mxu0 0.0
      %2646 = vmatpush1.msra.mxu0 0.0
      %2647 = vmatprep.subr.mxu0 0.0
      %2648 = vmatpush1.msra.mxu0 0.0
      %2649 = vmatprep.subr.mxu0 0.0
      %2650 = vmatpush1.msra.mxu0 0.0
      %2651 = vmatprep.subr.mxu0 0.0
      %2652 = vmatpush1.msra.mxu0 0.0
      %2653 = vmatprep.subr.mxu0 0.0
      %2654 = vmatpush1.msra.mxu0 0.0
      %2655 = vmatprep.subr.mxu0 0.0
      %2656 = vmatpush1.msra.mxu0 0.0
      %2657 = vmatprep.subr.mxu0 0.0
      %2658 = vmatpush1.msra.mxu0 0.0
      %2659 = vmatprep.subr.mxu0 0.0
      %2660 = vmatpush1.msra.mxu0 0.0
      %2661 = vmatprep.subr.mxu0 0.0
      %2662 = vmatpush1.msra.mxu0 0.0
      %2663 = vmatprep.subr.mxu0 0.0
      %2664 = vmatpush1.msra.mxu0 0.0
      %2665 = vmatprep.subr.mxu0 0.0
      %2666 = vmatpush1.msra.mxu0 0.0
      %2667 = vmatprep.subr.mxu0 0.0
      %2668 = vmatpush1.msra.mxu0 0.0
      %2669 = vmatprep.subr.mxu0 0.0
      %2670 = vmatpush1.msra.mxu0 0.0
      %2671 = vmatprep.subr.mxu0 0.0
      %2672 = vmatpush1.msra.mxu0 0.0
      %2673 = vmatprep.subr.mxu0 0.0
      %2674 = vmatpush1.msra.mxu0 0.0
      %2675 = vmatprep.mubr.f32.mxu0 0.0
      %v2676 = vand.u32 %v2333, 4294901760
      %v2677 = vsub.f32 %v2333, %v2676
      %2678 = vmatmul.mubr.f32.gmra.mrb[0].mxu0 %v2677
      %v2679 = vpop.f32.mrb[0].mxu0
      %v2680 = vadd.f32 %v2575, %v2679
      %v2681 = vpop.f32.mrb[0].mxu0
      %v2682 = vadd.f32 %v2577, %v2681
      %2683 = vdwg.mxu0
      %v2684 = vand.u32 %v1592, 4294901760
      %2685 = vmatprep.subr.mxu0 %v2684
      %v2686 = vand.u32 %v1591, 4294901760
      %2687 = vmatpush1.msra.mxu0 %v2686
      %v2688 = vand.u32 %v1594, 4294901760
      %2689 = vmatprep.subr.mxu0 %v2688
      %v2690 = vand.u32 %v1593, 4294901760
      %2691 = vmatpush1.msra.mxu0 %v2690
      %v2692 = vand.u32 %v1596, 4294901760
      %2693 = vmatprep.subr.mxu0 %v2692
      %v2694 = vand.u32 %v1595, 4294901760
      %2695 = vmatpush1.msra.mxu0 %v2694
      %v2696 = vand.u32 %v1598, 4294901760
      %2697 = vmatprep.subr.mxu0 %v2696
      %v2698 = vand.u32 %v1597, 4294901760
      %2699 = vmatpush1.msra.mxu0 %v2698
      %v2700 = vand.u32 %v1600, 4294901760
      %2701 = vmatprep.subr.mxu0 %v2700
      %v2702 = vand.u32 %v1599, 4294901760
      %2703 = vmatpush1.msra.mxu0 %v2702
      %v2704 = vand.u32 %v1602, 4294901760
      %2705 = vmatprep.subr.mxu0 %v2704
      %v2706 = vand.u32 %v1601, 4294901760
      %2707 = vmatpush1.msra.mxu0 %v2706
      %v2708 = vand.u32 %v1604, 4294901760
      %2709 = vmatprep.subr.mxu0 %v2708
      %v2710 = vand.u32 %v1603, 4294901760
      %2711 = vmatpush1.msra.mxu0 %v2710
      %v2712 = vand.u32 %v1606, 4294901760
      %2713 = vmatprep.subr.mxu0 %v2712
      %v2714 = vand.u32 %v1605, 4294901760
      %2715 = vmatpush1.msra.mxu0 %v2714
      %2716 = vmatprep.subr.mxu0 0.0
      %2717 = vmatpush1.msra.mxu0 0.0
      %2718 = vmatprep.subr.mxu0 0.0
      %2719 = vmatpush1.msra.mxu0 0.0
      %2720 = vmatprep.subr.mxu0 0.0
      %2721 = vmatpush1.msra.mxu0 0.0
      %2722 = vmatprep.subr.mxu0 0.0
      %2723 = vmatpush1.msra.mxu0 0.0
      %2724 = vmatprep.subr.mxu0 0.0
      %2725 = vmatpush1.msra.mxu0 0.0
      %2726 = vmatprep.subr.mxu0 0.0
      %2727 = vmatpush1.msra.mxu0 0.0
      %2728 = vmatprep.subr.mxu0 0.0
      %2729 = vmatpush1.msra.mxu0 0.0
      %2730 = vmatprep.subr.mxu0 0.0
      %2731 = vmatpush1.msra.mxu0 0.0
      %2732 = vmatprep.subr.mxu0 0.0
      %2733 = vmatpush1.msra.mxu0 0.0
      %2734 = vmatprep.subr.mxu0 0.0
      %2735 = vmatpush1.msra.mxu0 0.0
      %2736 = vmatprep.subr.mxu0 0.0
      %2737 = vmatpush1.msra.mxu0 0.0
      %2738 = vmatprep.subr.mxu0 0.0
      %2739 = vmatpush1.msra.mxu0 0.0
      %2740 = vmatprep.subr.mxu0 0.0
      %2741 = vmatpush1.msra.mxu0 0.0
      %2742 = vmatprep.subr.mxu0 0.0
      %2743 = vmatpush1.msra.mxu0 0.0
      %2744 = vmatprep.subr.mxu0 0.0
      %2745 = vmatpush1.msra.mxu0 0.0
      %2746 = vmatprep.subr.mxu0 0.0
      %2747 = vmatpush1.msra.mxu0 0.0
      %2748 = vmatprep.subr.mxu0 0.0
      %2749 = vmatpush1.msra.mxu0 0.0
      %2750 = vmatprep.subr.mxu0 0.0
      %2751 = vmatpush1.msra.mxu0 0.0
      %2752 = vmatprep.subr.mxu0 0.0
      %2753 = vmatpush1.msra.mxu0 0.0
      %2754 = vmatprep.subr.mxu0 0.0
      %2755 = vmatpush1.msra.mxu0 0.0
      %2756 = vmatprep.subr.mxu0 0.0
      %2757 = vmatpush1.msra.mxu0 0.0
      %2758 = vmatprep.subr.mxu0 0.0
      %2759 = vmatpush1.msra.mxu0 0.0
      %2760 = vmatprep.subr.mxu0 0.0
      %2761 = vmatpush1.msra.mxu0 0.0
      %2762 = vmatprep.subr.mxu0 0.0
      %2763 = vmatpush1.msra.mxu0 0.0
      %2764 = vmatprep.mubr.f32.mxu0 0.0
      %v2765 = vand.u32 %v2333, 4294901760
      %v2766 = vsub.f32 %v2333, %v2765
      %v2767 = vand.u32 %v2766, 4294901760
      %2768 = vmatmul.mubr.f32.gmra.mrb[0].mxu0 %v2767
      %v2769 = vpop.f32.mrb[0].mxu0
      %v2770 = vadd.f32 %v2680, %v2769
      %v2771 = vpop.f32.mrb[0].mxu0
      %v2772 = vadd.f32 %v2682, %v2771
      %2773 = vdwg.mxu0
      %v2774 = vand.u32 %v1592, 4294901760
      %v2775 = vsub.f32 %v1592, %v2774
      %v2776 = vand.u32 %v2775, 4294901760
      %2777 = vmatprep.subr.mxu0 %v2776
      %v2778 = vand.u32 %v1591, 4294901760
      %v2779 = vsub.f32 %v1591, %v2778
      %v2780 = vand.u32 %v2779, 4294901760
      %2781 = vmatpush1.msra.mxu0 %v2780
      %v2782 = vand.u32 %v1594, 4294901760
      %v2783 = vsub.f32 %v1594, %v2782
      %v2784 = vand.u32 %v2783, 4294901760
      %2785 = vmatprep.subr.mxu0 %v2784
      %v2786 = vand.u32 %v1593, 4294901760
      %v2787 = vsub.f32 %v1593, %v2786
      %v2788 = vand.u32 %v2787, 4294901760
      %2789 = vmatpush1.msra.mxu0 %v2788
      %v2790 = vand.u32 %v1596, 4294901760
      %v2791 = vsub.f32 %v1596, %v2790
      %v2792 = vand.u32 %v2791, 4294901760
      %2793 = vmatprep.subr.mxu0 %v2792
      %v2794 = vand.u32 %v1595, 4294901760
      %v2795 = vsub.f32 %v1595, %v2794
      %v2796 = vand.u32 %v2795, 4294901760
      %2797 = vmatpush1.msra.mxu0 %v2796
      %v2798 = vand.u32 %v1598, 4294901760
      %v2799 = vsub.f32 %v1598, %v2798
      %v2800 = vand.u32 %v2799, 4294901760
      %2801 = vmatprep.subr.mxu0 %v2800
      %v2802 = vand.u32 %v1597, 4294901760
      %v2803 = vsub.f32 %v1597, %v2802
      %v2804 = vand.u32 %v2803, 4294901760
      %2805 = vmatpush1.msra.mxu0 %v2804
      %v2806 = vand.u32 %v1600, 4294901760
      %v2807 = vsub.f32 %v1600, %v2806
      %v2808 = vand.u32 %v2807, 4294901760
      %2809 = vmatprep.subr.mxu0 %v2808
      %v2810 = vand.u32 %v1599, 4294901760
      %v2811 = vsub.f32 %v1599, %v2810
      %v2812 = vand.u32 %v2811, 4294901760
      %2813 = vmatpush1.msra.mxu0 %v2812
      %v2814 = vand.u32 %v1602, 4294901760
      %v2815 = vsub.f32 %v1602, %v2814
      %v2816 = vand.u32 %v2815, 4294901760
      %2817 = vmatprep.subr.mxu0 %v2816
      %v2818 = vand.u32 %v1601, 4294901760
      %v2819 = vsub.f32 %v1601, %v2818
      %v2820 = vand.u32 %v2819, 4294901760
      %2821 = vmatpush1.msra.mxu0 %v2820
      %v2822 = vand.u32 %v1604, 4294901760
      %v2823 = vsub.f32 %v1604, %v2822
      %v2824 = vand.u32 %v2823, 4294901760
      %2825 = vmatprep.subr.mxu0 %v2824
      %v2826 = vand.u32 %v1603, 4294901760
      %v2827 = vsub.f32 %v1603, %v2826
      %v2828 = vand.u32 %v2827, 4294901760
      %2829 = vmatpush1.msra.mxu0 %v2828
      %v2830 = vand.u32 %v1606, 4294901760
      %v2831 = vsub.f32 %v1606, %v2830
      %v2832 = vand.u32 %v2831, 4294901760
      %2833 = vmatprep.subr.mxu0 %v2832
      %v2834 = vand.u32 %v1605, 4294901760
      %v2835 = vsub.f32 %v1605, %v2834
      %v2836 = vand.u32 %v2835, 4294901760
      %2837 = vmatpush1.msra.mxu0 %v2836
      %2838 = vmatprep.subr.mxu0 0.0
      %2839 = vmatpush1.msra.mxu0 0.0
      %2840 = vmatprep.subr.mxu0 0.0
      %2841 = vmatpush1.msra.mxu0 0.0
      %2842 = vmatprep.subr.mxu0 0.0
      %2843 = vmatpush1.msra.mxu0 0.0
      %2844 = vmatprep.subr.mxu0 0.0
      %2845 = vmatpush1.msra.mxu0 0.0
      %2846 = vmatprep.subr.mxu0 0.0
      %2847 = vmatpush1.msra.mxu0 0.0
      %2848 = vmatprep.subr.mxu0 0.0
      %2849 = vmatpush1.msra.mxu0 0.0
      %2850 = vmatprep.subr.mxu0 0.0
      %2851 = vmatpush1.msra.mxu0 0.0
      %2852 = vmatprep.subr.mxu0 0.0
      %2853 = vmatpush1.msra.mxu0 0.0
      %2854 = vmatprep.subr.mxu0 0.0
      %2855 = vmatpush1.msra.mxu0 0.0
      %2856 = vmatprep.subr.mxu0 0.0
      %2857 = vmatpush1.msra.mxu0 0.0
      %2858 = vmatprep.subr.mxu0 0.0
      %2859 = vmatpush1.msra.mxu0 0.0
      %2860 = vmatprep.subr.mxu0 0.0
      %2861 = vmatpush1.msra.mxu0 0.0
      %2862 = vmatprep.subr.mxu0 0.0
      %2863 = vmatpush1.msra.mxu0 0.0
      %2864 = vmatprep.subr.mxu0 0.0
      %2865 = vmatpush1.msra.mxu0 0.0
      %2866 = vmatprep.subr.mxu0 0.0
      %2867 = vmatpush1.msra.mxu0 0.0
      %2868 = vmatprep.subr.mxu0 0.0
      %2869 = vmatpush1.msra.mxu0 0.0
      %2870 = vmatprep.subr.mxu0 0.0
      %2871 = vmatpush1.msra.mxu0 0.0
      %2872 = vmatprep.subr.mxu0 0.0
      %2873 = vmatpush1.msra.mxu0 0.0
      %2874 = vmatprep.subr.mxu0 0.0
      %2875 = vmatpush1.msra.mxu0 0.0
      %2876 = vmatprep.subr.mxu0 0.0
      %2877 = vmatpush1.msra.mxu0 0.0
      %2878 = vmatprep.subr.mxu0 0.0
      %2879 = vmatpush1.msra.mxu0 0.0
      %2880 = vmatprep.subr.mxu0 0.0
      %2881 = vmatpush1.msra.mxu0 0.0
      %2882 = vmatprep.subr.mxu0 0.0
      %2883 = vmatpush1.msra.mxu0 0.0
      %2884 = vmatprep.subr.mxu0 0.0
      %2885 = vmatpush1.msra.mxu0 0.0
      %2886 = vmatprep.mubr.f32.mxu0 0.0
      %v2887 = vand.u32 %v2333, 4294901760
      %2888 = vmatmul.mubr.f32.gmra.mrb[0].mxu0 %v2887
      %v2889 = vpop.f32.mrb[0].mxu0
      %v2890 = vadd.f32 %v2770, %v2889
      %v2891 = vpop.f32.mrb[0].mxu0
      %v2892 = vadd.f32 %v2772, %v2891
      %2893 = vdwg.mxu0
      %v2894 = vand.u32 %v1592, 4294901760
      %2895 = vmatprep.subr.mxu0 %v2894
      %v2896 = vand.u32 %v1591, 4294901760
      %2897 = vmatpush1.msra.mxu0 %v2896
      %v2898 = vand.u32 %v1594, 4294901760
      %2899 = vmatprep.subr.mxu0 %v2898
      %v2900 = vand.u32 %v1593, 4294901760
      %2901 = vmatpush1.msra.mxu0 %v2900
      %v2902 = vand.u32 %v1596, 4294901760
      %2903 = vmatprep.subr.mxu0 %v2902
      %v2904 = vand.u32 %v1595, 4294901760
      %2905 = vmatpush1.msra.mxu0 %v2904
      %v2906 = vand.u32 %v1598, 4294901760
      %2907 = vmatprep.subr.mxu0 %v2906
      %v2908 = vand.u32 %v1597, 4294901760
      %2909 = vmatpush1.msra.mxu0 %v2908
      %v2910 = vand.u32 %v1600, 4294901760
      %2911 = vmatprep.subr.mxu0 %v2910
      %v2912 = vand.u32 %v1599, 4294901760
      %2913 = vmatpush1.msra.mxu0 %v2912
      %v2914 = vand.u32 %v1602, 4294901760
      %2915 = vmatprep.subr.mxu0 %v2914
      %v2916 = vand.u32 %v1601, 4294901760
      %2917 = vmatpush1.msra.mxu0 %v2916
      %v2918 = vand.u32 %v1604, 4294901760
      %2919 = vmatprep.subr.mxu0 %v2918
      %v2920 = vand.u32 %v1603, 4294901760
      %2921 = vmatpush1.msra.mxu0 %v2920
      %v2922 = vand.u32 %v1606, 4294901760
      %2923 = vmatprep.subr.mxu0 %v2922
      %v2924 = vand.u32 %v1605, 4294901760
      %2925 = vmatpush1.msra.mxu0 %v2924
      %2926 = vmatprep.subr.mxu0 0.0
      %2927 = vmatpush1.msra.mxu0 0.0
      %2928 = vmatprep.subr.mxu0 0.0
      %2929 = vmatpush1.msra.mxu0 0.0
      %2930 = vmatprep.subr.mxu0 0.0
      %2931 = vmatpush1.msra.mxu0 0.0
      %2932 = vmatprep.subr.mxu0 0.0
      %2933 = vmatpush1.msra.mxu0 0.0
      %2934 = vmatprep.subr.mxu0 0.0
      %2935 = vmatpush1.msra.mxu0 0.0
      %2936 = vmatprep.subr.mxu0 0.0
      %2937 = vmatpush1.msra.mxu0 0.0
      %2938 = vmatprep.subr.mxu0 0.0
      %2939 = vmatpush1.msra.mxu0 0.0
      %2940 = vmatprep.subr.mxu0 0.0
      %2941 = vmatpush1.msra.mxu0 0.0
      %2942 = vmatprep.subr.mxu0 0.0
      %2943 = vmatpush1.msra.mxu0 0.0
      %2944 = vmatprep.subr.mxu0 0.0
      %2945 = vmatpush1.msra.mxu0 0.0
      %2946 = vmatprep.subr.mxu0 0.0
      %2947 = vmatpush1.msra.mxu0 0.0
      %2948 = vmatprep.subr.mxu0 0.0
      %2949 = vmatpush1.msra.mxu0 0.0
      %2950 = vmatprep.subr.mxu0 0.0
      %2951 = vmatpush1.msra.mxu0 0.0
      %2952 = vmatprep.subr.mxu0 0.0
      %2953 = vmatpush1.msra.mxu0 0.0
      %2954 = vmatprep.subr.mxu0 0.0
      %2955 = vmatpush1.msra.mxu0 0.0
      %2956 = vmatprep.subr.mxu0 0.0
      %2957 = vmatpush1.msra.mxu0 0.0
      %2958 = vmatprep.subr.mxu0 0.0
      %2959 = vmatpush1.msra.mxu0 0.0
      %2960 = vmatprep.subr.mxu0 0.0
      %2961 = vmatpush1.msra.mxu0 0.0
      %2962 = vmatprep.subr.mxu0 0.0
      %2963 = vmatpush1.msra.mxu0 0.0
      %2964 = vmatprep.subr.mxu0 0.0
      %2965 = vmatpush1.msra.mxu0 0.0
      %2966 = vmatprep.subr.mxu0 0.0
      %2967 = vmatpush1.msra.mxu0 0.0
      %2968 = vmatprep.subr.mxu0 0.0
      %2969 = vmatpush1.msra.mxu0 0.0
      %2970 = vmatprep.subr.mxu0 0.0
      %2971 = vmatpush1.msra.mxu0 0.0
      %2972 = vmatprep.subr.mxu0 0.0
      %2973 = vmatpush1.msra.mxu0 0.0
      %2974 = vmatprep.mubr.f32.mxu0 0.0
      %v2975 = vand.u32 %v2333, 4294901760
      %2976 = vmatmul.mubr.f32.gmra.mrb[0].mxu0 %v2975
      %v2977 = vpop.f32.mrb[0].mxu0
      %v2978 = vadd.f32 %v2890, %v2977
      %v2979 = vpop.f32.mrb[0].mxu0
      %v2980 = vadd.f32 %v2892, %v2979
      %2981 = vdwg.mxu0
      %s2982 = scalar_lea.vmem %s3, 16
      %v2983 = vld [vmem:[%s2982] sm:$0xff]
      %2984 = vrot.lane.b32.xlu0 %v1591, 126
      %v2985 = vpop.permute.xlu0 %2984
      %2986 = vrot.lane.b32.xlu0 %v1592, 126
      %v2987 = vpop.permute.xlu0 %2986
      %2988 = vrot.lane.b32.xlu0 %v1593, 126
      %v2989 = vpop.permute.xlu0 %2988
      %2990 = vrot.lane.b32.xlu0 %v1594, 126
      %v2991 = vpop.permute.xlu0 %2990
      %2992 = vrot.lane.b32.xlu0 %v1595, 126
      %v2993 = vpop.permute.xlu0 %2992
      %2994 = vrot.lane.b32.xlu0 %v1596, 126
      %v2995 = vpop.permute.xlu0 %2994
      %2996 = vrot.lane.b32.xlu0 %v1597, 126
      %v2997 = vpop.permute.xlu0 %2996
      %2998 = vrot.lane.b32.xlu0 %v1598, 126
      %v2999 = vpop.permute.xlu0 %2998
      %3000 = vrot.lane.b32.xlu0 %v1599, 126
      %v3001 = vpop.permute.xlu0 %3000
      %3002 = vrot.lane.b32.xlu0 %v1600, 126
      %v3003 = vpop.permute.xlu0 %3002
      %3004 = vrot.lane.b32.xlu0 %v1601, 126
      %v3005 = vpop.permute.xlu0 %3004
      %3006 = vrot.lane.b32.xlu0 %v1602, 126
      %v3007 = vpop.permute.xlu0 %3006
      %3008 = vrot.lane.b32.xlu0 %v1603, 126
      %v3009 = vpop.permute.xlu0 %3008
      %3010 = vrot.lane.b32.xlu0 %v1604, 126
      %v3011 = vpop.permute.xlu0 %3010
      %3012 = vrot.lane.b32.xlu0 %v1605, 126
      %v3013 = vpop.permute.xlu0 %3012
      %3014 = vrot.lane.b32.xlu0 %v1606, 126
      %v3015 = vpop.permute.xlu0 %3014
      %v3016 = vsel %vm293, %v2985, %v2987
      %v3017 = vsel %vm293, %v2989, %v2991
      %v3018 = vsel %vm293, %v2993, %v2995
      %v3019 = vsel %vm293, %v2997, %v2999
      %v3020 = vsel %vm293, %v3001, %v3003
      %v3021 = vsel %vm293, %v3005, %v3007
      %v3022 = vsel %vm293, %v3009, %v3011
      %v3023 = vsel %vm293, %v3013, %v3015
      %v3041 = vsel %vm1681, %v2983, 0
      %v3043 = vand.u32 %v2987, 4294901760
      %3044 = vmatprep.subr.mxu0 %v3043
      %v3045 = vand.u32 %v3016, 4294901760
      %3046 = vmatpush1.msra.mxu0 %v3045
      %v3047 = vand.u32 %v2991, 4294901760
      %3048 = vmatprep.subr.mxu0 %v3047
      %v3049 = vand.u32 %v3017, 4294901760
      %3050 = vmatpush1.msra.mxu0 %v3049
      %v3051 = vand.u32 %v2995, 4294901760
      %3052 = vmatprep.subr.mxu0 %v3051
      %v3053 = vand.u32 %v3018, 4294901760
      %3054 = vmatpush1.msra.mxu0 %v3053
      %v3055 = vand.u32 %v2999, 4294901760
      %3056 = vmatprep.subr.mxu0 %v3055
      %v3057 = vand.u32 %v3019, 4294901760
      %3058 = vmatpush1.msra.mxu0 %v3057
      %v3059 = vand.u32 %v3003, 4294901760
      %3060 = vmatprep.subr.mxu0 %v3059
      %v3061 = vand.u32 %v3020, 4294901760
      %3062 = vmatpush1.msra.mxu0 %v3061
      %v3063 = vand.u32 %v3007, 4294901760
      %3064 = vmatprep.subr.mxu0 %v3063
      %v3065 = vand.u32 %v3021, 4294901760
      %3066 = vmatpush1.msra.mxu0 %v3065
      %v3067 = vand.u32 %v3011, 4294901760
      %3068 = vmatprep.subr.mxu0 %v3067
      %v3069 = vand.u32 %v3022, 4294901760
      %3070 = vmatpush1.msra.mxu0 %v3069
      %v3071 = vand.u32 %v3015, 4294901760
      %3072 = vmatprep.subr.mxu0 %v3071
      %v3073 = vand.u32 %v3023, 4294901760
      %3074 = vmatpush1.msra.mxu0 %v3073
      %3075 = vmatprep.subr.mxu0 0.0
      %3076 = vmatpush1.msra.mxu0 0.0
      %3077 = vmatprep.subr.mxu0 0.0
      %3078 = vmatpush1.msra.mxu0 0.0
      %3079 = vmatprep.subr.mxu0 0.0
      %3080 = vmatpush1.msra.mxu0 0.0
      %3081 = vmatprep.subr.mxu0 0.0
      %3082 = vmatpush1.msra.mxu0 0.0
      %3083 = vmatprep.subr.mxu0 0.0
      %3084 = vmatpush1.msra.mxu0 0.0
      %3085 = vmatprep.subr.mxu0 0.0
      %3086 = vmatpush1.msra.mxu0 0.0
      %3087 = vmatprep.subr.mxu0 0.0
      %3088 = vmatpush1.msra.mxu0 0.0
      %3089 = vmatprep.subr.mxu0 0.0
      %3090 = vmatpush1.msra.mxu0 0.0
      %3091 = vmatprep.subr.mxu0 0.0
      %3092 = vmatpush1.msra.mxu0 0.0
      %3093 = vmatprep.subr.mxu0 0.0
      %3094 = vmatpush1.msra.mxu0 0.0
      %3095 = vmatprep.subr.mxu0 0.0
      %3096 = vmatpush1.msra.mxu0 0.0
      %3097 = vmatprep.subr.mxu0 0.0
      %3098 = vmatpush1.msra.mxu0 0.0
      %3099 = vmatprep.subr.mxu0 0.0
      %3100 = vmatpush1.msra.mxu0 0.0
      %3101 = vmatprep.subr.mxu0 0.0
      %3102 = vmatpush1.msra.mxu0 0.0
      %3103 = vmatprep.subr.mxu0 0.0
      %3104 = vmatpush1.msra.mxu0 0.0
      %3105 = vmatprep.subr.mxu0 0.0
      %3106 = vmatpush1.msra.mxu0 0.0
      %3107 = vmatprep.subr.mxu0 0.0
      %3108 = vmatpush1.msra.mxu0 0.0
      %3109 = vmatprep.subr.mxu0 0.0
      %3110 = vmatpush1.msra.mxu0 0.0
      %3111 = vmatprep.subr.mxu0 0.0
      %3112 = vmatpush1.msra.mxu0 0.0
      %3113 = vmatprep.subr.mxu0 0.0
      %3114 = vmatpush1.msra.mxu0 0.0
      %3115 = vmatprep.subr.mxu0 0.0
      %3116 = vmatpush1.msra.mxu0 0.0
      %3117 = vmatprep.subr.mxu0 0.0
      %3118 = vmatpush1.msra.mxu0 0.0
      %3119 = vmatprep.subr.mxu0 0.0
      %3120 = vmatpush1.msra.mxu0 0.0
      %3121 = vmatprep.subr.mxu0 0.0
      %3122 = vmatpush1.msra.mxu0 0.0
      %3123 = vmatprep.mubr.f32.mxu0 0.0
      %v3124 = vand.u32 %v3041, 4294901760
      %v3125 = vsub.f32 %v3041, %v3124
      %v3126 = vand.u32 %v3125, 4294901760
      %v3127 = vsub.f32 %v3125, %v3126
      %v3128 = vand.u32 %v3127, 4294901760
      %3129 = vmatmul.mubr.f32.gmra.mrb[0].mxu0 %v3128
      %v3130 = vpop.f32.mrb[0].mxu0
      %v3131 = vadd.f32 0.0, %v3130
      %v3132 = vpop.f32.mrb[0].mxu0
      %v3133 = vadd.f32 0.0, %v3132
      %3134 = vdwg.mxu0
      %v3135 = vand.u32 %v2987, 4294901760
      %v3136 = vsub.f32 %v2987, %v3135
      %v3137 = vand.u32 %v3136, 4294901760
      %v3138 = vsub.f32 %v3136, %v3137
      %v3139 = vand.u32 %v3138, 4294901760
      %3140 = vmatprep.subr.mxu0 %v3139
      %v3141 = vand.u32 %v3016, 4294901760
      %v3142 = vsub.f32 %v3016, %v3141
      %v3143 = vand.u32 %v3142, 4294901760
      %v3144 = vsub.f32 %v3142, %v3143
      %v3145 = vand.u32 %v3144, 4294901760
      %3146 = vmatpush1.msra.mxu0 %v3145
      %v3147 = vand.u32 %v2991, 4294901760
      %v3148 = vsub.f32 %v2991, %v3147
      %v3149 = vand.u32 %v3148, 4294901760
      %v3150 = vsub.f32 %v3148, %v3149
      %v3151 = vand.u32 %v3150, 4294901760
      %3152 = vmatprep.subr.mxu0 %v3151
      %v3153 = vand.u32 %v3017, 4294901760
      %v3154 = vsub.f32 %v3017, %v3153
      %v3155 = vand.u32 %v3154, 4294901760
      %v3156 = vsub.f32 %v3154, %v3155
      %v3157 = vand.u32 %v3156, 4294901760
      %3158 = vmatpush1.msra.mxu0 %v3157
      %v3159 = vand.u32 %v2995, 4294901760
      %v3160 = vsub.f32 %v2995, %v3159
      %v3161 = vand.u32 %v3160, 4294901760
      %v3162 = vsub.f32 %v3160, %v3161
      %v3163 = vand.u32 %v3162, 4294901760
      %3164 = vmatprep.subr.mxu0 %v3163
      %v3165 = vand.u32 %v3018, 4294901760
      %v3166 = vsub.f32 %v3018, %v3165
      %v3167 = vand.u32 %v3166, 4294901760
      %v3168 = vsub.f32 %v3166, %v3167
      %v3169 = vand.u32 %v3168, 4294901760
      %3170 = vmatpush1.msra.mxu0 %v3169
      %v3171 = vand.u32 %v2999, 4294901760
      %v3172 = vsub.f32 %v2999, %v3171
      %v3173 = vand.u32 %v3172, 4294901760
      %v3174 = vsub.f32 %v3172, %v3173
      %v3175 = vand.u32 %v3174, 4294901760
      %3176 = vmatprep.subr.mxu0 %v3175
      %v3177 = vand.u32 %v3019, 4294901760
      %v3178 = vsub.f32 %v3019, %v3177
      %v3179 = vand.u32 %v3178, 4294901760
      %v3180 = vsub.f32 %v3178, %v3179
      %v3181 = vand.u32 %v3180, 4294901760
      %3182 = vmatpush1.msra.mxu0 %v3181
      %v3183 = vand.u32 %v3003, 4294901760
      %v3184 = vsub.f32 %v3003, %v3183
      %v3185 = vand.u32 %v3184, 4294901760
      %v3186 = vsub.f32 %v3184, %v3185
      %v3187 = vand.u32 %v3186, 4294901760
      %3188 = vmatprep.subr.mxu0 %v3187
      %v3189 = vand.u32 %v3020, 4294901760
      %v3190 = vsub.f32 %v3020, %v3189
      %v3191 = vand.u32 %v3190, 4294901760
      %v3192 = vsub.f32 %v3190, %v3191
      %v3193 = vand.u32 %v3192, 4294901760
      %3194 = vmatpush1.msra.mxu0 %v3193
      %v3195 = vand.u32 %v3007, 4294901760
      %v3196 = vsub.f32 %v3007, %v3195
      %v3197 = vand.u32 %v3196, 4294901760
      %v3198 = vsub.f32 %v3196, %v3197
      %v3199 = vand.u32 %v3198, 4294901760
      %3200 = vmatprep.subr.mxu0 %v3199
      %v3201 = vand.u32 %v3021, 4294901760
      %v3202 = vsub.f32 %v3021, %v3201
      %v3203 = vand.u32 %v3202, 4294901760
      %v3204 = vsub.f32 %v3202, %v3203
      %v3205 = vand.u32 %v3204, 4294901760
      %3206 = vmatpush1.msra.mxu0 %v3205
      %v3207 = vand.u32 %v3011, 4294901760
      %v3208 = vsub.f32 %v3011, %v3207
      %v3209 = vand.u32 %v3208, 4294901760
      %v3210 = vsub.f32 %v3208, %v3209
      %v3211 = vand.u32 %v3210, 4294901760
      %3212 = vmatprep.subr.mxu0 %v3211
      %v3213 = vand.u32 %v3022, 4294901760
      %v3214 = vsub.f32 %v3022, %v3213
      %v3215 = vand.u32 %v3214, 4294901760
      %v3216 = vsub.f32 %v3214, %v3215
      %v3217 = vand.u32 %v3216, 4294901760
      %3218 = vmatpush1.msra.mxu0 %v3217
      %v3219 = vand.u32 %v3015, 4294901760
      %v3220 = vsub.f32 %v3015, %v3219
      %v3221 = vand.u32 %v3220, 4294901760
      %v3222 = vsub.f32 %v3220, %v3221
      %v3223 = vand.u32 %v3222, 4294901760
      %3224 = vmatprep.subr.mxu0 %v3223
      %v3225 = vand.u32 %v3023, 4294901760
      %v3226 = vsub.f32 %v3023, %v3225
      %v3227 = vand.u32 %v3226, 4294901760
      %v3228 = vsub.f32 %v3226, %v3227
      %v3229 = vand.u32 %v3228, 4294901760
      %3230 = vmatpush1.msra.mxu0 %v3229
      %3231 = vmatprep.subr.mxu0 0.0
      %3232 = vmatpush1.msra.mxu0 0.0
      %3233 = vmatprep.subr.mxu0 0.0
      %3234 = vmatpush1.msra.mxu0 0.0
      %3235 = vmatprep.subr.mxu0 0.0
      %3236 = vmatpush1.msra.mxu0 0.0
      %3237 = vmatprep.subr.mxu0 0.0
      %3238 = vmatpush1.msra.mxu0 0.0
      %3239 = vmatprep.subr.mxu0 0.0
      %3240 = vmatpush1.msra.mxu0 0.0
      %3241 = vmatprep.subr.mxu0 0.0
      %3242 = vmatpush1.msra.mxu0 0.0
      %3243 = vmatprep.subr.mxu0 0.0
      %3244 = vmatpush1.msra.mxu0 0.0
      %3245 = vmatprep.subr.mxu0 0.0
      %3246 = vmatpush1.msra.mxu0 0.0
      %3247 = vmatprep.subr.mxu0 0.0
      %3248 = vmatpush1.msra.mxu0 0.0
      %3249 = vmatprep.subr.mxu0 0.0
      %3250 = vmatpush1.msra.mxu0 0.0
      %3251 = vmatprep.subr.mxu0 0.0
      %3252 = vmatpush1.msra.mxu0 0.0
      %3253 = vmatprep.subr.mxu0 0.0
      %3254 = vmatpush1.msra.mxu0 0.0
      %3255 = vmatprep.subr.mxu0 0.0
      %3256 = vmatpush1.msra.mxu0 0.0
      %3257 = vmatprep.subr.mxu0 0.0
      %3258 = vmatpush1.msra.mxu0 0.0
      %3259 = vmatprep.subr.mxu0 0.0
      %3260 = vmatpush1.msra.mxu0 0.0
      %3261 = vmatprep.subr.mxu0 0.0
      %3262 = vmatpush1.msra.mxu0 0.0
      %3263 = vmatprep.subr.mxu0 0.0
      %3264 = vmatpush1.msra.mxu0 0.0
      %3265 = vmatprep.subr.mxu0 0.0
      %3266 = vmatpush1.msra.mxu0 0.0
      %3267 = vmatprep.subr.mxu0 0.0
      %3268 = vmatpush1.msra.mxu0 0.0
      %3269 = vmatprep.subr.mxu0 0.0
      %3270 = vmatpush1.msra.mxu0 0.0
      %3271 = vmatprep.subr.mxu0 0.0
      %3272 = vmatpush1.msra.mxu0 0.0
      %3273 = vmatprep.subr.mxu0 0.0
      %3274 = vmatpush1.msra.mxu0 0.0
      %3275 = vmatprep.subr.mxu0 0.0
      %3276 = vmatpush1.msra.mxu0 0.0
      %3277 = vmatprep.subr.mxu0 0.0
      %3278 = vmatpush1.msra.mxu0 0.0
      %3279 = vmatprep.mubr.f32.mxu0 0.0
      %v3280 = vand.u32 %v3041, 4294901760
      %3281 = vmatmul.mubr.f32.gmra.mrb[0].mxu0 %v3280
      %v3282 = vpop.f32.mrb[0].mxu0
      %v3283 = vadd.f32 %v3131, %v3282
      %v3284 = vpop.f32.mrb[0].mxu0
      %v3285 = vadd.f32 %v3133, %v3284
      %3286 = vdwg.mxu0
      %v3287 = vand.u32 %v2987, 4294901760
      %v3288 = vsub.f32 %v2987, %v3287
      %3289 = vmatprep.subr.mxu0 %v3288
      %v3290 = vand.u32 %v3016, 4294901760
      %v3291 = vsub.f32 %v3016, %v3290
      %3292 = vmatpush1.msra.mxu0 %v3291
      %v3293 = vand.u32 %v2991, 4294901760
      %v3294 = vsub.f32 %v2991, %v3293
      %3295 = vmatprep.subr.mxu0 %v3294
      %v3296 = vand.u32 %v3017, 4294901760
      %v3297 = vsub.f32 %v3017, %v3296
      %3298 = vmatpush1.msra.mxu0 %v3297
      %v3299 = vand.u32 %v2995, 4294901760
      %v3300 = vsub.f32 %v2995, %v3299
      %3301 = vmatprep.subr.mxu0 %v3300
      %v3302 = vand.u32 %v3018, 4294901760
      %v3303 = vsub.f32 %v3018, %v3302
      %3304 = vmatpush1.msra.mxu0 %v3303
      %v3305 = vand.u32 %v2999, 4294901760
      %v3306 = vsub.f32 %v2999, %v3305
      %3307 = vmatprep.subr.mxu0 %v3306
      %v3308 = vand.u32 %v3019, 4294901760
      %v3309 = vsub.f32 %v3019, %v3308
      %3310 = vmatpush1.msra.mxu0 %v3309
      %v3311 = vand.u32 %v3003, 4294901760
      %v3312 = vsub.f32 %v3003, %v3311
      %3313 = vmatprep.subr.mxu0 %v3312
      %v3314 = vand.u32 %v3020, 4294901760
      %v3315 = vsub.f32 %v3020, %v3314
      %3316 = vmatpush1.msra.mxu0 %v3315
      %v3317 = vand.u32 %v3007, 4294901760
      %v3318 = vsub.f32 %v3007, %v3317
      %3319 = vmatprep.subr.mxu0 %v3318
      %v3320 = vand.u32 %v3021, 4294901760
      %v3321 = vsub.f32 %v3021, %v3320
      %3322 = vmatpush1.msra.mxu0 %v3321
      %v3323 = vand.u32 %v3011, 4294901760
      %v3324 = vsub.f32 %v3011, %v3323
      %3325 = vmatprep.subr.mxu0 %v3324
      %v3326 = vand.u32 %v3022, 4294901760
      %v3327 = vsub.f32 %v3022, %v3326
      %3328 = vmatpush1.msra.mxu0 %v3327
      %v3329 = vand.u32 %v3015, 4294901760
      %v3330 = vsub.f32 %v3015, %v3329
      %3331 = vmatprep.subr.mxu0 %v3330
      %v3332 = vand.u32 %v3023, 4294901760
      %v3333 = vsub.f32 %v3023, %v3332
      %3334 = vmatpush1.msra.mxu0 %v3333
      %3335 = vmatprep.subr.mxu0 0.0
      %3336 = vmatpush1.msra.mxu0 0.0
      %3337 = vmatprep.subr.mxu0 0.0
      %3338 = vmatpush1.msra.mxu0 0.0
      %3339 = vmatprep.subr.mxu0 0.0
      %3340 = vmatpush1.msra.mxu0 0.0
      %3341 = vmatprep.subr.mxu0 0.0
      %3342 = vmatpush1.msra.mxu0 0.0
      %3343 = vmatprep.subr.mxu0 0.0
      %3344 = vmatpush1.msra.mxu0 0.0
      %3345 = vmatprep.subr.mxu0 0.0
      %3346 = vmatpush1.msra.mxu0 0.0
      %3347 = vmatprep.subr.mxu0 0.0
      %3348 = vmatpush1.msra.mxu0 0.0
      %3349 = vmatprep.subr.mxu0 0.0
      %3350 = vmatpush1.msra.mxu0 0.0
      %3351 = vmatprep.subr.mxu0 0.0
      %3352 = vmatpush1.msra.mxu0 0.0
      %3353 = vmatprep.subr.mxu0 0.0
      %3354 = vmatpush1.msra.mxu0 0.0
      %3355 = vmatprep.subr.mxu0 0.0
      %3356 = vmatpush1.msra.mxu0 0.0
      %3357 = vmatprep.subr.mxu0 0.0
      %3358 = vmatpush1.msra.mxu0 0.0
      %3359 = vmatprep.subr.mxu0 0.0
      %3360 = vmatpush1.msra.mxu0 0.0
      %3361 = vmatprep.subr.mxu0 0.0
      %3362 = vmatpush1.msra.mxu0 0.0
      %3363 = vmatprep.subr.mxu0 0.0
      %3364 = vmatpush1.msra.mxu0 0.0
      %3365 = vmatprep.subr.mxu0 0.0
      %3366 = vmatpush1.msra.mxu0 0.0
      %3367 = vmatprep.subr.mxu0 0.0
      %3368 = vmatpush1.msra.mxu0 0.0
      %3369 = vmatprep.subr.mxu0 0.0
      %3370 = vmatpush1.msra.mxu0 0.0
      %3371 = vmatprep.subr.mxu0 0.0
      %3372 = vmatpush1.msra.mxu0 0.0
      %3373 = vmatprep.subr.mxu0 0.0
      %3374 = vmatpush1.msra.mxu0 0.0
      %3375 = vmatprep.subr.mxu0 0.0
      %3376 = vmatpush1.msra.mxu0 0.0
      %3377 = vmatprep.subr.mxu0 0.0
      %3378 = vmatpush1.msra.mxu0 0.0
      %3379 = vmatprep.subr.mxu0 0.0
      %3380 = vmatpush1.msra.mxu0 0.0
      %3381 = vmatprep.subr.mxu0 0.0
      %3382 = vmatpush1.msra.mxu0 0.0
      %3383 = vmatprep.mubr.f32.mxu0 0.0
      %v3384 = vand.u32 %v3041, 4294901760
      %v3385 = vsub.f32 %v3041, %v3384
      %3386 = vmatmul.mubr.f32.gmra.mrb[0].mxu0 %v3385
      %v3387 = vpop.f32.mrb[0].mxu0
      %v3388 = vadd.f32 %v3283, %v3387
      %v3389 = vpop.f32.mrb[0].mxu0
      %v3390 = vadd.f32 %v3285, %v3389
      %3391 = vdwg.mxu0
      %v3392 = vand.u32 %v2987, 4294901760
      %3393 = vmatprep.subr.mxu0 %v3392
      %v3394 = vand.u32 %v3016, 4294901760
      %3395 = vmatpush1.msra.mxu0 %v3394
      %v3396 = vand.u32 %v2991, 4294901760
      %3397 = vmatprep.subr.mxu0 %v3396
      %v3398 = vand.u32 %v3017, 4294901760
      %3399 = vmatpush1.msra.mxu0 %v3398
      %v3400 = vand.u32 %v2995, 4294901760
      %3401 = vmatprep.subr.mxu0 %v3400
      %v3402 = vand.u32 %v3018, 4294901760
      %3403 = vmatpush1.msra.mxu0 %v3402
      %v3404 = vand.u32 %v2999, 4294901760
      %3405 = vmatprep.subr.mxu0 %v3404
      %v3406 = vand.u32 %v3019, 4294901760
      %3407 = vmatpush1.msra.mxu0 %v3406
      %v3408 = vand.u32 %v3003, 4294901760
      %3409 = vmatprep.subr.mxu0 %v3408
      %v3410 = vand.u32 %v3020, 4294901760
      %3411 = vmatpush1.msra.mxu0 %v3410
      %v3412 = vand.u32 %v3007, 4294901760
      %3413 = vmatprep.subr.mxu0 %v3412
      %v3414 = vand.u32 %v3021, 4294901760
      %3415 = vmatpush1.msra.mxu0 %v3414
      %v3416 = vand.u32 %v3011, 4294901760
      %3417 = vmatprep.subr.mxu0 %v3416
      %v3418 = vand.u32 %v3022, 4294901760
      %3419 = vmatpush1.msra.mxu0 %v3418
      %v3420 = vand.u32 %v3015, 4294901760
      %3421 = vmatprep.subr.mxu0 %v3420
      %v3422 = vand.u32 %v3023, 4294901760
      %3423 = vmatpush1.msra.mxu0 %v3422
      %3424 = vmatprep.subr.mxu0 0.0
      %3425 = vmatpush1.msra.mxu0 0.0
      %3426 = vmatprep.subr.mxu0 0.0
      %3427 = vmatpush1.msra.mxu0 0.0
      %3428 = vmatprep.subr.mxu0 0.0
      %3429 = vmatpush1.msra.mxu0 0.0
      %3430 = vmatprep.subr.mxu0 0.0
      %3431 = vmatpush1.msra.mxu0 0.0
      %3432 = vmatprep.subr.mxu0 0.0
      %3433 = vmatpush1.msra.mxu0 0.0
      %3434 = vmatprep.subr.mxu0 0.0
      %3435 = vmatpush1.msra.mxu0 0.0
      %3436 = vmatprep.subr.mxu0 0.0
      %3437 = vmatpush1.msra.mxu0 0.0
      %3438 = vmatprep.subr.mxu0 0.0
      %3439 = vmatpush1.msra.mxu0 0.0
      %3440 = vmatprep.subr.mxu0 0.0
      %3441 = vmatpush1.msra.mxu0 0.0
      %3442 = vmatprep.subr.mxu0 0.0
      %3443 = vmatpush1.msra.mxu0 0.0
      %3444 = vmatprep.subr.mxu0 0.0
      %3445 = vmatpush1.msra.mxu0 0.0
      %3446 = vmatprep.subr.mxu0 0.0
      %3447 = vmatpush1.msra.mxu0 0.0
      %3448 = vmatprep.subr.mxu0 0.0
      %3449 = vmatpush1.msra.mxu0 0.0
      %3450 = vmatprep.subr.mxu0 0.0
      %3451 = vmatpush1.msra.mxu0 0.0
      %3452 = vmatprep.subr.mxu0 0.0
      %3453 = vmatpush1.msra.mxu0 0.0
      %3454 = vmatprep.subr.mxu0 0.0
      %3455 = vmatpush1.msra.mxu0 0.0
      %3456 = vmatprep.subr.mxu0 0.0
      %3457 = vmatpush1.msra.mxu0 0.0
      %3458 = vmatprep.subr.mxu0 0.0
      %3459 = vmatpush1.msra.mxu0 0.0
      %3460 = vmatprep.subr.mxu0 0.0
      %3461 = vmatpush1.msra.mxu0 0.0
      %3462 = vmatprep.subr.mxu0 0.0
      %3463 = vmatpush1.msra.mxu0 0.0
      %3464 = vmatprep.subr.mxu0 0.0
      %3465 = vmatpush1.msra.mxu0 0.0
      %3466 = vmatprep.subr.mxu0 0.0
      %3467 = vmatpush1.msra.mxu0 0.0
      %3468 = vmatprep.subr.mxu0 0.0
      %3469 = vmatpush1.msra.mxu0 0.0
      %3470 = vmatprep.subr.mxu0 0.0
      %3471 = vmatpush1.msra.mxu0 0.0
      %3472 = vmatprep.mubr.f32.mxu0 0.0
      %v3473 = vand.u32 %v3041, 4294901760
      %v3474 = vsub.f32 %v3041, %v3473
      %v3475 = vand.u32 %v3474, 4294901760
      %3476 = vmatmul.mubr.f32.gmra.mrb[0].mxu0 %v3475
      %v3477 = vpop.f32.mrb[0].mxu0
      %v3478 = vadd.f32 %v3388, %v3477
      %v3479 = vpop.f32.mrb[0].mxu0
      %v3480 = vadd.f32 %v3390, %v3479
      %3481 = vdwg.mxu0
      %v3482 = vand.u32 %v2987, 4294901760
      %v3483 = vsub.f32 %v2987, %v3482
      %v3484 = vand.u32 %v3483, 4294901760
      %3485 = vmatprep.subr.mxu0 %v3484
      %v3486 = vand.u32 %v3016, 4294901760
      %v3487 = vsub.f32 %v3016, %v3486
      %v3488 = vand.u32 %v3487, 4294901760
      %3489 = vmatpush1.msra.mxu0 %v3488
      %v3490 = vand.u32 %v2991, 4294901760
      %v3491 = vsub.f32 %v2991, %v3490
      %v3492 = vand.u32 %v3491, 4294901760
      %3493 = vmatprep.subr.mxu0 %v3492
      %v3494 = vand.u32 %v3017, 4294901760
      %v3495 = vsub.f32 %v3017, %v3494
      %v3496 = vand.u32 %v3495, 4294901760
      %3497 = vmatpush1.msra.mxu0 %v3496
      %v3498 = vand.u32 %v2995, 4294901760
      %v3499 = vsub.f32 %v2995, %v3498
      %v3500 = vand.u32 %v3499, 4294901760
      %3501 = vmatprep.subr.mxu0 %v3500
      %v3502 = vand.u32 %v3018, 4294901760
      %v3503 = vsub.f32 %v3018, %v3502
      %v3504 = vand.u32 %v3503, 4294901760
      %3505 = vmatpush1.msra.mxu0 %v3504
      %v3506 = vand.u32 %v2999, 4294901760
      %v3507 = vsub.f32 %v2999, %v3506
      %v3508 = vand.u32 %v3507, 4294901760
      %3509 = vmatprep.subr.mxu0 %v3508
      %v3510 = vand.u32 %v3019, 4294901760
      %v3511 = vsub.f32 %v3019, %v3510
      %v3512 = vand.u32 %v3511, 4294901760
      %3513 = vmatpush1.msra.mxu0 %v3512
      %v3514 = vand.u32 %v3003, 4294901760
      %v3515 = vsub.f32 %v3003, %v3514
      %v3516 = vand.u32 %v3515, 4294901760
      %3517 = vmatprep.subr.mxu0 %v3516
      %v3518 = vand.u32 %v3020, 4294901760
      %v3519 = vsub.f32 %v3020, %v3518
      %v3520 = vand.u32 %v3519, 4294901760
      %3521 = vmatpush1.msra.mxu0 %v3520
      %v3522 = vand.u32 %v3007, 4294901760
      %v3523 = vsub.f32 %v3007, %v3522
      %v3524 = vand.u32 %v3523, 4294901760
      %3525 = vmatprep.subr.mxu0 %v3524
      %v3526 = vand.u32 %v3021, 4294901760
      %v3527 = vsub.f32 %v3021, %v3526
      %v3528 = vand.u32 %v3527, 4294901760
      %3529 = vmatpush1.msra.mxu0 %v3528
      %v3530 = vand.u32 %v3011, 4294901760
      %v3531 = vsub.f32 %v3011, %v3530
      %v3532 = vand.u32 %v3531, 4294901760
      %3533 = vmatprep.subr.mxu0 %v3532
      %v3534 = vand.u32 %v3022, 4294901760
      %v3535 = vsub.f32 %v3022, %v3534
      %v3536 = vand.u32 %v3535, 4294901760
      %3537 = vmatpush1.msra.mxu0 %v3536
      %v3538 = vand.u32 %v3015, 4294901760
      %v3539 = vsub.f32 %v3015, %v3538
      %v3540 = vand.u32 %v3539, 4294901760
      %3541 = vmatprep.subr.mxu0 %v3540
      %v3542 = vand.u32 %v3023, 4294901760
      %v3543 = vsub.f32 %v3023, %v3542
      %v3544 = vand.u32 %v3543, 4294901760
      %3545 = vmatpush1.msra.mxu0 %v3544
      %3546 = vmatprep.subr.mxu0 0.0
      %3547 = vmatpush1.msra.mxu0 0.0
      %3548 = vmatprep.subr.mxu0 0.0
      %3549 = vmatpush1.msra.mxu0 0.0
      %3550 = vmatprep.subr.mxu0 0.0
      %3551 = vmatpush1.msra.mxu0 0.0
      %3552 = vmatprep.subr.mxu0 0.0
      %3553 = vmatpush1.msra.mxu0 0.0
      %3554 = vmatprep.subr.mxu0 0.0
      %3555 = vmatpush1.msra.mxu0 0.0
      %3556 = vmatprep.subr.mxu0 0.0
      %3557 = vmatpush1.msra.mxu0 0.0
      %3558 = vmatprep.subr.mxu0 0.0
      %3559 = vmatpush1.msra.mxu0 0.0
      %3560 = vmatprep.subr.mxu0 0.0
      %3561 = vmatpush1.msra.mxu0 0.0
      %3562 = vmatprep.subr.mxu0 0.0
      %3563 = vmatpush1.msra.mxu0 0.0
      %3564 = vmatprep.subr.mxu0 0.0
      %3565 = vmatpush1.msra.mxu0 0.0
      %3566 = vmatprep.subr.mxu0 0.0
      %3567 = vmatpush1.msra.mxu0 0.0
      %3568 = vmatprep.subr.mxu0 0.0
      %3569 = vmatpush1.msra.mxu0 0.0
      %3570 = vmatprep.subr.mxu0 0.0
      %3571 = vmatpush1.msra.mxu0 0.0
      %3572 = vmatprep.subr.mxu0 0.0
      %3573 = vmatpush1.msra.mxu0 0.0
      %3574 = vmatprep.subr.mxu0 0.0
      %3575 = vmatpush1.msra.mxu0 0.0
      %3576 = vmatprep.subr.mxu0 0.0
      %3577 = vmatpush1.msra.mxu0 0.0
      %3578 = vmatprep.subr.mxu0 0.0
      %3579 = vmatpush1.msra.mxu0 0.0
      %3580 = vmatprep.subr.mxu0 0.0
      %3581 = vmatpush1.msra.mxu0 0.0
      %3582 = vmatprep.subr.mxu0 0.0
      %3583 = vmatpush1.msra.mxu0 0.0
      %3584 = vmatprep.subr.mxu0 0.0
      %3585 = vmatpush1.msra.mxu0 0.0
      %3586 = vmatprep.subr.mxu0 0.0
      %3587 = vmatpush1.msra.mxu0 0.0
      %3588 = vmatprep.subr.mxu0 0.0
      %3589 = vmatpush1.msra.mxu0 0.0
      %3590 = vmatprep.subr.mxu0 0.0
      %3591 = vmatpush1.msra.mxu0 0.0
      %3592 = vmatprep.subr.mxu0 0.0
      %3593 = vmatpush1.msra.mxu0 0.0
      %3594 = vmatprep.mubr.f32.mxu0 0.0
      %v3595 = vand.u32 %v3041, 4294901760
      %3596 = vmatmul.mubr.f32.gmra.mrb[0].mxu0 %v3595
      %v3597 = vpop.f32.mrb[0].mxu0
      %v3598 = vadd.f32 %v3478, %v3597
      %v3599 = vpop.f32.mrb[0].mxu0
      %v3600 = vadd.f32 %v3480, %v3599
      %3601 = vdwg.mxu0
      %v3602 = vand.u32 %v2987, 4294901760
      %3603 = vmatprep.subr.mxu0 %v3602
      %v3604 = vand.u32 %v3016, 4294901760
      %3605 = vmatpush1.msra.mxu0 %v3604
      %v3606 = vand.u32 %v2991, 4294901760
      %3607 = vmatprep.subr.mxu0 %v3606
      %v3608 = vand.u32 %v3017, 4294901760
      %3609 = vmatpush1.msra.mxu0 %v3608
      %v3610 = vand.u32 %v2995, 4294901760
      %3611 = vmatprep.subr.mxu0 %v3610
      %v3612 = vand.u32 %v3018, 4294901760
      %3613 = vmatpush1.msra.mxu0 %v3612
      %v3614 = vand.u32 %v2999, 4294901760
      %3615 = vmatprep.subr.mxu0 %v3614
      %v3616 = vand.u32 %v3019, 4294901760
      %3617 = vmatpush1.msra.mxu0 %v3616
      %v3618 = vand.u32 %v3003, 4294901760
      %3619 = vmatprep.subr.mxu0 %v3618
      %v3620 = vand.u32 %v3020, 4294901760
      %3621 = vmatpush1.msra.mxu0 %v3620
      %v3622 = vand.u32 %v3007, 4294901760
      %3623 = vmatprep.subr.mxu0 %v3622
      %v3624 = vand.u32 %v3021, 4294901760
      %3625 = vmatpush1.msra.mxu0 %v3624
      %v3626 = vand.u32 %v3011, 4294901760
      %3627 = vmatprep.subr.mxu0 %v3626
      %v3628 = vand.u32 %v3022, 4294901760
      %3629 = vmatpush1.msra.mxu0 %v3628
      %v3630 = vand.u32 %v3015, 4294901760
      %3631 = vmatprep.subr.mxu0 %v3630
      %v3632 = vand.u32 %v3023, 4294901760
      %3633 = vmatpush1.msra.mxu0 %v3632
      %3634 = vmatprep.subr.mxu0 0.0
      %3635 = vmatpush1.msra.mxu0 0.0
      %3636 = vmatprep.subr.mxu0 0.0
      %3637 = vmatpush1.msra.mxu0 0.0
      %3638 = vmatprep.subr.mxu0 0.0
      %3639 = vmatpush1.msra.mxu0 0.0
      %3640 = vmatprep.subr.mxu0 0.0
      %3641 = vmatpush1.msra.mxu0 0.0
      %3642 = vmatprep.subr.mxu0 0.0
      %3643 = vmatpush1.msra.mxu0 0.0
      %3644 = vmatprep.subr.mxu0 0.0
      %3645 = vmatpush1.msra.mxu0 0.0
      %3646 = vmatprep.subr.mxu0 0.0
      %3647 = vmatpush1.msra.mxu0 0.0
      %3648 = vmatprep.subr.mxu0 0.0
      %3649 = vmatpush1.msra.mxu0 0.0
      %3650 = vmatprep.subr.mxu0 0.0
      %3651 = vmatpush1.msra.mxu0 0.0
      %3652 = vmatprep.subr.mxu0 0.0
      %3653 = vmatpush1.msra.mxu0 0.0
      %3654 = vmatprep.subr.mxu0 0.0
      %3655 = vmatpush1.msra.mxu0 0.0
      %3656 = vmatprep.subr.mxu0 0.0
      %3657 = vmatpush1.msra.mxu0 0.0
      %3658 = vmatprep.subr.mxu0 0.0
      %3659 = vmatpush1.msra.mxu0 0.0
      %3660 = vmatprep.subr.mxu0 0.0
      %3661 = vmatpush1.msra.mxu0 0.0
      %3662 = vmatprep.subr.mxu0 0.0
      %3663 = vmatpush1.msra.mxu0 0.0
      %3664 = vmatprep.subr.mxu0 0.0
      %3665 = vmatpush1.msra.mxu0 0.0
      %3666 = vmatprep.subr.mxu0 0.0
      %3667 = vmatpush1.msra.mxu0 0.0
      %3668 = vmatprep.subr.mxu0 0.0
      %3669 = vmatpush1.msra.mxu0 0.0
      %3670 = vmatprep.subr.mxu0 0.0
      %3671 = vmatpush1.msra.mxu0 0.0
      %3672 = vmatprep.subr.mxu0 0.0
      %3673 = vmatpush1.msra.mxu0 0.0
      %3674 = vmatprep.subr.mxu0 0.0
      %3675 = vmatpush1.msra.mxu0 0.0
      %3676 = vmatprep.subr.mxu0 0.0
      %3677 = vmatpush1.msra.mxu0 0.0
      %3678 = vmatprep.subr.mxu0 0.0
      %3679 = vmatpush1.msra.mxu0 0.0
      %3680 = vmatprep.subr.mxu0 0.0
      %3681 = vmatpush1.msra.mxu0 0.0
      %3682 = vmatprep.mubr.f32.mxu0 0.0
      %v3683 = vand.u32 %v3041, 4294901760
      %3684 = vmatmul.mubr.f32.gmra.mrb[0].mxu0 %v3683
      %v3685 = vpop.f32.mrb[0].mxu0
      %v3686 = vadd.f32 %v3598, %v3685
      %v3687 = vpop.f32.mrb[0].mxu0
      %v3688 = vadd.f32 %v3600, %v3687
      %3689 = vdwg.mxu0
      %v3690 = vadd.f32 %v2978, %v3686
      %v3691 = vadd.f32 %v2980, %v3688
      %s3692 = scalar_lea.vmem %s3, 24
      %v3693 = vld [vmem:[%s3692] sm:$0xff]
      %3694 = vrot.lane.b32.xlu0 %v1591, 110
      %v3695 = vpop.permute.xlu0 %3694
      %3696 = vrot.lane.b32.xlu0 %v1592, 110
      %v3697 = vpop.permute.xlu0 %3696
      %3698 = vrot.lane.b32.xlu0 %v1593, 110
      %v3699 = vpop.permute.xlu0 %3698
      %3700 = vrot.lane.b32.xlu0 %v1594, 110
      %v3701 = vpop.permute.xlu0 %3700
      %3702 = vrot.lane.b32.xlu0 %v1595, 110
      %v3703 = vpop.permute.xlu0 %3702
      %3704 = vrot.lane.b32.xlu0 %v1596, 110
      %v3705 = vpop.permute.xlu0 %3704
      %3706 = vrot.lane.b32.xlu0 %v1597, 110
      %v3707 = vpop.permute.xlu0 %3706
      %3708 = vrot.lane.b32.xlu0 %v1598, 110
      %v3709 = vpop.permute.xlu0 %3708
      %3710 = vrot.lane.b32.xlu0 %v1599, 110
      %v3711 = vpop.permute.xlu0 %3710
      %3712 = vrot.lane.b32.xlu0 %v1600, 110
      %v3713 = vpop.permute.xlu0 %3712
      %3714 = vrot.lane.b32.xlu0 %v1601, 110
      %v3715 = vpop.permute.xlu0 %3714
      %3716 = vrot.lane.b32.xlu0 %v1602, 110
      %v3717 = vpop.permute.xlu0 %3716
      %3718 = vrot.lane.b32.xlu0 %v1603, 110
      %v3719 = vpop.permute.xlu0 %3718
      %3720 = vrot.lane.b32.xlu0 %v1604, 110
      %v3721 = vpop.permute.xlu0 %3720
      %3722 = vrot.lane.b32.xlu0 %v1605, 110
      %v3723 = vpop.permute.xlu0 %3722
      %3724 = vrot.lane.b32.xlu0 %v1606, 110
      %v3725 = vpop.permute.xlu0 %3724
      %v3726 = vsel %vm312, %v3695, %v3697
      %v3727 = vsel %vm312, %v3699, %v3701
      %v3728 = vsel %vm312, %v3703, %v3705
      %v3729 = vsel %vm312, %v3707, %v3709
      %v3730 = vsel %vm312, %v3711, %v3713
      %v3731 = vsel %vm312, %v3715, %v3717
      %v3732 = vsel %vm312, %v3719, %v3721
      %v3733 = vsel %vm312, %v3723, %v3725
      %v3751 = vsel %vm1681, %v3693, 0
      %v3753 = vand.u32 %v3697, 4294901760
      %3754 = vmatprep.subr.mxu0 %v3753
      %v3755 = vand.u32 %v3726, 4294901760
      %3756 = vmatpush1.msra.mxu0 %v3755
      %v3757 = vand.u32 %v3701, 4294901760
      %3758 = vmatprep.subr.mxu0 %v3757
      %v3759 = vand.u32 %v3727, 4294901760
      %3760 = vmatpush1.msra.mxu0 %v3759
      %v3761 = vand.u32 %v3705, 4294901760
      %3762 = vmatprep.subr.mxu0 %v3761
      %v3763 = vand.u32 %v3728, 4294901760
      %3764 = vmatpush1.msra.mxu0 %v3763
      %v3765 = vand.u32 %v3709, 4294901760
      %3766 = vmatprep.subr.mxu0 %v3765
      %v3767 = vand.u32 %v3729, 4294901760
      %3768 = vmatpush1.msra.mxu0 %v3767
      %v3769 = vand.u32 %v3713, 4294901760
      %3770 = vmatprep.subr.mxu0 %v3769
      %v3771 = vand.u32 %v3730, 4294901760
      %3772 = vmatpush1.msra.mxu0 %v3771
      %v3773 = vand.u32 %v3717, 4294901760
      %3774 = vmatprep.subr.mxu0 %v3773
      %v3775 = vand.u32 %v3731, 4294901760
      %3776 = vmatpush1.msra.mxu0 %v3775
      %v3777 = vand.u32 %v3721, 4294901760
      %3778 = vmatprep.subr.mxu0 %v3777
      %v3779 = vand.u32 %v3732, 4294901760
      %3780 = vmatpush1.msra.mxu0 %v3779
      %v3781 = vand.u32 %v3725, 4294901760
      %3782 = vmatprep.subr.mxu0 %v3781
      %v3783 = vand.u32 %v3733, 4294901760
      %3784 = vmatpush1.msra.mxu0 %v3783
      %3785 = vmatprep.subr.mxu0 0.0
      %3786 = vmatpush1.msra.mxu0 0.0
      %3787 = vmatprep.subr.mxu0 0.0
      %3788 = vmatpush1.msra.mxu0 0.0
      %3789 = vmatprep.subr.mxu0 0.0
      %3790 = vmatpush1.msra.mxu0 0.0
      %3791 = vmatprep.subr.mxu0 0.0
      %3792 = vmatpush1.msra.mxu0 0.0
      %3793 = vmatprep.subr.mxu0 0.0
      %3794 = vmatpush1.msra.mxu0 0.0
      %3795 = vmatprep.subr.mxu0 0.0
      %3796 = vmatpush1.msra.mxu0 0.0
      %3797 = vmatprep.subr.mxu0 0.0
      %3798 = vmatpush1.msra.mxu0 0.0
      %3799 = vmatprep.subr.mxu0 0.0
      %3800 = vmatpush1.msra.mxu0 0.0
      %3801 = vmatprep.subr.mxu0 0.0
      %3802 = vmatpush1.msra.mxu0 0.0
      %3803 = vmatprep.subr.mxu0 0.0
      %3804 = vmatpush1.msra.mxu0 0.0
      %3805 = vmatprep.subr.mxu0 0.0
      %3806 = vmatpush1.msra.mxu0 0.0
      %3807 = vmatprep.subr.mxu0 0.0
      %3808 = vmatpush1.msra.mxu0 0.0
      %3809 = vmatprep.subr.mxu0 0.0
      %3810 = vmatpush1.msra.mxu0 0.0
      %3811 = vmatprep.subr.mxu0 0.0
      %3812 = vmatpush1.msra.mxu0 0.0
      %3813 = vmatprep.subr.mxu0 0.0
      %3814 = vmatpush1.msra.mxu0 0.0
      %3815 = vmatprep.subr.mxu0 0.0
      %3816 = vmatpush1.msra.mxu0 0.0
      %3817 = vmatprep.subr.mxu0 0.0
      %3818 = vmatpush1.msra.mxu0 0.0
      %3819 = vmatprep.subr.mxu0 0.0
      %3820 = vmatpush1.msra.mxu0 0.0
      %3821 = vmatprep.subr.mxu0 0.0
      %3822 = vmatpush1.msra.mxu0 0.0
      %3823 = vmatprep.subr.mxu0 0.0
      %3824 = vmatpush1.msra.mxu0 0.0
      %3825 = vmatprep.subr.mxu0 0.0
      %3826 = vmatpush1.msra.mxu0 0.0
      %3827 = vmatprep.subr.mxu0 0.0
      %3828 = vmatpush1.msra.mxu0 0.0
      %3829 = vmatprep.subr.mxu0 0.0
      %3830 = vmatpush1.msra.mxu0 0.0
      %3831 = vmatprep.subr.mxu0 0.0
      %3832 = vmatpush1.msra.mxu0 0.0
      %3833 = vmatprep.mubr.f32.mxu0 0.0
      %v3834 = vand.u32 %v3751, 4294901760
      %v3835 = vsub.f32 %v3751, %v3834
      %v3836 = vand.u32 %v3835, 4294901760
      %v3837 = vsub.f32 %v3835, %v3836
      %v3838 = vand.u32 %v3837, 4294901760
      %3839 = vmatmul.mubr.f32.gmra.mrb[0].mxu0 %v3838
      %v3840 = vpop.f32.mrb[0].mxu0
      %v3841 = vadd.f32 0.0, %v3840
      %v3842 = vpop.f32.mrb[0].mxu0
      %v3843 = vadd.f32 0.0, %v3842
      %3844 = vdwg.mxu0
      %v3845 = vand.u32 %v3697, 4294901760
      %v3846 = vsub.f32 %v3697, %v3845
      %v3847 = vand.u32 %v3846, 4294901760
      %v3848 = vsub.f32 %v3846, %v3847
      %v3849 = vand.u32 %v3848, 4294901760
      %3850 = vmatprep.subr.mxu0 %v3849
      %v3851 = vand.u32 %v3726, 4294901760
      %v3852 = vsub.f32 %v3726, %v3851
      %v3853 = vand.u32 %v3852, 4294901760
      %v3854 = vsub.f32 %v3852, %v3853
      %v3855 = vand.u32 %v3854, 4294901760
      %3856 = vmatpush1.msra.mxu0 %v3855
      %v3857 = vand.u32 %v3701, 4294901760
      %v3858 = vsub.f32 %v3701, %v3857
      %v3859 = vand.u32 %v3858, 4294901760
      %v3860 = vsub.f32 %v3858, %v3859
      %v3861 = vand.u32 %v3860, 4294901760
      %3862 = vmatprep.subr.mxu0 %v3861
      %v3863 = vand.u32 %v3727, 4294901760
      %v3864 = vsub.f32 %v3727, %v3863
      %v3865 = vand.u32 %v3864, 4294901760
      %v3866 = vsub.f32 %v3864, %v3865
      %v3867 = vand.u32 %v3866, 4294901760
      %3868 = vmatpush1.msra.mxu0 %v3867
      %v3869 = vand.u32 %v3705, 4294901760
      %v3870 = vsub.f32 %v3705, %v3869
      %v3871 = vand.u32 %v3870, 4294901760
      %v3872 = vsub.f32 %v3870, %v3871
      %v3873 = vand.u32 %v3872, 4294901760
      %3874 = vmatprep.subr.mxu0 %v3873
      %v3875 = vand.u32 %v3728, 4294901760
      %v3876 = vsub.f32 %v3728, %v3875
      %v3877 = vand.u32 %v3876, 4294901760
      %v3878 = vsub.f32 %v3876, %v3877
      %v3879 = vand.u32 %v3878, 4294901760
      %3880 = vmatpush1.msra.mxu0 %v3879
      %v3881 = vand.u32 %v3709, 4294901760
      %v3882 = vsub.f32 %v3709, %v3881
      %v3883 = vand.u32 %v3882, 4294901760
      %v3884 = vsub.f32 %v3882, %v3883
      %v3885 = vand.u32 %v3884, 4294901760
      %3886 = vmatprep.subr.mxu0 %v3885
      %v3887 = vand.u32 %v3729, 4294901760
      %v3888 = vsub.f32 %v3729, %v3887
      %v3889 = vand.u32 %v3888, 4294901760
      %v3890 = vsub.f32 %v3888, %v3889
      %v3891 = vand.u32 %v3890, 4294901760
      %3892 = vmatpush1.msra.mxu0 %v3891
      %v3893 = vand.u32 %v3713, 4294901760
      %v3894 = vsub.f32 %v3713, %v3893
      %v3895 = vand.u32 %v3894, 4294901760
      %v3896 = vsub.f32 %v3894, %v3895
      %v3897 = vand.u32 %v3896, 4294901760
      %3898 = vmatprep.subr.mxu0 %v3897
      %v3899 = vand.u32 %v3730, 4294901760
      %v3900 = vsub.f32 %v3730, %v3899
      %v3901 = vand.u32 %v3900, 4294901760
      %v3902 = vsub.f32 %v3900, %v3901
      %v3903 = vand.u32 %v3902, 4294901760
      %3904 = vmatpush1.msra.mxu0 %v3903
      %v3905 = vand.u32 %v3717, 4294901760
      %v3906 = vsub.f32 %v3717, %v3905
      %v3907 = vand.u32 %v3906, 4294901760
      %v3908 = vsub.f32 %v3906, %v3907
      %v3909 = vand.u32 %v3908, 4294901760
      %3910 = vmatprep.subr.mxu0 %v3909
      %v3911 = vand.u32 %v3731, 4294901760
      %v3912 = vsub.f32 %v3731, %v3911
      %v3913 = vand.u32 %v3912, 4294901760
      %v3914 = vsub.f32 %v3912, %v3913
      %v3915 = vand.u32 %v3914, 4294901760
      %3916 = vmatpush1.msra.mxu0 %v3915
      %v3917 = vand.u32 %v3721, 4294901760
      %v3918 = vsub.f32 %v3721, %v3917
      %v3919 = vand.u32 %v3918, 4294901760
      %v3920 = vsub.f32 %v3918, %v3919
      %v3921 = vand.u32 %v3920, 4294901760
      %3922 = vmatprep.subr.mxu0 %v3921
      %v3923 = vand.u32 %v3732, 4294901760
      %v3924 = vsub.f32 %v3732, %v3923
      %v3925 = vand.u32 %v3924, 4294901760
      %v3926 = vsub.f32 %v3924, %v3925
      %v3927 = vand.u32 %v3926, 4294901760
      %3928 = vmatpush1.msra.mxu0 %v3927
      %v3929 = vand.u32 %v3725, 4294901760
      %v3930 = vsub.f32 %v3725, %v3929
      %v3931 = vand.u32 %v3930, 4294901760
      %v3932 = vsub.f32 %v3930, %v3931
      %v3933 = vand.u32 %v3932, 4294901760
      %3934 = vmatprep.subr.mxu0 %v3933
      %v3935 = vand.u32 %v3733, 4294901760
      %v3936 = vsub.f32 %v3733, %v3935
      %v3937 = vand.u32 %v3936, 4294901760
      %v3938 = vsub.f32 %v3936, %v3937
      %v3939 = vand.u32 %v3938, 4294901760
      %3940 = vmatpush1.msra.mxu0 %v3939
      %3941 = vmatprep.subr.mxu0 0.0
      %3942 = vmatpush1.msra.mxu0 0.0
      %3943 = vmatprep.subr.mxu0 0.0
      %3944 = vmatpush1.msra.mxu0 0.0
      %3945 = vmatprep.subr.mxu0 0.0
      %3946 = vmatpush1.msra.mxu0 0.0
      %3947 = vmatprep.subr.mxu0 0.0
      %3948 = vmatpush1.msra.mxu0 0.0
      %3949 = vmatprep.subr.mxu0 0.0
      %3950 = vmatpush1.msra.mxu0 0.0
      %3951 = vmatprep.subr.mxu0 0.0
      %3952 = vmatpush1.msra.mxu0 0.0
      %3953 = vmatprep.subr.mxu0 0.0
      %3954 = vmatpush1.msra.mxu0 0.0
      %3955 = vmatprep.subr.mxu0 0.0
      %3956 = vmatpush1.msra.mxu0 0.0
      %3957 = vmatprep.subr.mxu0 0.0
      %3958 = vmatpush1.msra.mxu0 0.0
      %3959 = vmatprep.subr.mxu0 0.0
      %3960 = vmatpush1.msra.mxu0 0.0
      %3961 = vmatprep.subr.mxu0 0.0
      %3962 = vmatpush1.msra.mxu0 0.0
      %3963 = vmatprep.subr.mxu0 0.0
      %3964 = vmatpush1.msra.mxu0 0.0
      %3965 = vmatprep.subr.mxu0 0.0
      %3966 = vmatpush1.msra.mxu0 0.0
      %3967 = vmatprep.subr.mxu0 0.0
      %3968 = vmatpush1.msra.mxu0 0.0
      %3969 = vmatprep.subr.mxu0 0.0
      %3970 = vmatpush1.msra.mxu0 0.0
      %3971 = vmatprep.subr.mxu0 0.0
      %3972 = vmatpush1.msra.mxu0 0.0
      %3973 = vmatprep.subr.mxu0 0.0
      %3974 = vmatpush1.msra.mxu0 0.0
      %3975 = vmatprep.subr.mxu0 0.0
      %3976 = vmatpush1.msra.mxu0 0.0
      %3977 = vmatprep.subr.mxu0 0.0
      %3978 = vmatpush1.msra.mxu0 0.0
      %3979 = vmatprep.subr.mxu0 0.0
      %3980 = vmatpush1.msra.mxu0 0.0
      %3981 = vmatprep.subr.mxu0 0.0
      %3982 = vmatpush1.msra.mxu0 0.0
      %3983 = vmatprep.subr.mxu0 0.0
      %3984 = vmatpush1.msra.mxu0 0.0
      %3985 = vmatprep.subr.mxu0 0.0
      %3986 = vmatpush1.msra.mxu0 0.0
      %3987 = vmatprep.subr.mxu0 0.0
      %3988 = vmatpush1.msra.mxu0 0.0
      %3989 = vmatprep.mubr.f32.mxu0 0.0
      %v3990 = vand.u32 %v3751, 4294901760
      %3991 = vmatmul.mubr.f32.gmra.mrb[0].mxu0 %v3990
      %v3992 = vpop.f32.mrb[0].mxu0
      %v3993 = vadd.f32 %v3841, %v3992
      %v3994 = vpop.f32.mrb[0].mxu0
      %v3995 = vadd.f32 %v3843, %v3994
      %3996 = vdwg.mxu0
      %v3997 = vand.u32 %v3697, 4294901760
      %v3998 = vsub.f32 %v3697, %v3997
      %3999 = vmatprep.subr.mxu0 %v3998
      %v4000 = vand.u32 %v3726, 4294901760
      %v4001 = vsub.f32 %v3726, %v4000
      %4002 = vmatpush1.msra.mxu0 %v4001
      %v4003 = vand.u32 %v3701, 4294901760
      %v4004 = vsub.f32 %v3701, %v4003
      %4005 = vmatprep.subr.mxu0 %v4004
      %v4006 = vand.u32 %v3727, 4294901760
      %v4007 = vsub.f32 %v3727, %v4006
      %4008 = vmatpush1.msra.mxu0 %v4007
      %v4009 = vand.u32 %v3705, 4294901760
      %v4010 = vsub.f32 %v3705, %v4009
      %4011 = vmatprep.subr.mxu0 %v4010
      %v4012 = vand.u32 %v3728, 4294901760
      %v4013 = vsub.f32 %v3728, %v4012
      %4014 = vmatpush1.msra.mxu0 %v4013
      %v4015 = vand.u32 %v3709, 4294901760
      %v4016 = vsub.f32 %v3709, %v4015
      %4017 = vmatprep.subr.mxu0 %v4016
      %v4018 = vand.u32 %v3729, 4294901760
      %v4019 = vsub.f32 %v3729, %v4018
      %4020 = vmatpush1.msra.mxu0 %v4019
      %v4021 = vand.u32 %v3713, 4294901760
      %v4022 = vsub.f32 %v3713, %v4021
      %4023 = vmatprep.subr.mxu0 %v4022
      %v4024 = vand.u32 %v3730, 4294901760
      %v4025 = vsub.f32 %v3730, %v4024
      %4026 = vmatpush1.msra.mxu0 %v4025
      %v4027 = vand.u32 %v3717, 4294901760
      %v4028 = vsub.f32 %v3717, %v4027
      %4029 = vmatprep.subr.mxu0 %v4028
      %v4030 = vand.u32 %v3731, 4294901760
      %v4031 = vsub.f32 %v3731, %v4030
      %4032 = vmatpush1.msra.mxu0 %v4031
      %v4033 = vand.u32 %v3721, 4294901760
      %v4034 = vsub.f32 %v3721, %v4033
      %4035 = vmatprep.subr.mxu0 %v4034
      %v4036 = vand.u32 %v3732, 4294901760
      %v4037 = vsub.f32 %v3732, %v4036
      %4038 = vmatpush1.msra.mxu0 %v4037
      %v4039 = vand.u32 %v3725, 4294901760
      %v4040 = vsub.f32 %v3725, %v4039
      %4041 = vmatprep.subr.mxu0 %v4040
      %v4042 = vand.u32 %v3733, 4294901760
      %v4043 = vsub.f32 %v3733, %v4042
      %4044 = vmatpush1.msra.mxu0 %v4043
      %4045 = vmatprep.subr.mxu0 0.0
      %4046 = vmatpush1.msra.mxu0 0.0
      %4047 = vmatprep.subr.mxu0 0.0
      %4048 = vmatpush1.msra.mxu0 0.0
      %4049 = vmatprep.subr.mxu0 0.0
      %4050 = vmatpush1.msra.mxu0 0.0
      %4051 = vmatprep.subr.mxu0 0.0
      %4052 = vmatpush1.msra.mxu0 0.0
      %4053 = vmatprep.subr.mxu0 0.0
      %4054 = vmatpush1.msra.mxu0 0.0
      %4055 = vmatprep.subr.mxu0 0.0
      %4056 = vmatpush1.msra.mxu0 0.0
      %4057 = vmatprep.subr.mxu0 0.0
      %4058 = vmatpush1.msra.mxu0 0.0
      %4059 = vmatprep.subr.mxu0 0.0
      %4060 = vmatpush1.msra.mxu0 0.0
      %4061 = vmatprep.subr.mxu0 0.0
      %4062 = vmatpush1.msra.mxu0 0.0
      %4063 = vmatprep.subr.mxu0 0.0
      %4064 = vmatpush1.msra.mxu0 0.0
      %4065 = vmatprep.subr.mxu0 0.0
      %4066 = vmatpush1.msra.mxu0 0.0
      %4067 = vmatprep.subr.mxu0 0.0
      %4068 = vmatpush1.msra.mxu0 0.0
      %4069 = vmatprep.subr.mxu0 0.0
      %4070 = vmatpush1.msra.mxu0 0.0
      %4071 = vmatprep.subr.mxu0 0.0
      %4072 = vmatpush1.msra.mxu0 0.0
      %4073 = vmatprep.subr.mxu0 0.0
      %4074 = vmatpush1.msra.mxu0 0.0
      %4075 = vmatprep.subr.mxu0 0.0
      %4076 = vmatpush1.msra.mxu0 0.0
      %4077 = vmatprep.subr.mxu0 0.0
      %4078 = vmatpush1.msra.mxu0 0.0
      %4079 = vmatprep.subr.mxu0 0.0
      %4080 = vmatpush1.msra.mxu0 0.0
      %4081 = vmatprep.subr.mxu0 0.0
      %4082 = vmatpush1.msra.mxu0 0.0
      %4083 = vmatprep.subr.mxu0 0.0
      %4084 = vmatpush1.msra.mxu0 0.0
      %4085 = vmatprep.subr.mxu0 0.0
      %4086 = vmatpush1.msra.mxu0 0.0
      %4087 = vmatprep.subr.mxu0 0.0
      %4088 = vmatpush1.msra.mxu0 0.0
      %4089 = vmatprep.subr.mxu0 0.0
      %4090 = vmatpush1.msra.mxu0 0.0
      %4091 = vmatprep.subr.mxu0 0.0
      %4092 = vmatpush1.msra.mxu0 0.0
      %4093 = vmatprep.mubr.f32.mxu0 0.0
      %v4094 = vand.u32 %v3751, 4294901760
      %v4095 = vsub.f32 %v3751, %v4094
      %4096 = vmatmul.mubr.f32.gmra.mrb[0].mxu0 %v4095
      %v4097 = vpop.f32.mrb[0].mxu0
      %v4098 = vadd.f32 %v3993, %v4097
      %v4099 = vpop.f32.mrb[0].mxu0
      %v4100 = vadd.f32 %v3995, %v4099
      %4101 = vdwg.mxu0
      %v4102 = vand.u32 %v3697, 4294901760
      %4103 = vmatprep.subr.mxu0 %v4102
      %v4104 = vand.u32 %v3726, 4294901760
      %4105 = vmatpush1.msra.mxu0 %v4104
      %v4106 = vand.u32 %v3701, 4294901760
      %4107 = vmatprep.subr.mxu0 %v4106
      %v4108 = vand.u32 %v3727, 4294901760
      %4109 = vmatpush1.msra.mxu0 %v4108
      %v4110 = vand.u32 %v3705, 4294901760
      %4111 = vmatprep.subr.mxu0 %v4110
      %v4112 = vand.u32 %v3728, 4294901760
      %4113 = vmatpush1.msra.mxu0 %v4112
      %v4114 = vand.u32 %v3709, 4294901760
      %4115 = vmatprep.subr.mxu0 %v4114
      %v4116 = vand.u32 %v3729, 4294901760
      %4117 = vmatpush1.msra.mxu0 %v4116
      %v4118 = vand.u32 %v3713, 4294901760
      %4119 = vmatprep.subr.mxu0 %v4118
      %v4120 = vand.u32 %v3730, 4294901760
      %4121 = vmatpush1.msra.mxu0 %v4120
      %v4122 = vand.u32 %v3717, 4294901760
      %4123 = vmatprep.subr.mxu0 %v4122
      %v4124 = vand.u32 %v3731, 4294901760
      %4125 = vmatpush1.msra.mxu0 %v4124
      %v4126 = vand.u32 %v3721, 4294901760
      %4127 = vmatprep.subr.mxu0 %v4126
      %v4128 = vand.u32 %v3732, 4294901760
      %4129 = vmatpush1.msra.mxu0 %v4128
      %v4130 = vand.u32 %v3725, 4294901760
      %4131 = vmatprep.subr.mxu0 %v4130
      %v4132 = vand.u32 %v3733, 4294901760
      %4133 = vmatpush1.msra.mxu0 %v4132
      %4134 = vmatprep.subr.mxu0 0.0
      %4135 = vmatpush1.msra.mxu0 0.0
      %4136 = vmatprep.subr.mxu0 0.0
      %4137 = vmatpush1.msra.mxu0 0.0
      %4138 = vmatprep.subr.mxu0 0.0
      %4139 = vmatpush1.msra.mxu0 0.0
      %4140 = vmatprep.subr.mxu0 0.0
      %4141 = vmatpush1.msra.mxu0 0.0
      %4142 = vmatprep.subr.mxu0 0.0
      %4143 = vmatpush1.msra.mxu0 0.0
      %4144 = vmatprep.subr.mxu0 0.0
      %4145 = vmatpush1.msra.mxu0 0.0
      %4146 = vmatprep.subr.mxu0 0.0
      %4147 = vmatpush1.msra.mxu0 0.0
      %4148 = vmatprep.subr.mxu0 0.0
      %4149 = vmatpush1.msra.mxu0 0.0
      %4150 = vmatprep.subr.mxu0 0.0
      %4151 = vmatpush1.msra.mxu0 0.0
      %4152 = vmatprep.subr.mxu0 0.0
      %4153 = vmatpush1.msra.mxu0 0.0
      %4154 = vmatprep.subr.mxu0 0.0
      %4155 = vmatpush1.msra.mxu0 0.0
      %4156 = vmatprep.subr.mxu0 0.0
      %4157 = vmatpush1.msra.mxu0 0.0
      %4158 = vmatprep.subr.mxu0 0.0
      %4159 = vmatpush1.msra.mxu0 0.0
      %4160 = vmatprep.subr.mxu0 0.0
      %4161 = vmatpush1.msra.mxu0 0.0
      %4162 = vmatprep.subr.mxu0 0.0
      %4163 = vmatpush1.msra.mxu0 0.0
      %4164 = vmatprep.subr.mxu0 0.0
      %4165 = vmatpush1.msra.mxu0 0.0
      %4166 = vmatprep.subr.mxu0 0.0
      %4167 = vmatpush1.msra.mxu0 0.0
      %4168 = vmatprep.subr.mxu0 0.0
      %4169 = vmatpush1.msra.mxu0 0.0
      %4170 = vmatprep.subr.mxu0 0.0
      %4171 = vmatpush1.msra.mxu0 0.0
      %4172 = vmatprep.subr.mxu0 0.0
      %4173 = vmatpush1.msra.mxu0 0.0
      %4174 = vmatprep.subr.mxu0 0.0
      %4175 = vmatpush1.msra.mxu0 0.0
      %4176 = vmatprep.subr.mxu0 0.0
      %4177 = vmatpush1.msra.mxu0 0.0
      %4178 = vmatprep.subr.mxu0 0.0
      %4179 = vmatpush1.msra.mxu0 0.0
      %4180 = vmatprep.subr.mxu0 0.0
      %4181 = vmatpush1.msra.mxu0 0.0
      %4182 = vmatprep.mubr.f32.mxu0 0.0
      %v4183 = vand.u32 %v3751, 4294901760
      %v4184 = vsub.f32 %v3751, %v4183
      %v4185 = vand.u32 %v4184, 4294901760
      %4186 = vmatmul.mubr.f32.gmra.mrb[0].mxu0 %v4185
      %v4187 = vpop.f32.mrb[0].mxu0
      %v4188 = vadd.f32 %v4098, %v4187
      %v4189 = vpop.f32.mrb[0].mxu0
      %v4190 = vadd.f32 %v4100, %v4189
      %4191 = vdwg.mxu0
      %v4192 = vand.u32 %v3697, 4294901760
      %v4193 = vsub.f32 %v3697, %v4192
      %v4194 = vand.u32 %v4193, 4294901760
      %4195 = vmatprep.subr.mxu0 %v4194
      %v4196 = vand.u32 %v3726, 4294901760
      %v4197 = vsub.f32 %v3726, %v4196
      %v4198 = vand.u32 %v4197, 4294901760
      %4199 = vmatpush1.msra.mxu0 %v4198
      %v4200 = vand.u32 %v3701, 4294901760
      %v4201 = vsub.f32 %v3701, %v4200
      %v4202 = vand.u32 %v4201, 4294901760
      %4203 = vmatprep.subr.mxu0 %v4202
      %v4204 = vand.u32 %v3727, 4294901760
      %v4205 = vsub.f32 %v3727, %v4204
      %v4206 = vand.u32 %v4205, 4294901760
      %4207 = vmatpush1.msra.mxu0 %v4206
      %v4208 = vand.u32 %v3705, 4294901760
      %v4209 = vsub.f32 %v3705, %v4208
      %v4210 = vand.u32 %v4209, 4294901760
      %4211 = vmatprep.subr.mxu0 %v4210
      %v4212 = vand.u32 %v3728, 4294901760
      %v4213 = vsub.f32 %v3728, %v4212
      %v4214 = vand.u32 %v4213, 4294901760
      %4215 = vmatpush1.msra.mxu0 %v4214
      %v4216 = vand.u32 %v3709, 4294901760
      %v4217 = vsub.f32 %v3709, %v4216
      %v4218 = vand.u32 %v4217, 4294901760
      %4219 = vmatprep.subr.mxu0 %v4218
      %v4220 = vand.u32 %v3729, 4294901760
      %v4221 = vsub.f32 %v3729, %v4220
      %v4222 = vand.u32 %v4221, 4294901760
      %4223 = vmatpush1.msra.mxu0 %v4222
      %v4224 = vand.u32 %v3713, 4294901760
      %v4225 = vsub.f32 %v3713, %v4224
      %v4226 = vand.u32 %v4225, 4294901760
      %4227 = vmatprep.subr.mxu0 %v4226
      %v4228 = vand.u32 %v3730, 4294901760
      %v4229 = vsub.f32 %v3730, %v4228
      %v4230 = vand.u32 %v4229, 4294901760
      %4231 = vmatpush1.msra.mxu0 %v4230
      %v4232 = vand.u32 %v3717, 4294901760
      %v4233 = vsub.f32 %v3717, %v4232
      %v4234 = vand.u32 %v4233, 4294901760
      %4235 = vmatprep.subr.mxu0 %v4234
      %v4236 = vand.u32 %v3731, 4294901760
      %v4237 = vsub.f32 %v3731, %v4236
      %v4238 = vand.u32 %v4237, 4294901760
      %4239 = vmatpush1.msra.mxu0 %v4238
      %v4240 = vand.u32 %v3721, 4294901760
      %v4241 = vsub.f32 %v3721, %v4240
      %v4242 = vand.u32 %v4241, 4294901760
      %4243 = vmatprep.subr.mxu0 %v4242
      %v4244 = vand.u32 %v3732, 4294901760
      %v4245 = vsub.f32 %v3732, %v4244
      %v4246 = vand.u32 %v4245, 4294901760
      %4247 = vmatpush1.msra.mxu0 %v4246
      %v4248 = vand.u32 %v3725, 4294901760
      %v4249 = vsub.f32 %v3725, %v4248
      %v4250 = vand.u32 %v4249, 4294901760
      %4251 = vmatprep.subr.mxu0 %v4250
      %v4252 = vand.u32 %v3733, 4294901760
      %v4253 = vsub.f32 %v3733, %v4252
      %v4254 = vand.u32 %v4253, 4294901760
      %4255 = vmatpush1.msra.mxu0 %v4254
      %4256 = vmatprep.subr.mxu0 0.0
      %4257 = vmatpush1.msra.mxu0 0.0
      %4258 = vmatprep.subr.mxu0 0.0
      %4259 = vmatpush1.msra.mxu0 0.0
      %4260 = vmatprep.subr.mxu0 0.0
      %4261 = vmatpush1.msra.mxu0 0.0
      %4262 = vmatprep.subr.mxu0 0.0
      %4263 = vmatpush1.msra.mxu0 0.0
      %4264 = vmatprep.subr.mxu0 0.0
      %4265 = vmatpush1.msra.mxu0 0.0
      %4266 = vmatprep.subr.mxu0 0.0
      %4267 = vmatpush1.msra.mxu0 0.0
      %4268 = vmatprep.subr.mxu0 0.0
      %4269 = vmatpush1.msra.mxu0 0.0
      %4270 = vmatprep.subr.mxu0 0.0
      %4271 = vmatpush1.msra.mxu0 0.0
      %4272 = vmatprep.subr.mxu0 0.0
      %4273 = vmatpush1.msra.mxu0 0.0
      %4274 = vmatprep.subr.mxu0 0.0
      %4275 = vmatpush1.msra.mxu0 0.0
      %4276 = vmatprep.subr.mxu0 0.0
      %4277 = vmatpush1.msra.mxu0 0.0
      %4278 = vmatprep.subr.mxu0 0.0
      %4279 = vmatpush1.msra.mxu0 0.0
      %4280 = vmatprep.subr.mxu0 0.0
      %4281 = vmatpush1.msra.mxu0 0.0
      %4282 = vmatprep.subr.mxu0 0.0
      %4283 = vmatpush1.msra.mxu0 0.0
      %4284 = vmatprep.subr.mxu0 0.0
      %4285 = vmatpush1.msra.mxu0 0.0
      %4286 = vmatprep.subr.mxu0 0.0
      %4287 = vmatpush1.msra.mxu0 0.0
      %4288 = vmatprep.subr.mxu0 0.0
      %4289 = vmatpush1.msra.mxu0 0.0
      %4290 = vmatprep.subr.mxu0 0.0
      %4291 = vmatpush1.msra.mxu0 0.0
      %4292 = vmatprep.subr.mxu0 0.0
      %4293 = vmatpush1.msra.mxu0 0.0
      %4294 = vmatprep.subr.mxu0 0.0
      %4295 = vmatpush1.msra.mxu0 0.0
      %4296 = vmatprep.subr.mxu0 0.0
      %4297 = vmatpush1.msra.mxu0 0.0
      %4298 = vmatprep.subr.mxu0 0.0
      %4299 = vmatpush1.msra.mxu0 0.0
      %4300 = vmatprep.subr.mxu0 0.0
      %4301 = vmatpush1.msra.mxu0 0.0
      %4302 = vmatprep.subr.mxu0 0.0
      %4303 = vmatpush1.msra.mxu0 0.0
      %4304 = vmatprep.mubr.f32.mxu0 0.0
      %v4305 = vand.u32 %v3751, 4294901760
      %4306 = vmatmul.mubr.f32.gmra.mrb[0].mxu0 %v4305
      %v4307 = vpop.f32.mrb[0].mxu0
      %v4308 = vadd.f32 %v4188, %v4307
      %v4309 = vpop.f32.mrb[0].mxu0
      %v4310 = vadd.f32 %v4190, %v4309
      %4311 = vdwg.mxu0
      %v4312 = vand.u32 %v3697, 4294901760
      %4313 = vmatprep.subr.mxu0 %v4312
      %v4314 = vand.u32 %v3726, 4294901760
      %4315 = vmatpush1.msra.mxu0 %v4314
      %v4316 = vand.u32 %v3701, 4294901760
      %4317 = vmatprep.subr.mxu0 %v4316
      %v4318 = vand.u32 %v3727, 4294901760
      %4319 = vmatpush1.msra.mxu0 %v4318
      %v4320 = vand.u32 %v3705, 4294901760
      %4321 = vmatprep.subr.mxu0 %v4320
      %v4322 = vand.u32 %v3728, 4294901760
      %4323 = vmatpush1.msra.mxu0 %v4322
      %v4324 = vand.u32 %v3709, 4294901760
      %4325 = vmatprep.subr.mxu0 %v4324
      %v4326 = vand.u32 %v3729, 4294901760
      %4327 = vmatpush1.msra.mxu0 %v4326
      %v4328 = vand.u32 %v3713, 4294901760
      %4329 = vmatprep.subr.mxu0 %v4328
      %v4330 = vand.u32 %v3730, 4294901760
      %4331 = vmatpush1.msra.mxu0 %v4330
      %v4332 = vand.u32 %v3717, 4294901760
      %4333 = vmatprep.subr.mxu0 %v4332
      %v4334 = vand.u32 %v3731, 4294901760
      %4335 = vmatpush1.msra.mxu0 %v4334
      %v4336 = vand.u32 %v3721, 4294901760
      %4337 = vmatprep.subr.mxu0 %v4336
      %v4338 = vand.u32 %v3732, 4294901760
      %4339 = vmatpush1.msra.mxu0 %v4338
      %v4340 = vand.u32 %v3725, 4294901760
      %4341 = vmatprep.subr.mxu0 %v4340
      %v4342 = vand.u32 %v3733, 4294901760
      %4343 = vmatpush1.msra.mxu0 %v4342
      %4344 = vmatprep.subr.mxu0 0.0
      %4345 = vmatpush1.msra.mxu0 0.0
      %4346 = vmatprep.subr.mxu0 0.0
      %4347 = vmatpush1.msra.mxu0 0.0
      %4348 = vmatprep.subr.mxu0 0.0
      %4349 = vmatpush1.msra.mxu0 0.0
      %4350 = vmatprep.subr.mxu0 0.0
      %4351 = vmatpush1.msra.mxu0 0.0
      %4352 = vmatprep.subr.mxu0 0.0
      %4353 = vmatpush1.msra.mxu0 0.0
      %4354 = vmatprep.subr.mxu0 0.0
      %4355 = vmatpush1.msra.mxu0 0.0
      %4356 = vmatprep.subr.mxu0 0.0
      %4357 = vmatpush1.msra.mxu0 0.0
      %4358 = vmatprep.subr.mxu0 0.0
      %4359 = vmatpush1.msra.mxu0 0.0
      %4360 = vmatprep.subr.mxu0 0.0
      %4361 = vmatpush1.msra.mxu0 0.0
      %4362 = vmatprep.subr.mxu0 0.0
      %4363 = vmatpush1.msra.mxu0 0.0
      %4364 = vmatprep.subr.mxu0 0.0
      %4365 = vmatpush1.msra.mxu0 0.0
      %4366 = vmatprep.subr.mxu0 0.0
      %4367 = vmatpush1.msra.mxu0 0.0
      %4368 = vmatprep.subr.mxu0 0.0
      %4369 = vmatpush1.msra.mxu0 0.0
      %4370 = vmatprep.subr.mxu0 0.0
      %4371 = vmatpush1.msra.mxu0 0.0
      %4372 = vmatprep.subr.mxu0 0.0
      %4373 = vmatpush1.msra.mxu0 0.0
      %4374 = vmatprep.subr.mxu0 0.0
      %4375 = vmatpush1.msra.mxu0 0.0
      %4376 = vmatprep.subr.mxu0 0.0
      %4377 = vmatpush1.msra.mxu0 0.0
      %4378 = vmatprep.subr.mxu0 0.0
      %4379 = vmatpush1.msra.mxu0 0.0
      %4380 = vmatprep.subr.mxu0 0.0
      %4381 = vmatpush1.msra.mxu0 0.0
      %4382 = vmatprep.subr.mxu0 0.0
      %4383 = vmatpush1.msra.mxu0 0.0
      %4384 = vmatprep.subr.mxu0 0.0
      %4385 = vmatpush1.msra.mxu0 0.0
      %4386 = vmatprep.subr.mxu0 0.0
      %4387 = vmatpush1.msra.mxu0 0.0
      %4388 = vmatprep.subr.mxu0 0.0
      %4389 = vmatpush1.msra.mxu0 0.0
      %4390 = vmatprep.subr.mxu0 0.0
      %4391 = vmatpush1.msra.mxu0 0.0
      %4392 = vmatprep.mubr.f32.mxu0 0.0
      %v4393 = vand.u32 %v3751, 4294901760
      %4394 = vmatmul.mubr.f32.gmra.mrb[0].mxu0 %v4393
      %v4395 = vpop.f32.mrb[0].mxu0
      %v4396 = vadd.f32 %v4308, %v4395
      %v4397 = vpop.f32.mrb[0].mxu0
      %v4398 = vadd.f32 %v4310, %v4397
      %4399 = vdwg.mxu0
      %v4400 = vadd.f32 %v3690, %v4396
      %v4401 = vadd.f32 %v3691, %v4398
      %s4402 = scalar_lea.vmem %s3, 32
      %v4403 = vld [vmem:[%s4402] sm:$0xff]
      %4404 = vrot.lane.b32.xlu0 %v1591, 109
      %v4405 = vpop.permute.xlu0 %4404
      %4406 = vrot.lane.b32.xlu0 %v1592, 109
      %v4407 = vpop.permute.xlu0 %4406
      %4408 = vrot.lane.b32.xlu0 %v1593, 109
      %v4409 = vpop.permute.xlu0 %4408
      %4410 = vrot.lane.b32.xlu0 %v1594, 109
      %v4411 = vpop.permute.xlu0 %4410
      %4412 = vrot.lane.b32.xlu0 %v1595, 109
      %v4413 = vpop.permute.xlu0 %4412
      %4414 = vrot.lane.b32.xlu0 %v1596, 109
      %v4415 = vpop.permute.xlu0 %4414
      %4416 = vrot.lane.b32.xlu0 %v1597, 109
      %v4417 = vpop.permute.xlu0 %4416
      %4418 = vrot.lane.b32.xlu0 %v1598, 109
      %v4419 = vpop.permute.xlu0 %4418
      %4420 = vrot.lane.b32.xlu0 %v1599, 109
      %v4421 = vpop.permute.xlu0 %4420
      %4422 = vrot.lane.b32.xlu0 %v1600, 109
      %v4423 = vpop.permute.xlu0 %4422
      %4424 = vrot.lane.b32.xlu0 %v1601, 109
      %v4425 = vpop.permute.xlu0 %4424
      %4426 = vrot.lane.b32.xlu0 %v1602, 109
      %v4427 = vpop.permute.xlu0 %4426
      %4428 = vrot.lane.b32.xlu0 %v1603, 109
      %v4429 = vpop.permute.xlu0 %4428
      %4430 = vrot.lane.b32.xlu0 %v1604, 109
      %v4431 = vpop.permute.xlu0 %4430
      %4432 = vrot.lane.b32.xlu0 %v1605, 109
      %v4433 = vpop.permute.xlu0 %4432
      %4434 = vrot.lane.b32.xlu0 %v1606, 109
      %v4435 = vpop.permute.xlu0 %4434
      %v4436 = vsel %vm326, %v4405, %v4407
      %v4437 = vsel %vm326, %v4409, %v4411
      %v4438 = vsel %vm326, %v4413, %v4415
      %v4439 = vsel %vm326, %v4417, %v4419
      %v4440 = vsel %vm326, %v4421, %v4423
      %v4441 = vsel %vm326, %v4425, %v4427
      %v4442 = vsel %vm326, %v4429, %v4431
      %v4443 = vsel %vm326, %v4433, %v4435
      %v4461 = vsel %vm1681, %v4403, 0
      %v4463 = vand.u32 %v4407, 4294901760
      %4464 = vmatprep.subr.mxu0 %v4463
      %v4465 = vand.u32 %v4436, 4294901760
      %4466 = vmatpush1.msra.mxu0 %v4465
      %v4467 = vand.u32 %v4411, 4294901760
      %4468 = vmatprep.subr.mxu0 %v4467
      %v4469 = vand.u32 %v4437, 4294901760
      %4470 = vmatpush1.msra.mxu0 %v4469
      %v4471 = vand.u32 %v4415, 4294901760
      %4472 = vmatprep.subr.mxu0 %v4471
      %v4473 = vand.u32 %v4438, 4294901760
      %4474 = vmatpush1.msra.mxu0 %v4473
      %v4475 = vand.u32 %v4419, 4294901760
      %4476 = vmatprep.subr.mxu0 %v4475
      %v4477 = vand.u32 %v4439, 4294901760
      %4478 = vmatpush1.msra.mxu0 %v4477
      %v4479 = vand.u32 %v4423, 4294901760
      %4480 = vmatprep.subr.mxu0 %v4479
      %v4481 = vand.u32 %v4440, 4294901760
      %4482 = vmatpush1.msra.mxu0 %v4481
      %v4483 = vand.u32 %v4427, 4294901760
      %4484 = vmatprep.subr.mxu0 %v4483
      %v4485 = vand.u32 %v4441, 4294901760
      %4486 = vmatpush1.msra.mxu0 %v4485
      %v4487 = vand.u32 %v4431, 4294901760
      %4488 = vmatprep.subr.mxu0 %v4487
      %v4489 = vand.u32 %v4442, 4294901760
      %4490 = vmatpush1.msra.mxu0 %v4489
      %v4491 = vand.u32 %v4435, 4294901760
      %4492 = vmatprep.subr.mxu0 %v4491
      %v4493 = vand.u32 %v4443, 4294901760
      %4494 = vmatpush1.msra.mxu0 %v4493
      %4495 = vmatprep.subr.mxu0 0.0
      %4496 = vmatpush1.msra.mxu0 0.0
      %4497 = vmatprep.subr.mxu0 0.0
      %4498 = vmatpush1.msra.mxu0 0.0
      %4499 = vmatprep.subr.mxu0 0.0
      %4500 = vmatpush1.msra.mxu0 0.0
      %4501 = vmatprep.subr.mxu0 0.0
      %4502 = vmatpush1.msra.mxu0 0.0
      %4503 = vmatprep.subr.mxu0 0.0
      %4504 = vmatpush1.msra.mxu0 0.0
      %4505 = vmatprep.subr.mxu0 0.0
      %4506 = vmatpush1.msra.mxu0 0.0
      %4507 = vmatprep.subr.mxu0 0.0
      %4508 = vmatpush1.msra.mxu0 0.0
      %4509 = vmatprep.subr.mxu0 0.0
      %4510 = vmatpush1.msra.mxu0 0.0
      %4511 = vmatprep.subr.mxu0 0.0
      %4512 = vmatpush1.msra.mxu0 0.0
      %4513 = vmatprep.subr.mxu0 0.0
      %4514 = vmatpush1.msra.mxu0 0.0
      %4515 = vmatprep.subr.mxu0 0.0
      %4516 = vmatpush1.msra.mxu0 0.0
      %4517 = vmatprep.subr.mxu0 0.0
      %4518 = vmatpush1.msra.mxu0 0.0
      %4519 = vmatprep.subr.mxu0 0.0
      %4520 = vmatpush1.msra.mxu0 0.0
      %4521 = vmatprep.subr.mxu0 0.0
      %4522 = vmatpush1.msra.mxu0 0.0
      %4523 = vmatprep.subr.mxu0 0.0
      %4524 = vmatpush1.msra.mxu0 0.0
      %4525 = vmatprep.subr.mxu0 0.0
      %4526 = vmatpush1.msra.mxu0 0.0
      %4527 = vmatprep.subr.mxu0 0.0
      %4528 = vmatpush1.msra.mxu0 0.0
      %4529 = vmatprep.subr.mxu0 0.0
      %4530 = vmatpush1.msra.mxu0 0.0
      %4531 = vmatprep.subr.mxu0 0.0
      %4532 = vmatpush1.msra.mxu0 0.0
      %4533 = vmatprep.subr.mxu0 0.0
      %4534 = vmatpush1.msra.mxu0 0.0
      %4535 = vmatprep.subr.mxu0 0.0
      %4536 = vmatpush1.msra.mxu0 0.0
      %4537 = vmatprep.subr.mxu0 0.0
      %4538 = vmatpush1.msra.mxu0 0.0
      %4539 = vmatprep.subr.mxu0 0.0
      %4540 = vmatpush1.msra.mxu0 0.0
      %4541 = vmatprep.subr.mxu0 0.0
      %4542 = vmatpush1.msra.mxu0 0.0
      %4543 = vmatprep.mubr.f32.mxu0 0.0
      %v4544 = vand.u32 %v4461, 4294901760
      %v4545 = vsub.f32 %v4461, %v4544
      %v4546 = vand.u32 %v4545, 4294901760
      %v4547 = vsub.f32 %v4545, %v4546
      %v4548 = vand.u32 %v4547, 4294901760
      %4549 = vmatmul.mubr.f32.gmra.mrb[0].mxu0 %v4548
      %v4550 = vpop.f32.mrb[0].mxu0
      %v4551 = vadd.f32 0.0, %v4550
      %v4552 = vpop.f32.mrb[0].mxu0
      %v4553 = vadd.f32 0.0, %v4552
      %4554 = vdwg.mxu0
      %v4555 = vand.u32 %v4407, 4294901760
      %v4556 = vsub.f32 %v4407, %v4555
      %v4557 = vand.u32 %v4556, 4294901760
      %v4558 = vsub.f32 %v4556, %v4557
      %v4559 = vand.u32 %v4558, 4294901760
      %4560 = vmatprep.subr.mxu0 %v4559
      %v4561 = vand.u32 %v4436, 4294901760
      %v4562 = vsub.f32 %v4436, %v4561
      %v4563 = vand.u32 %v4562, 4294901760
      %v4564 = vsub.f32 %v4562, %v4563
      %v4565 = vand.u32 %v4564, 4294901760
      %4566 = vmatpush1.msra.mxu0 %v4565
      %v4567 = vand.u32 %v4411, 4294901760
      %v4568 = vsub.f32 %v4411, %v4567
      %v4569 = vand.u32 %v4568, 4294901760
      %v4570 = vsub.f32 %v4568, %v4569
      %v4571 = vand.u32 %v4570, 4294901760
      %4572 = vmatprep.subr.mxu0 %v4571
      %v4573 = vand.u32 %v4437, 4294901760
      %v4574 = vsub.f32 %v4437, %v4573
      %v4575 = vand.u32 %v4574, 4294901760
      %v4576 = vsub.f32 %v4574, %v4575
      %v4577 = vand.u32 %v4576, 4294901760
      %4578 = vmatpush1.msra.mxu0 %v4577
      %v4579 = vand.u32 %v4415, 4294901760
      %v4580 = vsub.f32 %v4415, %v4579
      %v4581 = vand.u32 %v4580, 4294901760
      %v4582 = vsub.f32 %v4580, %v4581
      %v4583 = vand.u32 %v4582, 4294901760
      %4584 = vmatprep.subr.mxu0 %v4583
      %v4585 = vand.u32 %v4438, 4294901760
      %v4586 = vsub.f32 %v4438, %v4585
      %v4587 = vand.u32 %v4586, 4294901760
      %v4588 = vsub.f32 %v4586, %v4587
      %v4589 = vand.u32 %v4588, 4294901760
      %4590 = vmatpush1.msra.mxu0 %v4589
      %v4591 = vand.u32 %v4419, 4294901760
      %v4592 = vsub.f32 %v4419, %v4591
      %v4593 = vand.u32 %v4592, 4294901760
      %v4594 = vsub.f32 %v4592, %v4593
      %v4595 = vand.u32 %v4594, 4294901760
      %4596 = vmatprep.subr.mxu0 %v4595
      %v4597 = vand.u32 %v4439, 4294901760
      %v4598 = vsub.f32 %v4439, %v4597
      %v4599 = vand.u32 %v4598, 4294901760
      %v4600 = vsub.f32 %v4598, %v4599
      %v4601 = vand.u32 %v4600, 4294901760
      %4602 = vmatpush1.msra.mxu0 %v4601
      %v4603 = vand.u32 %v4423, 4294901760
      %v4604 = vsub.f32 %v4423, %v4603
      %v4605 = vand.u32 %v4604, 4294901760
      %v4606 = vsub.f32 %v4604, %v4605
      %v4607 = vand.u32 %v4606, 4294901760
      %4608 = vmatprep.subr.mxu0 %v4607
      %v4609 = vand.u32 %v4440, 4294901760
      %v4610 = vsub.f32 %v4440, %v4609
      %v4611 = vand.u32 %v4610, 4294901760
      %v4612 = vsub.f32 %v4610, %v4611
      %v4613 = vand.u32 %v4612, 4294901760
      %4614 = vmatpush1.msra.mxu0 %v4613
      %v4615 = vand.u32 %v4427, 4294901760
      %v4616 = vsub.f32 %v4427, %v4615
      %v4617 = vand.u32 %v4616, 4294901760
      %v4618 = vsub.f32 %v4616, %v4617
      %v4619 = vand.u32 %v4618, 4294901760
      %4620 = vmatprep.subr.mxu0 %v4619
      %v4621 = vand.u32 %v4441, 4294901760
      %v4622 = vsub.f32 %v4441, %v4621
      %v4623 = vand.u32 %v4622, 4294901760
      %v4624 = vsub.f32 %v4622, %v4623
      %v4625 = vand.u32 %v4624, 4294901760
      %4626 = vmatpush1.msra.mxu0 %v4625
      %v4627 = vand.u32 %v4431, 4294901760
      %v4628 = vsub.f32 %v4431, %v4627
      %v4629 = vand.u32 %v4628, 4294901760
      %v4630 = vsub.f32 %v4628, %v4629
      %v4631 = vand.u32 %v4630, 4294901760
      %4632 = vmatprep.subr.mxu0 %v4631
      %v4633 = vand.u32 %v4442, 4294901760
      %v4634 = vsub.f32 %v4442, %v4633
      %v4635 = vand.u32 %v4634, 4294901760
      %v4636 = vsub.f32 %v4634, %v4635
      %v4637 = vand.u32 %v4636, 4294901760
      %4638 = vmatpush1.msra.mxu0 %v4637
      %v4639 = vand.u32 %v4435, 4294901760
      %v4640 = vsub.f32 %v4435, %v4639
      %v4641 = vand.u32 %v4640, 4294901760
      %v4642 = vsub.f32 %v4640, %v4641
      %v4643 = vand.u32 %v4642, 4294901760
      %4644 = vmatprep.subr.mxu0 %v4643
      %v4645 = vand.u32 %v4443, 4294901760
      %v4646 = vsub.f32 %v4443, %v4645
      %v4647 = vand.u32 %v4646, 4294901760
      %v4648 = vsub.f32 %v4646, %v4647
      %v4649 = vand.u32 %v4648, 4294901760
      %4650 = vmatpush1.msra.mxu0 %v4649
      %4651 = vmatprep.subr.mxu0 0.0
      %4652 = vmatpush1.msra.mxu0 0.0
      %4653 = vmatprep.subr.mxu0 0.0
      %4654 = vmatpush1.msra.mxu0 0.0
      %4655 = vmatprep.subr.mxu0 0.0
      %4656 = vmatpush1.msra.mxu0 0.0
      %4657 = vmatprep.subr.mxu0 0.0
      %4658 = vmatpush1.msra.mxu0 0.0
      %4659 = vmatprep.subr.mxu0 0.0
      %4660 = vmatpush1.msra.mxu0 0.0
      %4661 = vmatprep.subr.mxu0 0.0
      %4662 = vmatpush1.msra.mxu0 0.0
      %4663 = vmatprep.subr.mxu0 0.0
      %4664 = vmatpush1.msra.mxu0 0.0
      %4665 = vmatprep.subr.mxu0 0.0
      %4666 = vmatpush1.msra.mxu0 0.0
      %4667 = vmatprep.subr.mxu0 0.0
      %4668 = vmatpush1.msra.mxu0 0.0
      %4669 = vmatprep.subr.mxu0 0.0
      %4670 = vmatpush1.msra.mxu0 0.0
      %4671 = vmatprep.subr.mxu0 0.0
      %4672 = vmatpush1.msra.mxu0 0.0
      %4673 = vmatprep.subr.mxu0 0.0
      %4674 = vmatpush1.msra.mxu0 0.0
      %4675 = vmatprep.subr.mxu0 0.0
      %4676 = vmatpush1.msra.mxu0 0.0
      %4677 = vmatprep.subr.mxu0 0.0
      %4678 = vmatpush1.msra.mxu0 0.0
      %4679 = vmatprep.subr.mxu0 0.0
      %4680 = vmatpush1.msra.mxu0 0.0
      %4681 = vmatprep.subr.mxu0 0.0
      %4682 = vmatpush1.msra.mxu0 0.0
      %4683 = vmatprep.subr.mxu0 0.0
      %4684 = vmatpush1.msra.mxu0 0.0
      %4685 = vmatprep.subr.mxu0 0.0
      %4686 = vmatpush1.msra.mxu0 0.0
      %4687 = vmatprep.subr.mxu0 0.0
      %4688 = vmatpush1.msra.mxu0 0.0
      %4689 = vmatprep.subr.mxu0 0.0
      %4690 = vmatpush1.msra.mxu0 0.0
      %4691 = vmatprep.subr.mxu0 0.0
      %4692 = vmatpush1.msra.mxu0 0.0
      %4693 = vmatprep.subr.mxu0 0.0
      %4694 = vmatpush1.msra.mxu0 0.0
      %4695 = vmatprep.subr.mxu0 0.0
      %4696 = vmatpush1.msra.mxu0 0.0
      %4697 = vmatprep.subr.mxu0 0.0
      %4698 = vmatpush1.msra.mxu0 0.0
      %4699 = vmatprep.mubr.f32.mxu0 0.0
      %v4700 = vand.u32 %v4461, 4294901760
      %4701 = vmatmul.mubr.f32.gmra.mrb[0].mxu0 %v4700
      %v4702 = vpop.f32.mrb[0].mxu0
      %v4703 = vadd.f32 %v4551, %v4702
      %v4704 = vpop.f32.mrb[0].mxu0
      %v4705 = vadd.f32 %v4553, %v4704
      %4706 = vdwg.mxu0
      %v4707 = vand.u32 %v4407, 4294901760
      %v4708 = vsub.f32 %v4407, %v4707
      %4709 = vmatprep.subr.mxu0 %v4708
      %v4710 = vand.u32 %v4436, 4294901760
      %v4711 = vsub.f32 %v4436, %v4710
      %4712 = vmatpush1.msra.mxu0 %v4711
      %v4713 = vand.u32 %v4411, 4294901760
      %v4714 = vsub.f32 %v4411, %v4713
      %4715 = vmatprep.subr.mxu0 %v4714
      %v4716 = vand.u32 %v4437, 4294901760
      %v4717 = vsub.f32 %v4437, %v4716
      %4718 = vmatpush1.msra.mxu0 %v4717
      %v4719 = vand.u32 %v4415, 4294901760
      %v4720 = vsub.f32 %v4415, %v4719
      %4721 = vmatprep.subr.mxu0 %v4720
      %v4722 = vand.u32 %v4438, 4294901760
      %v4723 = vsub.f32 %v4438, %v4722
      %4724 = vmatpush1.msra.mxu0 %v4723
      %v4725 = vand.u32 %v4419, 4294901760
      %v4726 = vsub.f32 %v4419, %v4725
      %4727 = vmatprep.subr.mxu0 %v4726
      %v4728 = vand.u32 %v4439, 4294901760
      %v4729 = vsub.f32 %v4439, %v4728
      %4730 = vmatpush1.msra.mxu0 %v4729
      %v4731 = vand.u32 %v4423, 4294901760
      %v4732 = vsub.f32 %v4423, %v4731
      %4733 = vmatprep.subr.mxu0 %v4732
      %v4734 = vand.u32 %v4440, 4294901760
      %v4735 = vsub.f32 %v4440, %v4734
      %4736 = vmatpush1.msra.mxu0 %v4735
      %v4737 = vand.u32 %v4427, 4294901760
      %v4738 = vsub.f32 %v4427, %v4737
      %4739 = vmatprep.subr.mxu0 %v4738
      %v4740 = vand.u32 %v4441, 4294901760
      %v4741 = vsub.f32 %v4441, %v4740
      %4742 = vmatpush1.msra.mxu0 %v4741
      %v4743 = vand.u32 %v4431, 4294901760
      %v4744 = vsub.f32 %v4431, %v4743
      %4745 = vmatprep.subr.mxu0 %v4744
      %v4746 = vand.u32 %v4442, 4294901760
      %v4747 = vsub.f32 %v4442, %v4746
      %4748 = vmatpush1.msra.mxu0 %v4747
      %v4749 = vand.u32 %v4435, 4294901760
      %v4750 = vsub.f32 %v4435, %v4749
      %4751 = vmatprep.subr.mxu0 %v4750
      %v4752 = vand.u32 %v4443, 4294901760
      %v4753 = vsub.f32 %v4443, %v4752
      %4754 = vmatpush1.msra.mxu0 %v4753
      %4755 = vmatprep.subr.mxu0 0.0
      %4756 = vmatpush1.msra.mxu0 0.0
      %4757 = vmatprep.subr.mxu0 0.0
      %4758 = vmatpush1.msra.mxu0 0.0
      %4759 = vmatprep.subr.mxu0 0.0
      %4760 = vmatpush1.msra.mxu0 0.0
      %4761 = vmatprep.subr.mxu0 0.0
      %4762 = vmatpush1.msra.mxu0 0.0
      %4763 = vmatprep.subr.mxu0 0.0
      %4764 = vmatpush1.msra.mxu0 0.0
      %4765 = vmatprep.subr.mxu0 0.0
      %4766 = vmatpush1.msra.mxu0 0.0
      %4767 = vmatprep.subr.mxu0 0.0
      %4768 = vmatpush1.msra.mxu0 0.0
      %4769 = vmatprep.subr.mxu0 0.0
      %4770 = vmatpush1.msra.mxu0 0.0
      %4771 = vmatprep.subr.mxu0 0.0
      %4772 = vmatpush1.msra.mxu0 0.0
      %4773 = vmatprep.subr.mxu0 0.0
      %4774 = vmatpush1.msra.mxu0 0.0
      %4775 = vmatprep.subr.mxu0 0.0
      %4776 = vmatpush1.msra.mxu0 0.0
      %4777 = vmatprep.subr.mxu0 0.0
      %4778 = vmatpush1.msra.mxu0 0.0
      %4779 = vmatprep.subr.mxu0 0.0
      %4780 = vmatpush1.msra.mxu0 0.0
      %4781 = vmatprep.subr.mxu0 0.0
      %4782 = vmatpush1.msra.mxu0 0.0
      %4783 = vmatprep.subr.mxu0 0.0
      %4784 = vmatpush1.msra.mxu0 0.0
      %4785 = vmatprep.subr.mxu0 0.0
      %4786 = vmatpush1.msra.mxu0 0.0
      %4787 = vmatprep.subr.mxu0 0.0
      %4788 = vmatpush1.msra.mxu0 0.0
      %4789 = vmatprep.subr.mxu0 0.0
      %4790 = vmatpush1.msra.mxu0 0.0
      %4791 = vmatprep.subr.mxu0 0.0
      %4792 = vmatpush1.msra.mxu0 0.0
      %4793 = vmatprep.subr.mxu0 0.0
      %4794 = vmatpush1.msra.mxu0 0.0
      %4795 = vmatprep.subr.mxu0 0.0
      %4796 = vmatpush1.msra.mxu0 0.0
      %4797 = vmatprep.subr.mxu0 0.0
      %4798 = vmatpush1.msra.mxu0 0.0
      %4799 = vmatprep.subr.mxu0 0.0
      %4800 = vmatpush1.msra.mxu0 0.0
      %4801 = vmatprep.subr.mxu0 0.0
      %4802 = vmatpush1.msra.mxu0 0.0
      %4803 = vmatprep.mubr.f32.mxu0 0.0
      %v4804 = vand.u32 %v4461, 4294901760
      %v4805 = vsub.f32 %v4461, %v4804
      %4806 = vmatmul.mubr.f32.gmra.mrb[0].mxu0 %v4805
      %v4807 = vpop.f32.mrb[0].mxu0
      %v4808 = vadd.f32 %v4703, %v4807
      %v4809 = vpop.f32.mrb[0].mxu0
      %v4810 = vadd.f32 %v4705, %v4809
      %4811 = vdwg.mxu0
      %v4812 = vand.u32 %v4407, 4294901760
      %4813 = vmatprep.subr.mxu0 %v4812
      %v4814 = vand.u32 %v4436, 4294901760
      %4815 = vmatpush1.msra.mxu0 %v4814
      %v4816 = vand.u32 %v4411, 4294901760
      %4817 = vmatprep.subr.mxu0 %v4816
      %v4818 = vand.u32 %v4437, 4294901760
      %4819 = vmatpush1.msra.mxu0 %v4818
      %v4820 = vand.u32 %v4415, 4294901760
      %4821 = vmatprep.subr.mxu0 %v4820
      %v4822 = vand.u32 %v4438, 4294901760
      %4823 = vmatpush1.msra.mxu0 %v4822
      %v4824 = vand.u32 %v4419, 4294901760
      %4825 = vmatprep.subr.mxu0 %v4824
      %v4826 = vand.u32 %v4439, 4294901760
      %4827 = vmatpush1.msra.mxu0 %v4826
      %v4828 = vand.u32 %v4423, 4294901760
      %4829 = vmatprep.subr.mxu0 %v4828
      %v4830 = vand.u32 %v4440, 4294901760
      %4831 = vmatpush1.msra.mxu0 %v4830
      %v4832 = vand.u32 %v4427, 4294901760
      %4833 = vmatprep.subr.mxu0 %v4832
      %v4834 = vand.u32 %v4441, 4294901760
      %4835 = vmatpush1.msra.mxu0 %v4834
      %v4836 = vand.u32 %v4431, 4294901760
      %4837 = vmatprep.subr.mxu0 %v4836
      %v4838 = vand.u32 %v4442, 4294901760
      %4839 = vmatpush1.msra.mxu0 %v4838
      %v4840 = vand.u32 %v4435, 4294901760
      %4841 = vmatprep.subr.mxu0 %v4840
      %v4842 = vand.u32 %v4443, 4294901760
      %4843 = vmatpush1.msra.mxu0 %v4842
      %4844 = vmatprep.subr.mxu0 0.0
      %4845 = vmatpush1.msra.mxu0 0.0
      %4846 = vmatprep.subr.mxu0 0.0
      %4847 = vmatpush1.msra.mxu0 0.0
      %4848 = vmatprep.subr.mxu0 0.0
      %4849 = vmatpush1.msra.mxu0 0.0
      %4850 = vmatprep.subr.mxu0 0.0
      %4851 = vmatpush1.msra.mxu0 0.0
      %4852 = vmatprep.subr.mxu0 0.0
      %4853 = vmatpush1.msra.mxu0 0.0
      %4854 = vmatprep.subr.mxu0 0.0
      %4855 = vmatpush1.msra.mxu0 0.0
      %4856 = vmatprep.subr.mxu0 0.0
      %4857 = vmatpush1.msra.mxu0 0.0
      %4858 = vmatprep.subr.mxu0 0.0
      %4859 = vmatpush1.msra.mxu0 0.0
      %4860 = vmatprep.subr.mxu0 0.0
      %4861 = vmatpush1.msra.mxu0 0.0
      %4862 = vmatprep.subr.mxu0 0.0
      %4863 = vmatpush1.msra.mxu0 0.0
      %4864 = vmatprep.subr.mxu0 0.0
      %4865 = vmatpush1.msra.mxu0 0.0
      %4866 = vmatprep.subr.mxu0 0.0
      %4867 = vmatpush1.msra.mxu0 0.0
      %4868 = vmatprep.subr.mxu0 0.0
      %4869 = vmatpush1.msra.mxu0 0.0
      %4870 = vmatprep.subr.mxu0 0.0
      %4871 = vmatpush1.msra.mxu0 0.0
      %4872 = vmatprep.subr.mxu0 0.0
      %4873 = vmatpush1.msra.mxu0 0.0
      %4874 = vmatprep.subr.mxu0 0.0
      %4875 = vmatpush1.msra.mxu0 0.0
      %4876 = vmatprep.subr.mxu0 0.0
      %4877 = vmatpush1.msra.mxu0 0.0
      %4878 = vmatprep.subr.mxu0 0.0
      %4879 = vmatpush1.msra.mxu0 0.0
      %4880 = vmatprep.subr.mxu0 0.0
      %4881 = vmatpush1.msra.mxu0 0.0
      %4882 = vmatprep.subr.mxu0 0.0
      %4883 = vmatpush1.msra.mxu0 0.0
      %4884 = vmatprep.subr.mxu0 0.0
      %4885 = vmatpush1.msra.mxu0 0.0
      %4886 = vmatprep.subr.mxu0 0.0
      %4887 = vmatpush1.msra.mxu0 0.0
      %4888 = vmatprep.subr.mxu0 0.0
      %4889 = vmatpush1.msra.mxu0 0.0
      %4890 = vmatprep.subr.mxu0 0.0
      %4891 = vmatpush1.msra.mxu0 0.0
      %4892 = vmatprep.mubr.f32.mxu0 0.0
      %v4893 = vand.u32 %v4461, 4294901760
      %v4894 = vsub.f32 %v4461, %v4893
      %v4895 = vand.u32 %v4894, 4294901760
      %4896 = vmatmul.mubr.f32.gmra.mrb[0].mxu0 %v4895
      %v4897 = vpop.f32.mrb[0].mxu0
      %v4898 = vadd.f32 %v4808, %v4897
      %v4899 = vpop.f32.mrb[0].mxu0
      %v4900 = vadd.f32 %v4810, %v4899
      %4901 = vdwg.mxu0
      %v4902 = vand.u32 %v4407, 4294901760
      %v4903 = vsub.f32 %v4407, %v4902
      %v4904 = vand.u32 %v4903, 4294901760
      %4905 = vmatprep.subr.mxu0 %v4904
      %v4906 = vand.u32 %v4436, 4294901760
      %v4907 = vsub.f32 %v4436, %v4906
      %v4908 = vand.u32 %v4907, 4294901760
      %4909 = vmatpush1.msra.mxu0 %v4908
      %v4910 = vand.u32 %v4411, 4294901760
      %v4911 = vsub.f32 %v4411, %v4910
      %v4912 = vand.u32 %v4911, 4294901760
      %4913 = vmatprep.subr.mxu0 %v4912
      %v4914 = vand.u32 %v4437, 4294901760
      %v4915 = vsub.f32 %v4437, %v4914
      %v4916 = vand.u32 %v4915, 4294901760
      %4917 = vmatpush1.msra.mxu0 %v4916
      %v4918 = vand.u32 %v4415, 4294901760
      %v4919 = vsub.f32 %v4415, %v4918
      %v4920 = vand.u32 %v4919, 4294901760
      %4921 = vmatprep.subr.mxu0 %v4920
      %v4922 = vand.u32 %v4438, 4294901760
      %v4923 = vsub.f32 %v4438, %v4922
      %v4924 = vand.u32 %v4923, 4294901760
      %4925 = vmatpush1.msra.mxu0 %v4924
      %v4926 = vand.u32 %v4419, 4294901760
      %v4927 = vsub.f32 %v4419, %v4926
      %v4928 = vand.u32 %v4927, 4294901760
      %4929 = vmatprep.subr.mxu0 %v4928
      %v4930 = vand.u32 %v4439, 4294901760
      %v4931 = vsub.f32 %v4439, %v4930
      %v4932 = vand.u32 %v4931, 4294901760
      %4933 = vmatpush1.msra.mxu0 %v4932
      %v4934 = vand.u32 %v4423, 4294901760
      %v4935 = vsub.f32 %v4423, %v4934
      %v4936 = vand.u32 %v4935, 4294901760
      %4937 = vmatprep.subr.mxu0 %v4936
      %v4938 = vand.u32 %v4440, 4294901760
      %v4939 = vsub.f32 %v4440, %v4938
      %v4940 = vand.u32 %v4939, 4294901760
      %4941 = vmatpush1.msra.mxu0 %v4940
      %v4942 = vand.u32 %v4427, 4294901760
      %v4943 = vsub.f32 %v4427, %v4942
      %v4944 = vand.u32 %v4943, 4294901760
      %4945 = vmatprep.subr.mxu0 %v4944
      %v4946 = vand.u32 %v4441, 4294901760
      %v4947 = vsub.f32 %v4441, %v4946
      %v4948 = vand.u32 %v4947, 4294901760
      %4949 = vmatpush1.msra.mxu0 %v4948
      %v4950 = vand.u32 %v4431, 4294901760
      %v4951 = vsub.f32 %v4431, %v4950
      %v4952 = vand.u32 %v4951, 4294901760
      %4953 = vmatprep.subr.mxu0 %v4952
      %v4954 = vand.u32 %v4442, 4294901760
      %v4955 = vsub.f32 %v4442, %v4954
      %v4956 = vand.u32 %v4955, 4294901760
      %4957 = vmatpush1.msra.mxu0 %v4956
      %v4958 = vand.u32 %v4435, 4294901760
      %v4959 = vsub.f32 %v4435, %v4958
      %v4960 = vand.u32 %v4959, 4294901760
      %4961 = vmatprep.subr.mxu0 %v4960
      %v4962 = vand.u32 %v4443, 4294901760
      %v4963 = vsub.f32 %v4443, %v4962
      %v4964 = vand.u32 %v4963, 4294901760
      %4965 = vmatpush1.msra.mxu0 %v4964
      %4966 = vmatprep.subr.mxu0 0.0
      %4967 = vmatpush1.msra.mxu0 0.0
      %4968 = vmatprep.subr.mxu0 0.0
      %4969 = vmatpush1.msra.mxu0 0.0
      %4970 = vmatprep.subr.mxu0 0.0
      %4971 = vmatpush1.msra.mxu0 0.0
      %4972 = vmatprep.subr.mxu0 0.0
      %4973 = vmatpush1.msra.mxu0 0.0
      %4974 = vmatprep.subr.mxu0 0.0
      %4975 = vmatpush1.msra.mxu0 0.0
      %4976 = vmatprep.subr.mxu0 0.0
      %4977 = vmatpush1.msra.mxu0 0.0
      %4978 = vmatprep.subr.mxu0 0.0
      %4979 = vmatpush1.msra.mxu0 0.0
      %4980 = vmatprep.subr.mxu0 0.0
      %4981 = vmatpush1.msra.mxu0 0.0
      %4982 = vmatprep.subr.mxu0 0.0
      %4983 = vmatpush1.msra.mxu0 0.0
      %4984 = vmatprep.subr.mxu0 0.0
      %4985 = vmatpush1.msra.mxu0 0.0
      %4986 = vmatprep.subr.mxu0 0.0
      %4987 = vmatpush1.msra.mxu0 0.0
      %4988 = vmatprep.subr.mxu0 0.0
      %4989 = vmatpush1.msra.mxu0 0.0
      %4990 = vmatprep.subr.mxu0 0.0
      %4991 = vmatpush1.msra.mxu0 0.0
      %4992 = vmatprep.subr.mxu0 0.0
      %4993 = vmatpush1.msra.mxu0 0.0
      %4994 = vmatprep.subr.mxu0 0.0
      %4995 = vmatpush1.msra.mxu0 0.0
      %4996 = vmatprep.subr.mxu0 0.0
      %4997 = vmatpush1.msra.mxu0 0.0
      %4998 = vmatprep.subr.mxu0 0.0
      %4999 = vmatpush1.msra.mxu0 0.0
      %5000 = vmatprep.subr.mxu0 0.0
      %5001 = vmatpush1.msra.mxu0 0.0
      %5002 = vmatprep.subr.mxu0 0.0
      %5003 = vmatpush1.msra.mxu0 0.0
      %5004 = vmatprep.subr.mxu0 0.0
      %5005 = vmatpush1.msra.mxu0 0.0
      %5006 = vmatprep.subr.mxu0 0.0
      %5007 = vmatpush1.msra.mxu0 0.0
      %5008 = vmatprep.subr.mxu0 0.0
      %5009 = vmatpush1.msra.mxu0 0.0
      %5010 = vmatprep.subr.mxu0 0.0
      %5011 = vmatpush1.msra.mxu0 0.0
      %5012 = vmatprep.subr.mxu0 0.0
      %5013 = vmatpush1.msra.mxu0 0.0
      %5014 = vmatprep.mubr.f32.mxu0 0.0
      %v5015 = vand.u32 %v4461, 4294901760
      %5016 = vmatmul.mubr.f32.gmra.mrb[0].mxu0 %v5015
      %v5017 = vpop.f32.mrb[0].mxu0
      %v5018 = vadd.f32 %v4898, %v5017
      %v5019 = vpop.f32.mrb[0].mxu0
      %v5020 = vadd.f32 %v4900, %v5019
      %5021 = vdwg.mxu0
      %v5022 = vand.u32 %v4407, 4294901760
      %5023 = vmatprep.subr.mxu0 %v5022
      %v5024 = vand.u32 %v4436, 4294901760
      %5025 = vmatpush1.msra.mxu0 %v5024
      %v5026 = vand.u32 %v4411, 4294901760
      %5027 = vmatprep.subr.mxu0 %v5026
      %v5028 = vand.u32 %v4437, 4294901760
      %5029 = vmatpush1.msra.mxu0 %v5028
      %v5030 = vand.u32 %v4415, 4294901760
      %5031 = vmatprep.subr.mxu0 %v5030
      %v5032 = vand.u32 %v4438, 4294901760
      %5033 = vmatpush1.msra.mxu0 %v5032
      %v5034 = vand.u32 %v4419, 4294901760
      %5035 = vmatprep.subr.mxu0 %v5034
      %v5036 = vand.u32 %v4439, 4294901760
      %5037 = vmatpush1.msra.mxu0 %v5036
      %v5038 = vand.u32 %v4423, 4294901760
      %5039 = vmatprep.subr.mxu0 %v5038
      %v5040 = vand.u32 %v4440, 4294901760
      %5041 = vmatpush1.msra.mxu0 %v5040
      %v5042 = vand.u32 %v4427, 4294901760
      %5043 = vmatprep.subr.mxu0 %v5042
      %v5044 = vand.u32 %v4441, 4294901760
      %5045 = vmatpush1.msra.mxu0 %v5044
      %v5046 = vand.u32 %v4431, 4294901760
      %5047 = vmatprep.subr.mxu0 %v5046
      %v5048 = vand.u32 %v4442, 4294901760
      %5049 = vmatpush1.msra.mxu0 %v5048
      %v5050 = vand.u32 %v4435, 4294901760
      %5051 = vmatprep.subr.mxu0 %v5050
      %v5052 = vand.u32 %v4443, 4294901760
      %5053 = vmatpush1.msra.mxu0 %v5052
      %5054 = vmatprep.subr.mxu0 0.0
      %5055 = vmatpush1.msra.mxu0 0.0
      %5056 = vmatprep.subr.mxu0 0.0
      %5057 = vmatpush1.msra.mxu0 0.0
      %5058 = vmatprep.subr.mxu0 0.0
      %5059 = vmatpush1.msra.mxu0 0.0
      %5060 = vmatprep.subr.mxu0 0.0
      %5061 = vmatpush1.msra.mxu0 0.0
      %5062 = vmatprep.subr.mxu0 0.0
      %5063 = vmatpush1.msra.mxu0 0.0
      %5064 = vmatprep.subr.mxu0 0.0
      %5065 = vmatpush1.msra.mxu0 0.0
      %5066 = vmatprep.subr.mxu0 0.0
      %5067 = vmatpush1.msra.mxu0 0.0
      %5068 = vmatprep.subr.mxu0 0.0
      %5069 = vmatpush1.msra.mxu0 0.0
      %5070 = vmatprep.subr.mxu0 0.0
      %5071 = vmatpush1.msra.mxu0 0.0
      %5072 = vmatprep.subr.mxu0 0.0
      %5073 = vmatpush1.msra.mxu0 0.0
      %5074 = vmatprep.subr.mxu0 0.0
      %5075 = vmatpush1.msra.mxu0 0.0
      %5076 = vmatprep.subr.mxu0 0.0
      %5077 = vmatpush1.msra.mxu0 0.0
      %5078 = vmatprep.subr.mxu0 0.0
      %5079 = vmatpush1.msra.mxu0 0.0
      %5080 = vmatprep.subr.mxu0 0.0
      %5081 = vmatpush1.msra.mxu0 0.0
      %5082 = vmatprep.subr.mxu0 0.0
      %5083 = vmatpush1.msra.mxu0 0.0
      %5084 = vmatprep.subr.mxu0 0.0
      %5085 = vmatpush1.msra.mxu0 0.0
      %5086 = vmatprep.subr.mxu0 0.0
      %5087 = vmatpush1.msra.mxu0 0.0
      %5088 = vmatprep.subr.mxu0 0.0
      %5089 = vmatpush1.msra.mxu0 0.0
      %5090 = vmatprep.subr.mxu0 0.0
      %5091 = vmatpush1.msra.mxu0 0.0
      %5092 = vmatprep.subr.mxu0 0.0
      %5093 = vmatpush1.msra.mxu0 0.0
      %5094 = vmatprep.subr.mxu0 0.0
      %5095 = vmatpush1.msra.mxu0 0.0
      %5096 = vmatprep.subr.mxu0 0.0
      %5097 = vmatpush1.msra.mxu0 0.0
      %5098 = vmatprep.subr.mxu0 0.0
      %5099 = vmatpush1.msra.mxu0 0.0
      %5100 = vmatprep.subr.mxu0 0.0
      %5101 = vmatpush1.msra.mxu0 0.0
      %5102 = vmatprep.mubr.f32.mxu0 0.0
      %v5103 = vand.u32 %v4461, 4294901760
      %5104 = vmatmul.mubr.f32.gmra.mrb[0].mxu0 %v5103
      %v5105 = vpop.f32.mrb[0].mxu0
      %v5106 = vadd.f32 %v5018, %v5105
      %v5107 = vpop.f32.mrb[0].mxu0
      %v5108 = vadd.f32 %v5020, %v5107
      %5109 = vdwg.mxu0
      %v5110 = vadd.f32 %v4400, %v5106
      %v5111 = vadd.f32 %v4401, %v5108
      %s5112 = scalar_lea.vmem %s3, 40
      %v5113 = vld [vmem:[%s5112] sm:$0xff]
      %5114 = vrot.lane.b32.xlu0 %v1591, 108
      %v5115 = vpop.permute.xlu0 %5114
      %5116 = vrot.lane.b32.xlu0 %v1592, 108
      %v5117 = vpop.permute.xlu0 %5116
      %5118 = vrot.lane.b32.xlu0 %v1593, 108
      %v5119 = vpop.permute.xlu0 %5118
      %5120 = vrot.lane.b32.xlu0 %v1594, 108
      %v5121 = vpop.permute.xlu0 %5120
      %5122 = vrot.lane.b32.xlu0 %v1595, 108
      %v5123 = vpop.permute.xlu0 %5122
      %5124 = vrot.lane.b32.xlu0 %v1596, 108
      %v5125 = vpop.permute.xlu0 %5124
      %5126 = vrot.lane.b32.xlu0 %v1597, 108
      %v5127 = vpop.permute.xlu0 %5126
      %5128 = vrot.lane.b32.xlu0 %v1598, 108
      %v5129 = vpop.permute.xlu0 %5128
      %5130 = vrot.lane.b32.xlu0 %v1599, 108
      %v5131 = vpop.permute.xlu0 %5130
      %5132 = vrot.lane.b32.xlu0 %v1600, 108
      %v5133 = vpop.permute.xlu0 %5132
      %5134 = vrot.lane.b32.xlu0 %v1601, 108
      %v5135 = vpop.permute.xlu0 %5134
      %5136 = vrot.lane.b32.xlu0 %v1602, 108
      %v5137 = vpop.permute.xlu0 %5136
      %5138 = vrot.lane.b32.xlu0 %v1603, 108
      %v5139 = vpop.permute.xlu0 %5138
      %5140 = vrot.lane.b32.xlu0 %v1604, 108
      %v5141 = vpop.permute.xlu0 %5140
      %5142 = vrot.lane.b32.xlu0 %v1605, 108
      %v5143 = vpop.permute.xlu0 %5142
      %5144 = vrot.lane.b32.xlu0 %v1606, 108
      %v5145 = vpop.permute.xlu0 %5144
      %v5146 = vsel %vm342, %v5115, %v5117
      %v5147 = vsel %vm342, %v5119, %v5121
      %v5148 = vsel %vm342, %v5123, %v5125
      %v5149 = vsel %vm342, %v5127, %v5129
      %v5150 = vsel %vm342, %v5131, %v5133
      %v5151 = vsel %vm342, %v5135, %v5137
      %v5152 = vsel %vm342, %v5139, %v5141
      %v5153 = vsel %vm342, %v5143, %v5145
      %v5171 = vsel %vm1681, %v5113, 0
      %v5173 = vand.u32 %v5117, 4294901760
      %5174 = vmatprep.subr.mxu0 %v5173
      %v5175 = vand.u32 %v5146, 4294901760
      %5176 = vmatpush1.msra.mxu0 %v5175
      %v5177 = vand.u32 %v5121, 4294901760
      %5178 = vmatprep.subr.mxu0 %v5177
      %v5179 = vand.u32 %v5147, 4294901760
      %5180 = vmatpush1.msra.mxu0 %v5179
      %v5181 = vand.u32 %v5125, 4294901760
      %5182 = vmatprep.subr.mxu0 %v5181
      %v5183 = vand.u32 %v5148, 4294901760
      %5184 = vmatpush1.msra.mxu0 %v5183
      %v5185 = vand.u32 %v5129, 4294901760
      %5186 = vmatprep.subr.mxu0 %v5185
      %v5187 = vand.u32 %v5149, 4294901760
      %5188 = vmatpush1.msra.mxu0 %v5187
      %v5189 = vand.u32 %v5133, 4294901760
      %5190 = vmatprep.subr.mxu0 %v5189
      %v5191 = vand.u32 %v5150, 4294901760
      %5192 = vmatpush1.msra.mxu0 %v5191
      %v5193 = vand.u32 %v5137, 4294901760
      %5194 = vmatprep.subr.mxu0 %v5193
      %v5195 = vand.u32 %v5151, 4294901760
      %5196 = vmatpush1.msra.mxu0 %v5195
      %v5197 = vand.u32 %v5141, 4294901760
      %5198 = vmatprep.subr.mxu0 %v5197
      %v5199 = vand.u32 %v5152, 4294901760
      %5200 = vmatpush1.msra.mxu0 %v5199
      %v5201 = vand.u32 %v5145, 4294901760
      %5202 = vmatprep.subr.mxu0 %v5201
      %v5203 = vand.u32 %v5153, 4294901760
      %5204 = vmatpush1.msra.mxu0 %v5203
      %5205 = vmatprep.subr.mxu0 0.0
      %5206 = vmatpush1.msra.mxu0 0.0
      %5207 = vmatprep.subr.mxu0 0.0
      %5208 = vmatpush1.msra.mxu0 0.0
      %5209 = vmatprep.subr.mxu0 0.0
      %5210 = vmatpush1.msra.mxu0 0.0
      %5211 = vmatprep.subr.mxu0 0.0
      %5212 = vmatpush1.msra.mxu0 0.0
      %5213 = vmatprep.subr.mxu0 0.0
      %5214 = vmatpush1.msra.mxu0 0.0
      %5215 = vmatprep.subr.mxu0 0.0
      %5216 = vmatpush1.msra.mxu0 0.0
      %5217 = vmatprep.subr.mxu0 0.0
      %5218 = vmatpush1.msra.mxu0 0.0
      %5219 = vmatprep.subr.mxu0 0.0
      %5220 = vmatpush1.msra.mxu0 0.0
      %5221 = vmatprep.subr.mxu0 0.0
      %5222 = vmatpush1.msra.mxu0 0.0
      %5223 = vmatprep.subr.mxu0 0.0
      %5224 = vmatpush1.msra.mxu0 0.0
      %5225 = vmatprep.subr.mxu0 0.0
      %5226 = vmatpush1.msra.mxu0 0.0
      %5227 = vmatprep.subr.mxu0 0.0
      %5228 = vmatpush1.msra.mxu0 0.0
      %5229 = vmatprep.subr.mxu0 0.0
      %5230 = vmatpush1.msra.mxu0 0.0
      %5231 = vmatprep.subr.mxu0 0.0
      %5232 = vmatpush1.msra.mxu0 0.0
      %5233 = vmatprep.subr.mxu0 0.0
      %5234 = vmatpush1.msra.mxu0 0.0
      %5235 = vmatprep.subr.mxu0 0.0
      %5236 = vmatpush1.msra.mxu0 0.0
      %5237 = vmatprep.subr.mxu0 0.0
      %5238 = vmatpush1.msra.mxu0 0.0
      %5239 = vmatprep.subr.mxu0 0.0
      %5240 = vmatpush1.msra.mxu0 0.0
      %5241 = vmatprep.subr.mxu0 0.0
      %5242 = vmatpush1.msra.mxu0 0.0
      %5243 = vmatprep.subr.mxu0 0.0
      %5244 = vmatpush1.msra.mxu0 0.0
      %5245 = vmatprep.subr.mxu0 0.0
      %5246 = vmatpush1.msra.mxu0 0.0
      %5247 = vmatprep.subr.mxu0 0.0
      %5248 = vmatpush1.msra.mxu0 0.0
      %5249 = vmatprep.subr.mxu0 0.0
      %5250 = vmatpush1.msra.mxu0 0.0
      %5251 = vmatprep.subr.mxu0 0.0
      %5252 = vmatpush1.msra.mxu0 0.0
      %5253 = vmatprep.mubr.f32.mxu0 0.0
      %v5254 = vand.u32 %v5171, 4294901760
      %v5255 = vsub.f32 %v5171, %v5254
      %v5256 = vand.u32 %v5255, 4294901760
      %v5257 = vsub.f32 %v5255, %v5256
      %v5258 = vand.u32 %v5257, 4294901760
      %5259 = vmatmul.mubr.f32.gmra.mrb[0].mxu0 %v5258
      %v5260 = vpop.f32.mrb[0].mxu0
      %v5261 = vadd.f32 0.0, %v5260
      %v5262 = vpop.f32.mrb[0].mxu0
      %v5263 = vadd.f32 0.0, %v5262
      %5264 = vdwg.mxu0
      %v5265 = vand.u32 %v5117, 4294901760
      %v5266 = vsub.f32 %v5117, %v5265
      %v5267 = vand.u32 %v5266, 4294901760
      %v5268 = vsub.f32 %v5266, %v5267
      %v5269 = vand.u32 %v5268, 4294901760
      %5270 = vmatprep.subr.mxu0 %v5269
      %v5271 = vand.u32 %v5146, 4294901760
      %v5272 = vsub.f32 %v5146, %v5271
      %v5273 = vand.u32 %v5272, 4294901760
      %v5274 = vsub.f32 %v5272, %v5273
      %v5275 = vand.u32 %v5274, 4294901760
      %5276 = vmatpush1.msra.mxu0 %v5275
      %v5277 = vand.u32 %v5121, 4294901760
      %v5278 = vsub.f32 %v5121, %v5277
      %v5279 = vand.u32 %v5278, 4294901760
      %v5280 = vsub.f32 %v5278, %v5279
      %v5281 = vand.u32 %v5280, 4294901760
      %5282 = vmatprep.subr.mxu0 %v5281
      %v5283 = vand.u32 %v5147, 4294901760
      %v5284 = vsub.f32 %v5147, %v5283
      %v5285 = vand.u32 %v5284, 4294901760
      %v5286 = vsub.f32 %v5284, %v5285
      %v5287 = vand.u32 %v5286, 4294901760
      %5288 = vmatpush1.msra.mxu0 %v5287
      %v5289 = vand.u32 %v5125, 4294901760
      %v5290 = vsub.f32 %v5125, %v5289
      %v5291 = vand.u32 %v5290, 4294901760
      %v5292 = vsub.f32 %v5290, %v5291
      %v5293 = vand.u32 %v5292, 4294901760
      %5294 = vmatprep.subr.mxu0 %v5293
      %v5295 = vand.u32 %v5148, 4294901760
      %v5296 = vsub.f32 %v5148, %v5295
      %v5297 = vand.u32 %v5296, 4294901760
      %v5298 = vsub.f32 %v5296, %v5297
      %v5299 = vand.u32 %v5298, 4294901760
      %5300 = vmatpush1.msra.mxu0 %v5299
      %v5301 = vand.u32 %v5129, 4294901760
      %v5302 = vsub.f32 %v5129, %v5301
      %v5303 = vand.u32 %v5302, 4294901760
      %v5304 = vsub.f32 %v5302, %v5303
      %v5305 = vand.u32 %v5304, 4294901760
      %5306 = vmatprep.subr.mxu0 %v5305
      %v5307 = vand.u32 %v5149, 4294901760
      %v5308 = vsub.f32 %v5149, %v5307
      %v5309 = vand.u32 %v5308, 4294901760
      %v5310 = vsub.f32 %v5308, %v5309
      %v5311 = vand.u32 %v5310, 4294901760
      %5312 = vmatpush1.msra.mxu0 %v5311
      %v5313 = vand.u32 %v5133, 4294901760
      %v5314 = vsub.f32 %v5133, %v5313
      %v5315 = vand.u32 %v5314, 4294901760
      %v5316 = vsub.f32 %v5314, %v5315
      %v5317 = vand.u32 %v5316, 4294901760
      %5318 = vmatprep.subr.mxu0 %v5317
      %v5319 = vand.u32 %v5150, 4294901760
      %v5320 = vsub.f32 %v5150, %v5319
      %v5321 = vand.u32 %v5320, 4294901760
      %v5322 = vsub.f32 %v5320, %v5321
      %v5323 = vand.u32 %v5322, 4294901760
      %5324 = vmatpush1.msra.mxu0 %v5323
      %v5325 = vand.u32 %v5137, 4294901760
      %v5326 = vsub.f32 %v5137, %v5325
      %v5327 = vand.u32 %v5326, 4294901760
      %v5328 = vsub.f32 %v5326, %v5327
      %v5329 = vand.u32 %v5328, 4294901760
      %5330 = vmatprep.subr.mxu0 %v5329
      %v5331 = vand.u32 %v5151, 4294901760
      %v5332 = vsub.f32 %v5151, %v5331
      %v5333 = vand.u32 %v5332, 4294901760
      %v5334 = vsub.f32 %v5332, %v5333
      %v5335 = vand.u32 %v5334, 4294901760
      %5336 = vmatpush1.msra.mxu0 %v5335
      %v5337 = vand.u32 %v5141, 4294901760
      %v5338 = vsub.f32 %v5141, %v5337
      %v5339 = vand.u32 %v5338, 4294901760
      %v5340 = vsub.f32 %v5338, %v5339
      %v5341 = vand.u32 %v5340, 4294901760
      %5342 = vmatprep.subr.mxu0 %v5341
      %v5343 = vand.u32 %v5152, 4294901760
      %v5344 = vsub.f32 %v5152, %v5343
      %v5345 = vand.u32 %v5344, 4294901760
      %v5346 = vsub.f32 %v5344, %v5345
      %v5347 = vand.u32 %v5346, 4294901760
      %5348 = vmatpush1.msra.mxu0 %v5347
      %v5349 = vand.u32 %v5145, 4294901760
      %v5350 = vsub.f32 %v5145, %v5349
      %v5351 = vand.u32 %v5350, 4294901760
      %v5352 = vsub.f32 %v5350, %v5351
      %v5353 = vand.u32 %v5352, 4294901760
      %5354 = vmatprep.subr.mxu0 %v5353
      %v5355 = vand.u32 %v5153, 4294901760
      %v5356 = vsub.f32 %v5153, %v5355
      %v5357 = vand.u32 %v5356, 4294901760
      %v5358 = vsub.f32 %v5356, %v5357
      %v5359 = vand.u32 %v5358, 4294901760
      %5360 = vmatpush1.msra.mxu0 %v5359
      %5361 = vmatprep.subr.mxu0 0.0
      %5362 = vmatpush1.msra.mxu0 0.0
      %5363 = vmatprep.subr.mxu0 0.0
      %5364 = vmatpush1.msra.mxu0 0.0
      %5365 = vmatprep.subr.mxu0 0.0
      %5366 = vmatpush1.msra.mxu0 0.0
      %5367 = vmatprep.subr.mxu0 0.0
      %5368 = vmatpush1.msra.mxu0 0.0
      %5369 = vmatprep.subr.mxu0 0.0
      %5370 = vmatpush1.msra.mxu0 0.0
      %5371 = vmatprep.subr.mxu0 0.0
      %5372 = vmatpush1.msra.mxu0 0.0
      %5373 = vmatprep.subr.mxu0 0.0
      %5374 = vmatpush1.msra.mxu0 0.0
      %5375 = vmatprep.subr.mxu0 0.0
      %5376 = vmatpush1.msra.mxu0 0.0
      %5377 = vmatprep.subr.mxu0 0.0
      %5378 = vmatpush1.msra.mxu0 0.0
      %5379 = vmatprep.subr.mxu0 0.0
      %5380 = vmatpush1.msra.mxu0 0.0
      %5381 = vmatprep.subr.mxu0 0.0
      %5382 = vmatpush1.msra.mxu0 0.0
      %5383 = vmatprep.subr.mxu0 0.0
      %5384 = vmatpush1.msra.mxu0 0.0
      %5385 = vmatprep.subr.mxu0 0.0
      %5386 = vmatpush1.msra.mxu0 0.0
      %5387 = vmatprep.subr.mxu0 0.0
      %5388 = vmatpush1.msra.mxu0 0.0
      %5389 = vmatprep.subr.mxu0 0.0
      %5390 = vmatpush1.msra.mxu0 0.0
      %5391 = vmatprep.subr.mxu0 0.0
      %5392 = vmatpush1.msra.mxu0 0.0
      %5393 = vmatprep.subr.mxu0 0.0
      %5394 = vmatpush1.msra.mxu0 0.0
      %5395 = vmatprep.subr.mxu0 0.0
      %5396 = vmatpush1.msra.mxu0 0.0
      %5397 = vmatprep.subr.mxu0 0.0
      %5398 = vmatpush1.msra.mxu0 0.0
      %5399 = vmatprep.subr.mxu0 0.0
      %5400 = vmatpush1.msra.mxu0 0.0
      %5401 = vmatprep.subr.mxu0 0.0
      %5402 = vmatpush1.msra.mxu0 0.0
      %5403 = vmatprep.subr.mxu0 0.0
      %5404 = vmatpush1.msra.mxu0 0.0
      %5405 = vmatprep.subr.mxu0 0.0
      %5406 = vmatpush1.msra.mxu0 0.0
      %5407 = vmatprep.subr.mxu0 0.0
      %5408 = vmatpush1.msra.mxu0 0.0
      %5409 = vmatprep.mubr.f32.mxu0 0.0
      %v5410 = vand.u32 %v5171, 4294901760
      %5411 = vmatmul.mubr.f32.gmra.mrb[0].mxu0 %v5410
      %v5412 = vpop.f32.mrb[0].mxu0
      %v5413 = vadd.f32 %v5261, %v5412
      %v5414 = vpop.f32.mrb[0].mxu0
      %v5415 = vadd.f32 %v5263, %v5414
      %5416 = vdwg.mxu0
      %v5417 = vand.u32 %v5117, 4294901760
      %v5418 = vsub.f32 %v5117, %v5417
      %5419 = vmatprep.subr.mxu0 %v5418
      %v5420 = vand.u32 %v5146, 4294901760
      %v5421 = vsub.f32 %v5146, %v5420
      %5422 = vmatpush1.msra.mxu0 %v5421
      %v5423 = vand.u32 %v5121, 4294901760
      %v5424 = vsub.f32 %v5121, %v5423
      %5425 = vmatprep.subr.mxu0 %v5424
      %v5426 = vand.u32 %v5147, 4294901760
      %v5427 = vsub.f32 %v5147, %v5426
      %5428 = vmatpush1.msra.mxu0 %v5427
      %v5429 = vand.u32 %v5125, 4294901760
      %v5430 = vsub.f32 %v5125, %v5429
      %5431 = vmatprep.subr.mxu0 %v5430
      %v5432 = vand.u32 %v5148, 4294901760
      %v5433 = vsub.f32 %v5148, %v5432
      %5434 = vmatpush1.msra.mxu0 %v5433
      %v5435 = vand.u32 %v5129, 4294901760
      %v5436 = vsub.f32 %v5129, %v5435
      %5437 = vmatprep.subr.mxu0 %v5436
      %v5438 = vand.u32 %v5149, 4294901760
      %v5439 = vsub.f32 %v5149, %v5438
      %5440 = vmatpush1.msra.mxu0 %v5439
      %v5441 = vand.u32 %v5133, 4294901760
      %v5442 = vsub.f32 %v5133, %v5441
      %5443 = vmatprep.subr.mxu0 %v5442
      %v5444 = vand.u32 %v5150, 4294901760
      %v5445 = vsub.f32 %v5150, %v5444
      %5446 = vmatpush1.msra.mxu0 %v5445
      %v5447 = vand.u32 %v5137, 4294901760
      %v5448 = vsub.f32 %v5137, %v5447
      %5449 = vmatprep.subr.mxu0 %v5448
      %v5450 = vand.u32 %v5151, 4294901760
      %v5451 = vsub.f32 %v5151, %v5450
      %5452 = vmatpush1.msra.mxu0 %v5451
      %v5453 = vand.u32 %v5141, 4294901760
      %v5454 = vsub.f32 %v5141, %v5453
      %5455 = vmatprep.subr.mxu0 %v5454
      %v5456 = vand.u32 %v5152, 4294901760
      %v5457 = vsub.f32 %v5152, %v5456
      %5458 = vmatpush1.msra.mxu0 %v5457
      %v5459 = vand.u32 %v5145, 4294901760
      %v5460 = vsub.f32 %v5145, %v5459
      %5461 = vmatprep.subr.mxu0 %v5460
      %v5462 = vand.u32 %v5153, 4294901760
      %v5463 = vsub.f32 %v5153, %v5462
      %5464 = vmatpush1.msra.mxu0 %v5463
      %5465 = vmatprep.subr.mxu0 0.0
      %5466 = vmatpush1.msra.mxu0 0.0
      %5467 = vmatprep.subr.mxu0 0.0
      %5468 = vmatpush1.msra.mxu0 0.0
      %5469 = vmatprep.subr.mxu0 0.0
      %5470 = vmatpush1.msra.mxu0 0.0
      %5471 = vmatprep.subr.mxu0 0.0
      %5472 = vmatpush1.msra.mxu0 0.0
      %5473 = vmatprep.subr.mxu0 0.0
      %5474 = vmatpush1.msra.mxu0 0.0
      %5475 = vmatprep.subr.mxu0 0.0
      %5476 = vmatpush1.msra.mxu0 0.0
      %5477 = vmatprep.subr.mxu0 0.0
      %5478 = vmatpush1.msra.mxu0 0.0
      %5479 = vmatprep.subr.mxu0 0.0
      %5480 = vmatpush1.msra.mxu0 0.0
      %5481 = vmatprep.subr.mxu0 0.0
      %5482 = vmatpush1.msra.mxu0 0.0
      %5483 = vmatprep.subr.mxu0 0.0
      %5484 = vmatpush1.msra.mxu0 0.0
      %5485 = vmatprep.subr.mxu0 0.0
      %5486 = vmatpush1.msra.mxu0 0.0
      %5487 = vmatprep.subr.mxu0 0.0
      %5488 = vmatpush1.msra.mxu0 0.0
      %5489 = vmatprep.subr.mxu0 0.0
      %5490 = vmatpush1.msra.mxu0 0.0
      %5491 = vmatprep.subr.mxu0 0.0
      %5492 = vmatpush1.msra.mxu0 0.0
      %5493 = vmatprep.subr.mxu0 0.0
      %5494 = vmatpush1.msra.mxu0 0.0
      %5495 = vmatprep.subr.mxu0 0.0
      %5496 = vmatpush1.msra.mxu0 0.0
      %5497 = vmatprep.subr.mxu0 0.0
      %5498 = vmatpush1.msra.mxu0 0.0
      %5499 = vmatprep.subr.mxu0 0.0
      %5500 = vmatpush1.msra.mxu0 0.0
      %5501 = vmatprep.subr.mxu0 0.0
      %5502 = vmatpush1.msra.mxu0 0.0
      %5503 = vmatprep.subr.mxu0 0.0
      %5504 = vmatpush1.msra.mxu0 0.0
      %5505 = vmatprep.subr.mxu0 0.0
      %5506 = vmatpush1.msra.mxu0 0.0
      %5507 = vmatprep.subr.mxu0 0.0
      %5508 = vmatpush1.msra.mxu0 0.0
      %5509 = vmatprep.subr.mxu0 0.0
      %5510 = vmatpush1.msra.mxu0 0.0
      %5511 = vmatprep.subr.mxu0 0.0
      %5512 = vmatpush1.msra.mxu0 0.0
      %5513 = vmatprep.mubr.f32.mxu0 0.0
      %v5514 = vand.u32 %v5171, 4294901760
      %v5515 = vsub.f32 %v5171, %v5514
      %5516 = vmatmul.mubr.f32.gmra.mrb[0].mxu0 %v5515
      %v5517 = vpop.f32.mrb[0].mxu0
      %v5518 = vadd.f32 %v5413, %v5517
      %v5519 = vpop.f32.mrb[0].mxu0
      %v5520 = vadd.f32 %v5415, %v5519
      %5521 = vdwg.mxu0
      %v5522 = vand.u32 %v5117, 4294901760
      %5523 = vmatprep.subr.mxu0 %v5522
      %v5524 = vand.u32 %v5146, 4294901760
      %5525 = vmatpush1.msra.mxu0 %v5524
      %v5526 = vand.u32 %v5121, 4294901760
      %5527 = vmatprep.subr.mxu0 %v5526
      %v5528 = vand.u32 %v5147, 4294901760
      %5529 = vmatpush1.msra.mxu0 %v5528
      %v5530 = vand.u32 %v5125, 4294901760
      %5531 = vmatprep.subr.mxu0 %v5530
      %v5532 = vand.u32 %v5148, 4294901760
      %5533 = vmatpush1.msra.mxu0 %v5532
      %v5534 = vand.u32 %v5129, 4294901760
      %5535 = vmatprep.subr.mxu0 %v5534
      %v5536 = vand.u32 %v5149, 4294901760
      %5537 = vmatpush1.msra.mxu0 %v5536
      %v5538 = vand.u32 %v5133, 4294901760
      %5539 = vmatprep.subr.mxu0 %v5538
      %v5540 = vand.u32 %v5150, 4294901760
      %5541 = vmatpush1.msra.mxu0 %v5540
      %v5542 = vand.u32 %v5137, 4294901760
      %5543 = vmatprep.subr.mxu0 %v5542
      %v5544 = vand.u32 %v5151, 4294901760
      %5545 = vmatpush1.msra.mxu0 %v5544
      %v5546 = vand.u32 %v5141, 4294901760
      %5547 = vmatprep.subr.mxu0 %v5546
      %v5548 = vand.u32 %v5152, 4294901760
      %5549 = vmatpush1.msra.mxu0 %v5548
      %v5550 = vand.u32 %v5145, 4294901760
      %5551 = vmatprep.subr.mxu0 %v5550
      %v5552 = vand.u32 %v5153, 4294901760
      %5553 = vmatpush1.msra.mxu0 %v5552
      %5554 = vmatprep.subr.mxu0 0.0
      %5555 = vmatpush1.msra.mxu0 0.0
      %5556 = vmatprep.subr.mxu0 0.0
      %5557 = vmatpush1.msra.mxu0 0.0
      %5558 = vmatprep.subr.mxu0 0.0
      %5559 = vmatpush1.msra.mxu0 0.0
      %5560 = vmatprep.subr.mxu0 0.0
      %5561 = vmatpush1.msra.mxu0 0.0
      %5562 = vmatprep.subr.mxu0 0.0
      %5563 = vmatpush1.msra.mxu0 0.0
      %5564 = vmatprep.subr.mxu0 0.0
      %5565 = vmatpush1.msra.mxu0 0.0
      %5566 = vmatprep.subr.mxu0 0.0
      %5567 = vmatpush1.msra.mxu0 0.0
      %5568 = vmatprep.subr.mxu0 0.0
      %5569 = vmatpush1.msra.mxu0 0.0
      %5570 = vmatprep.subr.mxu0 0.0
      %5571 = vmatpush1.msra.mxu0 0.0
      %5572 = vmatprep.subr.mxu0 0.0
      %5573 = vmatpush1.msra.mxu0 0.0
      %5574 = vmatprep.subr.mxu0 0.0
      %5575 = vmatpush1.msra.mxu0 0.0
      %5576 = vmatprep.subr.mxu0 0.0
      %5577 = vmatpush1.msra.mxu0 0.0
      %5578 = vmatprep.subr.mxu0 0.0
      %5579 = vmatpush1.msra.mxu0 0.0
      %5580 = vmatprep.subr.mxu0 0.0
      %5581 = vmatpush1.msra.mxu0 0.0
      %5582 = vmatprep.subr.mxu0 0.0
      %5583 = vmatpush1.msra.mxu0 0.0
      %5584 = vmatprep.subr.mxu0 0.0
      %5585 = vmatpush1.msra.mxu0 0.0
      %5586 = vmatprep.subr.mxu0 0.0
      %5587 = vmatpush1.msra.mxu0 0.0
      %5588 = vmatprep.subr.mxu0 0.0
      %5589 = vmatpush1.msra.mxu0 0.0
      %5590 = vmatprep.subr.mxu0 0.0
      %5591 = vmatpush1.msra.mxu0 0.0
      %5592 = vmatprep.subr.mxu0 0.0
      %5593 = vmatpush1.msra.mxu0 0.0
      %5594 = vmatprep.subr.mxu0 0.0
      %5595 = vmatpush1.msra.mxu0 0.0
      %5596 = vmatprep.subr.mxu0 0.0
      %5597 = vmatpush1.msra.mxu0 0.0
      %5598 = vmatprep.subr.mxu0 0.0
      %5599 = vmatpush1.msra.mxu0 0.0
      %5600 = vmatprep.subr.mxu0 0.0
      %5601 = vmatpush1.msra.mxu0 0.0
      %5602 = vmatprep.mubr.f32.mxu0 0.0
      %v5603 = vand.u32 %v5171, 4294901760
      %v5604 = vsub.f32 %v5171, %v5603
      %v5605 = vand.u32 %v5604, 4294901760
      %5606 = vmatmul.mubr.f32.gmra.mrb[0].mxu0 %v5605
      %v5607 = vpop.f32.mrb[0].mxu0
      %v5608 = vadd.f32 %v5518, %v5607
      %v5609 = vpop.f32.mrb[0].mxu0
      %v5610 = vadd.f32 %v5520, %v5609
      %5611 = vdwg.mxu0
      %v5612 = vand.u32 %v5117, 4294901760
      %v5613 = vsub.f32 %v5117, %v5612
      %v5614 = vand.u32 %v5613, 4294901760
      %5615 = vmatprep.subr.mxu0 %v5614
      %v5616 = vand.u32 %v5146, 4294901760
      %v5617 = vsub.f32 %v5146, %v5616
      %v5618 = vand.u32 %v5617, 4294901760
      %5619 = vmatpush1.msra.mxu0 %v5618
      %v5620 = vand.u32 %v5121, 4294901760
      %v5621 = vsub.f32 %v5121, %v5620
      %v5622 = vand.u32 %v5621, 4294901760
      %5623 = vmatprep.subr.mxu0 %v5622
      %v5624 = vand.u32 %v5147, 4294901760
      %v5625 = vsub.f32 %v5147, %v5624
      %v5626 = vand.u32 %v5625, 4294901760
      %5627 = vmatpush1.msra.mxu0 %v5626
      %v5628 = vand.u32 %v5125, 4294901760
      %v5629 = vsub.f32 %v5125, %v5628
      %v5630 = vand.u32 %v5629, 4294901760
      %5631 = vmatprep.subr.mxu0 %v5630
      %v5632 = vand.u32 %v5148, 4294901760
      %v5633 = vsub.f32 %v5148, %v5632
      %v5634 = vand.u32 %v5633, 4294901760
      %5635 = vmatpush1.msra.mxu0 %v5634
      %v5636 = vand.u32 %v5129, 4294901760
      %v5637 = vsub.f32 %v5129, %v5636
      %v5638 = vand.u32 %v5637, 4294901760
      %5639 = vmatprep.subr.mxu0 %v5638
      %v5640 = vand.u32 %v5149, 4294901760
      %v5641 = vsub.f32 %v5149, %v5640
      %v5642 = vand.u32 %v5641, 4294901760
      %5643 = vmatpush1.msra.mxu0 %v5642
      %v5644 = vand.u32 %v5133, 4294901760
      %v5645 = vsub.f32 %v5133, %v5644
      %v5646 = vand.u32 %v5645, 4294901760
      %5647 = vmatprep.subr.mxu0 %v5646
      %v5648 = vand.u32 %v5150, 4294901760
      %v5649 = vsub.f32 %v5150, %v5648
      %v5650 = vand.u32 %v5649, 4294901760
      %5651 = vmatpush1.msra.mxu0 %v5650
      %v5652 = vand.u32 %v5137, 4294901760
      %v5653 = vsub.f32 %v5137, %v5652
      %v5654 = vand.u32 %v5653, 4294901760
      %5655 = vmatprep.subr.mxu0 %v5654
      %v5656 = vand.u32 %v5151, 4294901760
      %v5657 = vsub.f32 %v5151, %v5656
      %v5658 = vand.u32 %v5657, 4294901760
      %5659 = vmatpush1.msra.mxu0 %v5658
      %v5660 = vand.u32 %v5141, 4294901760
      %v5661 = vsub.f32 %v5141, %v5660
      %v5662 = vand.u32 %v5661, 4294901760
      %5663 = vmatprep.subr.mxu0 %v5662
      %v5664 = vand.u32 %v5152, 4294901760
      %v5665 = vsub.f32 %v5152, %v5664
      %v5666 = vand.u32 %v5665, 4294901760
      %5667 = vmatpush1.msra.mxu0 %v5666
      %v5668 = vand.u32 %v5145, 4294901760
      %v5669 = vsub.f32 %v5145, %v5668
      %v5670 = vand.u32 %v5669, 4294901760
      %5671 = vmatprep.subr.mxu0 %v5670
      %v5672 = vand.u32 %v5153, 4294901760
      %v5673 = vsub.f32 %v5153, %v5672
      %v5674 = vand.u32 %v5673, 4294901760
      %5675 = vmatpush1.msra.mxu0 %v5674
      %5676 = vmatprep.subr.mxu0 0.0
      %5677 = vmatpush1.msra.mxu0 0.0
      %5678 = vmatprep.subr.mxu0 0.0
      %5679 = vmatpush1.msra.mxu0 0.0
      %5680 = vmatprep.subr.mxu0 0.0
      %5681 = vmatpush1.msra.mxu0 0.0
      %5682 = vmatprep.subr.mxu0 0.0
      %5683 = vmatpush1.msra.mxu0 0.0
      %5684 = vmatprep.subr.mxu0 0.0
      %5685 = vmatpush1.msra.mxu0 0.0
      %5686 = vmatprep.subr.mxu0 0.0
      %5687 = vmatpush1.msra.mxu0 0.0
      %5688 = vmatprep.subr.mxu0 0.0
      %5689 = vmatpush1.msra.mxu0 0.0
      %5690 = vmatprep.subr.mxu0 0.0
      %5691 = vmatpush1.msra.mxu0 0.0
      %5692 = vmatprep.subr.mxu0 0.0
      %5693 = vmatpush1.msra.mxu0 0.0
      %5694 = vmatprep.subr.mxu0 0.0
      %5695 = vmatpush1.msra.mxu0 0.0
      %5696 = vmatprep.subr.mxu0 0.0
      %5697 = vmatpush1.msra.mxu0 0.0
      %5698 = vmatprep.subr.mxu0 0.0
      %5699 = vmatpush1.msra.mxu0 0.0
      %5700 = vmatprep.subr.mxu0 0.0
      %5701 = vmatpush1.msra.mxu0 0.0
      %5702 = vmatprep.subr.mxu0 0.0
      %5703 = vmatpush1.msra.mxu0 0.0
      %5704 = vmatprep.subr.mxu0 0.0
      %5705 = vmatpush1.msra.mxu0 0.0
      %5706 = vmatprep.subr.mxu0 0.0
      %5707 = vmatpush1.msra.mxu0 0.0
      %5708 = vmatprep.subr.mxu0 0.0
      %5709 = vmatpush1.msra.mxu0 0.0
      %5710 = vmatprep.subr.mxu0 0.0
      %5711 = vmatpush1.msra.mxu0 0.0
      %5712 = vmatprep.subr.mxu0 0.0
      %5713 = vmatpush1.msra.mxu0 0.0
      %5714 = vmatprep.subr.mxu0 0.0
      %5715 = vmatpush1.msra.mxu0 0.0
      %5716 = vmatprep.subr.mxu0 0.0
      %5717 = vmatpush1.msra.mxu0 0.0
      %5718 = vmatprep.subr.mxu0 0.0
      %5719 = vmatpush1.msra.mxu0 0.0
      %5720 = vmatprep.subr.mxu0 0.0
      %5721 = vmatpush1.msra.mxu0 0.0
      %5722 = vmatprep.subr.mxu0 0.0
      %5723 = vmatpush1.msra.mxu0 0.0
      %5724 = vmatprep.mubr.f32.mxu0 0.0
      %v5725 = vand.u32 %v5171, 4294901760
      %5726 = vmatmul.mubr.f32.gmra.mrb[0].mxu0 %v5725
      %v5727 = vpop.f32.mrb[0].mxu0
      %v5728 = vadd.f32 %v5608, %v5727
      %v5729 = vpop.f32.mrb[0].mxu0
      %v5730 = vadd.f32 %v5610, %v5729
      %5731 = vdwg.mxu0
      %v5732 = vand.u32 %v5117, 4294901760
      %5733 = vmatprep.subr.mxu0 %v5732
      %v5734 = vand.u32 %v5146, 4294901760
      %5735 = vmatpush1.msra.mxu0 %v5734
      %v5736 = vand.u32 %v5121, 4294901760
      %5737 = vmatprep.subr.mxu0 %v5736
      %v5738 = vand.u32 %v5147, 4294901760
      %5739 = vmatpush1.msra.mxu0 %v5738
      %v5740 = vand.u32 %v5125, 4294901760
      %5741 = vmatprep.subr.mxu0 %v5740
      %v5742 = vand.u32 %v5148, 4294901760
      %5743 = vmatpush1.msra.mxu0 %v5742
      %v5744 = vand.u32 %v5129, 4294901760
      %5745 = vmatprep.subr.mxu0 %v5744
      %v5746 = vand.u32 %v5149, 4294901760
      %5747 = vmatpush1.msra.mxu0 %v5746
      %v5748 = vand.u32 %v5133, 4294901760
      %5749 = vmatprep.subr.mxu0 %v5748
      %v5750 = vand.u32 %v5150, 4294901760
      %5751 = vmatpush1.msra.mxu0 %v5750
      %v5752 = vand.u32 %v5137, 4294901760
      %5753 = vmatprep.subr.mxu0 %v5752
      %v5754 = vand.u32 %v5151, 4294901760
      %5755 = vmatpush1.msra.mxu0 %v5754
      %v5756 = vand.u32 %v5141, 4294901760
      %5757 = vmatprep.subr.mxu0 %v5756
      %v5758 = vand.u32 %v5152, 4294901760
      %5759 = vmatpush1.msra.mxu0 %v5758
      %v5760 = vand.u32 %v5145, 4294901760
      %5761 = vmatprep.subr.mxu0 %v5760
      %v5762 = vand.u32 %v5153, 4294901760
      %5763 = vmatpush1.msra.mxu0 %v5762
      %5764 = vmatprep.subr.mxu0 0.0
      %5765 = vmatpush1.msra.mxu0 0.0
      %5766 = vmatprep.subr.mxu0 0.0
      %5767 = vmatpush1.msra.mxu0 0.0
      %5768 = vmatprep.subr.mxu0 0.0
      %5769 = vmatpush1.msra.mxu0 0.0
      %5770 = vmatprep.subr.mxu0 0.0
      %5771 = vmatpush1.msra.mxu0 0.0
      %5772 = vmatprep.subr.mxu0 0.0
      %5773 = vmatpush1.msra.mxu0 0.0
      %5774 = vmatprep.subr.mxu0 0.0
      %5775 = vmatpush1.msra.mxu0 0.0
      %5776 = vmatprep.subr.mxu0 0.0
      %5777 = vmatpush1.msra.mxu0 0.0
      %5778 = vmatprep.subr.mxu0 0.0
      %5779 = vmatpush1.msra.mxu0 0.0
      %5780 = vmatprep.subr.mxu0 0.0
      %5781 = vmatpush1.msra.mxu0 0.0
      %5782 = vmatprep.subr.mxu0 0.0
      %5783 = vmatpush1.msra.mxu0 0.0
      %5784 = vmatprep.subr.mxu0 0.0
      %5785 = vmatpush1.msra.mxu0 0.0
      %5786 = vmatprep.subr.mxu0 0.0
      %5787 = vmatpush1.msra.mxu0 0.0
      %5788 = vmatprep.subr.mxu0 0.0
      %5789 = vmatpush1.msra.mxu0 0.0
      %5790 = vmatprep.subr.mxu0 0.0
      %5791 = vmatpush1.msra.mxu0 0.0
      %5792 = vmatprep.subr.mxu0 0.0
      %5793 = vmatpush1.msra.mxu0 0.0
      %5794 = vmatprep.subr.mxu0 0.0
      %5795 = vmatpush1.msra.mxu0 0.0
      %5796 = vmatprep.subr.mxu0 0.0
      %5797 = vmatpush1.msra.mxu0 0.0
      %5798 = vmatprep.subr.mxu0 0.0
      %5799 = vmatpush1.msra.mxu0 0.0
      %5800 = vmatprep.subr.mxu0 0.0
      %5801 = vmatpush1.msra.mxu0 0.0
      %5802 = vmatprep.subr.mxu0 0.0
      %5803 = vmatpush1.msra.mxu0 0.0
      %5804 = vmatprep.subr.mxu0 0.0
      %5805 = vmatpush1.msra.mxu0 0.0
      %5806 = vmatprep.subr.mxu0 0.0
      %5807 = vmatpush1.msra.mxu0 0.0
      %5808 = vmatprep.subr.mxu0 0.0
      %5809 = vmatpush1.msra.mxu0 0.0
      %5810 = vmatprep.subr.mxu0 0.0
      %5811 = vmatpush1.msra.mxu0 0.0
      %5812 = vmatprep.mubr.f32.mxu0 0.0
      %v5813 = vand.u32 %v5171, 4294901760
      %5814 = vmatmul.mubr.f32.gmra.mrb[0].mxu0 %v5813
      %v5815 = vpop.f32.mrb[0].mxu0
      %v5816 = vadd.f32 %v5728, %v5815
      %v5817 = vpop.f32.mrb[0].mxu0
      %v5818 = vadd.f32 %v5730, %v5817
      %5819 = vdwg.mxu0
      %v5820 = vadd.f32 %v5110, %v5816
      %v5821 = vadd.f32 %v5111, %v5818
      %s5822 = scalar_lea.vmem %s3, 48
      %v5823 = vld [vmem:[%s5822] sm:$0xff]
      %5824 = vrot.lane.b32.xlu0 %v1591, 92
      %v5825 = vpop.permute.xlu0 %5824
      %5826 = vrot.lane.b32.xlu0 %v1592, 92
      %v5827 = vpop.permute.xlu0 %5826
      %5828 = vrot.lane.b32.xlu0 %v1593, 92
      %v5829 = vpop.permute.xlu0 %5828
      %5830 = vrot.lane.b32.xlu0 %v1594, 92
      %v5831 = vpop.permute.xlu0 %5830
      %5832 = vrot.lane.b32.xlu0 %v1595, 92
      %v5833 = vpop.permute.xlu0 %5832
      %5834 = vrot.lane.b32.xlu0 %v1596, 92
      %v5835 = vpop.permute.xlu0 %5834
      %5836 = vrot.lane.b32.xlu0 %v1597, 92
      %v5837 = vpop.permute.xlu0 %5836
      %5838 = vrot.lane.b32.xlu0 %v1598, 92
      %v5839 = vpop.permute.xlu0 %5838
      %5840 = vrot.lane.b32.xlu0 %v1599, 92
      %v5841 = vpop.permute.xlu0 %5840
      %5842 = vrot.lane.b32.xlu0 %v1600, 92
      %v5843 = vpop.permute.xlu0 %5842
      %5844 = vrot.lane.b32.xlu0 %v1601, 92
      %v5845 = vpop.permute.xlu0 %5844
      %5846 = vrot.lane.b32.xlu0 %v1602, 92
      %v5847 = vpop.permute.xlu0 %5846
      %5848 = vrot.lane.b32.xlu0 %v1603, 92
      %v5849 = vpop.permute.xlu0 %5848
      %5850 = vrot.lane.b32.xlu0 %v1604, 92
      %v5851 = vpop.permute.xlu0 %5850
      %5852 = vrot.lane.b32.xlu0 %v1605, 92
      %v5853 = vpop.permute.xlu0 %5852
      %5854 = vrot.lane.b32.xlu0 %v1606, 92
      %v5855 = vpop.permute.xlu0 %5854
      %v5856 = vsel %vm361, %v5825, %v5827
      %v5857 = vsel %vm361, %v5829, %v5831
      %v5858 = vsel %vm361, %v5833, %v5835
      %v5859 = vsel %vm361, %v5837, %v5839
      %v5860 = vsel %vm361, %v5841, %v5843
      %v5861 = vsel %vm361, %v5845, %v5847
      %v5862 = vsel %vm361, %v5849, %v5851
      %v5863 = vsel %vm361, %v5853, %v5855
      %v5881 = vsel %vm1681, %v5823, 0
      %v5883 = vand.u32 %v5827, 4294901760
      %5884 = vmatprep.subr.mxu0 %v5883
      %v5885 = vand.u32 %v5856, 4294901760
      %5886 = vmatpush1.msra.mxu0 %v5885
      %v5887 = vand.u32 %v5831, 4294901760
      %5888 = vmatprep.subr.mxu0 %v5887
      %v5889 = vand.u32 %v5857, 4294901760
      %5890 = vmatpush1.msra.mxu0 %v5889
      %v5891 = vand.u32 %v5835, 4294901760
      %5892 = vmatprep.subr.mxu0 %v5891
      %v5893 = vand.u32 %v5858, 4294901760
      %5894 = vmatpush1.msra.mxu0 %v5893
      %v5895 = vand.u32 %v5839, 4294901760
      %5896 = vmatprep.subr.mxu0 %v5895
      %v5897 = vand.u32 %v5859, 4294901760
      %5898 = vmatpush1.msra.mxu0 %v5897
      %v5899 = vand.u32 %v5843, 4294901760
      %5900 = vmatprep.subr.mxu0 %v5899
      %v5901 = vand.u32 %v5860, 4294901760
      %5902 = vmatpush1.msra.mxu0 %v5901
      %v5903 = vand.u32 %v5847, 4294901760
      %5904 = vmatprep.subr.mxu0 %v5903
      %v5905 = vand.u32 %v5861, 4294901760
      %5906 = vmatpush1.msra.mxu0 %v5905
      %v5907 = vand.u32 %v5851, 4294901760
      %5908 = vmatprep.subr.mxu0 %v5907
      %v5909 = vand.u32 %v5862, 4294901760
      %5910 = vmatpush1.msra.mxu0 %v5909
      %v5911 = vand.u32 %v5855, 4294901760
      %5912 = vmatprep.subr.mxu0 %v5911
      %v5913 = vand.u32 %v5863, 4294901760
      %5914 = vmatpush1.msra.mxu0 %v5913
      %5915 = vmatprep.subr.mxu0 0.0
      %5916 = vmatpush1.msra.mxu0 0.0
      %5917 = vmatprep.subr.mxu0 0.0
      %5918 = vmatpush1.msra.mxu0 0.0
      %5919 = vmatprep.subr.mxu0 0.0
      %5920 = vmatpush1.msra.mxu0 0.0
      %5921 = vmatprep.subr.mxu0 0.0
      %5922 = vmatpush1.msra.mxu0 0.0
      %5923 = vmatprep.subr.mxu0 0.0
      %5924 = vmatpush1.msra.mxu0 0.0
      %5925 = vmatprep.subr.mxu0 0.0
      %5926 = vmatpush1.msra.mxu0 0.0
      %5927 = vmatprep.subr.mxu0 0.0
      %5928 = vmatpush1.msra.mxu0 0.0
      %5929 = vmatprep.subr.mxu0 0.0
      %5930 = vmatpush1.msra.mxu0 0.0
      %5931 = vmatprep.subr.mxu0 0.0
      %5932 = vmatpush1.msra.mxu0 0.0
      %5933 = vmatprep.subr.mxu0 0.0
      %5934 = vmatpush1.msra.mxu0 0.0
      %5935 = vmatprep.subr.mxu0 0.0
      %5936 = vmatpush1.msra.mxu0 0.0
      %5937 = vmatprep.subr.mxu0 0.0
      %5938 = vmatpush1.msra.mxu0 0.0
      %5939 = vmatprep.subr.mxu0 0.0
      %5940 = vmatpush1.msra.mxu0 0.0
      %5941 = vmatprep.subr.mxu0 0.0
      %5942 = vmatpush1.msra.mxu0 0.0
      %5943 = vmatprep.subr.mxu0 0.0
      %5944 = vmatpush1.msra.mxu0 0.0
      %5945 = vmatprep.subr.mxu0 0.0
      %5946 = vmatpush1.msra.mxu0 0.0
      %5947 = vmatprep.subr.mxu0 0.0
      %5948 = vmatpush1.msra.mxu0 0.0
      %5949 = vmatprep.subr.mxu0 0.0
      %5950 = vmatpush1.msra.mxu0 0.0
      %5951 = vmatprep.subr.mxu0 0.0
      %5952 = vmatpush1.msra.mxu0 0.0
      %5953 = vmatprep.subr.mxu0 0.0
      %5954 = vmatpush1.msra.mxu0 0.0
      %5955 = vmatprep.subr.mxu0 0.0
      %5956 = vmatpush1.msra.mxu0 0.0
      %5957 = vmatprep.subr.mxu0 0.0
      %5958 = vmatpush1.msra.mxu0 0.0
      %5959 = vmatprep.subr.mxu0 0.0
      %5960 = vmatpush1.msra.mxu0 0.0
      %5961 = vmatprep.subr.mxu0 0.0
      %5962 = vmatpush1.msra.mxu0 0.0
      %5963 = vmatprep.mubr.f32.mxu0 0.0
      %v5964 = vand.u32 %v5881, 4294901760
      %v5965 = vsub.f32 %v5881, %v5964
      %v5966 = vand.u32 %v5965, 4294901760
      %v5967 = vsub.f32 %v5965, %v5966
      %v5968 = vand.u32 %v5967, 4294901760
      %5969 = vmatmul.mubr.f32.gmra.mrb[0].mxu0 %v5968
      %v5970 = vpop.f32.mrb[0].mxu0
      %v5971 = vadd.f32 0.0, %v5970
      %v5972 = vpop.f32.mrb[0].mxu0
      %v5973 = vadd.f32 0.0, %v5972
      %5974 = vdwg.mxu0
      %v5975 = vand.u32 %v5827, 4294901760
      %v5976 = vsub.f32 %v5827, %v5975
      %v5977 = vand.u32 %v5976, 4294901760
      %v5978 = vsub.f32 %v5976, %v5977
      %v5979 = vand.u32 %v5978, 4294901760
      %5980 = vmatprep.subr.mxu0 %v5979
      %v5981 = vand.u32 %v5856, 4294901760
      %v5982 = vsub.f32 %v5856, %v5981
      %v5983 = vand.u32 %v5982, 4294901760
      %v5984 = vsub.f32 %v5982, %v5983
      %v5985 = vand.u32 %v5984, 4294901760
      %5986 = vmatpush1.msra.mxu0 %v5985
      %v5987 = vand.u32 %v5831, 4294901760
      %v5988 = vsub.f32 %v5831, %v5987
      %v5989 = vand.u32 %v5988, 4294901760
      %v5990 = vsub.f32 %v5988, %v5989
      %v5991 = vand.u32 %v5990, 4294901760
      %5992 = vmatprep.subr.mxu0 %v5991
      %v5993 = vand.u32 %v5857, 4294901760
      %v5994 = vsub.f32 %v5857, %v5993
      %v5995 = vand.u32 %v5994, 4294901760
      %v5996 = vsub.f32 %v5994, %v5995
      %v5997 = vand.u32 %v5996, 4294901760
      %5998 = vmatpush1.msra.mxu0 %v5997
      %v5999 = vand.u32 %v5835, 4294901760
      %v6000 = vsub.f32 %v5835, %v5999
      %v6001 = vand.u32 %v6000, 4294901760
      %v6002 = vsub.f32 %v6000, %v6001
      %v6003 = vand.u32 %v6002, 4294901760
      %6004 = vmatprep.subr.mxu0 %v6003
      %v6005 = vand.u32 %v5858, 4294901760
      %v6006 = vsub.f32 %v5858, %v6005
      %v6007 = vand.u32 %v6006, 4294901760
      %v6008 = vsub.f32 %v6006, %v6007
      %v6009 = vand.u32 %v6008, 4294901760
      %6010 = vmatpush1.msra.mxu0 %v6009
      %v6011 = vand.u32 %v5839, 4294901760
      %v6012 = vsub.f32 %v5839, %v6011
      %v6013 = vand.u32 %v6012, 4294901760
      %v6014 = vsub.f32 %v6012, %v6013
      %v6015 = vand.u32 %v6014, 4294901760
      %6016 = vmatprep.subr.mxu0 %v6015
      %v6017 = vand.u32 %v5859, 4294901760
      %v6018 = vsub.f32 %v5859, %v6017
      %v6019 = vand.u32 %v6018, 4294901760
      %v6020 = vsub.f32 %v6018, %v6019
      %v6021 = vand.u32 %v6020, 4294901760
      %6022 = vmatpush1.msra.mxu0 %v6021
      %v6023 = vand.u32 %v5843, 4294901760
      %v6024 = vsub.f32 %v5843, %v6023
      %v6025 = vand.u32 %v6024, 4294901760
      %v6026 = vsub.f32 %v6024, %v6025
      %v6027 = vand.u32 %v6026, 4294901760
      %6028 = vmatprep.subr.mxu0 %v6027
      %v6029 = vand.u32 %v5860, 4294901760
      %v6030 = vsub.f32 %v5860, %v6029
      %v6031 = vand.u32 %v6030, 4294901760
      %v6032 = vsub.f32 %v6030, %v6031
      %v6033 = vand.u32 %v6032, 4294901760
      %6034 = vmatpush1.msra.mxu0 %v6033
      %v6035 = vand.u32 %v5847, 4294901760
      %v6036 = vsub.f32 %v5847, %v6035
      %v6037 = vand.u32 %v6036, 4294901760
      %v6038 = vsub.f32 %v6036, %v6037
      %v6039 = vand.u32 %v6038, 4294901760
      %6040 = vmatprep.subr.mxu0 %v6039
      %v6041 = vand.u32 %v5861, 4294901760
      %v6042 = vsub.f32 %v5861, %v6041
      %v6043 = vand.u32 %v6042, 4294901760
      %v6044 = vsub.f32 %v6042, %v6043
      %v6045 = vand.u32 %v6044, 4294901760
      %6046 = vmatpush1.msra.mxu0 %v6045
      %v6047 = vand.u32 %v5851, 4294901760
      %v6048 = vsub.f32 %v5851, %v6047
      %v6049 = vand.u32 %v6048, 4294901760
      %v6050 = vsub.f32 %v6048, %v6049
      %v6051 = vand.u32 %v6050, 4294901760
      %6052 = vmatprep.subr.mxu0 %v6051
      %v6053 = vand.u32 %v5862, 4294901760
      %v6054 = vsub.f32 %v5862, %v6053
      %v6055 = vand.u32 %v6054, 4294901760
      %v6056 = vsub.f32 %v6054, %v6055
      %v6057 = vand.u32 %v6056, 4294901760
      %6058 = vmatpush1.msra.mxu0 %v6057
      %v6059 = vand.u32 %v5855, 4294901760
      %v6060 = vsub.f32 %v5855, %v6059
      %v6061 = vand.u32 %v6060, 4294901760
      %v6062 = vsub.f32 %v6060, %v6061
      %v6063 = vand.u32 %v6062, 4294901760
      %6064 = vmatprep.subr.mxu0 %v6063
      %v6065 = vand.u32 %v5863, 4294901760
      %v6066 = vsub.f32 %v5863, %v6065
      %v6067 = vand.u32 %v6066, 4294901760
      %v6068 = vsub.f32 %v6066, %v6067
      %v6069 = vand.u32 %v6068, 4294901760
      %6070 = vmatpush1.msra.mxu0 %v6069
      %6071 = vmatprep.subr.mxu0 0.0
      %6072 = vmatpush1.msra.mxu0 0.0
      %6073 = vmatprep.subr.mxu0 0.0
      %6074 = vmatpush1.msra.mxu0 0.0
      %6075 = vmatprep.subr.mxu0 0.0
      %6076 = vmatpush1.msra.mxu0 0.0
      %6077 = vmatprep.subr.mxu0 0.0
      %6078 = vmatpush1.msra.mxu0 0.0
      %6079 = vmatprep.subr.mxu0 0.0
      %6080 = vmatpush1.msra.mxu0 0.0
      %6081 = vmatprep.subr.mxu0 0.0
      %6082 = vmatpush1.msra.mxu0 0.0
      %6083 = vmatprep.subr.mxu0 0.0
      %6084 = vmatpush1.msra.mxu0 0.0
      %6085 = vmatprep.subr.mxu0 0.0
      %6086 = vmatpush1.msra.mxu0 0.0
      %6087 = vmatprep.subr.mxu0 0.0
      %6088 = vmatpush1.msra.mxu0 0.0
      %6089 = vmatprep.subr.mxu0 0.0
      %6090 = vmatpush1.msra.mxu0 0.0
      %6091 = vmatprep.subr.mxu0 0.0
      %6092 = vmatpush1.msra.mxu0 0.0
      %6093 = vmatprep.subr.mxu0 0.0
      %6094 = vmatpush1.msra.mxu0 0.0
      %6095 = vmatprep.subr.mxu0 0.0
      %6096 = vmatpush1.msra.mxu0 0.0
      %6097 = vmatprep.subr.mxu0 0.0
      %6098 = vmatpush1.msra.mxu0 0.0
      %6099 = vmatprep.subr.mxu0 0.0
      %6100 = vmatpush1.msra.mxu0 0.0
      %6101 = vmatprep.subr.mxu0 0.0
      %6102 = vmatpush1.msra.mxu0 0.0
      %6103 = vmatprep.subr.mxu0 0.0
      %6104 = vmatpush1.msra.mxu0 0.0
      %6105 = vmatprep.subr.mxu0 0.0
      %6106 = vmatpush1.msra.mxu0 0.0
      %6107 = vmatprep.subr.mxu0 0.0
      %6108 = vmatpush1.msra.mxu0 0.0
      %6109 = vmatprep.subr.mxu0 0.0
      %6110 = vmatpush1.msra.mxu0 0.0
      %6111 = vmatprep.subr.mxu0 0.0
      %6112 = vmatpush1.msra.mxu0 0.0
      %6113 = vmatprep.subr.mxu0 0.0
      %6114 = vmatpush1.msra.mxu0 0.0
      %6115 = vmatprep.subr.mxu0 0.0
      %6116 = vmatpush1.msra.mxu0 0.0
      %6117 = vmatprep.subr.mxu0 0.0
      %6118 = vmatpush1.msra.mxu0 0.0
      %6119 = vmatprep.mubr.f32.mxu0 0.0
      %v6120 = vand.u32 %v5881, 4294901760
      %6121 = vmatmul.mubr.f32.gmra.mrb[0].mxu0 %v6120
      %v6122 = vpop.f32.mrb[0].mxu0
      %v6123 = vadd.f32 %v5971, %v6122
      %v6124 = vpop.f32.mrb[0].mxu0
      %v6125 = vadd.f32 %v5973, %v6124
      %6126 = vdwg.mxu0
      %v6127 = vand.u32 %v5827, 4294901760
      %v6128 = vsub.f32 %v5827, %v6127
      %6129 = vmatprep.subr.mxu0 %v6128
      %v6130 = vand.u32 %v5856, 4294901760
      %v6131 = vsub.f32 %v5856, %v6130
      %6132 = vmatpush1.msra.mxu0 %v6131
      %v6133 = vand.u32 %v5831, 4294901760
      %v6134 = vsub.f32 %v5831, %v6133
      %6135 = vmatprep.subr.mxu0 %v6134
      %v6136 = vand.u32 %v5857, 4294901760
      %v6137 = vsub.f32 %v5857, %v6136
      %6138 = vmatpush1.msra.mxu0 %v6137
      %v6139 = vand.u32 %v5835, 4294901760
      %v6140 = vsub.f32 %v5835, %v6139
      %6141 = vmatprep.subr.mxu0 %v6140
      %v6142 = vand.u32 %v5858, 4294901760
      %v6143 = vsub.f32 %v5858, %v6142
      %6144 = vmatpush1.msra.mxu0 %v6143
      %v6145 = vand.u32 %v5839, 4294901760
      %v6146 = vsub.f32 %v5839, %v6145
      %6147 = vmatprep.subr.mxu0 %v6146
      %v6148 = vand.u32 %v5859, 4294901760
      %v6149 = vsub.f32 %v5859, %v6148
      %6150 = vmatpush1.msra.mxu0 %v6149
      %v6151 = vand.u32 %v5843, 4294901760
      %v6152 = vsub.f32 %v5843, %v6151
      %6153 = vmatprep.subr.mxu0 %v6152
      %v6154 = vand.u32 %v5860, 4294901760
      %v6155 = vsub.f32 %v5860, %v6154
      %6156 = vmatpush1.msra.mxu0 %v6155
      %v6157 = vand.u32 %v5847, 4294901760
      %v6158 = vsub.f32 %v5847, %v6157
      %6159 = vmatprep.subr.mxu0 %v6158
      %v6160 = vand.u32 %v5861, 4294901760
      %v6161 = vsub.f32 %v5861, %v6160
      %6162 = vmatpush1.msra.mxu0 %v6161
      %v6163 = vand.u32 %v5851, 4294901760
      %v6164 = vsub.f32 %v5851, %v6163
      %6165 = vmatprep.subr.mxu0 %v6164
      %v6166 = vand.u32 %v5862, 4294901760
      %v6167 = vsub.f32 %v5862, %v6166
      %6168 = vmatpush1.msra.mxu0 %v6167
      %v6169 = vand.u32 %v5855, 4294901760
      %v6170 = vsub.f32 %v5855, %v6169
      %6171 = vmatprep.subr.mxu0 %v6170
      %v6172 = vand.u32 %v5863, 4294901760
      %v6173 = vsub.f32 %v5863, %v6172
      %6174 = vmatpush1.msra.mxu0 %v6173
      %6175 = vmatprep.subr.mxu0 0.0
      %6176 = vmatpush1.msra.mxu0 0.0
      %6177 = vmatprep.subr.mxu0 0.0
      %6178 = vmatpush1.msra.mxu0 0.0
      %6179 = vmatprep.subr.mxu0 0.0
      %6180 = vmatpush1.msra.mxu0 0.0
      %6181 = vmatprep.subr.mxu0 0.0
      %6182 = vmatpush1.msra.mxu0 0.0
      %6183 = vmatprep.subr.mxu0 0.0
      %6184 = vmatpush1.msra.mxu0 0.0
      %6185 = vmatprep.subr.mxu0 0.0
      %6186 = vmatpush1.msra.mxu0 0.0
      %6187 = vmatprep.subr.mxu0 0.0
      %6188 = vmatpush1.msra.mxu0 0.0
      %6189 = vmatprep.subr.mxu0 0.0
      %6190 = vmatpush1.msra.mxu0 0.0
      %6191 = vmatprep.subr.mxu0 0.0
      %6192 = vmatpush1.msra.mxu0 0.0
      %6193 = vmatprep.subr.mxu0 0.0
      %6194 = vmatpush1.msra.mxu0 0.0
      %6195 = vmatprep.subr.mxu0 0.0
      %6196 = vmatpush1.msra.mxu0 0.0
      %6197 = vmatprep.subr.mxu0 0.0
      %6198 = vmatpush1.msra.mxu0 0.0
      %6199 = vmatprep.subr.mxu0 0.0
      %6200 = vmatpush1.msra.mxu0 0.0
      %6201 = vmatprep.subr.mxu0 0.0
      %6202 = vmatpush1.msra.mxu0 0.0
      %6203 = vmatprep.subr.mxu0 0.0
      %6204 = vmatpush1.msra.mxu0 0.0
      %6205 = vmatprep.subr.mxu0 0.0
      %6206 = vmatpush1.msra.mxu0 0.0
      %6207 = vmatprep.subr.mxu0 0.0
      %6208 = vmatpush1.msra.mxu0 0.0
      %6209 = vmatprep.subr.mxu0 0.0
      %6210 = vmatpush1.msra.mxu0 0.0
      %6211 = vmatprep.subr.mxu0 0.0
      %6212 = vmatpush1.msra.mxu0 0.0
      %6213 = vmatprep.subr.mxu0 0.0
      %6214 = vmatpush1.msra.mxu0 0.0
      %6215 = vmatprep.subr.mxu0 0.0
      %6216 = vmatpush1.msra.mxu0 0.0
      %6217 = vmatprep.subr.mxu0 0.0
      %6218 = vmatpush1.msra.mxu0 0.0
      %6219 = vmatprep.subr.mxu0 0.0
      %6220 = vmatpush1.msra.mxu0 0.0
      %6221 = vmatprep.subr.mxu0 0.0
      %6222 = vmatpush1.msra.mxu0 0.0
      %6223 = vmatprep.mubr.f32.mxu0 0.0
      %v6224 = vand.u32 %v5881, 4294901760
      %v6225 = vsub.f32 %v5881, %v6224
      %6226 = vmatmul.mubr.f32.gmra.mrb[0].mxu0 %v6225
      %v6227 = vpop.f32.mrb[0].mxu0
      %v6228 = vadd.f32 %v6123, %v6227
      %v6229 = vpop.f32.mrb[0].mxu0
      %v6230 = vadd.f32 %v6125, %v6229
      %6231 = vdwg.mxu0
      %v6232 = vand.u32 %v5827, 4294901760
      %6233 = vmatprep.subr.mxu0 %v6232
      %v6234 = vand.u32 %v5856, 4294901760
      %6235 = vmatpush1.msra.mxu0 %v6234
      %v6236 = vand.u32 %v5831, 4294901760
      %6237 = vmatprep.subr.mxu0 %v6236
      %v6238 = vand.u32 %v5857, 4294901760
      %6239 = vmatpush1.msra.mxu0 %v6238
      %v6240 = vand.u32 %v5835, 4294901760
      %6241 = vmatprep.subr.mxu0 %v6240
      %v6242 = vand.u32 %v5858, 4294901760
      %6243 = vmatpush1.msra.mxu0 %v6242
      %v6244 = vand.u32 %v5839, 4294901760
      %6245 = vmatprep.subr.mxu0 %v6244
      %v6246 = vand.u32 %v5859, 4294901760
      %6247 = vmatpush1.msra.mxu0 %v6246
      %v6248 = vand.u32 %v5843, 4294901760
      %6249 = vmatprep.subr.mxu0 %v6248
      %v6250 = vand.u32 %v5860, 4294901760
      %6251 = vmatpush1.msra.mxu0 %v6250
      %v6252 = vand.u32 %v5847, 4294901760
      %6253 = vmatprep.subr.mxu0 %v6252
      %v6254 = vand.u32 %v5861, 4294901760
      %6255 = vmatpush1.msra.mxu0 %v6254
      %v6256 = vand.u32 %v5851, 4294901760
      %6257 = vmatprep.subr.mxu0 %v6256
      %v6258 = vand.u32 %v5862, 4294901760
      %6259 = vmatpush1.msra.mxu0 %v6258
      %v6260 = vand.u32 %v5855, 4294901760
      %6261 = vmatprep.subr.mxu0 %v6260
      %v6262 = vand.u32 %v5863, 4294901760
      %6263 = vmatpush1.msra.mxu0 %v6262
      %6264 = vmatprep.subr.mxu0 0.0
      %6265 = vmatpush1.msra.mxu0 0.0
      %6266 = vmatprep.subr.mxu0 0.0
      %6267 = vmatpush1.msra.mxu0 0.0
      %6268 = vmatprep.subr.mxu0 0.0
      %6269 = vmatpush1.msra.mxu0 0.0
      %6270 = vmatprep.subr.mxu0 0.0
      %6271 = vmatpush1.msra.mxu0 0.0
      %6272 = vmatprep.subr.mxu0 0.0
      %6273 = vmatpush1.msra.mxu0 0.0
      %6274 = vmatprep.subr.mxu0 0.0
      %6275 = vmatpush1.msra.mxu0 0.0
      %6276 = vmatprep.subr.mxu0 0.0
      %6277 = vmatpush1.msra.mxu0 0.0
      %6278 = vmatprep.subr.mxu0 0.0
      %6279 = vmatpush1.msra.mxu0 0.0
      %6280 = vmatprep.subr.mxu0 0.0
      %6281 = vmatpush1.msra.mxu0 0.0
      %6282 = vmatprep.subr.mxu0 0.0
      %6283 = vmatpush1.msra.mxu0 0.0
      %6284 = vmatprep.subr.mxu0 0.0
      %6285 = vmatpush1.msra.mxu0 0.0
      %6286 = vmatprep.subr.mxu0 0.0
      %6287 = vmatpush1.msra.mxu0 0.0
      %6288 = vmatprep.subr.mxu0 0.0
      %6289 = vmatpush1.msra.mxu0 0.0
      %6290 = vmatprep.subr.mxu0 0.0
      %6291 = vmatpush1.msra.mxu0 0.0
      %6292 = vmatprep.subr.mxu0 0.0
      %6293 = vmatpush1.msra.mxu0 0.0
      %6294 = vmatprep.subr.mxu0 0.0
      %6295 = vmatpush1.msra.mxu0 0.0
      %6296 = vmatprep.subr.mxu0 0.0
      %6297 = vmatpush1.msra.mxu0 0.0
      %6298 = vmatprep.subr.mxu0 0.0
      %6299 = vmatpush1.msra.mxu0 0.0
      %6300 = vmatprep.subr.mxu0 0.0
      %6301 = vmatpush1.msra.mxu0 0.0
      %6302 = vmatprep.subr.mxu0 0.0
      %6303 = vmatpush1.msra.mxu0 0.0
      %6304 = vmatprep.subr.mxu0 0.0
      %6305 = vmatpush1.msra.mxu0 0.0
      %6306 = vmatprep.subr.mxu0 0.0
      %6307 = vmatpush1.msra.mxu0 0.0
      %6308 = vmatprep.subr.mxu0 0.0
      %6309 = vmatpush1.msra.mxu0 0.0
      %6310 = vmatprep.subr.mxu0 0.0
      %6311 = vmatpush1.msra.mxu0 0.0
      %6312 = vmatprep.mubr.f32.mxu0 0.0
      %v6313 = vand.u32 %v5881, 4294901760
      %v6314 = vsub.f32 %v5881, %v6313
      %v6315 = vand.u32 %v6314, 4294901760
      %6316 = vmatmul.mubr.f32.gmra.mrb[0].mxu0 %v6315
      %v6317 = vpop.f32.mrb[0].mxu0
      %v6318 = vadd.f32 %v6228, %v6317
      %v6319 = vpop.f32.mrb[0].mxu0
      %v6320 = vadd.f32 %v6230, %v6319
      %6321 = vdwg.mxu0
      %v6322 = vand.u32 %v5827, 4294901760
      %v6323 = vsub.f32 %v5827, %v6322
      %v6324 = vand.u32 %v6323, 4294901760
      %6325 = vmatprep.subr.mxu0 %v6324
      %v6326 = vand.u32 %v5856, 4294901760
      %v6327 = vsub.f32 %v5856, %v6326
      %v6328 = vand.u32 %v6327, 4294901760
      %6329 = vmatpush1.msra.mxu0 %v6328
      %v6330 = vand.u32 %v5831, 4294901760
      %v6331 = vsub.f32 %v5831, %v6330
      %v6332 = vand.u32 %v6331, 4294901760
      %6333 = vmatprep.subr.mxu0 %v6332
      %v6334 = vand.u32 %v5857, 4294901760
      %v6335 = vsub.f32 %v5857, %v6334
      %v6336 = vand.u32 %v6335, 4294901760
      %6337 = vmatpush1.msra.mxu0 %v6336
      %v6338 = vand.u32 %v5835, 4294901760
      %v6339 = vsub.f32 %v5835, %v6338
      %v6340 = vand.u32 %v6339, 4294901760
      %6341 = vmatprep.subr.mxu0 %v6340
      %v6342 = vand.u32 %v5858, 4294901760
      %v6343 = vsub.f32 %v5858, %v6342
      %v6344 = vand.u32 %v6343, 4294901760
      %6345 = vmatpush1.msra.mxu0 %v6344
      %v6346 = vand.u32 %v5839, 4294901760
      %v6347 = vsub.f32 %v5839, %v6346
      %v6348 = vand.u32 %v6347, 4294901760
      %6349 = vmatprep.subr.mxu0 %v6348
      %v6350 = vand.u32 %v5859, 4294901760
      %v6351 = vsub.f32 %v5859, %v6350
      %v6352 = vand.u32 %v6351, 4294901760
      %6353 = vmatpush1.msra.mxu0 %v6352
      %v6354 = vand.u32 %v5843, 4294901760
      %v6355 = vsub.f32 %v5843, %v6354
      %v6356 = vand.u32 %v6355, 4294901760
      %6357 = vmatprep.subr.mxu0 %v6356
      %v6358 = vand.u32 %v5860, 4294901760
      %v6359 = vsub.f32 %v5860, %v6358
      %v6360 = vand.u32 %v6359, 4294901760
      %6361 = vmatpush1.msra.mxu0 %v6360
      %v6362 = vand.u32 %v5847, 4294901760
      %v6363 = vsub.f32 %v5847, %v6362
      %v6364 = vand.u32 %v6363, 4294901760
      %6365 = vmatprep.subr.mxu0 %v6364
      %v6366 = vand.u32 %v5861, 4294901760
      %v6367 = vsub.f32 %v5861, %v6366
      %v6368 = vand.u32 %v6367, 4294901760
      %6369 = vmatpush1.msra.mxu0 %v6368
      %v6370 = vand.u32 %v5851, 4294901760
      %v6371 = vsub.f32 %v5851, %v6370
      %v6372 = vand.u32 %v6371, 4294901760
      %6373 = vmatprep.subr.mxu0 %v6372
      %v6374 = vand.u32 %v5862, 4294901760
      %v6375 = vsub.f32 %v5862, %v6374
      %v6376 = vand.u32 %v6375, 4294901760
      %6377 = vmatpush1.msra.mxu0 %v6376
      %v6378 = vand.u32 %v5855, 4294901760
      %v6379 = vsub.f32 %v5855, %v6378
      %v6380 = vand.u32 %v6379, 4294901760
      %6381 = vmatprep.subr.mxu0 %v6380
      %v6382 = vand.u32 %v5863, 4294901760
      %v6383 = vsub.f32 %v5863, %v6382
      %v6384 = vand.u32 %v6383, 4294901760
      %6385 = vmatpush1.msra.mxu0 %v6384
      %6386 = vmatprep.subr.mxu0 0.0
      %6387 = vmatpush1.msra.mxu0 0.0
      %6388 = vmatprep.subr.mxu0 0.0
      %6389 = vmatpush1.msra.mxu0 0.0
      %6390 = vmatprep.subr.mxu0 0.0
      %6391 = vmatpush1.msra.mxu0 0.0
      %6392 = vmatprep.subr.mxu0 0.0
      %6393 = vmatpush1.msra.mxu0 0.0
      %6394 = vmatprep.subr.mxu0 0.0
      %6395 = vmatpush1.msra.mxu0 0.0
      %6396 = vmatprep.subr.mxu0 0.0
      %6397 = vmatpush1.msra.mxu0 0.0
      %6398 = vmatprep.subr.mxu0 0.0
      %6399 = vmatpush1.msra.mxu0 0.0
      %6400 = vmatprep.subr.mxu0 0.0
      %6401 = vmatpush1.msra.mxu0 0.0
      %6402 = vmatprep.subr.mxu0 0.0
      %6403 = vmatpush1.msra.mxu0 0.0
      %6404 = vmatprep.subr.mxu0 0.0
      %6405 = vmatpush1.msra.mxu0 0.0
      %6406 = vmatprep.subr.mxu0 0.0
      %6407 = vmatpush1.msra.mxu0 0.0
      %6408 = vmatprep.subr.mxu0 0.0
      %6409 = vmatpush1.msra.mxu0 0.0
      %6410 = vmatprep.subr.mxu0 0.0
      %6411 = vmatpush1.msra.mxu0 0.0
      %6412 = vmatprep.subr.mxu0 0.0
      %6413 = vmatpush1.msra.mxu0 0.0
      %6414 = vmatprep.subr.mxu0 0.0
      %6415 = vmatpush1.msra.mxu0 0.0
      %6416 = vmatprep.subr.mxu0 0.0
      %6417 = vmatpush1.msra.mxu0 0.0
      %6418 = vmatprep.subr.mxu0 0.0
      %6419 = vmatpush1.msra.mxu0 0.0
      %6420 = vmatprep.subr.mxu0 0.0
      %6421 = vmatpush1.msra.mxu0 0.0
      %6422 = vmatprep.subr.mxu0 0.0
      %6423 = vmatpush1.msra.mxu0 0.0
      %6424 = vmatprep.subr.mxu0 0.0
      %6425 = vmatpush1.msra.mxu0 0.0
      %6426 = vmatprep.subr.mxu0 0.0
      %6427 = vmatpush1.msra.mxu0 0.0
      %6428 = vmatprep.subr.mxu0 0.0
      %6429 = vmatpush1.msra.mxu0 0.0
      %6430 = vmatprep.subr.mxu0 0.0
      %6431 = vmatpush1.msra.mxu0 0.0
      %6432 = vmatprep.subr.mxu0 0.0
      %6433 = vmatpush1.msra.mxu0 0.0
      %6434 = vmatprep.mubr.f32.mxu0 0.0
      %v6435 = vand.u32 %v5881, 4294901760
      %6436 = vmatmul.mubr.f32.gmra.mrb[0].mxu0 %v6435
      %v6437 = vpop.f32.mrb[0].mxu0
      %v6438 = vadd.f32 %v6318, %v6437
      %v6439 = vpop.f32.mrb[0].mxu0
      %v6440 = vadd.f32 %v6320, %v6439
      %6441 = vdwg.mxu0
      %v6442 = vand.u32 %v5827, 4294901760
      %6443 = vmatprep.subr.mxu0 %v6442
      %v6444 = vand.u32 %v5856, 4294901760
      %6445 = vmatpush1.msra.mxu0 %v6444
      %v6446 = vand.u32 %v5831, 4294901760
      %6447 = vmatprep.subr.mxu0 %v6446
      %v6448 = vand.u32 %v5857, 4294901760
      %6449 = vmatpush1.msra.mxu0 %v6448
      %v6450 = vand.u32 %v5835, 4294901760
      %6451 = vmatprep.subr.mxu0 %v6450
      %v6452 = vand.u32 %v5858, 4294901760
      %6453 = vmatpush1.msra.mxu0 %v6452
      %v6454 = vand.u32 %v5839, 4294901760
      %6455 = vmatprep.subr.mxu0 %v6454
      %v6456 = vand.u32 %v5859, 4294901760
      %6457 = vmatpush1.msra.mxu0 %v6456
      %v6458 = vand.u32 %v5843, 4294901760
      %6459 = vmatprep.subr.mxu0 %v6458
      %v6460 = vand.u32 %v5860, 4294901760
      %6461 = vmatpush1.msra.mxu0 %v6460
      %v6462 = vand.u32 %v5847, 4294901760
      %6463 = vmatprep.subr.mxu0 %v6462
      %v6464 = vand.u32 %v5861, 4294901760
      %6465 = vmatpush1.msra.mxu0 %v6464
      %v6466 = vand.u32 %v5851, 4294901760
      %6467 = vmatprep.subr.mxu0 %v6466
      %v6468 = vand.u32 %v5862, 4294901760
      %6469 = vmatpush1.msra.mxu0 %v6468
      %v6470 = vand.u32 %v5855, 4294901760
      %6471 = vmatprep.subr.mxu0 %v6470
      %v6472 = vand.u32 %v5863, 4294901760
      %6473 = vmatpush1.msra.mxu0 %v6472
      %6474 = vmatprep.subr.mxu0 0.0
      %6475 = vmatpush1.msra.mxu0 0.0
      %6476 = vmatprep.subr.mxu0 0.0
      %6477 = vmatpush1.msra.mxu0 0.0
      %6478 = vmatprep.subr.mxu0 0.0
      %6479 = vmatpush1.msra.mxu0 0.0
      %6480 = vmatprep.subr.mxu0 0.0
      %6481 = vmatpush1.msra.mxu0 0.0
      %6482 = vmatprep.subr.mxu0 0.0
      %6483 = vmatpush1.msra.mxu0 0.0
      %6484 = vmatprep.subr.mxu0 0.0
      %6485 = vmatpush1.msra.mxu0 0.0
      %6486 = vmatprep.subr.mxu0 0.0
      %6487 = vmatpush1.msra.mxu0 0.0
      %6488 = vmatprep.subr.mxu0 0.0
      %6489 = vmatpush1.msra.mxu0 0.0
      %6490 = vmatprep.subr.mxu0 0.0
      %6491 = vmatpush1.msra.mxu0 0.0
      %6492 = vmatprep.subr.mxu0 0.0
      %6493 = vmatpush1.msra.mxu0 0.0
      %6494 = vmatprep.subr.mxu0 0.0
      %6495 = vmatpush1.msra.mxu0 0.0
      %6496 = vmatprep.subr.mxu0 0.0
      %6497 = vmatpush1.msra.mxu0 0.0
      %6498 = vmatprep.subr.mxu0 0.0
      %6499 = vmatpush1.msra.mxu0 0.0
      %6500 = vmatprep.subr.mxu0 0.0
      %6501 = vmatpush1.msra.mxu0 0.0
      %6502 = vmatprep.subr.mxu0 0.0
      %6503 = vmatpush1.msra.mxu0 0.0
      %6504 = vmatprep.subr.mxu0 0.0
      %6505 = vmatpush1.msra.mxu0 0.0
      %6506 = vmatprep.subr.mxu0 0.0
      %6507 = vmatpush1.msra.mxu0 0.0
      %6508 = vmatprep.subr.mxu0 0.0
      %6509 = vmatpush1.msra.mxu0 0.0
      %6510 = vmatprep.subr.mxu0 0.0
      %6511 = vmatpush1.msra.mxu0 0.0
      %6512 = vmatprep.subr.mxu0 0.0
      %6513 = vmatpush1.msra.mxu0 0.0
      %6514 = vmatprep.subr.mxu0 0.0
      %6515 = vmatpush1.msra.mxu0 0.0
      %6516 = vmatprep.subr.mxu0 0.0
      %6517 = vmatpush1.msra.mxu0 0.0
      %6518 = vmatprep.subr.mxu0 0.0
      %6519 = vmatpush1.msra.mxu0 0.0
      %6520 = vmatprep.subr.mxu0 0.0
      %6521 = vmatpush1.msra.mxu0 0.0
      %6522 = vmatprep.mubr.f32.mxu0 0.0
      %v6523 = vand.u32 %v5881, 4294901760
      %6524 = vmatmul.mubr.f32.gmra.mrb[0].mxu0 %v6523
      %v6525 = vpop.f32.mrb[0].mxu0
      %v6526 = vadd.f32 %v6438, %v6525
      %v6527 = vpop.f32.mrb[0].mxu0
      %v6528 = vadd.f32 %v6440, %v6527
      %6529 = vdwg.mxu0
      %v6530 = vadd.f32 %v5820, %v6526
      %v6531 = vadd.f32 %v5821, %v6528
      %s6532 = scalar_lea.vmem %s3, 56
      %v6533 = vld [vmem:[%s6532] sm:$0xff]
      %6534 = vrot.lane.b32.xlu0 %v1591, 91
      %v6535 = vpop.permute.xlu0 %6534
      %6536 = vrot.lane.b32.xlu0 %v1592, 91
      %v6537 = vpop.permute.xlu0 %6536
      %6538 = vrot.lane.b32.xlu0 %v1593, 91
      %v6539 = vpop.permute.xlu0 %6538
      %6540 = vrot.lane.b32.xlu0 %v1594, 91
      %v6541 = vpop.permute.xlu0 %6540
      %6542 = vrot.lane.b32.xlu0 %v1595, 91
      %v6543 = vpop.permute.xlu0 %6542
      %6544 = vrot.lane.b32.xlu0 %v1596, 91
      %v6545 = vpop.permute.xlu0 %6544
      %6546 = vrot.lane.b32.xlu0 %v1597, 91
      %v6547 = vpop.permute.xlu0 %6546
      %6548 = vrot.lane.b32.xlu0 %v1598, 91
      %v6549 = vpop.permute.xlu0 %6548
      %6550 = vrot.lane.b32.xlu0 %v1599, 91
      %v6551 = vpop.permute.xlu0 %6550
      %6552 = vrot.lane.b32.xlu0 %v1600, 91
      %v6553 = vpop.permute.xlu0 %6552
      %6554 = vrot.lane.b32.xlu0 %v1601, 91
      %v6555 = vpop.permute.xlu0 %6554
      %6556 = vrot.lane.b32.xlu0 %v1602, 91
      %v6557 = vpop.permute.xlu0 %6556
      %6558 = vrot.lane.b32.xlu0 %v1603, 91
      %v6559 = vpop.permute.xlu0 %6558
      %6560 = vrot.lane.b32.xlu0 %v1604, 91
      %v6561 = vpop.permute.xlu0 %6560
      %6562 = vrot.lane.b32.xlu0 %v1605, 91
      %v6563 = vpop.permute.xlu0 %6562
      %6564 = vrot.lane.b32.xlu0 %v1606, 91
      %v6565 = vpop.permute.xlu0 %6564
      %v6566 = vsel %vm377, %v6535, %v6537
      %v6567 = vsel %vm377, %v6539, %v6541
      %v6568 = vsel %vm377, %v6543, %v6545
      %v6569 = vsel %vm377, %v6547, %v6549
      %v6570 = vsel %vm377, %v6551, %v6553
      %v6571 = vsel %vm377, %v6555, %v6557
      %v6572 = vsel %vm377, %v6559, %v6561
      %v6573 = vsel %vm377, %v6563, %v6565
      %v6591 = vsel %vm1681, %v6533, 0
      %v6593 = vand.u32 %v6537, 4294901760
      %6594 = vmatprep.subr.mxu0 %v6593
      %v6595 = vand.u32 %v6566, 4294901760
      %6596 = vmatpush1.msra.mxu0 %v6595
      %v6597 = vand.u32 %v6541, 4294901760
      %6598 = vmatprep.subr.mxu0 %v6597
      %v6599 = vand.u32 %v6567, 4294901760
      %6600 = vmatpush1.msra.mxu0 %v6599
      %v6601 = vand.u32 %v6545, 4294901760
      %6602 = vmatprep.subr.mxu0 %v6601
      %v6603 = vand.u32 %v6568, 4294901760
      %6604 = vmatpush1.msra.mxu0 %v6603
      %v6605 = vand.u32 %v6549, 4294901760
      %6606 = vmatprep.subr.mxu0 %v6605
      %v6607 = vand.u32 %v6569, 4294901760
      %6608 = vmatpush1.msra.mxu0 %v6607
      %v6609 = vand.u32 %v6553, 4294901760
      %6610 = vmatprep.subr.mxu0 %v6609
      %v6611 = vand.u32 %v6570, 4294901760
      %6612 = vmatpush1.msra.mxu0 %v6611
      %v6613 = vand.u32 %v6557, 4294901760
      %6614 = vmatprep.subr.mxu0 %v6613
      %v6615 = vand.u32 %v6571, 4294901760
      %6616 = vmatpush1.msra.mxu0 %v6615
      %v6617 = vand.u32 %v6561, 4294901760
      %6618 = vmatprep.subr.mxu0 %v6617
      %v6619 = vand.u32 %v6572, 4294901760
      %6620 = vmatpush1.msra.mxu0 %v6619
      %v6621 = vand.u32 %v6565, 4294901760
      %6622 = vmatprep.subr.mxu0 %v6621
      %v6623 = vand.u32 %v6573, 4294901760
      %6624 = vmatpush1.msra.mxu0 %v6623
      %6625 = vmatprep.subr.mxu0 0.0
      %6626 = vmatpush1.msra.mxu0 0.0
      %6627 = vmatprep.subr.mxu0 0.0
      %6628 = vmatpush1.msra.mxu0 0.0
      %6629 = vmatprep.subr.mxu0 0.0
      %6630 = vmatpush1.msra.mxu0 0.0
      %6631 = vmatprep.subr.mxu0 0.0
      %6632 = vmatpush1.msra.mxu0 0.0
      %6633 = vmatprep.subr.mxu0 0.0
      %6634 = vmatpush1.msra.mxu0 0.0
      %6635 = vmatprep.subr.mxu0 0.0
      %6636 = vmatpush1.msra.mxu0 0.0
      %6637 = vmatprep.subr.mxu0 0.0
      %6638 = vmatpush1.msra.mxu0 0.0
      %6639 = vmatprep.subr.mxu0 0.0
      %6640 = vmatpush1.msra.mxu0 0.0
      %6641 = vmatprep.subr.mxu0 0.0
      %6642 = vmatpush1.msra.mxu0 0.0
      %6643 = vmatprep.subr.mxu0 0.0
      %6644 = vmatpush1.msra.mxu0 0.0
      %6645 = vmatprep.subr.mxu0 0.0
      %6646 = vmatpush1.msra.mxu0 0.0
      %6647 = vmatprep.subr.mxu0 0.0
      %6648 = vmatpush1.msra.mxu0 0.0
      %6649 = vmatprep.subr.mxu0 0.0
      %6650 = vmatpush1.msra.mxu0 0.0
      %6651 = vmatprep.subr.mxu0 0.0
      %6652 = vmatpush1.msra.mxu0 0.0
      %6653 = vmatprep.subr.mxu0 0.0
      %6654 = vmatpush1.msra.mxu0 0.0
      %6655 = vmatprep.subr.mxu0 0.0
      %6656 = vmatpush1.msra.mxu0 0.0
      %6657 = vmatprep.subr.mxu0 0.0
      %6658 = vmatpush1.msra.mxu0 0.0
      %6659 = vmatprep.subr.mxu0 0.0
      %6660 = vmatpush1.msra.mxu0 0.0
      %6661 = vmatprep.subr.mxu0 0.0
      %6662 = vmatpush1.msra.mxu0 0.0
      %6663 = vmatprep.subr.mxu0 0.0
      %6664 = vmatpush1.msra.mxu0 0.0
      %6665 = vmatprep.subr.mxu0 0.0
      %6666 = vmatpush1.msra.mxu0 0.0
      %6667 = vmatprep.subr.mxu0 0.0
      %6668 = vmatpush1.msra.mxu0 0.0
      %6669 = vmatprep.subr.mxu0 0.0
      %6670 = vmatpush1.msra.mxu0 0.0
      %6671 = vmatprep.subr.mxu0 0.0
      %6672 = vmatpush1.msra.mxu0 0.0
      %6673 = vmatprep.mubr.f32.mxu0 0.0
      %v6674 = vand.u32 %v6591, 4294901760
      %v6675 = vsub.f32 %v6591, %v6674
      %v6676 = vand.u32 %v6675, 4294901760
      %v6677 = vsub.f32 %v6675, %v6676
      %v6678 = vand.u32 %v6677, 4294901760
      %6679 = vmatmul.mubr.f32.gmra.mrb[0].mxu0 %v6678
      %v6680 = vpop.f32.mrb[0].mxu0
      %v6681 = vadd.f32 0.0, %v6680
      %v6682 = vpop.f32.mrb[0].mxu0
      %v6683 = vadd.f32 0.0, %v6682
      %6684 = vdwg.mxu0
      %v6685 = vand.u32 %v6537, 4294901760
      %v6686 = vsub.f32 %v6537, %v6685
      %v6687 = vand.u32 %v6686, 4294901760
      %v6688 = vsub.f32 %v6686, %v6687
      %v6689 = vand.u32 %v6688, 4294901760
      %6690 = vmatprep.subr.mxu0 %v6689
      %v6691 = vand.u32 %v6566, 4294901760
      %v6692 = vsub.f32 %v6566, %v6691
      %v6693 = vand.u32 %v6692, 4294901760
      %v6694 = vsub.f32 %v6692, %v6693
      %v6695 = vand.u32 %v6694, 4294901760
      %6696 = vmatpush1.msra.mxu0 %v6695
      %v6697 = vand.u32 %v6541, 4294901760
      %v6698 = vsub.f32 %v6541, %v6697
      %v6699 = vand.u32 %v6698, 4294901760
      %v6700 = vsub.f32 %v6698, %v6699
      %v6701 = vand.u32 %v6700, 4294901760
      %6702 = vmatprep.subr.mxu0 %v6701
      %v6703 = vand.u32 %v6567, 4294901760
      %v6704 = vsub.f32 %v6567, %v6703
      %v6705 = vand.u32 %v6704, 4294901760
      %v6706 = vsub.f32 %v6704, %v6705
      %v6707 = vand.u32 %v6706, 4294901760
      %6708 = vmatpush1.msra.mxu0 %v6707
      %v6709 = vand.u32 %v6545, 4294901760
      %v6710 = vsub.f32 %v6545, %v6709
      %v6711 = vand.u32 %v6710, 4294901760
      %v6712 = vsub.f32 %v6710, %v6711
      %v6713 = vand.u32 %v6712, 4294901760
      %6714 = vmatprep.subr.mxu0 %v6713
      %v6715 = vand.u32 %v6568, 4294901760
      %v6716 = vsub.f32 %v6568, %v6715
      %v6717 = vand.u32 %v6716, 4294901760
      %v6718 = vsub.f32 %v6716, %v6717
      %v6719 = vand.u32 %v6718, 4294901760
      %6720 = vmatpush1.msra.mxu0 %v6719
      %v6721 = vand.u32 %v6549, 4294901760
      %v6722 = vsub.f32 %v6549, %v6721
      %v6723 = vand.u32 %v6722, 4294901760
      %v6724 = vsub.f32 %v6722, %v6723
      %v6725 = vand.u32 %v6724, 4294901760
      %6726 = vmatprep.subr.mxu0 %v6725
      %v6727 = vand.u32 %v6569, 4294901760
      %v6728 = vsub.f32 %v6569, %v6727
      %v6729 = vand.u32 %v6728, 4294901760
      %v6730 = vsub.f32 %v6728, %v6729
      %v6731 = vand.u32 %v6730, 4294901760
      %6732 = vmatpush1.msra.mxu0 %v6731
      %v6733 = vand.u32 %v6553, 4294901760
      %v6734 = vsub.f32 %v6553, %v6733
      %v6735 = vand.u32 %v6734, 4294901760
      %v6736 = vsub.f32 %v6734, %v6735
      %v6737 = vand.u32 %v6736, 4294901760
      %6738 = vmatprep.subr.mxu0 %v6737
      %v6739 = vand.u32 %v6570, 4294901760
      %v6740 = vsub.f32 %v6570, %v6739
      %v6741 = vand.u32 %v6740, 4294901760
      %v6742 = vsub.f32 %v6740, %v6741
      %v6743 = vand.u32 %v6742, 4294901760
      %6744 = vmatpush1.msra.mxu0 %v6743
      %v6745 = vand.u32 %v6557, 4294901760
      %v6746 = vsub.f32 %v6557, %v6745
      %v6747 = vand.u32 %v6746, 4294901760
      %v6748 = vsub.f32 %v6746, %v6747
      %v6749 = vand.u32 %v6748, 4294901760
      %6750 = vmatprep.subr.mxu0 %v6749
      %v6751 = vand.u32 %v6571, 4294901760
      %v6752 = vsub.f32 %v6571, %v6751
      %v6753 = vand.u32 %v6752, 4294901760
      %v6754 = vsub.f32 %v6752, %v6753
      %v6755 = vand.u32 %v6754, 4294901760
      %6756 = vmatpush1.msra.mxu0 %v6755
      %v6757 = vand.u32 %v6561, 4294901760
      %v6758 = vsub.f32 %v6561, %v6757
      %v6759 = vand.u32 %v6758, 4294901760
      %v6760 = vsub.f32 %v6758, %v6759
      %v6761 = vand.u32 %v6760, 4294901760
      %6762 = vmatprep.subr.mxu0 %v6761
      %v6763 = vand.u32 %v6572, 4294901760
      %v6764 = vsub.f32 %v6572, %v6763
      %v6765 = vand.u32 %v6764, 4294901760
      %v6766 = vsub.f32 %v6764, %v6765
      %v6767 = vand.u32 %v6766, 4294901760
      %6768 = vmatpush1.msra.mxu0 %v6767
      %v6769 = vand.u32 %v6565, 4294901760
      %v6770 = vsub.f32 %v6565, %v6769
      %v6771 = vand.u32 %v6770, 4294901760
      %v6772 = vsub.f32 %v6770, %v6771
      %v6773 = vand.u32 %v6772, 4294901760
      %6774 = vmatprep.subr.mxu0 %v6773
      %v6775 = vand.u32 %v6573, 4294901760
      %v6776 = vsub.f32 %v6573, %v6775
      %v6777 = vand.u32 %v6776, 4294901760
      %v6778 = vsub.f32 %v6776, %v6777
      %v6779 = vand.u32 %v6778, 4294901760
      %6780 = vmatpush1.msra.mxu0 %v6779
      %6781 = vmatprep.subr.mxu0 0.0
      %6782 = vmatpush1.msra.mxu0 0.0
      %6783 = vmatprep.subr.mxu0 0.0
      %6784 = vmatpush1.msra.mxu0 0.0
      %6785 = vmatprep.subr.mxu0 0.0
      %6786 = vmatpush1.msra.mxu0 0.0
      %6787 = vmatprep.subr.mxu0 0.0
      %6788 = vmatpush1.msra.mxu0 0.0
      %6789 = vmatprep.subr.mxu0 0.0
      %6790 = vmatpush1.msra.mxu0 0.0
      %6791 = vmatprep.subr.mxu0 0.0
      %6792 = vmatpush1.msra.mxu0 0.0
      %6793 = vmatprep.subr.mxu0 0.0
      %6794 = vmatpush1.msra.mxu0 0.0
      %6795 = vmatprep.subr.mxu0 0.0
      %6796 = vmatpush1.msra.mxu0 0.0
      %6797 = vmatprep.subr.mxu0 0.0
      %6798 = vmatpush1.msra.mxu0 0.0
      %6799 = vmatprep.subr.mxu0 0.0
      %6800 = vmatpush1.msra.mxu0 0.0
      %6801 = vmatprep.subr.mxu0 0.0
      %6802 = vmatpush1.msra.mxu0 0.0
      %6803 = vmatprep.subr.mxu0 0.0
      %6804 = vmatpush1.msra.mxu0 0.0
      %6805 = vmatprep.subr.mxu0 0.0
      %6806 = vmatpush1.msra.mxu0 0.0
      %6807 = vmatprep.subr.mxu0 0.0
      %6808 = vmatpush1.msra.mxu0 0.0
      %6809 = vmatprep.subr.mxu0 0.0
      %6810 = vmatpush1.msra.mxu0 0.0
      %6811 = vmatprep.subr.mxu0 0.0
      %6812 = vmatpush1.msra.mxu0 0.0
      %6813 = vmatprep.subr.mxu0 0.0
      %6814 = vmatpush1.msra.mxu0 0.0
      %6815 = vmatprep.subr.mxu0 0.0
      %6816 = vmatpush1.msra.mxu0 0.0
      %6817 = vmatprep.subr.mxu0 0.0
      %6818 = vmatpush1.msra.mxu0 0.0
      %6819 = vmatprep.subr.mxu0 0.0
      %6820 = vmatpush1.msra.mxu0 0.0
      %6821 = vmatprep.subr.mxu0 0.0
      %6822 = vmatpush1.msra.mxu0 0.0
      %6823 = vmatprep.subr.mxu0 0.0
      %6824 = vmatpush1.msra.mxu0 0.0
      %6825 = vmatprep.subr.mxu0 0.0
      %6826 = vmatpush1.msra.mxu0 0.0
      %6827 = vmatprep.subr.mxu0 0.0
      %6828 = vmatpush1.msra.mxu0 0.0
      %6829 = vmatprep.mubr.f32.mxu0 0.0
      %v6830 = vand.u32 %v6591, 4294901760
      %6831 = vmatmul.mubr.f32.gmra.mrb[0].mxu0 %v6830
      %v6832 = vpop.f32.mrb[0].mxu0
      %v6833 = vadd.f32 %v6681, %v6832
      %v6834 = vpop.f32.mrb[0].mxu0
      %v6835 = vadd.f32 %v6683, %v6834
      %6836 = vdwg.mxu0
      %v6837 = vand.u32 %v6537, 4294901760
      %v6838 = vsub.f32 %v6537, %v6837
      %6839 = vmatprep.subr.mxu0 %v6838
      %v6840 = vand.u32 %v6566, 4294901760
      %v6841 = vsub.f32 %v6566, %v6840
      %6842 = vmatpush1.msra.mxu0 %v6841
      %v6843 = vand.u32 %v6541, 4294901760
      %v6844 = vsub.f32 %v6541, %v6843
      %6845 = vmatprep.subr.mxu0 %v6844
      %v6846 = vand.u32 %v6567, 4294901760
      %v6847 = vsub.f32 %v6567, %v6846
      %6848 = vmatpush1.msra.mxu0 %v6847
      %v6849 = vand.u32 %v6545, 4294901760
      %v6850 = vsub.f32 %v6545, %v6849
      %6851 = vmatprep.subr.mxu0 %v6850
      %v6852 = vand.u32 %v6568, 4294901760
      %v6853 = vsub.f32 %v6568, %v6852
      %6854 = vmatpush1.msra.mxu0 %v6853
      %v6855 = vand.u32 %v6549, 4294901760
      %v6856 = vsub.f32 %v6549, %v6855
      %6857 = vmatprep.subr.mxu0 %v6856
      %v6858 = vand.u32 %v6569, 4294901760
      %v6859 = vsub.f32 %v6569, %v6858
      %6860 = vmatpush1.msra.mxu0 %v6859
      %v6861 = vand.u32 %v6553, 4294901760
      %v6862 = vsub.f32 %v6553, %v6861
      %6863 = vmatprep.subr.mxu0 %v6862
      %v6864 = vand.u32 %v6570, 4294901760
      %v6865 = vsub.f32 %v6570, %v6864
      %6866 = vmatpush1.msra.mxu0 %v6865
      %v6867 = vand.u32 %v6557, 4294901760
      %v6868 = vsub.f32 %v6557, %v6867
      %6869 = vmatprep.subr.mxu0 %v6868
      %v6870 = vand.u32 %v6571, 4294901760
      %v6871 = vsub.f32 %v6571, %v6870
      %6872 = vmatpush1.msra.mxu0 %v6871
      %v6873 = vand.u32 %v6561, 4294901760
      %v6874 = vsub.f32 %v6561, %v6873
      %6875 = vmatprep.subr.mxu0 %v6874
      %v6876 = vand.u32 %v6572, 4294901760
      %v6877 = vsub.f32 %v6572, %v6876
      %6878 = vmatpush1.msra.mxu0 %v6877
      %v6879 = vand.u32 %v6565, 4294901760
      %v6880 = vsub.f32 %v6565, %v6879
      %6881 = vmatprep.subr.mxu0 %v6880
      %v6882 = vand.u32 %v6573, 4294901760
      %v6883 = vsub.f32 %v6573, %v6882
      %6884 = vmatpush1.msra.mxu0 %v6883
      %6885 = vmatprep.subr.mxu0 0.0
      %6886 = vmatpush1.msra.mxu0 0.0
      %6887 = vmatprep.subr.mxu0 0.0
      %6888 = vmatpush1.msra.mxu0 0.0
      %6889 = vmatprep.subr.mxu0 0.0
      %6890 = vmatpush1.msra.mxu0 0.0
      %6891 = vmatprep.subr.mxu0 0.0
      %6892 = vmatpush1.msra.mxu0 0.0
      %6893 = vmatprep.subr.mxu0 0.0
      %6894 = vmatpush1.msra.mxu0 0.0
      %6895 = vmatprep.subr.mxu0 0.0
      %6896 = vmatpush1.msra.mxu0 0.0
      %6897 = vmatprep.subr.mxu0 0.0
      %6898 = vmatpush1.msra.mxu0 0.0
      %6899 = vmatprep.subr.mxu0 0.0
      %6900 = vmatpush1.msra.mxu0 0.0
      %6901 = vmatprep.subr.mxu0 0.0
      %6902 = vmatpush1.msra.mxu0 0.0
      %6903 = vmatprep.subr.mxu0 0.0
      %6904 = vmatpush1.msra.mxu0 0.0
      %6905 = vmatprep.subr.mxu0 0.0
      %6906 = vmatpush1.msra.mxu0 0.0
      %6907 = vmatprep.subr.mxu0 0.0
      %6908 = vmatpush1.msra.mxu0 0.0
      %6909 = vmatprep.subr.mxu0 0.0
      %6910 = vmatpush1.msra.mxu0 0.0
      %6911 = vmatprep.subr.mxu0 0.0
      %6912 = vmatpush1.msra.mxu0 0.0
      %6913 = vmatprep.subr.mxu0 0.0
      %6914 = vmatpush1.msra.mxu0 0.0
      %6915 = vmatprep.subr.mxu0 0.0
      %6916 = vmatpush1.msra.mxu0 0.0
      %6917 = vmatprep.subr.mxu0 0.0
      %6918 = vmatpush1.msra.mxu0 0.0
      %6919 = vmatprep.subr.mxu0 0.0
      %6920 = vmatpush1.msra.mxu0 0.0
      %6921 = vmatprep.subr.mxu0 0.0
      %6922 = vmatpush1.msra.mxu0 0.0
      %6923 = vmatprep.subr.mxu0 0.0
      %6924 = vmatpush1.msra.mxu0 0.0
      %6925 = vmatprep.subr.mxu0 0.0
      %6926 = vmatpush1.msra.mxu0 0.0
      %6927 = vmatprep.subr.mxu0 0.0
      %6928 = vmatpush1.msra.mxu0 0.0
      %6929 = vmatprep.subr.mxu0 0.0
      %6930 = vmatpush1.msra.mxu0 0.0
      %6931 = vmatprep.subr.mxu0 0.0
      %6932 = vmatpush1.msra.mxu0 0.0
      %6933 = vmatprep.mubr.f32.mxu0 0.0
      %v6934 = vand.u32 %v6591, 4294901760
      %v6935 = vsub.f32 %v6591, %v6934
      %6936 = vmatmul.mubr.f32.gmra.mrb[0].mxu0 %v6935
      %v6937 = vpop.f32.mrb[0].mxu0
      %v6938 = vadd.f32 %v6833, %v6937
      %v6939 = vpop.f32.mrb[0].mxu0
      %v6940 = vadd.f32 %v6835, %v6939
      %6941 = vdwg.mxu0
      %v6942 = vand.u32 %v6537, 4294901760
      %6943 = vmatprep.subr.mxu0 %v6942
      %v6944 = vand.u32 %v6566, 4294901760
      %6945 = vmatpush1.msra.mxu0 %v6944
      %v6946 = vand.u32 %v6541, 4294901760
      %6947 = vmatprep.subr.mxu0 %v6946
      %v6948 = vand.u32 %v6567, 4294901760
      %6949 = vmatpush1.msra.mxu0 %v6948
      %v6950 = vand.u32 %v6545, 4294901760
      %6951 = vmatprep.subr.mxu0 %v6950
      %v6952 = vand.u32 %v6568, 4294901760
      %6953 = vmatpush1.msra.mxu0 %v6952
      %v6954 = vand.u32 %v6549, 4294901760
      %6955 = vmatprep.subr.mxu0 %v6954
      %v6956 = vand.u32 %v6569, 4294901760
      %6957 = vmatpush1.msra.mxu0 %v6956
      %v6958 = vand.u32 %v6553, 4294901760
      %6959 = vmatprep.subr.mxu0 %v6958
      %v6960 = vand.u32 %v6570, 4294901760
      %6961 = vmatpush1.msra.mxu0 %v6960
      %v6962 = vand.u32 %v6557, 4294901760
      %6963 = vmatprep.subr.mxu0 %v6962
      %v6964 = vand.u32 %v6571, 4294901760
      %6965 = vmatpush1.msra.mxu0 %v6964
      %v6966 = vand.u32 %v6561, 4294901760
      %6967 = vmatprep.subr.mxu0 %v6966
      %v6968 = vand.u32 %v6572, 4294901760
      %6969 = vmatpush1.msra.mxu0 %v6968
      %v6970 = vand.u32 %v6565, 4294901760
      %6971 = vmatprep.subr.mxu0 %v6970
      %v6972 = vand.u32 %v6573, 4294901760
      %6973 = vmatpush1.msra.mxu0 %v6972
      %6974 = vmatprep.subr.mxu0 0.0
      %6975 = vmatpush1.msra.mxu0 0.0
      %6976 = vmatprep.subr.mxu0 0.0
      %6977 = vmatpush1.msra.mxu0 0.0
      %6978 = vmatprep.subr.mxu0 0.0
      %6979 = vmatpush1.msra.mxu0 0.0
      %6980 = vmatprep.subr.mxu0 0.0
      %6981 = vmatpush1.msra.mxu0 0.0
      %6982 = vmatprep.subr.mxu0 0.0
      %6983 = vmatpush1.msra.mxu0 0.0
      %6984 = vmatprep.subr.mxu0 0.0
      %6985 = vmatpush1.msra.mxu0 0.0
      %6986 = vmatprep.subr.mxu0 0.0
      %6987 = vmatpush1.msra.mxu0 0.0
      %6988 = vmatprep.subr.mxu0 0.0
      %6989 = vmatpush1.msra.mxu0 0.0
      %6990 = vmatprep.subr.mxu0 0.0
      %6991 = vmatpush1.msra.mxu0 0.0
      %6992 = vmatprep.subr.mxu0 0.0
      %6993 = vmatpush1.msra.mxu0 0.0
      %6994 = vmatprep.subr.mxu0 0.0
      %6995 = vmatpush1.msra.mxu0 0.0
      %6996 = vmatprep.subr.mxu0 0.0
      %6997 = vmatpush1.msra.mxu0 0.0
      %6998 = vmatprep.subr.mxu0 0.0
      %6999 = vmatpush1.msra.mxu0 0.0
      %7000 = vmatprep.subr.mxu0 0.0
      %7001 = vmatpush1.msra.mxu0 0.0
      %7002 = vmatprep.subr.mxu0 0.0
      %7003 = vmatpush1.msra.mxu0 0.0
      %7004 = vmatprep.subr.mxu0 0.0
      %7005 = vmatpush1.msra.mxu0 0.0
      %7006 = vmatprep.subr.mxu0 0.0
      %7007 = vmatpush1.msra.mxu0 0.0
      %7008 = vmatprep.subr.mxu0 0.0
      %7009 = vmatpush1.msra.mxu0 0.0
      %7010 = vmatprep.subr.mxu0 0.0
      %7011 = vmatpush1.msra.mxu0 0.0
      %7012 = vmatprep.subr.mxu0 0.0
      %7013 = vmatpush1.msra.mxu0 0.0
      %7014 = vmatprep.subr.mxu0 0.0
      %7015 = vmatpush1.msra.mxu0 0.0
      %7016 = vmatprep.subr.mxu0 0.0
      %7017 = vmatpush1.msra.mxu0 0.0
      %7018 = vmatprep.subr.mxu0 0.0
      %7019 = vmatpush1.msra.mxu0 0.0
      %7020 = vmatprep.subr.mxu0 0.0
      %7021 = vmatpush1.msra.mxu0 0.0
      %7022 = vmatprep.mubr.f32.mxu0 0.0
      %v7023 = vand.u32 %v6591, 4294901760
      %v7024 = vsub.f32 %v6591, %v7023
      %v7025 = vand.u32 %v7024, 4294901760
      %7026 = vmatmul.mubr.f32.gmra.mrb[0].mxu0 %v7025
      %v7027 = vpop.f32.mrb[0].mxu0
      %v7028 = vadd.f32 %v6938, %v7027
      %v7029 = vpop.f32.mrb[0].mxu0
      %v7030 = vadd.f32 %v6940, %v7029
      %7031 = vdwg.mxu0
      %v7032 = vand.u32 %v6537, 4294901760
      %v7033 = vsub.f32 %v6537, %v7032
      %v7034 = vand.u32 %v7033, 4294901760
      %7035 = vmatprep.subr.mxu0 %v7034
      %v7036 = vand.u32 %v6566, 4294901760
      %v7037 = vsub.f32 %v6566, %v7036
      %v7038 = vand.u32 %v7037, 4294901760
      %7039 = vmatpush1.msra.mxu0 %v7038
      %v7040 = vand.u32 %v6541, 4294901760
      %v7041 = vsub.f32 %v6541, %v7040
      %v7042 = vand.u32 %v7041, 4294901760
      %7043 = vmatprep.subr.mxu0 %v7042
      %v7044 = vand.u32 %v6567, 4294901760
      %v7045 = vsub.f32 %v6567, %v7044
      %v7046 = vand.u32 %v7045, 4294901760
      %7047 = vmatpush1.msra.mxu0 %v7046
      %v7048 = vand.u32 %v6545, 4294901760
      %v7049 = vsub.f32 %v6545, %v7048
      %v7050 = vand.u32 %v7049, 4294901760
      %7051 = vmatprep.subr.mxu0 %v7050
      %v7052 = vand.u32 %v6568, 4294901760
      %v7053 = vsub.f32 %v6568, %v7052
      %v7054 = vand.u32 %v7053, 4294901760
      %7055 = vmatpush1.msra.mxu0 %v7054
      %v7056 = vand.u32 %v6549, 4294901760
      %v7057 = vsub.f32 %v6549, %v7056
      %v7058 = vand.u32 %v7057, 4294901760
      %7059 = vmatprep.subr.mxu0 %v7058
      %v7060 = vand.u32 %v6569, 4294901760
      %v7061 = vsub.f32 %v6569, %v7060
      %v7062 = vand.u32 %v7061, 4294901760
      %7063 = vmatpush1.msra.mxu0 %v7062
      %v7064 = vand.u32 %v6553, 4294901760
      %v7065 = vsub.f32 %v6553, %v7064
      %v7066 = vand.u32 %v7065, 4294901760
      %7067 = vmatprep.subr.mxu0 %v7066
      %v7068 = vand.u32 %v6570, 4294901760
      %v7069 = vsub.f32 %v6570, %v7068
      %v7070 = vand.u32 %v7069, 4294901760
      %7071 = vmatpush1.msra.mxu0 %v7070
      %v7072 = vand.u32 %v6557, 4294901760
      %v7073 = vsub.f32 %v6557, %v7072
      %v7074 = vand.u32 %v7073, 4294901760
      %7075 = vmatprep.subr.mxu0 %v7074
      %v7076 = vand.u32 %v6571, 4294901760
      %v7077 = vsub.f32 %v6571, %v7076
      %v7078 = vand.u32 %v7077, 4294901760
      %7079 = vmatpush1.msra.mxu0 %v7078
      %v7080 = vand.u32 %v6561, 4294901760
      %v7081 = vsub.f32 %v6561, %v7080
      %v7082 = vand.u32 %v7081, 4294901760
      %7083 = vmatprep.subr.mxu0 %v7082
      %v7084 = vand.u32 %v6572, 4294901760
      %v7085 = vsub.f32 %v6572, %v7084
      %v7086 = vand.u32 %v7085, 4294901760
      %7087 = vmatpush1.msra.mxu0 %v7086
      %v7088 = vand.u32 %v6565, 4294901760
      %v7089 = vsub.f32 %v6565, %v7088
      %v7090 = vand.u32 %v7089, 4294901760
      %7091 = vmatprep.subr.mxu0 %v7090
      %v7092 = vand.u32 %v6573, 4294901760
      %v7093 = vsub.f32 %v6573, %v7092
      %v7094 = vand.u32 %v7093, 4294901760
      %7095 = vmatpush1.msra.mxu0 %v7094
      %7096 = vmatprep.subr.mxu0 0.0
      %7097 = vmatpush1.msra.mxu0 0.0
      %7098 = vmatprep.subr.mxu0 0.0
      %7099 = vmatpush1.msra.mxu0 0.0
      %7100 = vmatprep.subr.mxu0 0.0
      %7101 = vmatpush1.msra.mxu0 0.0
      %7102 = vmatprep.subr.mxu0 0.0
      %7103 = vmatpush1.msra.mxu0 0.0
      %7104 = vmatprep.subr.mxu0 0.0
      %7105 = vmatpush1.msra.mxu0 0.0
      %7106 = vmatprep.subr.mxu0 0.0
      %7107 = vmatpush1.msra.mxu0 0.0
      %7108 = vmatprep.subr.mxu0 0.0
      %7109 = vmatpush1.msra.mxu0 0.0
      %7110 = vmatprep.subr.mxu0 0.0
      %7111 = vmatpush1.msra.mxu0 0.0
      %7112 = vmatprep.subr.mxu0 0.0
      %7113 = vmatpush1.msra.mxu0 0.0
      %7114 = vmatprep.subr.mxu0 0.0
      %7115 = vmatpush1.msra.mxu0 0.0
      %7116 = vmatprep.subr.mxu0 0.0
      %7117 = vmatpush1.msra.mxu0 0.0
      %7118 = vmatprep.subr.mxu0 0.0
      %7119 = vmatpush1.msra.mxu0 0.0
      %7120 = vmatprep.subr.mxu0 0.0
      %7121 = vmatpush1.msra.mxu0 0.0
      %7122 = vmatprep.subr.mxu0 0.0
      %7123 = vmatpush1.msra.mxu0 0.0
      %7124 = vmatprep.subr.mxu0 0.0
      %7125 = vmatpush1.msra.mxu0 0.0
      %7126 = vmatprep.subr.mxu0 0.0
      %7127 = vmatpush1.msra.mxu0 0.0
      %7128 = vmatprep.subr.mxu0 0.0
      %7129 = vmatpush1.msra.mxu0 0.0
      %7130 = vmatprep.subr.mxu0 0.0
      %7131 = vmatpush1.msra.mxu0 0.0
      %7132 = vmatprep.subr.mxu0 0.0
      %7133 = vmatpush1.msra.mxu0 0.0
      %7134 = vmatprep.subr.mxu0 0.0
      %7135 = vmatpush1.msra.mxu0 0.0
      %7136 = vmatprep.subr.mxu0 0.0
      %7137 = vmatpush1.msra.mxu0 0.0
      %7138 = vmatprep.subr.mxu0 0.0
      %7139 = vmatpush1.msra.mxu0 0.0
      %7140 = vmatprep.subr.mxu0 0.0
      %7141 = vmatpush1.msra.mxu0 0.0
      %7142 = vmatprep.subr.mxu0 0.0
      %7143 = vmatpush1.msra.mxu0 0.0
      %7144 = vmatprep.mubr.f32.mxu0 0.0
      %v7145 = vand.u32 %v6591, 4294901760
      %7146 = vmatmul.mubr.f32.gmra.mrb[0].mxu0 %v7145
      %v7147 = vpop.f32.mrb[0].mxu0
      %v7148 = vadd.f32 %v7028, %v7147
      %v7149 = vpop.f32.mrb[0].mxu0
      %v7150 = vadd.f32 %v7030, %v7149
      %7151 = vdwg.mxu0
      %v7152 = vand.u32 %v6537, 4294901760
      %7153 = vmatprep.subr.mxu0 %v7152
      %v7154 = vand.u32 %v6566, 4294901760
      %7155 = vmatpush1.msra.mxu0 %v7154
      %v7156 = vand.u32 %v6541, 4294901760
      %7157 = vmatprep.subr.mxu0 %v7156
      %v7158 = vand.u32 %v6567, 4294901760
      %7159 = vmatpush1.msra.mxu0 %v7158
      %v7160 = vand.u32 %v6545, 4294901760
      %7161 = vmatprep.subr.mxu0 %v7160
      %v7162 = vand.u32 %v6568, 4294901760
      %7163 = vmatpush1.msra.mxu0 %v7162
      %v7164 = vand.u32 %v6549, 4294901760
      %7165 = vmatprep.subr.mxu0 %v7164
      %v7166 = vand.u32 %v6569, 4294901760
      %7167 = vmatpush1.msra.mxu0 %v7166
      %v7168 = vand.u32 %v6553, 4294901760
      %7169 = vmatprep.subr.mxu0 %v7168
      %v7170 = vand.u32 %v6570, 4294901760
      %7171 = vmatpush1.msra.mxu0 %v7170
      %v7172 = vand.u32 %v6557, 4294901760
      %7173 = vmatprep.subr.mxu0 %v7172
      %v7174 = vand.u32 %v6571, 4294901760
      %7175 = vmatpush1.msra.mxu0 %v7174
      %v7176 = vand.u32 %v6561, 4294901760
      %7177 = vmatprep.subr.mxu0 %v7176
      %v7178 = vand.u32 %v6572, 4294901760
      %7179 = vmatpush1.msra.mxu0 %v7178
      %v7180 = vand.u32 %v6565, 4294901760
      %7181 = vmatprep.subr.mxu0 %v7180
      %v7182 = vand.u32 %v6573, 4294901760
      %7183 = vmatpush1.msra.mxu0 %v7182
      %7184 = vmatprep.subr.mxu0 0.0
      %7185 = vmatpush1.msra.mxu0 0.0
      %7186 = vmatprep.subr.mxu0 0.0
      %7187 = vmatpush1.msra.mxu0 0.0
      %7188 = vmatprep.subr.mxu0 0.0
      %7189 = vmatpush1.msra.mxu0 0.0
      %7190 = vmatprep.subr.mxu0 0.0
      %7191 = vmatpush1.msra.mxu0 0.0
      %7192 = vmatprep.subr.mxu0 0.0
      %7193 = vmatpush1.msra.mxu0 0.0
      %7194 = vmatprep.subr.mxu0 0.0
      %7195 = vmatpush1.msra.mxu0 0.0
      %7196 = vmatprep.subr.mxu0 0.0
      %7197 = vmatpush1.msra.mxu0 0.0
      %7198 = vmatprep.subr.mxu0 0.0
      %7199 = vmatpush1.msra.mxu0 0.0
      %7200 = vmatprep.subr.mxu0 0.0
      %7201 = vmatpush1.msra.mxu0 0.0
      %7202 = vmatprep.subr.mxu0 0.0
      %7203 = vmatpush1.msra.mxu0 0.0
      %7204 = vmatprep.subr.mxu0 0.0
      %7205 = vmatpush1.msra.mxu0 0.0
      %7206 = vmatprep.subr.mxu0 0.0
      %7207 = vmatpush1.msra.mxu0 0.0
      %7208 = vmatprep.subr.mxu0 0.0
      %7209 = vmatpush1.msra.mxu0 0.0
      %7210 = vmatprep.subr.mxu0 0.0
      %7211 = vmatpush1.msra.mxu0 0.0
      %7212 = vmatprep.subr.mxu0 0.0
      %7213 = vmatpush1.msra.mxu0 0.0
      %7214 = vmatprep.subr.mxu0 0.0
      %7215 = vmatpush1.msra.mxu0 0.0
      %7216 = vmatprep.subr.mxu0 0.0
      %7217 = vmatpush1.msra.mxu0 0.0
      %7218 = vmatprep.subr.mxu0 0.0
      %7219 = vmatpush1.msra.mxu0 0.0
      %7220 = vmatprep.subr.mxu0 0.0
      %7221 = vmatpush1.msra.mxu0 0.0
      %7222 = vmatprep.subr.mxu0 0.0
      %7223 = vmatpush1.msra.mxu0 0.0
      %7224 = vmatprep.subr.mxu0 0.0
      %7225 = vmatpush1.msra.mxu0 0.0
      %7226 = vmatprep.subr.mxu0 0.0
      %7227 = vmatpush1.msra.mxu0 0.0
      %7228 = vmatprep.subr.mxu0 0.0
      %7229 = vmatpush1.msra.mxu0 0.0
      %7230 = vmatprep.subr.mxu0 0.0
      %7231 = vmatpush1.msra.mxu0 0.0
      %7232 = vmatprep.mubr.f32.mxu0 0.0
      %v7233 = vand.u32 %v6591, 4294901760
      %7234 = vmatmul.mubr.f32.gmra.mrb[0].mxu0 %v7233
      %v7235 = vpop.f32.mrb[0].mxu0
      %v7236 = vadd.f32 %v7148, %v7235
      %v7237 = vpop.f32.mrb[0].mxu0
      %v7238 = vadd.f32 %v7150, %v7237
      %7239 = vdwg.mxu0
      %v7240 = vadd.f32 %v6530, %v7236
      %v7241 = vadd.f32 %v6531, %v7238
      %s7242 = scalar_lea.vmem %s3, 64
      %v7243 = vld [vmem:[%s7242] sm:$0xff]
      %7244 = vrot.lane.b32.xlu0 %v1591, 90
      %v7245 = vpop.permute.xlu0 %7244
      %7246 = vrot.lane.b32.xlu0 %v1592, 90
      %v7247 = vpop.permute.xlu0 %7246
      %7248 = vrot.lane.b32.xlu0 %v1593, 90
      %v7249 = vpop.permute.xlu0 %7248
      %7250 = vrot.lane.b32.xlu0 %v1594, 90
      %v7251 = vpop.permute.xlu0 %7250
      %7252 = vrot.lane.b32.xlu0 %v1595, 90
      %v7253 = vpop.permute.xlu0 %7252
      %7254 = vrot.lane.b32.xlu0 %v1596, 90
      %v7255 = vpop.permute.xlu0 %7254
      %7256 = vrot.lane.b32.xlu0 %v1597, 90
      %v7257 = vpop.permute.xlu0 %7256
      %7258 = vrot.lane.b32.xlu0 %v1598, 90
      %v7259 = vpop.permute.xlu0 %7258
      %7260 = vrot.lane.b32.xlu0 %v1599, 90
      %v7261 = vpop.permute.xlu0 %7260
      %7262 = vrot.lane.b32.xlu0 %v1600, 90
      %v7263 = vpop.permute.xlu0 %7262
      %7264 = vrot.lane.b32.xlu0 %v1601, 90
      %v7265 = vpop.permute.xlu0 %7264
      %7266 = vrot.lane.b32.xlu0 %v1602, 90
      %v7267 = vpop.permute.xlu0 %7266
      %7268 = vrot.lane.b32.xlu0 %v1603, 90
      %v7269 = vpop.permute.xlu0 %7268
      %7270 = vrot.lane.b32.xlu0 %v1604, 90
      %v7271 = vpop.permute.xlu0 %7270
      %7272 = vrot.lane.b32.xlu0 %v1605, 90
      %v7273 = vpop.permute.xlu0 %7272
      %7274 = vrot.lane.b32.xlu0 %v1606, 90
      %v7275 = vpop.permute.xlu0 %7274
      %v7276 = vsel %vm391, %v7245, %v7247
      %v7277 = vsel %vm391, %v7249, %v7251
      %v7278 = vsel %vm391, %v7253, %v7255
      %v7279 = vsel %vm391, %v7257, %v7259
      %v7280 = vsel %vm391, %v7261, %v7263
      %v7281 = vsel %vm391, %v7265, %v7267
      %v7282 = vsel %vm391, %v7269, %v7271
      %v7283 = vsel %vm391, %v7273, %v7275
      %v7301 = vsel %vm1681, %v7243, 0
      %v7303 = vand.u32 %v7247, 4294901760
      %7304 = vmatprep.subr.mxu0 %v7303
      %v7305 = vand.u32 %v7276, 4294901760
      %7306 = vmatpush1.msra.mxu0 %v7305
      %v7307 = vand.u32 %v7251, 4294901760
      %7308 = vmatprep.subr.mxu0 %v7307
      %v7309 = vand.u32 %v7277, 4294901760
      %7310 = vmatpush1.msra.mxu0 %v7309
      %v7311 = vand.u32 %v7255, 4294901760
      %7312 = vmatprep.subr.mxu0 %v7311
      %v7313 = vand.u32 %v7278, 4294901760
      %7314 = vmatpush1.msra.mxu0 %v7313
      %v7315 = vand.u32 %v7259, 4294901760
      %7316 = vmatprep.subr.mxu0 %v7315
      %v7317 = vand.u32 %v7279, 4294901760
      %7318 = vmatpush1.msra.mxu0 %v7317
      %v7319 = vand.u32 %v7263, 4294901760
      %7320 = vmatprep.subr.mxu0 %v7319
      %v7321 = vand.u32 %v7280, 4294901760
      %7322 = vmatpush1.msra.mxu0 %v7321
      %v7323 = vand.u32 %v7267, 4294901760
      %7324 = vmatprep.subr.mxu0 %v7323
      %v7325 = vand.u32 %v7281, 4294901760
      %7326 = vmatpush1.msra.mxu0 %v7325
      %v7327 = vand.u32 %v7271, 4294901760
      %7328 = vmatprep.subr.mxu0 %v7327
      %v7329 = vand.u32 %v7282, 4294901760
      %7330 = vmatpush1.msra.mxu0 %v7329
      %v7331 = vand.u32 %v7275, 4294901760
      %7332 = vmatprep.subr.mxu0 %v7331
      %v7333 = vand.u32 %v7283, 4294901760
      %7334 = vmatpush1.msra.mxu0 %v7333
      %7335 = vmatprep.subr.mxu0 0.0
      %7336 = vmatpush1.msra.mxu0 0.0
      %7337 = vmatprep.subr.mxu0 0.0
      %7338 = vmatpush1.msra.mxu0 0.0
      %7339 = vmatprep.subr.mxu0 0.0
      %7340 = vmatpush1.msra.mxu0 0.0
      %7341 = vmatprep.subr.mxu0 0.0
      %7342 = vmatpush1.msra.mxu0 0.0
      %7343 = vmatprep.subr.mxu0 0.0
      %7344 = vmatpush1.msra.mxu0 0.0
      %7345 = vmatprep.subr.mxu0 0.0
      %7346 = vmatpush1.msra.mxu0 0.0
      %7347 = vmatprep.subr.mxu0 0.0
      %7348 = vmatpush1.msra.mxu0 0.0
      %7349 = vmatprep.subr.mxu0 0.0
      %7350 = vmatpush1.msra.mxu0 0.0
      %7351 = vmatprep.subr.mxu0 0.0
      %7352 = vmatpush1.msra.mxu0 0.0
      %7353 = vmatprep.subr.mxu0 0.0
      %7354 = vmatpush1.msra.mxu0 0.0
      %7355 = vmatprep.subr.mxu0 0.0
      %7356 = vmatpush1.msra.mxu0 0.0
      %7357 = vmatprep.subr.mxu0 0.0
      %7358 = vmatpush1.msra.mxu0 0.0
      %7359 = vmatprep.subr.mxu0 0.0
      %7360 = vmatpush1.msra.mxu0 0.0
      %7361 = vmatprep.subr.mxu0 0.0
      %7362 = vmatpush1.msra.mxu0 0.0
      %7363 = vmatprep.subr.mxu0 0.0
      %7364 = vmatpush1.msra.mxu0 0.0
      %7365 = vmatprep.subr.mxu0 0.0
      %7366 = vmatpush1.msra.mxu0 0.0
      %7367 = vmatprep.subr.mxu0 0.0
      %7368 = vmatpush1.msra.mxu0 0.0
      %7369 = vmatprep.subr.mxu0 0.0
      %7370 = vmatpush1.msra.mxu0 0.0
      %7371 = vmatprep.subr.mxu0 0.0
      %7372 = vmatpush1.msra.mxu0 0.0
      %7373 = vmatprep.subr.mxu0 0.0
      %7374 = vmatpush1.msra.mxu0 0.0
      %7375 = vmatprep.subr.mxu0 0.0
      %7376 = vmatpush1.msra.mxu0 0.0
      %7377 = vmatprep.subr.mxu0 0.0
      %7378 = vmatpush1.msra.mxu0 0.0
      %7379 = vmatprep.subr.mxu0 0.0
      %7380 = vmatpush1.msra.mxu0 0.0
      %7381 = vmatprep.subr.mxu0 0.0
      %7382 = vmatpush1.msra.mxu0 0.0
      %7383 = vmatprep.mubr.f32.mxu0 0.0
      %v7384 = vand.u32 %v7301, 4294901760
      %v7385 = vsub.f32 %v7301, %v7384
      %v7386 = vand.u32 %v7385, 4294901760
      %v7387 = vsub.f32 %v7385, %v7386
      %v7388 = vand.u32 %v7387, 4294901760
      %7389 = vmatmul.mubr.f32.gmra.mrb[0].mxu0 %v7388
      %v7390 = vpop.f32.mrb[0].mxu0
      %v7391 = vadd.f32 0.0, %v7390
      %v7392 = vpop.f32.mrb[0].mxu0
      %v7393 = vadd.f32 0.0, %v7392
      %7394 = vdwg.mxu0
      %v7395 = vand.u32 %v7247, 4294901760
      %v7396 = vsub.f32 %v7247, %v7395
      %v7397 = vand.u32 %v7396, 4294901760
      %v7398 = vsub.f32 %v7396, %v7397
      %v7399 = vand.u32 %v7398, 4294901760
      %7400 = vmatprep.subr.mxu0 %v7399
      %v7401 = vand.u32 %v7276, 4294901760
      %v7402 = vsub.f32 %v7276, %v7401
      %v7403 = vand.u32 %v7402, 4294901760
      %v7404 = vsub.f32 %v7402, %v7403
      %v7405 = vand.u32 %v7404, 4294901760
      %7406 = vmatpush1.msra.mxu0 %v7405
      %v7407 = vand.u32 %v7251, 4294901760
      %v7408 = vsub.f32 %v7251, %v7407
      %v7409 = vand.u32 %v7408, 4294901760
      %v7410 = vsub.f32 %v7408, %v7409
      %v7411 = vand.u32 %v7410, 4294901760
      %7412 = vmatprep.subr.mxu0 %v7411
      %v7413 = vand.u32 %v7277, 4294901760
      %v7414 = vsub.f32 %v7277, %v7413
      %v7415 = vand.u32 %v7414, 4294901760
      %v7416 = vsub.f32 %v7414, %v7415
      %v7417 = vand.u32 %v7416, 4294901760
      %7418 = vmatpush1.msra.mxu0 %v7417
      %v7419 = vand.u32 %v7255, 4294901760
      %v7420 = vsub.f32 %v7255, %v7419
      %v7421 = vand.u32 %v7420, 4294901760
      %v7422 = vsub.f32 %v7420, %v7421
      %v7423 = vand.u32 %v7422, 4294901760
      %7424 = vmatprep.subr.mxu0 %v7423
      %v7425 = vand.u32 %v7278, 4294901760
      %v7426 = vsub.f32 %v7278, %v7425
      %v7427 = vand.u32 %v7426, 4294901760
      %v7428 = vsub.f32 %v7426, %v7427
      %v7429 = vand.u32 %v7428, 4294901760
      %7430 = vmatpush1.msra.mxu0 %v7429
      %v7431 = vand.u32 %v7259, 4294901760
      %v7432 = vsub.f32 %v7259, %v7431
      %v7433 = vand.u32 %v7432, 4294901760
      %v7434 = vsub.f32 %v7432, %v7433
      %v7435 = vand.u32 %v7434, 4294901760
      %7436 = vmatprep.subr.mxu0 %v7435
      %v7437 = vand.u32 %v7279, 4294901760
      %v7438 = vsub.f32 %v7279, %v7437
      %v7439 = vand.u32 %v7438, 4294901760
      %v7440 = vsub.f32 %v7438, %v7439
      %v7441 = vand.u32 %v7440, 4294901760
      %7442 = vmatpush1.msra.mxu0 %v7441
      %v7443 = vand.u32 %v7263, 4294901760
      %v7444 = vsub.f32 %v7263, %v7443
      %v7445 = vand.u32 %v7444, 4294901760
      %v7446 = vsub.f32 %v7444, %v7445
      %v7447 = vand.u32 %v7446, 4294901760
      %7448 = vmatprep.subr.mxu0 %v7447
      %v7449 = vand.u32 %v7280, 4294901760
      %v7450 = vsub.f32 %v7280, %v7449
      %v7451 = vand.u32 %v7450, 4294901760
      %v7452 = vsub.f32 %v7450, %v7451
      %v7453 = vand.u32 %v7452, 4294901760
      %7454 = vmatpush1.msra.mxu0 %v7453
      %v7455 = vand.u32 %v7267, 4294901760
      %v7456 = vsub.f32 %v7267, %v7455
      %v7457 = vand.u32 %v7456, 4294901760
      %v7458 = vsub.f32 %v7456, %v7457
      %v7459 = vand.u32 %v7458, 4294901760
      %7460 = vmatprep.subr.mxu0 %v7459
      %v7461 = vand.u32 %v7281, 4294901760
      %v7462 = vsub.f32 %v7281, %v7461
      %v7463 = vand.u32 %v7462, 4294901760
      %v7464 = vsub.f32 %v7462, %v7463
      %v7465 = vand.u32 %v7464, 4294901760
      %7466 = vmatpush1.msra.mxu0 %v7465
      %v7467 = vand.u32 %v7271, 4294901760
      %v7468 = vsub.f32 %v7271, %v7467
      %v7469 = vand.u32 %v7468, 4294901760
      %v7470 = vsub.f32 %v7468, %v7469
      %v7471 = vand.u32 %v7470, 4294901760
      %7472 = vmatprep.subr.mxu0 %v7471
      %v7473 = vand.u32 %v7282, 4294901760
      %v7474 = vsub.f32 %v7282, %v7473
      %v7475 = vand.u32 %v7474, 4294901760
      %v7476 = vsub.f32 %v7474, %v7475
      %v7477 = vand.u32 %v7476, 4294901760
      %7478 = vmatpush1.msra.mxu0 %v7477
      %v7479 = vand.u32 %v7275, 4294901760
      %v7480 = vsub.f32 %v7275, %v7479
      %v7481 = vand.u32 %v7480, 4294901760
      %v7482 = vsub.f32 %v7480, %v7481
      %v7483 = vand.u32 %v7482, 4294901760
      %7484 = vmatprep.subr.mxu0 %v7483
      %v7485 = vand.u32 %v7283, 4294901760
      %v7486 = vsub.f32 %v7283, %v7485
      %v7487 = vand.u32 %v7486, 4294901760
      %v7488 = vsub.f32 %v7486, %v7487
      %v7489 = vand.u32 %v7488, 4294901760
      %7490 = vmatpush1.msra.mxu0 %v7489
      %7491 = vmatprep.subr.mxu0 0.0
      %7492 = vmatpush1.msra.mxu0 0.0
      %7493 = vmatprep.subr.mxu0 0.0
      %7494 = vmatpush1.msra.mxu0 0.0
      %7495 = vmatprep.subr.mxu0 0.0
      %7496 = vmatpush1.msra.mxu0 0.0
      %7497 = vmatprep.subr.mxu0 0.0
      %7498 = vmatpush1.msra.mxu0 0.0
      %7499 = vmatprep.subr.mxu0 0.0
      %7500 = vmatpush1.msra.mxu0 0.0
      %7501 = vmatprep.subr.mxu0 0.0
      %7502 = vmatpush1.msra.mxu0 0.0
      %7503 = vmatprep.subr.mxu0 0.0
      %7504 = vmatpush1.msra.mxu0 0.0
      %7505 = vmatprep.subr.mxu0 0.0
      %7506 = vmatpush1.msra.mxu0 0.0
      %7507 = vmatprep.subr.mxu0 0.0
      %7508 = vmatpush1.msra.mxu0 0.0
      %7509 = vmatprep.subr.mxu0 0.0
      %7510 = vmatpush1.msra.mxu0 0.0
      %7511 = vmatprep.subr.mxu0 0.0
      %7512 = vmatpush1.msra.mxu0 0.0
      %7513 = vmatprep.subr.mxu0 0.0
      %7514 = vmatpush1.msra.mxu0 0.0
      %7515 = vmatprep.subr.mxu0 0.0
      %7516 = vmatpush1.msra.mxu0 0.0
      %7517 = vmatprep.subr.mxu0 0.0
      %7518 = vmatpush1.msra.mxu0 0.0
      %7519 = vmatprep.subr.mxu0 0.0
      %7520 = vmatpush1.msra.mxu0 0.0
      %7521 = vmatprep.subr.mxu0 0.0
      %7522 = vmatpush1.msra.mxu0 0.0
      %7523 = vmatprep.subr.mxu0 0.0
      %7524 = vmatpush1.msra.mxu0 0.0
      %7525 = vmatprep.subr.mxu0 0.0
      %7526 = vmatpush1.msra.mxu0 0.0
      %7527 = vmatprep.subr.mxu0 0.0
      %7528 = vmatpush1.msra.mxu0 0.0
      %7529 = vmatprep.subr.mxu0 0.0
      %7530 = vmatpush1.msra.mxu0 0.0
      %7531 = vmatprep.subr.mxu0 0.0
      %7532 = vmatpush1.msra.mxu0 0.0
      %7533 = vmatprep.subr.mxu0 0.0
      %7534 = vmatpush1.msra.mxu0 0.0
      %7535 = vmatprep.subr.mxu0 0.0
      %7536 = vmatpush1.msra.mxu0 0.0
      %7537 = vmatprep.subr.mxu0 0.0
      %7538 = vmatpush1.msra.mxu0 0.0
      %7539 = vmatprep.mubr.f32.mxu0 0.0
      %v7540 = vand.u32 %v7301, 4294901760
      %7541 = vmatmul.mubr.f32.gmra.mrb[0].mxu0 %v7540
      %v7542 = vpop.f32.mrb[0].mxu0
      %v7543 = vadd.f32 %v7391, %v7542
      %v7544 = vpop.f32.mrb[0].mxu0
      %v7545 = vadd.f32 %v7393, %v7544
      %7546 = vdwg.mxu0
      %v7547 = vand.u32 %v7247, 4294901760
      %v7548 = vsub.f32 %v7247, %v7547
      %7549 = vmatprep.subr.mxu0 %v7548
      %v7550 = vand.u32 %v7276, 4294901760
      %v7551 = vsub.f32 %v7276, %v7550
      %7552 = vmatpush1.msra.mxu0 %v7551
      %v7553 = vand.u32 %v7251, 4294901760
      %v7554 = vsub.f32 %v7251, %v7553
      %7555 = vmatprep.subr.mxu0 %v7554
      %v7556 = vand.u32 %v7277, 4294901760
      %v7557 = vsub.f32 %v7277, %v7556
      %7558 = vmatpush1.msra.mxu0 %v7557
      %v7559 = vand.u32 %v7255, 4294901760
      %v7560 = vsub.f32 %v7255, %v7559
      %7561 = vmatprep.subr.mxu0 %v7560
      %v7562 = vand.u32 %v7278, 4294901760
      %v7563 = vsub.f32 %v7278, %v7562
      %7564 = vmatpush1.msra.mxu0 %v7563
      %v7565 = vand.u32 %v7259, 4294901760
      %v7566 = vsub.f32 %v7259, %v7565
      %7567 = vmatprep.subr.mxu0 %v7566
      %v7568 = vand.u32 %v7279, 4294901760
      %v7569 = vsub.f32 %v7279, %v7568
      %7570 = vmatpush1.msra.mxu0 %v7569
      %v7571 = vand.u32 %v7263, 4294901760
      %v7572 = vsub.f32 %v7263, %v7571
      %7573 = vmatprep.subr.mxu0 %v7572
      %v7574 = vand.u32 %v7280, 4294901760
      %v7575 = vsub.f32 %v7280, %v7574
      %7576 = vmatpush1.msra.mxu0 %v7575
      %v7577 = vand.u32 %v7267, 4294901760
      %v7578 = vsub.f32 %v7267, %v7577
      %7579 = vmatprep.subr.mxu0 %v7578
      %v7580 = vand.u32 %v7281, 4294901760
      %v7581 = vsub.f32 %v7281, %v7580
      %7582 = vmatpush1.msra.mxu0 %v7581
      %v7583 = vand.u32 %v7271, 4294901760
      %v7584 = vsub.f32 %v7271, %v7583
      %7585 = vmatprep.subr.mxu0 %v7584
      %v7586 = vand.u32 %v7282, 4294901760
      %v7587 = vsub.f32 %v7282, %v7586
      %7588 = vmatpush1.msra.mxu0 %v7587
      %v7589 = vand.u32 %v7275, 4294901760
      %v7590 = vsub.f32 %v7275, %v7589
      %7591 = vmatprep.subr.mxu0 %v7590
      %v7592 = vand.u32 %v7283, 4294901760
      %v7593 = vsub.f32 %v7283, %v7592
      %7594 = vmatpush1.msra.mxu0 %v7593
      %7595 = vmatprep.subr.mxu0 0.0
      %7596 = vmatpush1.msra.mxu0 0.0
      %7597 = vmatprep.subr.mxu0 0.0
      %7598 = vmatpush1.msra.mxu0 0.0
      %7599 = vmatprep.subr.mxu0 0.0
      %7600 = vmatpush1.msra.mxu0 0.0
      %7601 = vmatprep.subr.mxu0 0.0
      %7602 = vmatpush1.msra.mxu0 0.0
      %7603 = vmatprep.subr.mxu0 0.0
      %7604 = vmatpush1.msra.mxu0 0.0
      %7605 = vmatprep.subr.mxu0 0.0
      %7606 = vmatpush1.msra.mxu0 0.0
      %7607 = vmatprep.subr.mxu0 0.0
      %7608 = vmatpush1.msra.mxu0 0.0
      %7609 = vmatprep.subr.mxu0 0.0
      %7610 = vmatpush1.msra.mxu0 0.0
      %7611 = vmatprep.subr.mxu0 0.0
      %7612 = vmatpush1.msra.mxu0 0.0
      %7613 = vmatprep.subr.mxu0 0.0
      %7614 = vmatpush1.msra.mxu0 0.0
      %7615 = vmatprep.subr.mxu0 0.0
      %7616 = vmatpush1.msra.mxu0 0.0
      %7617 = vmatprep.subr.mxu0 0.0
      %7618 = vmatpush1.msra.mxu0 0.0
      %7619 = vmatprep.subr.mxu0 0.0
      %7620 = vmatpush1.msra.mxu0 0.0
      %7621 = vmatprep.subr.mxu0 0.0
      %7622 = vmatpush1.msra.mxu0 0.0
      %7623 = vmatprep.subr.mxu0 0.0
      %7624 = vmatpush1.msra.mxu0 0.0
      %7625 = vmatprep.subr.mxu0 0.0
      %7626 = vmatpush1.msra.mxu0 0.0
      %7627 = vmatprep.subr.mxu0 0.0
      %7628 = vmatpush1.msra.mxu0 0.0
      %7629 = vmatprep.subr.mxu0 0.0
      %7630 = vmatpush1.msra.mxu0 0.0
      %7631 = vmatprep.subr.mxu0 0.0
      %7632 = vmatpush1.msra.mxu0 0.0
      %7633 = vmatprep.subr.mxu0 0.0
      %7634 = vmatpush1.msra.mxu0 0.0
      %7635 = vmatprep.subr.mxu0 0.0
      %7636 = vmatpush1.msra.mxu0 0.0
      %7637 = vmatprep.subr.mxu0 0.0
      %7638 = vmatpush1.msra.mxu0 0.0
      %7639 = vmatprep.subr.mxu0 0.0
      %7640 = vmatpush1.msra.mxu0 0.0
      %7641 = vmatprep.subr.mxu0 0.0
      %7642 = vmatpush1.msra.mxu0 0.0
      %7643 = vmatprep.mubr.f32.mxu0 0.0
      %v7644 = vand.u32 %v7301, 4294901760
      %v7645 = vsub.f32 %v7301, %v7644
      %7646 = vmatmul.mubr.f32.gmra.mrb[0].mxu0 %v7645
      %v7647 = vpop.f32.mrb[0].mxu0
      %v7648 = vadd.f32 %v7543, %v7647
      %v7649 = vpop.f32.mrb[0].mxu0
      %v7650 = vadd.f32 %v7545, %v7649
      %7651 = vdwg.mxu0
      %v7652 = vand.u32 %v7247, 4294901760
      %7653 = vmatprep.subr.mxu0 %v7652
      %v7654 = vand.u32 %v7276, 4294901760
      %7655 = vmatpush1.msra.mxu0 %v7654
      %v7656 = vand.u32 %v7251, 4294901760
      %7657 = vmatprep.subr.mxu0 %v7656
      %v7658 = vand.u32 %v7277, 4294901760
      %7659 = vmatpush1.msra.mxu0 %v7658
      %v7660 = vand.u32 %v7255, 4294901760
      %7661 = vmatprep.subr.mxu0 %v7660
      %v7662 = vand.u32 %v7278, 4294901760
      %7663 = vmatpush1.msra.mxu0 %v7662
      %v7664 = vand.u32 %v7259, 4294901760
      %7665 = vmatprep.subr.mxu0 %v7664
      %v7666 = vand.u32 %v7279, 4294901760
      %7667 = vmatpush1.msra.mxu0 %v7666
      %v7668 = vand.u32 %v7263, 4294901760
      %7669 = vmatprep.subr.mxu0 %v7668
      %v7670 = vand.u32 %v7280, 4294901760
      %7671 = vmatpush1.msra.mxu0 %v7670
      %v7672 = vand.u32 %v7267, 4294901760
      %7673 = vmatprep.subr.mxu0 %v7672
      %v7674 = vand.u32 %v7281, 4294901760
      %7675 = vmatpush1.msra.mxu0 %v7674
      %v7676 = vand.u32 %v7271, 4294901760
      %7677 = vmatprep.subr.mxu0 %v7676
      %v7678 = vand.u32 %v7282, 4294901760
      %7679 = vmatpush1.msra.mxu0 %v7678
      %v7680 = vand.u32 %v7275, 4294901760
      %7681 = vmatprep.subr.mxu0 %v7680
      %v7682 = vand.u32 %v7283, 4294901760
      %7683 = vmatpush1.msra.mxu0 %v7682
      %7684 = vmatprep.subr.mxu0 0.0
      %7685 = vmatpush1.msra.mxu0 0.0
      %7686 = vmatprep.subr.mxu0 0.0
      %7687 = vmatpush1.msra.mxu0 0.0
      %7688 = vmatprep.subr.mxu0 0.0
      %7689 = vmatpush1.msra.mxu0 0.0
      %7690 = vmatprep.subr.mxu0 0.0
      %7691 = vmatpush1.msra.mxu0 0.0
      %7692 = vmatprep.subr.mxu0 0.0
      %7693 = vmatpush1.msra.mxu0 0.0
      %7694 = vmatprep.subr.mxu0 0.0
      %7695 = vmatpush1.msra.mxu0 0.0
      %7696 = vmatprep.subr.mxu0 0.0
      %7697 = vmatpush1.msra.mxu0 0.0
      %7698 = vmatprep.subr.mxu0 0.0
      %7699 = vmatpush1.msra.mxu0 0.0
      %7700 = vmatprep.subr.mxu0 0.0
      %7701 = vmatpush1.msra.mxu0 0.0
      %7702 = vmatprep.subr.mxu0 0.0
      %7703 = vmatpush1.msra.mxu0 0.0
      %7704 = vmatprep.subr.mxu0 0.0
      %7705 = vmatpush1.msra.mxu0 0.0
      %7706 = vmatprep.subr.mxu0 0.0
      %7707 = vmatpush1.msra.mxu0 0.0
      %7708 = vmatprep.subr.mxu0 0.0
      %7709 = vmatpush1.msra.mxu0 0.0
      %7710 = vmatprep.subr.mxu0 0.0
      %7711 = vmatpush1.msra.mxu0 0.0
      %7712 = vmatprep.subr.mxu0 0.0
      %7713 = vmatpush1.msra.mxu0 0.0
      %7714 = vmatprep.subr.mxu0 0.0
      %7715 = vmatpush1.msra.mxu0 0.0
      %7716 = vmatprep.subr.mxu0 0.0
      %7717 = vmatpush1.msra.mxu0 0.0
      %7718 = vmatprep.subr.mxu0 0.0
      %7719 = vmatpush1.msra.mxu0 0.0
      %7720 = vmatprep.subr.mxu0 0.0
      %7721 = vmatpush1.msra.mxu0 0.0
      %7722 = vmatprep.subr.mxu0 0.0
      %7723 = vmatpush1.msra.mxu0 0.0
      %7724 = vmatprep.subr.mxu0 0.0
      %7725 = vmatpush1.msra.mxu0 0.0
      %7726 = vmatprep.subr.mxu0 0.0
      %7727 = vmatpush1.msra.mxu0 0.0
      %7728 = vmatprep.subr.mxu0 0.0
      %7729 = vmatpush1.msra.mxu0 0.0
      %7730 = vmatprep.subr.mxu0 0.0
      %7731 = vmatpush1.msra.mxu0 0.0
      %7732 = vmatprep.mubr.f32.mxu0 0.0
      %v7733 = vand.u32 %v7301, 4294901760
      %v7734 = vsub.f32 %v7301, %v7733
      %v7735 = vand.u32 %v7734, 4294901760
      %7736 = vmatmul.mubr.f32.gmra.mrb[0].mxu0 %v7735
      %v7737 = vpop.f32.mrb[0].mxu0
      %v7738 = vadd.f32 %v7648, %v7737
      %v7739 = vpop.f32.mrb[0].mxu0
      %v7740 = vadd.f32 %v7650, %v7739
      %7741 = vdwg.mxu0
      %v7742 = vand.u32 %v7247, 4294901760
      %v7743 = vsub.f32 %v7247, %v7742
      %v7744 = vand.u32 %v7743, 4294901760
      %7745 = vmatprep.subr.mxu0 %v7744
      %v7746 = vand.u32 %v7276, 4294901760
      %v7747 = vsub.f32 %v7276, %v7746
      %v7748 = vand.u32 %v7747, 4294901760
      %7749 = vmatpush1.msra.mxu0 %v7748
      %v7750 = vand.u32 %v7251, 4294901760
      %v7751 = vsub.f32 %v7251, %v7750
      %v7752 = vand.u32 %v7751, 4294901760
      %7753 = vmatprep.subr.mxu0 %v7752
      %v7754 = vand.u32 %v7277, 4294901760
      %v7755 = vsub.f32 %v7277, %v7754
      %v7756 = vand.u32 %v7755, 4294901760
      %7757 = vmatpush1.msra.mxu0 %v7756
      %v7758 = vand.u32 %v7255, 4294901760
      %v7759 = vsub.f32 %v7255, %v7758
      %v7760 = vand.u32 %v7759, 4294901760
      %7761 = vmatprep.subr.mxu0 %v7760
      %v7762 = vand.u32 %v7278, 4294901760
      %v7763 = vsub.f32 %v7278, %v7762
      %v7764 = vand.u32 %v7763, 4294901760
      %7765 = vmatpush1.msra.mxu0 %v7764
      %v7766 = vand.u32 %v7259, 4294901760
      %v7767 = vsub.f32 %v7259, %v7766
      %v7768 = vand.u32 %v7767, 4294901760
      %7769 = vmatprep.subr.mxu0 %v7768
      %v7770 = vand.u32 %v7279, 4294901760
      %v7771 = vsub.f32 %v7279, %v7770
      %v7772 = vand.u32 %v7771, 4294901760
      %7773 = vmatpush1.msra.mxu0 %v7772
      %v7774 = vand.u32 %v7263, 4294901760
      %v7775 = vsub.f32 %v7263, %v7774
      %v7776 = vand.u32 %v7775, 4294901760
      %7777 = vmatprep.subr.mxu0 %v7776
      %v7778 = vand.u32 %v7280, 4294901760
      %v7779 = vsub.f32 %v7280, %v7778
      %v7780 = vand.u32 %v7779, 4294901760
      %7781 = vmatpush1.msra.mxu0 %v7780
      %v7782 = vand.u32 %v7267, 4294901760
      %v7783 = vsub.f32 %v7267, %v7782
      %v7784 = vand.u32 %v7783, 4294901760
      %7785 = vmatprep.subr.mxu0 %v7784
      %v7786 = vand.u32 %v7281, 4294901760
      %v7787 = vsub.f32 %v7281, %v7786
      %v7788 = vand.u32 %v7787, 4294901760
      %7789 = vmatpush1.msra.mxu0 %v7788
      %v7790 = vand.u32 %v7271, 4294901760
      %v7791 = vsub.f32 %v7271, %v7790
      %v7792 = vand.u32 %v7791, 4294901760
      %7793 = vmatprep.subr.mxu0 %v7792
      %v7794 = vand.u32 %v7282, 4294901760
      %v7795 = vsub.f32 %v7282, %v7794
      %v7796 = vand.u32 %v7795, 4294901760
      %7797 = vmatpush1.msra.mxu0 %v7796
      %v7798 = vand.u32 %v7275, 4294901760
      %v7799 = vsub.f32 %v7275, %v7798
      %v7800 = vand.u32 %v7799, 4294901760
      %7801 = vmatprep.subr.mxu0 %v7800
      %v7802 = vand.u32 %v7283, 4294901760
      %v7803 = vsub.f32 %v7283, %v7802
      %v7804 = vand.u32 %v7803, 4294901760
      %7805 = vmatpush1.msra.mxu0 %v7804
      %7806 = vmatprep.subr.mxu0 0.0
      %7807 = vmatpush1.msra.mxu0 0.0
      %7808 = vmatprep.subr.mxu0 0.0
      %7809 = vmatpush1.msra.mxu0 0.0
      %7810 = vmatprep.subr.mxu0 0.0
      %7811 = vmatpush1.msra.mxu0 0.0
      %7812 = vmatprep.subr.mxu0 0.0
      %7813 = vmatpush1.msra.mxu0 0.0
      %7814 = vmatprep.subr.mxu0 0.0
      %7815 = vmatpush1.msra.mxu0 0.0
      %7816 = vmatprep.subr.mxu0 0.0
      %7817 = vmatpush1.msra.mxu0 0.0
      %7818 = vmatprep.subr.mxu0 0.0
      %7819 = vmatpush1.msra.mxu0 0.0
      %7820 = vmatprep.subr.mxu0 0.0
      %7821 = vmatpush1.msra.mxu0 0.0
      %7822 = vmatprep.subr.mxu0 0.0
      %7823 = vmatpush1.msra.mxu0 0.0
      %7824 = vmatprep.subr.mxu0 0.0
      %7825 = vmatpush1.msra.mxu0 0.0
      %7826 = vmatprep.subr.mxu0 0.0
      %7827 = vmatpush1.msra.mxu0 0.0
      %7828 = vmatprep.subr.mxu0 0.0
      %7829 = vmatpush1.msra.mxu0 0.0
      %7830 = vmatprep.subr.mxu0 0.0
      %7831 = vmatpush1.msra.mxu0 0.0
      %7832 = vmatprep.subr.mxu0 0.0
      %7833 = vmatpush1.msra.mxu0 0.0
      %7834 = vmatprep.subr.mxu0 0.0
      %7835 = vmatpush1.msra.mxu0 0.0
      %7836 = vmatprep.subr.mxu0 0.0
      %7837 = vmatpush1.msra.mxu0 0.0
      %7838 = vmatprep.subr.mxu0 0.0
      %7839 = vmatpush1.msra.mxu0 0.0
      %7840 = vmatprep.subr.mxu0 0.0
      %7841 = vmatpush1.msra.mxu0 0.0
      %7842 = vmatprep.subr.mxu0 0.0
      %7843 = vmatpush1.msra.mxu0 0.0
      %7844 = vmatprep.subr.mxu0 0.0
      %7845 = vmatpush1.msra.mxu0 0.0
      %7846 = vmatprep.subr.mxu0 0.0
      %7847 = vmatpush1.msra.mxu0 0.0
      %7848 = vmatprep.subr.mxu0 0.0
      %7849 = vmatpush1.msra.mxu0 0.0
      %7850 = vmatprep.subr.mxu0 0.0
      %7851 = vmatpush1.msra.mxu0 0.0
      %7852 = vmatprep.subr.mxu0 0.0
      %7853 = vmatpush1.msra.mxu0 0.0
      %7854 = vmatprep.mubr.f32.mxu0 0.0
      %v7855 = vand.u32 %v7301, 4294901760
      %7856 = vmatmul.mubr.f32.gmra.mrb[0].mxu0 %v7855
      %v7857 = vpop.f32.mrb[0].mxu0
      %v7858 = vadd.f32 %v7738, %v7857
      %v7859 = vpop.f32.mrb[0].mxu0
      %v7860 = vadd.f32 %v7740, %v7859
      %7861 = vdwg.mxu0
      %v7862 = vand.u32 %v7247, 4294901760
      %7863 = vmatprep.subr.mxu0 %v7862
      %v7864 = vand.u32 %v7276, 4294901760
      %7865 = vmatpush1.msra.mxu0 %v7864
      %v7866 = vand.u32 %v7251, 4294901760
      %7867 = vmatprep.subr.mxu0 %v7866
      %v7868 = vand.u32 %v7277, 4294901760
      %7869 = vmatpush1.msra.mxu0 %v7868
      %v7870 = vand.u32 %v7255, 4294901760
      %7871 = vmatprep.subr.mxu0 %v7870
      %v7872 = vand.u32 %v7278, 4294901760
      %7873 = vmatpush1.msra.mxu0 %v7872
      %v7874 = vand.u32 %v7259, 4294901760
      %7875 = vmatprep.subr.mxu0 %v7874
      %v7876 = vand.u32 %v7279, 4294901760
      %7877 = vmatpush1.msra.mxu0 %v7876
      %v7878 = vand.u32 %v7263, 4294901760
      %7879 = vmatprep.subr.mxu0 %v7878
      %v7880 = vand.u32 %v7280, 4294901760
      %7881 = vmatpush1.msra.mxu0 %v7880
      %v7882 = vand.u32 %v7267, 4294901760
      %7883 = vmatprep.subr.mxu0 %v7882
      %v7884 = vand.u32 %v7281, 4294901760
      %7885 = vmatpush1.msra.mxu0 %v7884
      %v7886 = vand.u32 %v7271, 4294901760
      %7887 = vmatprep.subr.mxu0 %v7886
      %v7888 = vand.u32 %v7282, 4294901760
      %7889 = vmatpush1.msra.mxu0 %v7888
      %v7890 = vand.u32 %v7275, 4294901760
      %7891 = vmatprep.subr.mxu0 %v7890
      %v7892 = vand.u32 %v7283, 4294901760
      %7893 = vmatpush1.msra.mxu0 %v7892
      %7894 = vmatprep.subr.mxu0 0.0
      %7895 = vmatpush1.msra.mxu0 0.0
      %7896 = vmatprep.subr.mxu0 0.0
      %7897 = vmatpush1.msra.mxu0 0.0
      %7898 = vmatprep.subr.mxu0 0.0
      %7899 = vmatpush1.msra.mxu0 0.0
      %7900 = vmatprep.subr.mxu0 0.0
      %7901 = vmatpush1.msra.mxu0 0.0
      %7902 = vmatprep.subr.mxu0 0.0
      %7903 = vmatpush1.msra.mxu0 0.0
      %7904 = vmatprep.subr.mxu0 0.0
      %7905 = vmatpush1.msra.mxu0 0.0
      %7906 = vmatprep.subr.mxu0 0.0
      %7907 = vmatpush1.msra.mxu0 0.0
      %7908 = vmatprep.subr.mxu0 0.0
      %7909 = vmatpush1.msra.mxu0 0.0
      %7910 = vmatprep.subr.mxu0 0.0
      %7911 = vmatpush1.msra.mxu0 0.0
      %7912 = vmatprep.subr.mxu0 0.0
      %7913 = vmatpush1.msra.mxu0 0.0
      %7914 = vmatprep.subr.mxu0 0.0
      %7915 = vmatpush1.msra.mxu0 0.0
      %7916 = vmatprep.subr.mxu0 0.0
      %7917 = vmatpush1.msra.mxu0 0.0
      %7918 = vmatprep.subr.mxu0 0.0
      %7919 = vmatpush1.msra.mxu0 0.0
      %7920 = vmatprep.subr.mxu0 0.0
      %7921 = vmatpush1.msra.mxu0 0.0
      %7922 = vmatprep.subr.mxu0 0.0
      %7923 = vmatpush1.msra.mxu0 0.0
      %7924 = vmatprep.subr.mxu0 0.0
      %7925 = vmatpush1.msra.mxu0 0.0
      %7926 = vmatprep.subr.mxu0 0.0
      %7927 = vmatpush1.msra.mxu0 0.0
      %7928 = vmatprep.subr.mxu0 0.0
      %7929 = vmatpush1.msra.mxu0 0.0
      %7930 = vmatprep.subr.mxu0 0.0
      %7931 = vmatpush1.msra.mxu0 0.0
      %7932 = vmatprep.subr.mxu0 0.0
      %7933 = vmatpush1.msra.mxu0 0.0
      %7934 = vmatprep.subr.mxu0 0.0
      %7935 = vmatpush1.msra.mxu0 0.0
      %7936 = vmatprep.subr.mxu0 0.0
      %7937 = vmatpush1.msra.mxu0 0.0
      %7938 = vmatprep.subr.mxu0 0.0
      %7939 = vmatpush1.msra.mxu0 0.0
      %7940 = vmatprep.subr.mxu0 0.0
      %7941 = vmatpush1.msra.mxu0 0.0
      %7942 = vmatprep.mubr.f32.mxu0 0.0
      %v7943 = vand.u32 %v7301, 4294901760
      %7944 = vmatmul.mubr.f32.gmra.mrb[0].mxu0 %v7943
      %v7945 = vpop.f32.mrb[0].mxu0
      %v7946 = vadd.f32 %v7858, %v7945
      %v7947 = vpop.f32.mrb[0].mxu0
      %v7948 = vadd.f32 %v7860, %v7947
      %7949 = vdwg.mxu0
      %v7950 = vadd.f32 %v7240, %v7946
      %v7951 = vadd.f32 %v7241, %v7948
      %v7952 = vld [vmem:[%s4] sm:$0x7]
      %7954 = vset.pattern.permute.xlu0 0
      %7955 = vperm.xlu0 %7954, %v7952
      %v7956 = vpop.permute.xlu0 %7955
      %v7958 = vadd.f32 %v7950, %v7956
      %v7959 = vadd.f32 %v7951, %v7956
      %v7960 = vxor.u32 %v7958, 2147483648
      %v7961 = vxor.u32 %v7959, 2147483648
      %v7962 = vmul.f32 %v7960, 1.442695
      %v7963 = vpow.pop %v7962
      %v7964 = vmul.f32 %v7961, 1.442695
      %v7965 = vpow.pop %v7964
      %v7966 = vadd.f32 %v7963, 1.0
      %v7967 = vadd.f32 %v7965, 1.0
      %v7968 = vrcp.pop %v7966
      %v7969 = vmul.f32 1.0, %v7968
      %v7970 = vrcp.pop %v7967
      %v7971 = vmul.f32 1.0, %v7970
      %v7974 = vcombine.low %v7969, %v7971
      %vm7976 = vcmask 129028
      %vm7977 = vmor %vm7976, %vm531
      %7978 = vst.msk [vmem:[%s260] sm:$0x77] %vm7977, %v7974
      %p7979 = scmp.lt.s32.totalorder %s20, 1
      %s7980 = scalar_select %p7979, %s20, 1
      %p7981 = scmp.lt.s32.totalorder %s21, 1
      %s7982 = scalar_select %p7981, %s21, 1
      %s7983 = smul.addr %s7982, 2
      %s7984 = smul.addr %s7980, 4
      %s7985 = sadd.s32 %s7983, %s7984
      %s7986 = smul.addr %s7985, 4
      %s7987 = scalar_lea.vmem %s5, %s7986
      // Predicated region
      $region49: #{dip_model_forward.1} parent=39 // pred_check
        %p7988 = pneg %p160
      $region50: #{dip_model_forward.1} parent=39 // pred_check_branch
        %7990 = sbr.rel (%p7988) target = $region52
      $region51: #{dip_model_forward.1} parent=39 // pred_region
        _
      $region52: #{dip_model_forward.1} parent=39 // pred_fallthru
        _
    $region40: #{dip_model_forward.1} parent=5 // pred_fallthru
      _
    %p7991 = scmp.le.s32.totalorder 2, %s11
    // Predicated region
    $region53: #{dip_model_forward.1} parent=5 // pred_check
      %p7992 = pneg %p7991
    $region54: #{dip_model_forward.1} parent=5 // pred_check_branch
      %7994 = sbr.rel (%p7992) target = $region56
    $region55: #{dip_model_forward.1} parent=5 // pred_region
      %s7995 = ssub.s32 %s11, 2
      // Predicated region
      $region57: #{dip_model_forward.1} parent=55 // pred_check
        %p7996 = pneg %p166
      $region58: #{dip_model_forward.1} parent=55 // pred_check_branch
        %7998 = sbr.rel (%p7996) target = $region60
      $region59: #{dip_model_forward.1} parent=55 // pred_region
        %p7999 = scmp.lt.s32.totalorder %s22, 1
        %s8000 = scalar_select %p7999, %s22, 1
        %p8001 = scmp.lt.s32.totalorder %s23, 1
        %s8002 = scalar_select %p8001, %s23, 1
        %s8003 = smul.addr %s8002, 2
        %s8004 = smul.addr %s8000, 4
        %s8005 = sadd.s32 %s8003, %s8004
        %s8006 = smul.addr %s8005, 4
        %s8007 = scalar_lea.vmem %s5, %s8006
      $region60: #{dip_model_forward.1} parent=55 // pred_fallthru
        _
    $region56: #{dip_model_forward.1} parent=5 // pred_fallthru
      _
  $region6: #{dip_model_forward.1} parent=0 // loop_footer
    %s15 = sadd.s32 1, %s11
  $region7: #{dip_model_forward.1} parent=0 // loop_footer_branch
    %10 = sbr.rel target = $region3
  $region8: #{dip_model_forward.1} parent=0 // loop_exit
    _

</llo_original>
